<compile_context>
chip_gen: v6e
topology: v6e:2x2x1
jax: 0.10.0
libtpu: 0.0.40
codegen_flags: <defaults>
</compile_context>

<pallas_src>
import jax
import jax.numpy as jnp
from jax.experimental import pallas as pl
from jax.experimental.pallas import tpu as pltpu

# ----------------------------- config (synthetic, small) -----------------------------
N_LAYERS = 2
Z_LEN = 16
FG = [8, 16, 32]          # num_features_global
FL = [8, 16, 32]          # num_features_local (FG[0] == FL[0] required by the merge)
NODES = [64, 32, 16]      # node counts per mesh level (level 0 = finest)
B = 2                     # batch size (num_graphs)
BATCH_NORM = True
GLOBAL_RATIO = 0.01
LOCAL_RATIO = 1.0 - GLOBAL_RATIO
NEG_SLOPE = 0.01          # F.leaky_relu default
BN_EPS = 1e-5


# --------------------------------- in-kernel helpers ----------------------------------
def _leaky(x):
    return jnp.where(x > 0, x, NEG_SLOPE * x)


def _mm(a, b):
    return jnp.dot(a, b, preferred_element_type=jnp.float32)


def _conv(x, a_ref, wt_ref, b_ref):
    # FeaStConv, heads=1  ==  A_norm @ (X @ W^T) + b   (BN pre-folded into wt/b)
    return _mm(a_ref[...], _mm(x, wt_ref[...])) + b_ref[...]


# ----------------------------------- kernel bodies ------------------------------------
def _encoder_body(data_refs, c, out_refs):
    (x_ref,) = data_refs
    xg_mean_ref, xl_out_ref = out_refs
    x = x_ref[0]                                                   # (N0, F0)

    # global branch: (conv[+folded bn] -> leaky -> pool) x N_LAYERS, then mean + leaky
    xg = x
    for i in range(N_LAYERS):
        wt, b = c["conv_g"][i]
        xg = _leaky(_conv(xg, c["A"][i], wt, b))
        xg = _mm(c["D"][i][...], xg)                               # downsample
    xg_mean_ref[0] = _leaky(jnp.mean(xg, axis=0, keepdims=True))   # (1, FG[-1])

    # local branch: (conv[+folded bn] -> leaky) x N_LAYERS on the finest graph
    xl = x
    for i in range(N_LAYERS):
        wt, b = c["conv_l"][i]
        xl = _leaky(_conv(xl, c["A"][0], wt, b))
    xl_out_ref[0] = xl                                             # (N0, FL[-1])


def _bottleneck_body(data_refs, c, out_refs):
    xg_mean_ref, xl_flat_ref = data_refs
    z_ref, xg_out_ref, xl_lin_ref = out_refs

    # encoder tail: local flatten-linear -> leaky, "concat" + encoder_lin -> z
    wt, b = c["enc_local_lin"]
    hl = _leaky(_mm(xl_flat_ref[0], wt[...]) + b[...])             # (1, Z)
    wg, wl, be = c["enc_lin"]                                      # pre-split: no in-kernel concat
    z = _mm(xg_mean_ref[0], wg[...]) + _mm(hl, wl[...]) + be[...]  # (1, Z)
    z_ref[0] = z

    # decoder head: dec_lin with pre-split output columns (no in-kernel slicing)
    wdg, wdl, bg, bl = c["dec_lin"]
    xg0 = _mm(z, wdg[...]) + bg[...]                               # (1, FG[-1])
    xl0 = _mm(z, wdl[...]) + bl[...]                               # (1, Z)

    # decoder global branch.  The latent is broadcast over the coarsest mesh before the
    # first upsample, so  U[-1] @ broadcast(xg0)  ==  rowsum(U[-1]) * xg0  (rank-1),
    # computed as a cheap VPU broadcast-multiply instead of broadcast_to + matmul.
    xg = c["Usum"][...] * xg0                                      # (NODES[-2], FG[-1])
    for i in range(N_LAYERS):
        if i > 0:
            xg = _mm(c["U"][N_LAYERS - 1 - i][...], xg)            # remaining upsamples
        wt, b = c["conv_g"][i]
        xg = _conv(xg, c["A"][N_LAYERS - 1 - i], wt, b)
        if i < N_LAYERS - 1:
            xg = _leaky(xg)                                        # bn already folded
    xg_out_ref[0] = xg                                             # (N0, FG[0])

    # decoder local linear (kept flat; unflattened by a free reshape outside)
    wt, b = c["dec_local_lin"]
    xl_lin_ref[0] = _mm(xl0, wt[...]) + b[...]                     # (1, N0 * FL[-1])


def _decoder_local_body(data_refs, c, out_refs):
    xl_ref, xg_ref = data_refs
    (out_ref,) = out_refs
    xl = xl_ref[0]                                                 # (N0, FL[-1])
    for i in range(N_LAYERS):
        wt, b = c["conv_l"][i]
        xl = _conv(xl, c["A0"], wt, b)
        if i < N_LAYERS - 1:
            xl = _leaky(xl)                                        # bn already folded
    out_ref[0] = GLOBAL_RATIO * xg_ref[0] + LOCAL_RATIO * xl       # (N0, FG[0])


# --------------------------------- generic launcher ------------------------------------
def _const_spec(a):
    zeros = (0,) * a.ndim
    return pl.BlockSpec(a.shape, lambda b, _z=zeros: _z)           # full-array, VMEM-resident


def _launch(body, data, data_specs, consts, out_shapes, out_specs, batch):
    flat, treedef = jax.tree_util.tree_flatten(consts)
    n_data = len(data)
    n_consts = len(flat)

    def kernel(*refs):
        data_refs = refs[:n_data]
        const_refs = refs[n_data:n_data + n_consts]
        out_refs = refs[n_data + n_consts:]
        body(data_refs, jax.tree_util.tree_unflatten(treedef, const_refs), out_refs)

    return pl.pallas_call(
        kernel,
        out_shape=tuple(out_shapes),
        grid=(batch,),
        in_specs=list(data_specs) + [_const_spec(a) for a in flat],
        out_specs=tuple(out_specs),
        compiler_params=pltpu.CompilerParams(dimension_semantics=("parallel",)),
    )(*data, *flat)


# -------------------------------------- forward ----------------------------------------
@jax.jit
def fmgen_forward(x, consts):
    bsz, n0, f0 = x.shape
    fgl, fll = FG[-1], FL[-1]

    # ---- kernel 1: all encoder graph convolutions (global + local branches) ----
    xg_mean, xl_conv = _launch(
        _encoder_body,
        data=(x,),
        data_specs=[pl.BlockSpec((1, n0, f0), lambda b: (b, 0, 0))],
        consts=consts["enc"],
        out_shapes=[jax.ShapeDtypeStruct((bsz, 1, fgl), jnp.float32),
                    jax.ShapeDtypeStruct((bsz, n0, fll), jnp.float32)],
        out_specs=[pl.BlockSpec((1, 1, fgl), lambda b: (b, 0, 0)),
                   pl.BlockSpec((1, n0, fll), lambda b: (b, 0, 0))],
        batch=bsz)

    xl_flat = xl_conv.reshape(bsz, 1, n0 * fll)        # free row-major reshape (XLA metadata)

    # ---- kernel 2: bottleneck linears + full decoder-global branch ----
    z, xg_out, xl_lin = _launch(
        _bottleneck_body,
        data=(xg_mean, xl_flat),
        data_specs=[pl.BlockSpec((1, 1, fgl), lambda b: (b, 0, 0)),
                    pl.BlockSpec((1, 1, n0 * fll), lambda b: (b, 0, 0))],
        consts=consts["mid"],
        out_shapes=[jax.ShapeDtypeStruct((bsz, 1, Z_LEN), jnp.float32),
                    jax.ShapeDtypeStruct((bsz, n0, FG[0]), jnp.float32),
                    jax.ShapeDtypeStruct((bsz, 1, n0 * fll), jnp.float32)],
        out_specs=[pl.BlockSpec((1, 1, Z_LEN), lambda b: (b, 0, 0)),
                   pl.BlockSpec((1, n0, FG[0]), lambda b: (b, 0, 0)),
                   pl.BlockSpec((1, 1, n0 * fll), lambda b: (b, 0, 0))],
        batch=bsz)

    xl_dec = xl_lin.reshape(bsz, n0, fll)              # free row-major reshape

    # ---- kernel 3: decoder-local convolutions + merge ----
    (out,) = _launch(
        _decoder_local_body,
        data=(xl_dec, xg_out),
        data_specs=[pl.BlockSpec((1, n0, fll), lambda b: (b, 0, 0)),
                    pl.BlockSpec((1, n0, FG[0]), lambda b: (b, 0, 0))],
        consts=consts["dec"],
        out_shapes=[jax.ShapeDtypeStruct((bsz, n0, FG[0]), jnp.float32)],
        out_specs=[pl.BlockSpec((1, n0, FG[0]), lambda b: (b, 0, 0))],
        batch=bsz)

    return out.reshape(bsz * n0, FG[0]), z.reshape(bsz, Z_LEN)


# ------------------------------------- parameters --------------------------------------
def init_params(key):
    ks = iter(jax.random.split(key, 32))

    def normal(shape, std):
        return (std * jax.random.normal(next(ks), shape)).astype(jnp.float32)

    def lin(in_dim, out_dim):
        # torch Linear weight (out, in) ~ N(0, 0.1); stored pre-transposed (in, out)
        return (normal((out_dim, in_dim), 0.1).T, normal((out_dim,), 0.01).reshape(1, out_dim))

    def conv(in_dim, out_dim):
        # FeaStConv heads=1: only lin.weight + bias matter (u, c cancel under 1-head softmax)
        return (normal((out_dim, in_dim), 0.1).T, jnp.zeros((1, out_dim), jnp.float32))

    bn_scale = float(1.0 / (1.0 + BN_EPS) ** 0.5)

    def bn(ch):
        # eval-mode BatchNorm1d, default stats: y = x / sqrt(1 + eps)
        return (jnp.full((1, ch), bn_scale, jnp.float32), jnp.zeros((1, ch), jnp.float32))

    p = {}
    p["enc_conv_g"] = [conv(FG[i], FG[i + 1]) for i in range(N_LAYERS)]
    p["enc_conv_l"] = [conv(FL[i], FL[i + 1]) for i in range(N_LAYERS)]
    p["dec_conv_g"] = [conv(FG[-1 - i], FG[-2 - i]) for i in range(N_LAYERS)]
    p["dec_conv_l"] = [conv(FL[-1 - i], FL[-2 - i]) for i in range(N_LAYERS)]
    p["enc_bn_g"] = [bn(FG[i + 1]) for i in range(N_LAYERS)]        # applied after enc conv i
    p["enc_bn_l"] = [bn(FL[i + 1]) for i in range(N_LAYERS)]
    p["dec_bn_g"] = [bn(FG[-2 - i]) for i in range(N_LAYERS - 1)]   # applied after dec conv i (i < last)
    p["dec_bn_l"] = [bn(FL[-2 - i]) for i in range(N_LAYERS - 1)]

    # encoder_lin: Linear(FG[-1] + Z, Z); input = concat(global, local) -> pre-split rows
    w = normal((Z_LEN, FG[-1] + Z_LEN), 0.1).T                      # (FG[-1]+Z, Z)
    p["enc_lin"] = (w[:FG[-1], :], w[FG[-1]:, :], normal((Z_LEN,), 0.01).reshape(1, Z_LEN))
    p["enc_local_lin"] = lin(NODES[0] * FL[-1], Z_LEN)
    # decoder_lin: Linear(Z, Z + FG[-1]); output = [global | local] -> pre-split columns
    w = normal((Z_LEN + FG[-1], Z_LEN), 0.1).T                      # (Z, Z+FG[-1])
    b = normal((Z_LEN + FG[-1],), 0.01).reshape(1, Z_LEN + FG[-1])
    p["dec_lin"] = (w[:, :FG[-1]], w[:, FG[-1]:], b[:, :FG[-1]], b[:, FG[-1]:])
    p["dec_local_lin"] = lin(Z_LEN, FL[-1] * NODES[0])
    return p


def _fold_bn(conv, bn):
    # Fold eval-mode BatchNorm affine (scale s, shift t, per output channel) into the
    # conv weight/bias:  (A@(X@Wt)+b)*s + t  ==  A@(X@(Wt*s)) + (b*s + t).
    wt, b = conv
    if bn is None:
        return wt, b
    s, t = bn
    return (wt * s).astype(jnp.float32), (b * s + t).astype(jnp.float32)


def build_consts(p, A, D, U):
    enc_g = [_fold_bn(p["enc_conv_g"][i], p["enc_bn_g"][i] if BATCH_NORM else None)
             for i in range(N_LAYERS)]
    enc_l = [_fold_bn(p["enc_conv_l"][i], p["enc_bn_l"][i] if BATCH_NORM else None)
             for i in range(N_LAYERS)]
    dec_g = [_fold_bn(p["dec_conv_g"][i],
                      p["dec_bn_g"][i] if (BATCH_NORM and i < N_LAYERS - 1) else None)
             for i in range(N_LAYERS)]
    dec_l = [_fold_bn(p["dec_conv_l"][i],
                      p["dec_bn_l"][i] if (BATCH_NORM and i < N_LAYERS - 1) else None)
             for i in range(N_LAYERS)]

    # rowsum(U[-1]) -> rank-1 shortcut for the first decoder upsample of the broadcast latent
    u_sum = U[N_LAYERS - 1].sum(axis=1, keepdims=True).astype(jnp.float32)   # (NODES[-2], 1)

    enc = dict(A=[A[i] for i in range(N_LAYERS)], D=list(D), conv_g=enc_g, conv_l=enc_l)
    mid = dict(A=[A[i] for i in range(N_LAYERS)],
               U=[U[i] for i in range(N_LAYERS - 1)],   # U[-1] replaced by Usum
               Usum=u_sum, conv_g=dec_g,
               enc_local_lin=p["enc_local_lin"], enc_lin=p["enc_lin"],
               dec_lin=p["dec_lin"], dec_local_lin=p["dec_local_lin"])
    dec = dict(A0=A[0], conv_l=dec_l)
    return dict(enc=enc, mid=mid, dec=dec)


def ring_adj_norm(n):
    # ring graph + self loops, row-normalized == FeaStConv mean aggregation (heads=1)
    idx = jnp.arange(n)
    a = jnp.zeros((n, n), jnp.float32)
    a = a.at[idx, idx].set(1.0)
    a = a.at[idx, (idx + 1) % n].set(1.0)
    a = a.at[idx, (idx - 1) % n].set(1.0)
    return a / a.sum(axis=1, keepdims=True)


# ---------------------------------------- main ------------------------------------------
if __name__ == "__main__":
    key = jax.random.PRNGKey(0)
    kx, kp, kd, ku = jax.random.split(key, 4)

    params = init_params(kp)
    A = [ring_adj_norm(n) for n in NODES]
    dks = jax.random.split(kd, N_LAYERS)
    uks = jax.random.split(ku, N_LAYERS)
    D = [(jax.random.normal(dks[i], (NODES[i + 1], NODES[i])) / NODES[i] ** 0.5).astype(jnp.float32)
         for i in range(N_LAYERS)]
    U = [(jax.random.normal(uks[i], (NODES[i], NODES[i + 1])) / NODES[i + 1] ** 0.5).astype(jnp.float32)
         for i in range(N_LAYERS)]
    consts = build_consts(params, A, D, U)

    # batch.x in torch is (B * N0, F0); we keep the equivalent (B, N0, F0) layout.
    x = jax.random.normal(kx, (B, NODES[0], FG[0]), dtype=jnp.float32)

    out, z = fmgen_forward(x, consts)
    jax.block_until_ready((out, z))
    assert out.shape == (B * NODES[0], FG[0]) and z.shape == (B, Z_LEN)
    print("KERNEL_OK")
</pallas_src>

<mosaic_0001>
module attributes {stable_mosaic.version = 11 : i64} {
  func.func @kernel(%arg0: i32, %arg1: memref<1x64x8xf32, #tpu.memory_space<vmem>>, %arg2: memref<64x64xf32, #tpu.memory_space<vmem>>, %arg3: memref<32x32xf32, #tpu.memory_space<vmem>>, %arg4: memref<32x64xf32, #tpu.memory_space<vmem>>, %arg5: memref<16x32xf32, #tpu.memory_space<vmem>>, %arg6: memref<8x16xf32, #tpu.memory_space<vmem>>, %arg7: memref<1x16xf32, #tpu.memory_space<vmem>>, %arg8: memref<16x32xf32, #tpu.memory_space<vmem>>, %arg9: memref<1x32xf32, #tpu.memory_space<vmem>>, %arg10: memref<8x16xf32, #tpu.memory_space<vmem>>, %arg11: memref<1x16xf32, #tpu.memory_space<vmem>>, %arg12: memref<16x32xf32, #tpu.memory_space<vmem>>, %arg13: memref<1x32xf32, #tpu.memory_space<vmem>>, %arg14: memref<1x1x32xf32, #tpu.memory_space<vmem>>, %arg15: memref<1x64x32xf32, #tpu.memory_space<vmem>>) attributes {dimension_semantics = [#tpu.dimension_semantics<parallel>], iteration_bounds = array<i64: 2>, scalar_prefetch = 0 : i64, scratch_operands = 0 : i64, tpu.core_type = #tpu.core_type<tc>, window_params = [{transform_indices = @transform_0, window_bounds = array<i64: 1, 64, 8>}, {pipeline_mode = #tpu.pipeline_mode<synchronous>, transform_indices = @transform_1, window_bounds = array<i64: 64, 64>}, {pipeline_mode = #tpu.pipeline_mode<synchronous>, transform_indices = @transform_2, window_bounds = array<i64: 32, 32>}, {pipeline_mode = #tpu.pipeline_mode<synchronous>, transform_indices = @transform_3, window_bounds = array<i64: 32, 64>}, {pipeline_mode = #tpu.pipeline_mode<synchronous>, transform_indices = @transform_4, window_bounds = array<i64: 16, 32>}, {pipeline_mode = #tpu.pipeline_mode<synchronous>, transform_indices = @transform_5, window_bounds = array<i64: 8, 16>}, {pipeline_mode = #tpu.pipeline_mode<synchronous>, transform_indices = @transform_6, window_bounds = array<i64: 1, 16>}, {pipeline_mode = #tpu.pipeline_mode<synchronous>, transform_indices = @transform_7, window_bounds = array<i64: 16, 32>}, {pipeline_mode = #tpu.pipeline_mode<synchronous>, transform_indices = @transform_8, window_bounds = array<i64: 1, 32>}, {pipeline_mode = #tpu.pipeline_mode<synchronous>, transform_indices = @transform_9, window_bounds = array<i64: 8, 16>}, {pipeline_mode = #tpu.pipeline_mode<synchronous>, transform_indices = @transform_10, window_bounds = array<i64: 1, 16>}, {pipeline_mode = #tpu.pipeline_mode<synchronous>, transform_indices = @transform_11, window_bounds = array<i64: 16, 32>}, {pipeline_mode = #tpu.pipeline_mode<synchronous>, transform_indices = @transform_12, window_bounds = array<i64: 1, 32>}, {transform_indices = @transform_13, window_bounds = array<i64: 1, 1, 32>}, {transform_indices = @transform_14, window_bounds = array<i64: 1, 64, 32>}]} {
    %c0 = arith.constant 0 : index
    %c0_0 = arith.constant 0 : index
    %c0_1 = arith.constant 0 : index
    %0 = vector.load %arg1[%c0, %c0_0, %c0_1] : memref<1x64x8xf32, #tpu.memory_space<vmem>>, vector<1x64x8xf32>
    %1 = vector.shape_cast %0 : vector<1x64x8xf32> to vector<64x8xf32>
    %c0_2 = arith.constant 0 : index
    %c0_3 = arith.constant 0 : index
    %2 = vector.load %arg2[%c0_2, %c0_3] : memref<64x64xf32, #tpu.memory_space<vmem>>, vector<64x64xf32>
    %c0_4 = arith.constant 0 : index
    %c0_5 = arith.constant 0 : index
    %3 = vector.load %arg6[%c0_4, %c0_5] : memref<8x16xf32, #tpu.memory_space<vmem>>, vector<8x16xf32>
    %cst = arith.constant dense<0.000000e+00> : vector<64x16xf32>
    %4 = tpu.matmul %1, %3, %cst {dimension_numbers = #tpu.dot_dimension_numbers<[1], [0], [0], [1], [0, 0, 1, 1], [], []>} : vector<64x8xf32>, vector<8x16xf32>, vector<64x16xf32> -> vector<64x16xf32>
    %cst_6 = arith.constant dense<0.000000e+00> : vector<64x16xf32>
    %5 = tpu.matmul %2, %4, %cst_6 {dimension_numbers = #tpu.dot_dimension_numbers<[1], [0], [0], [1], [0, 0, 1, 1], [], []>} : vector<64x64xf32>, vector<64x16xf32>, vector<64x16xf32> -> vector<64x16xf32>
    %c0_7 = arith.constant 0 : index
    %c0_8 = arith.constant 0 : index
    %6 = vector.load %arg7[%c0_7, %c0_8] : memref<1x16xf32, #tpu.memory_space<vmem>>, vector<1x16xf32>
    %7 = vector.broadcast %6 : vector<1x16xf32> to vector<64x16xf32>
    %8 = arith.addf %5, %7 : vector<64x16xf32>
    %cst_9 = arith.constant 0.000000e+00 : f32
    %9 = vector.broadcast %cst_9 : f32 to vector<64x16xf32>
    %10 = arith.cmpf ogt, %8, %9 : vector<64x16xf32>
    %cst_10 = arith.constant 0.00999999977 : f32
    %11 = vector.broadcast %cst_10 : f32 to vector<64x16xf32>
    %12 = arith.mulf %11, %8 : vector<64x16xf32>
    %13 = arith.select %10, %8, %12 : vector<64x16xi1>, vector<64x16xf32>
    %c0_11 = arith.constant 0 : index
    %c0_12 = arith.constant 0 : index
    %14 = vector.load %arg4[%c0_11, %c0_12] : memref<32x64xf32, #tpu.memory_space<vmem>>, vector<32x64xf32>
    %cst_13 = arith.constant dense<0.000000e+00> : vector<32x16xf32>
    %15 = tpu.matmul %14, %13, %cst_13 {dimension_numbers = #tpu.dot_dimension_numbers<[1], [0], [0], [1], [0, 0, 1, 1], [], []>} : vector<32x64xf32>, vector<64x16xf32>, vector<32x16xf32> -> vector<32x16xf32>
    %c0_14 = arith.constant 0 : index
    %c0_15 = arith.constant 0 : index
    %16 = vector.load %arg3[%c0_14, %c0_15] : memref<32x32xf32, #tpu.memory_space<vmem>>, vector<32x32xf32>
    %c0_16 = arith.constant 0 : index
    %c0_17 = arith.constant 0 : index
    %17 = vector.load %arg8[%c0_16, %c0_17] : memref<16x32xf32, #tpu.memory_space<vmem>>, vector<16x32xf32>
    %cst_18 = arith.constant dense<0.000000e+00> : vector<32x32xf32>
    %18 = tpu.matmul %15, %17, %cst_18 {dimension_numbers = #tpu.dot_dimension_numbers<[1], [0], [0], [1], [0, 0, 1, 1], [], []>} : vector<32x16xf32>, vector<16x32xf32>, vector<32x32xf32> -> vector<32x32xf32>
    %cst_19 = arith.constant dense<0.000000e+00> : vector<32x32xf32>
    %19 = tpu.matmul %16, %18, %cst_19 {dimension_numbers = #tpu.dot_dimension_numbers<[1], [0], [0], [1], [0, 0, 1, 1], [], []>} : vector<32x32xf32>, vector<32x32xf32>, vector<32x32xf32> -> vector<32x32xf32>
    %c0_20 = arith.constant 0 : index
    %c0_21 = arith.constant 0 : index
    %20 = vector.load %arg9[%c0_20, %c0_21] : memref<1x32xf32, #tpu.memory_space<vmem>>, vector<1x32xf32>
    %21 = vector.broadcast %20 : vector<1x32xf32> to vector<32x32xf32>
    %22 = arith.addf %19, %21 : vector<32x32xf32>
    %cst_22 = arith.constant 0.000000e+00 : f32
    %23 = vector.broadcast %cst_22 : f32 to vector<32x32xf32>
    %24 = arith.cmpf ogt, %22, %23 : vector<32x32xf32>
    %cst_23 = arith.constant 0.00999999977 : f32
    %25 = vector.broadcast %cst_23 : f32 to vector<32x32xf32>
    %26 = arith.mulf %25, %22 : vector<32x32xf32>
    %27 = arith.select %24, %22, %26 : vector<32x32xi1>, vector<32x32xf32>
    %c0_24 = arith.constant 0 : index
    %c0_25 = arith.constant 0 : index
    %28 = vector.load %arg5[%c0_24, %c0_25] : memref<16x32xf32, #tpu.memory_space<vmem>>, vector<16x32xf32>
    %cst_26 = arith.constant dense<0.000000e+00> : vector<16x32xf32>
    %29 = tpu.matmul %28, %27, %cst_26 {dimension_numbers = #tpu.dot_dimension_numbers<[1], [0], [0], [1], [0, 0, 1, 1], [], []>} : vector<16x32xf32>, vector<32x32xf32>, vector<16x32xf32> -> vector<16x32xf32>
    %cst_27 = arith.constant dense<0.000000e+00> : vector<32xf32>
    %30 = vector.multi_reduction <add>, %29, %cst_27 [0] : vector<16x32xf32> to vector<32xf32>
    %31 = vector.shape_cast %30 : vector<32xf32> to vector<1x32xf32>
    %cst_28 = arith.constant 1.600000e+01 : f32
    %32 = vector.broadcast %cst_28 : f32 to vector<1x32xf32>
    %33 = arith.divf %31, %32 : vector<1x32xf32>
    %cst_29 = arith.constant 0.000000e+00 : f32
    %34 = vector.broadcast %cst_29 : f32 to vector<1x32xf32>
    %35 = arith.cmpf ogt, %33, %34 : vector<1x32xf32>
    %cst_30 = arith.constant 0.00999999977 : f32
    %36 = vector.broadcast %cst_30 : f32 to vector<1x32xf32>
    %37 = arith.mulf %36, %33 : vector<1x32xf32>
    %38 = arith.select %35, %33, %37 : vector<1x32xi1>, vector<1x32xf32>
    %c0_31 = arith.constant 0 : index
    %c0_32 = arith.constant 0 : index
    %c0_33 = arith.constant 0 : index
    %39 = vector.load %arg14[%c0_31, %c0_32, %c0_33] : memref<1x1x32xf32, #tpu.memory_space<vmem>>, vector<1x1x32xf32>
    %40 = vector.shape_cast %39 : vector<1x1x32xf32> to vector<1x32xf32>
    %41 = vector.shape_cast %38 : vector<1x32xf32> to vector<1x1x32xf32>
    tpu.vector_store %arg14[%c0_31, %c0_32, %c0_33], %41 {strides = array<i32>} : memref<1x1x32xf32, #tpu.memory_space<vmem>>, vector<1x1x32xf32>,
    %c0_34 = arith.constant 0 : index
    %c0_35 = arith.constant 0 : index
    %42 = vector.load %arg2[%c0_34, %c0_35] : memref<64x64xf32, #tpu.memory_space<vmem>>, vector<64x64xf32>
    %c0_36 = arith.constant 0 : index
    %c0_37 = arith.constant 0 : index
    %43 = vector.load %arg10[%c0_36, %c0_37] : memref<8x16xf32, #tpu.memory_space<vmem>>, vector<8x16xf32>
    %cst_38 = arith.constant dense<0.000000e+00> : vector<64x16xf32>
    %44 = tpu.matmul %1, %43, %cst_38 {dimension_numbers = #tpu.dot_dimension_numbers<[1], [0], [0], [1], [0, 0, 1, 1], [], []>} : vector<64x8xf32>, vector<8x16xf32>, vector<64x16xf32> -> vector<64x16xf32>
    %cst_39 = arith.constant dense<0.000000e+00> : vector<64x16xf32>
    %45 = tpu.matmul %42, %44, %cst_39 {dimension_numbers = #tpu.dot_dimension_numbers<[1], [0], [0], [1], [0, 0, 1, 1], [], []>} : vector<64x64xf32>, vector<64x16xf32>, vector<64x16xf32> -> vector<64x16xf32>
    %c0_40 = arith.constant 0 : index
    %c0_41 = arith.constant 0 : index
    %46 = vector.load %arg11[%c0_40, %c0_41] : memref<1x16xf32, #tpu.memory_space<vmem>>, vector<1x16xf32>
    %47 = vector.broadcast %46 : vector<1x16xf32> to vector<64x16xf32>
    %48 = arith.addf %45, %47 : vector<64x16xf32>
    %cst_42 = arith.constant 0.000000e+00 : f32
    %49 = vector.broadcast %cst_42 : f32 to vector<64x16xf32>
    %50 = arith.cmpf ogt, %48, %49 : vector<64x16xf32>
    %cst_43 = arith.constant 0.00999999977 : f32
    %51 = vector.broadcast %cst_43 : f32 to vector<64x16xf32>
    %52 = arith.mulf %51, %48 : vector<64x16xf32>
    %53 = arith.select %50, %48, %52 : vector<64x16xi1>, vector<64x16xf32>
    %c0_44 = arith.constant 0 : index
    %c0_45 = arith.constant 0 : index
    %54 = vector.load %arg2[%c0_44, %c0_45] : memref<64x64xf32, #tpu.memory_space<vmem>>, vector<64x64xf32>
    %c0_46 = arith.constant 0 : index
    %c0_47 = arith.constant 0 : index
    %55 = vector.load %arg12[%c0_46, %c0_47] : memref<16x32xf32, #tpu.memory_space<vmem>>, vector<16x32xf32>
    %cst_48 = arith.constant dense<0.000000e+00> : vector<64x32xf32>
    %56 = tpu.matmul %53, %55, %cst_48 {dimension_numbers = #tpu.dot_dimension_numbers<[1], [0], [0], [1], [0, 0, 1, 1], [], []>} : vector<64x16xf32>, vector<16x32xf32>, vector<64x32xf32> -> vector<64x32xf32>
    %cst_49 = arith.constant dense<0.000000e+00> : vector<64x32xf32>
    %57 = tpu.matmul %54, %56, %cst_49 {dimension_numbers = #tpu.dot_dimension_numbers<[1], [0], [0], [1], [0, 0, 1, 1], [], []>} : vector<64x64xf32>, vector<64x32xf32>, vector<64x32xf32> -> vector<64x32xf32>
    %c0_50 = arith.constant 0 : index
    %c0_51 = arith.constant 0 : index
    %58 = vector.load %arg13[%c0_50, %c0_51] : memref<1x32xf32, #tpu.memory_space<vmem>>, vector<1x32xf32>
    %59 = vector.broadcast %58 : vector<1x32xf32> to vector<64x32xf32>
    %60 = arith.addf %57, %59 : vector<64x32xf32>
    %cst_52 = arith.constant 0.000000e+00 : f32
    %61 = vector.broadcast %cst_52 : f32 to vector<64x32xf32>
    %62 = arith.cmpf ogt, %60, %61 : vector<64x32xf32>
    %cst_53 = arith.constant 0.00999999977 : f32
    %63 = vector.broadcast %cst_53 : f32 to vector<64x32xf32>
    %64 = arith.mulf %63, %60 : vector<64x32xf32>
    %65 = arith.select %62, %60, %64 : vector<64x32xi1>, vector<64x32xf32>
    %c0_54 = arith.constant 0 : index
    %c0_55 = arith.constant 0 : index
    %c0_56 = arith.constant 0 : index
    %66 = vector.load %arg15[%c0_54, %c0_55, %c0_56] : memref<1x64x32xf32, #tpu.memory_space<vmem>>, vector<1x64x32xf32>
    %67 = vector.shape_cast %66 : vector<1x64x32xf32> to vector<64x32xf32>
    %68 = vector.shape_cast %65 : vector<64x32xf32> to vector<1x64x32xf32>
    tpu.vector_store %arg15[%c0_54, %c0_55, %c0_56], %68 {strides = array<i32>} : memref<1x64x32xf32, #tpu.memory_space<vmem>>, vector<1x64x32xf32>,
    return
  }
  func.func @transform_0(%arg0: i32) -> (i32, i32, i32) {
    %c0_i32 = arith.constant 0 : i32
    %c0_i32_0 = arith.constant 0 : i32
    %c0_i32_1 = arith.constant 0 : i32
    return %arg0, %c0_i32, %c0_i32_0 : i32, i32, i32
  }
  func.func @transform_1(%arg0: i32) -> (i32, i32) {
    %c0_i32 = arith.constant 0 : i32
    %c0_i32_0 = arith.constant 0 : i32
    %c0_i32_1 = arith.constant 0 : i32
    return %c0_i32, %c0_i32_0 : i32, i32
  }
  func.func @transform_2(%arg0: i32) -> (i32, i32) {
    %c0_i32 = arith.constant 0 : i32
    %c0_i32_0 = arith.constant 0 : i32
    %c0_i32_1 = arith.constant 0 : i32
    return %c0_i32, %c0_i32_0 : i32, i32
  }
  func.func @transform_3(%arg0: i32) -> (i32, i32) {
    %c0_i32 = arith.constant 0 : i32
    %c0_i32_0 = arith.constant 0 : i32
    %c0_i32_1 = arith.constant 0 : i32
    return %c0_i32, %c0_i32_0 : i32, i32
  }
  func.func @transform_4(%arg0: i32) -> (i32, i32) {
    %c0_i32 = arith.constant 0 : i32
    %c0_i32_0 = arith.constant 0 : i32
    %c0_i32_1 = arith.constant 0 : i32
    return %c0_i32, %c0_i32_0 : i32, i32
  }
  func.func @transform_5(%arg0: i32) -> (i32, i32) {
    %c0_i32 = arith.constant 0 : i32
    %c0_i32_0 = arith.constant 0 : i32
    %c0_i32_1 = arith.constant 0 : i32
    return %c0_i32, %c0_i32_0 : i32, i32
  }
  func.func @transform_6(%arg0: i32) -> (i32, i32) {
    %c0_i32 = arith.constant 0 : i32
    %c0_i32_0 = arith.constant 0 : i32
    %c0_i32_1 = arith.constant 0 : i32
    return %c0_i32, %c0_i32_0 : i32, i32
  }
  func.func @transform_7(%arg0: i32) -> (i32, i32) {
    %c0_i32 = arith.constant 0 : i32
    %c0_i32_0 = arith.constant 0 : i32
    %c0_i32_1 = arith.constant 0 : i32
    return %c0_i32, %c0_i32_0 : i32, i32
  }
  func.func @transform_8(%arg0: i32) -> (i32, i32) {
    %c0_i32 = arith.constant 0 : i32
    %c0_i32_0 = arith.constant 0 : i32
    %c0_i32_1 = arith.constant 0 : i32
    return %c0_i32, %c0_i32_0 : i32, i32
  }
  func.func @transform_9(%arg0: i32) -> (i32, i32) {
    %c0_i32 = arith.constant 0 : i32
    %c0_i32_0 = arith.constant 0 : i32
    %c0_i32_1 = arith.constant 0 : i32
    return %c0_i32, %c0_i32_0 : i32, i32
  }
  func.func @transform_10(%arg0: i32) -> (i32, i32) {
    %c0_i32 = arith.constant 0 : i32
    %c0_i32_0 = arith.constant 0 : i32
    %c0_i32_1 = arith.constant 0 : i32
    return %c0_i32, %c0_i32_0 : i32, i32
  }
  func.func @transform_11(%arg0: i32) -> (i32, i32) {
    %c0_i32 = arith.constant 0 : i32
    %c0_i32_0 = arith.constant 0 : i32
    %c0_i32_1 = arith.constant 0 : i32
    return %c0_i32, %c0_i32_0 : i32, i32
  }
  func.func @transform_12(%arg0: i32) -> (i32, i32) {
    %c0_i32 = arith.constant 0 : i32
    %c0_i32_0 = arith.constant 0 : i32
    %c0_i32_1 = arith.constant 0 : i32
    return %c0_i32, %c0_i32_0 : i32, i32
  }
  func.func @transform_13(%arg0: i32) -> (i32, i32, i32) {
    %c0_i32 = arith.constant 0 : i32
    %c0_i32_0 = arith.constant 0 : i32
    %c0_i32_1 = arith.constant 0 : i32
    return %arg0, %c0_i32, %c0_i32_0 : i32, i32, i32
  }
  func.func @transform_14(%arg0: i32) -> (i32, i32, i32) {
    %c0_i32 = arith.constant 0 : i32
    %c0_i32_0 = arith.constant 0 : i32
    %c0_i32_1 = arith.constant 0 : i32
    return %arg0, %c0_i32, %c0_i32_0 : i32, i32, i32
  }
}

module attributes {stable_mosaic.version = 11 : i64} {
  func.func @kernel(%arg0: i32, %arg1: memref<1x1x32xf32, #tpu.memory_space<vmem>>, %arg2: memref<1x1x2048xf32, #tpu.memory_space<vmem>>, %arg3: memref<64x64xf32, #tpu.memory_space<vmem>>, %arg4: memref<32x32xf32, #tpu.memory_space<vmem>>, %arg5: memref<64x32xf32, #tpu.memory_space<vmem>>, %arg6: memref<32x1xf32, #tpu.memory_space<vmem>>, %arg7: memref<32x16xf32, #tpu.memory_space<vmem>>, %arg8: memref<1x16xf32, #tpu.memory_space<vmem>>, %arg9: memref<16x8xf32, #tpu.memory_space<vmem>>, %arg10: memref<1x8xf32, #tpu.memory_space<vmem>>, %arg11: memref<16x32xf32, #tpu.memory_space<vmem>>, %arg12: memref<16x16xf32, #tpu.memory_space<vmem>>, %arg13: memref<1x32xf32, #tpu.memory_space<vmem>>, %arg14: memref<1x16xf32, #tpu.memory_space<vmem>>, %arg15: memref<16x2048xf32, #tpu.memory_space<vmem>>, %arg16: memref<1x2048xf32, #tpu.memory_space<vmem>>, %arg17: memref<32x16xf32, #tpu.memory_space<vmem>>, %arg18: memref<16x16xf32, #tpu.memory_space<vmem>>, %arg19: memref<1x16xf32, #tpu.memory_space<vmem>>, %arg20: memref<2048x16xf32, #tpu.memory_space<vmem>>, %arg21: memref<1x16xf32, #tpu.memory_space<vmem>>, %arg22: memref<1x1x16xf32, #tpu.memory_space<vmem>>, %arg23: memref<1x64x8xf32, #tpu.memory_space<vmem>>, %arg24: memref<1x1x2048xf32, #tpu.memory_space<vmem>>) attributes {dimension_semantics = [#tpu.dimension_semantics<parallel>], iteration_bounds = array<i64: 2>, scalar_prefetch = 0 : i64, scratch_operands = 0 : i64, tpu.core_type = #tpu.core_type<tc>, window_params = [{transform_indices = @transform_0, window_bounds = array<i64: 1, 1, 32>}, {transform_indices = @transform_1, window_bounds = array<i64: 1, 1, 2048>}, {pipeline_mode = #tpu.pipeline_mode<synchronous>, transform_indices = @transform_2, window_bounds = array<i64: 64, 64>}, {pipeline_mode = #tpu.pipeline_mode<synchronous>, transform_indices = @transform_3, window_bounds = array<i64: 32, 32>}, {pipeline_mode = #tpu.pipeline_mode<synchronous>, transform_indices = @transform_4, window_bounds = array<i64: 64, 32>}, {pipeline_mode = #tpu.pipeline_mode<synchronous>, transform_indices = @transform_5, window_bounds = array<i64: 32, 1>}, {pipeline_mode = #tpu.pipeline_mode<synchronous>, transform_indices = @transform_6, window_bounds = array<i64: 32, 16>}, {pipeline_mode = #tpu.pipeline_mode<synchronous>, transform_indices = @transform_7, window_bounds = array<i64: 1, 16>}, {pipeline_mode = #tpu.pipeline_mode<synchronous>, transform_indices = @transform_8, window_bounds = array<i64: 16, 8>}, {pipeline_mode = #tpu.pipeline_mode<synchronous>, transform_indices = @transform_9, window_bounds = array<i64: 1, 8>}, {pipeline_mode = #tpu.pipeline_mode<synchronous>, transform_indices = @transform_10, window_bounds = array<i64: 16, 32>}, {pipeline_mode = #tpu.pipeline_mode<synchronous>, transform_indices = @transform_11, window_bounds = array<i64: 16, 16>}, {pipeline_mode = #tpu.pipeline_mode<synchronous>, transform_indices = @transform_12, window_bounds = array<i64: 1, 32>}, {pipeline_mode = #tpu.pipeline_mode<synchronous>, transform_indices = @transform_13, window_bounds = array<i64: 1, 16>}, {pipeline_mode = #tpu.pipeline_mode<synchronous>, transform_indices = @transform_14, window_bounds = array<i64: 16, 2048>}, {pipeline_mode = #tpu.pipeline_mode<synchronous>, transform_indices = @transform_15, window_bounds = array<i64: 1, 2048>}, {pipeline_mode = #tpu.pipeline_mode<synchronous>, transform_indices = @transform_16, window_bounds = array<i64: 32, 16>}, {pipeline_mode = #tpu.pipeline_mode<synchronous>, transform_indices = @transform_17, window_bounds = array<i64: 16, 16>}, {pipeline_mode = #tpu.pipeline_mode<synchronous>, transform_indices = @transform_18, window_bounds = array<i64: 1, 16>}, {pipeline_mode = #tpu.pipeline_mode<synchronous>, transform_indices = @transform_19, window_bounds = array<i64: 2048, 16>}, {pipeline_mode = #tpu.pipeline_mode<synchronous>, transform_indices = @transform_20, window_bounds = array<i64: 1, 16>}, {transform_indices = @transform_21, window_bounds = array<i64: 1, 1, 16>}, {transform_indices = @transform_22, window_bounds = array<i64: 1, 64, 8>}, {transform_indices = @transform_23, window_bounds = array<i64: 1, 1, 2048>}]} {
    %c0 = arith.constant 0 : index
    %c0_0 = arith.constant 0 : index
    %c0_1 = arith.constant 0 : index
    %0 = vector.load %arg2[%c0, %c0_0, %c0_1] : memref<1x1x2048xf32, #tpu.memory_space<vmem>>, vector<1x1x2048xf32>
    %1 = vector.shape_cast %0 : vector<1x1x2048xf32> to vector<1x2048xf32>
    %c0_2 = arith.constant 0 : index
    %c0_3 = arith.constant 0 : index
    %2 = vector.load %arg20[%c0_2, %c0_3] : memref<2048x16xf32, #tpu.memory_space<vmem>>, vector<2048x16xf32>
    %cst = arith.constant dense<0.000000e+00> : vector<1x16xf32>
    %3 = tpu.matmul %1, %2, %cst {dimension_numbers = #tpu.dot_dimension_numbers<[1], [0], [0], [1], [0, 0, 1, 1], [], []>} : vector<1x2048xf32>, vector<2048x16xf32>, vector<1x16xf32> -> vector<1x16xf32>
    %c0_4 = arith.constant 0 : index
    %c0_5 = arith.constant 0 : index
    %4 = vector.load %arg21[%c0_4, %c0_5] : memref<1x16xf32, #tpu.memory_space<vmem>>, vector<1x16xf32>
    %5 = arith.addf %3, %4 : vector<1x16xf32>
    %cst_6 = arith.constant 0.000000e+00 : f32
    %6 = vector.broadcast %cst_6 : f32 to vector<1x16xf32>
    %7 = arith.cmpf ogt, %5, %6 : vector<1x16xf32>
    %cst_7 = arith.constant 0.00999999977 : f32
    %8 = vector.broadcast %cst_7 : f32 to vector<1x16xf32>
    %9 = arith.mulf %8, %5 : vector<1x16xf32>
    %10 = arith.select %7, %5, %9 : vector<1x16xi1>, vector<1x16xf32>
    %c0_8 = arith.constant 0 : index
    %c0_9 = arith.constant 0 : index
    %c0_10 = arith.constant 0 : index
    %11 = vector.load %arg1[%c0_8, %c0_9, %c0_10] : memref<1x1x32xf32, #tpu.memory_space<vmem>>, vector<1x1x32xf32>
    %12 = vector.shape_cast %11 : vector<1x1x32xf32> to vector<1x32xf32>
    %c0_11 = arith.constant 0 : index
    %c0_12 = arith.constant 0 : index
    %13 = vector.load %arg17[%c0_11, %c0_12] : memref<32x16xf32, #tpu.memory_space<vmem>>, vector<32x16xf32>
    %cst_13 = arith.constant dense<0.000000e+00> : vector<1x16xf32>
    %14 = tpu.matmul %12, %13, %cst_13 {dimension_numbers = #tpu.dot_dimension_numbers<[1], [0], [0], [1], [0, 0, 1, 1], [], []>} : vector<1x32xf32>, vector<32x16xf32>, vector<1x16xf32> -> vector<1x16xf32>
    %c0_14 = arith.constant 0 : index
    %c0_15 = arith.constant 0 : index
    %15 = vector.load %arg18[%c0_14, %c0_15] : memref<16x16xf32, #tpu.memory_space<vmem>>, vector<16x16xf32>
    %cst_16 = arith.constant dense<0.000000e+00> : vector<1x16xf32>
    %16 = tpu.matmul %10, %15, %cst_16 {dimension_numbers = #tpu.dot_dimension_numbers<[1], [0], [0], [1], [0, 0, 1, 1], [], []>} : vector<1x16xf32>, vector<16x16xf32>, vector<1x16xf32> -> vector<1x16xf32>
    %17 = arith.addf %14, %16 : vector<1x16xf32>
    %c0_17 = arith.constant 0 : index
    %c0_18 = arith.constant 0 : index
    %18 = vector.load %arg19[%c0_17, %c0_18] : memref<1x16xf32, #tpu.memory_space<vmem>>, vector<1x16xf32>
    %19 = arith.addf %17, %18 : vector<1x16xf32>
    %c0_19 = arith.constant 0 : index
    %c0_20 = arith.constant 0 : index
    %c0_21 = arith.constant 0 : index
    %20 = vector.load %arg22[%c0_19, %c0_20, %c0_21] : memref<1x1x16xf32, #tpu.memory_space<vmem>>, vector<1x1x16xf32>
    %21 = vector.shape_cast %20 : vector<1x1x16xf32> to vector<1x16xf32>
    %22 = vector.shape_cast %19 : vector<1x16xf32> to vector<1x1x16xf32>
    tpu.vector_store %arg22[%c0_19, %c0_20, %c0_21], %22 {strides = array<i32>} : memref<1x1x16xf32, #tpu.memory_space<vmem>>, vector<1x1x16xf32>,
    %c0_22 = arith.constant 0 : index
    %c0_23 = arith.constant 0 : index
    %23 = vector.load %arg11[%c0_22, %c0_23] : memref<16x32xf32, #tpu.memory_space<vmem>>, vector<16x32xf32>
    %cst_24 = arith.constant dense<0.000000e+00> : vector<1x32xf32>
    %24 = tpu.matmul %19, %23, %cst_24 {dimension_numbers = #tpu.dot_dimension_numbers<[1], [0], [0], [1], [0, 0, 1, 1], [], []>} : vector<1x16xf32>, vector<16x32xf32>, vector<1x32xf32> -> vector<1x32xf32>
    %c0_25 = arith.constant 0 : index
    %c0_26 = arith.constant 0 : index
    %25 = vector.load %arg13[%c0_25, %c0_26] : memref<1x32xf32, #tpu.memory_space<vmem>>, vector<1x32xf32>
    %26 = arith.addf %24, %25 : vector<1x32xf32>
    %c0_27 = arith.constant 0 : index
    %c0_28 = arith.constant 0 : index
    %27 = vector.load %arg12[%c0_27, %c0_28] : memref<16x16xf32, #tpu.memory_space<vmem>>, vector<16x16xf32>
    %cst_29 = arith.constant dense<0.000000e+00> : vector<1x16xf32>
    %28 = tpu.matmul %19, %27, %cst_29 {dimension_numbers = #tpu.dot_dimension_numbers<[1], [0], [0], [1], [0, 0, 1, 1], [], []>} : vector<1x16xf32>, vector<16x16xf32>, vector<1x16xf32> -> vector<1x16xf32>
    %c0_30 = arith.constant 0 : index
    %c0_31 = arith.constant 0 : index
    %29 = vector.load %arg14[%c0_30, %c0_31] : memref<1x16xf32, #tpu.memory_space<vmem>>, vector<1x16xf32>
    %30 = arith.addf %28, %29 : vector<1x16xf32>
    %c0_32 = arith.constant 0 : index
    %c0_33 = arith.constant 0 : index
    %31 = vector.load %arg6[%c0_32, %c0_33] : memref<32x1xf32, #tpu.memory_space<vmem>>, vector<32x1xf32>
    %32 = vector.broadcast %31 : vector<32x1xf32> to vector<32x32xf32>
    %33 = vector.broadcast %26 : vector<1x32xf32> to vector<32x32xf32>
    %34 = arith.mulf %32, %33 : vector<32x32xf32>
    %c0_34 = arith.constant 0 : index
    %c0_35 = arith.constant 0 : index
    %35 = vector.load %arg4[%c0_34, %c0_35] : memref<32x32xf32, #tpu.memory_space<vmem>>, vector<32x32xf32>
    %c0_36 = arith.constant 0 : index
    %c0_37 = arith.constant 0 : index
    %36 = vector.load %arg7[%c0_36, %c0_37] : memref<32x16xf32, #tpu.memory_space<vmem>>, vector<32x16xf32>
    %cst_38 = arith.constant dense<0.000000e+00> : vector<32x16xf32>
    %37 = tpu.matmul %34, %36, %cst_38 {dimension_numbers = #tpu.dot_dimension_numbers<[1], [0], [0], [1], [0, 0, 1, 1], [], []>} : vector<32x32xf32>, vector<32x16xf32>, vector<32x16xf32> -> vector<32x16xf32>
    %cst_39 = arith.constant dense<0.000000e+00> : vector<32x16xf32>
    %38 = tpu.matmul %35, %37, %cst_39 {dimension_numbers = #tpu.dot_dimension_numbers<[1], [0], [0], [1], [0, 0, 1, 1], [], []>} : vector<32x32xf32>, vector<32x16xf32>, vector<32x16xf32> -> vector<32x16xf32>
    %c0_40 = arith.constant 0 : index
    %c0_41 = arith.constant 0 : index
    %39 = vector.load %arg8[%c0_40, %c0_41] : memref<1x16xf32, #tpu.memory_space<vmem>>, vector<1x16xf32>
    %40 = vector.broadcast %39 : vector<1x16xf32> to vector<32x16xf32>
    %41 = arith.addf %38, %40 : vector<32x16xf32>
    %cst_42 = arith.constant 0.000000e+00 : f32
    %42 = vector.broadcast %cst_42 : f32 to vector<32x16xf32>
    %43 = arith.cmpf ogt, %41, %42 : vector<32x16xf32>
    %cst_43 = arith.constant 0.00999999977 : f32
    %44 = vector.broadcast %cst_43 : f32 to vector<32x16xf32>
    %45 = arith.mulf %44, %41 : vector<32x16xf32>
    %46 = arith.select %43, %41, %45 : vector<32x16xi1>, vector<32x16xf32>
    %c0_44 = arith.constant 0 : index
    %c0_45 = arith.constant 0 : index
    %47 = vector.load %arg5[%c0_44, %c0_45] : memref<64x32xf32, #tpu.memory_space<vmem>>, vector<64x32xf32>
    %cst_46 = arith.constant dense<0.000000e+00> : vector<64x16xf32>
    %48 = tpu.matmul %47, %46, %cst_46 {dimension_numbers = #tpu.dot_dimension_numbers<[1], [0], [0], [1], [0, 0, 1, 1], [], []>} : vector<64x32xf32>, vector<32x16xf32>, vector<64x16xf32> -> vector<64x16xf32>
    %c0_47 = arith.constant 0 : index
    %c0_48 = arith.constant 0 : index
    %49 = vector.load %arg3[%c0_47, %c0_48] : memref<64x64xf32, #tpu.memory_space<vmem>>, vector<64x64xf32>
    %c0_49 = arith.constant 0 : index
    %c0_50 = arith.constant 0 : index
    %50 = vector.load %arg9[%c0_49, %c0_50] : memref<16x8xf32, #tpu.memory_space<vmem>>, vector<16x8xf32>
    %cst_51 = arith.constant dense<0.000000e+00> : vector<64x8xf32>
    %51 = tpu.matmul %48, %50, %cst_51 {dimension_numbers = #tpu.dot_dimension_numbers<[1], [0], [0], [1], [0, 0, 1, 1], [], []>} : vector<64x16xf32>, vector<16x8xf32>, vector<64x8xf32> -> vector<64x8xf32>
    %cst_52 = arith.constant dense<0.000000e+00> : vector<64x8xf32>
    %52 = tpu.matmul %49, %51, %cst_52 {dimension_numbers = #tpu.dot_dimension_numbers<[1], [0], [0], [1], [0, 0, 1, 1], [], []>} : vector<64x64xf32>, vector<64x8xf32>, vector<64x8xf32> -> vector<64x8xf32>
    %c0_53 = arith.constant 0 : index
    %c0_54 = arith.constant 0 : index
    %53 = vector.load %arg10[%c0_53, %c0_54] : memref<1x8xf32, #tpu.memory_space<vmem>>, vector<1x8xf32>
    %54 = vector.broadcast %53 : vector<1x8xf32> to vector<64x8xf32>
    %55 = arith.addf %52, %54 : vector<64x8xf32>
    %c0_55 = arith.constant 0 : index
    %c0_56 = arith.constant 0 : index
    %c0_57 = arith.constant 0 : index
    %56 = vector.load %arg23[%c0_55, %c0_56, %c0_57] : memref<1x64x8xf32, #tpu.memory_space<vmem>>, vector<1x64x8xf32>
    %57 = vector.shape_cast %56 : vector<1x64x8xf32> to vector<64x8xf32>
    %58 = vector.shape_cast %55 : vector<64x8xf32> to vector<1x64x8xf32>
    tpu.vector_store %arg23[%c0_55, %c0_56, %c0_57], %58 {strides = array<i32>} : memref<1x64x8xf32, #tpu.memory_space<vmem>>, vector<1x64x8xf32>,
    %c0_58 = arith.constant 0 : index
    %c0_59 = arith.constant 0 : index
    %59 = vector.load %arg15[%c0_58, %c0_59] : memref<16x2048xf32, #tpu.memory_space<vmem>>, vector<16x2048xf32>
    %cst_60 = arith.constant dense<0.000000e+00> : vector<1x2048xf32>
    %60 = tpu.matmul %30, %59, %cst_60 {dimension_numbers = #tpu.dot_dimension_numbers<[1], [0], [0], [1], [0, 0, 1, 1], [], []>} : vector<1x16xf32>, vector<16x2048xf32>, vector<1x2048xf32> -> vector<1x2048xf32>
    %c0_61 = arith.constant 0 : index
    %c0_62 = arith.constant 0 : index
    %61 = vector.load %arg16[%c0_61, %c0_62] : memref<1x2048xf32, #tpu.memory_space<vmem>>, vector<1x2048xf32>
    %62 = arith.addf %60, %61 : vector<1x2048xf32>
    %c0_63 = arith.constant 0 : index
    %c0_64 = arith.constant 0 : index
    %c0_65 = arith.constant 0 : index
    %63 = vector.load %arg24[%c0_63, %c0_64, %c0_65] : memref<1x1x2048xf32, #tpu.memory_space<vmem>>, vector<1x1x2048xf32>
    %64 = vector.shape_cast %63 : vector<1x1x2048xf32> to vector<1x2048xf32>
    %65 = vector.shape_cast %62 : vector<1x2048xf32> to vector<1x1x2048xf32>
    tpu.vector_store %arg24[%c0_63, %c0_64, %c0_65], %65 {strides = array<i32>} : memref<1x1x2048xf32, #tpu.memory_space<vmem>>, vector<1x1x2048xf32>,
    return
  }
  func.func @transform_0(%arg0: i32) -> (i32, i32, i32) {
    %c0_i32 = arith.constant 0 : i32
    %c0_i32_0 = arith.constant 0 : i32
    %c0_i32_1 = arith.constant 0 : i32
    return %arg0, %c0_i32, %c0_i32_0 : i32, i32, i32
  }
  func.func @transform_1(%arg0: i32) -> (i32, i32, i32) {
    %c0_i32 = arith.constant 0 : i32
    %c0_i32_0 = arith.constant 0 : i32
    %c0_i32_1 = arith.constant 0 : i32
    return %arg0, %c0_i32, %c0_i32_0 : i32, i32, i32
  }
  func.func @transform_2(%arg0: i32) -> (i32, i32) {
    %c0_i32 = arith.constant 0 : i32
    %c0_i32_0 = arith.constant 0 : i32
    %c0_i32_1 = arith.constant 0 : i32
    return %c0_i32, %c0_i32_0 : i32, i32
  }
  func.func @transform_3(%arg0: i32) -> (i32, i32) {
    %c0_i32 = arith.constant 0 : i32
    %c0_i32_0 = arith.constant 0 : i32
    %c0_i32_1 = arith.constant 0 : i32
    return %c0_i32, %c0_i32_0 : i32, i32
  }
  func.func @transform_4(%arg0: i32) -> (i32, i32) {
    %c0_i32 = arith.constant 0 : i32
    %c0_i32_0 = arith.constant 0 : i32
    %c0_i32_1 = arith.constant 0 : i32
    return %c0_i32, %c0_i32_0 : i32, i32
  }
  func.func @transform_5(%arg0: i32) -> (i32, i32) {
    %c0_i32 = arith.constant 0 : i32
    %c0_i32_0 = arith.constant 0 : i32
    %c0_i32_1 = arith.constant 0 : i32
    return %c0_i32, %c0_i32_0 : i32, i32
  }
  func.func @transform_6(%arg0: i32) -> (i32, i32) {
    %c0_i32 = arith.constant 0 : i32
    %c0_i32_0 = arith.constant 0 : i32
    %c0_i32_1 = arith.constant 0 : i32
    return %c0_i32, %c0_i32_0 : i32, i32
  }
  func.func @transform_7(%arg0: i32) -> (i32, i32) {
    %c0_i32 = arith.constant 0 : i32
    %c0_i32_0 = arith.constant 0 : i32
    %c0_i32_1 = arith.constant 0 : i32
    return %c0_i32, %c0_i32_0 : i32, i32
  }
  func.func @transform_8(%arg0: i32) -> (i32, i32) {
    %c0_i32 = arith.constant 0 : i32
    %c0_i32_0 = arith.constant 0 : i32
    %c0_i32_1 = arith.constant 0 : i32
    return %c0_i32, %c0_i32_0 : i32, i32
  }
  func.func @transform_9(%arg0: i32) -> (i32, i32) {
    %c0_i32 = arith.constant 0 : i32
    %c0_i32_0 = arith.constant 0 : i32
    %c0_i32_1 = arith.constant 0 : i32
    return %c0_i32, %c0_i32_0 : i32, i32
  }
  func.func @transform_10(%arg0: i32) -> (i32, i32) {
    %c0_i32 = arith.constant 0 : i32
    %c0_i32_0 = arith.constant 0 : i32
    %c0_i32_1 = arith.constant 0 : i32
    return %c0_i32, %c0_i32_0 : i32, i32
  }
  func.func @transform_11(%arg0: i32) -> (i32, i32) {
    %c0_i32 = arith.constant 0 : i32
    %c0_i32_0 = arith.constant 0 : i32
    %c0_i32_1 = arith.constant 0 : i32
    return %c0_i32, %c0_i32_0 : i32, i32
  }
  func.func @transform_12(%arg0: i32) -> (i32, i32) {
    %c0_i32 = arith.constant 0 : i32
    %c0_i32_0 = arith.constant 0 : i32
    %c0_i32_1 = arith.constant 0 : i32
    return %c0_i32, %c0_i32_0 : i32, i32
  }
  func.func @transform_13(%arg0: i32) -> (i32, i32) {
    %c0_i32 = arith.constant 0 : i32
    %c0_i32_0 = arith.constant 0 : i32
    %c0_i32_1 = arith.constant 0 : i32
    return %c0_i32, %c0_i32_0 : i32, i32
  }
  func.func @transform_14(%arg0: i32) -> (i32, i32) {
    %c0_i32 = arith.constant 0 : i32
    %c0_i32_0 = arith.constant 0 : i32
    %c0_i32_1 = arith.constant 0 : i32
    return %c0_i32, %c0_i32_0 : i32, i32
  }
  func.func @transform_15(%arg0: i32) -> (i32, i32) {
    %c0_i32 = arith.constant 0 : i32
    %c0_i32_0 = arith.constant 0 : i32
    %c0_i32_1 = arith.constant 0 : i32
    return %c0_i32, %c0_i32_0 : i32, i32
  }
  func.func @transform_16(%arg0: i32) -> (i32, i32) {
    %c0_i32 = arith.constant 0 : i32
    %c0_i32_0 = arith.constant 0 : i32
    %c0_i32_1 = arith.constant 0 : i32
    return %c0_i32, %c0_i32_0 : i32, i32
  }
  func.func @transform_17(%arg0: i32) -> (i32, i32) {
    %c0_i32 = arith.constant 0 : i32
    %c0_i32_0 = arith.constant 0 : i32
    %c0_i32_1 = arith.constant 0 : i32
    return %c0_i32, %c0_i32_0 : i32, i32
  }
  func.func @transform_18(%arg0: i32) -> (i32, i32) {
    %c0_i32 = arith.constant 0 : i32
    %c0_i32_0 = arith.constant 0 : i32
    %c0_i32_1 = arith.constant 0 : i32
    return %c0_i32, %c0_i32_0 : i32, i32
  }
  func.func @transform_19(%arg0: i32) -> (i32, i32) {
    %c0_i32 = arith.constant 0 : i32
    %c0_i32_0 = arith.constant 0 : i32
    %c0_i32_1 = arith.constant 0 : i32
    return %c0_i32, %c0_i32_0 : i32, i32
  }
  func.func @transform_20(%arg0: i32) -> (i32, i32) {
    %c0_i32 = arith.constant 0 : i32
    %c0_i32_0 = arith.constant 0 : i32
    %c0_i32_1 = arith.constant 0 : i32
    return %c0_i32, %c0_i32_0 : i32, i32
  }
  func.func @transform_21(%arg0: i32) -> (i32, i32, i32) {
    %c0_i32 = arith.constant 0 : i32
    %c0_i32_0 = arith.constant 0 : i32
    %c0_i32_1 = arith.constant 0 : i32
    return %arg0, %c0_i32, %c0_i32_0 : i32, i32, i32
  }
  func.func @transform_22(%arg0: i32) -> (i32, i32, i32) {
    %c0_i32 = arith.constant 0 : i32
    %c0_i32_0 = arith.constant 0 : i32
    %c0_i32_1 = arith.constant 0 : i32
    return %arg0, %c0_i32, %c0_i32_0 : i32, i32, i32
  }
  func.func @transform_23(%arg0: i32) -> (i32, i32, i32) {
    %c0_i32 = arith.constant 0 : i32
    %c0_i32_0 = arith.constant 0 : i32
    %c0_i32_1 = arith.constant 0 : i32
    return %arg0, %c0_i32, %c0_i32_0 : i32, i32, i32
  }
}

module attributes {stable_mosaic.version = 11 : i64} {
  func.func @kernel(%arg0: i32, %arg1: memref<1x64x32xf32, #tpu.memory_space<vmem>>, %arg2: memref<1x64x8xf32, #tpu.memory_space<vmem>>, %arg3: memref<64x64xf32, #tpu.memory_space<vmem>>, %arg4: memref<32x16xf32, #tpu.memory_space<vmem>>, %arg5: memref<1x16xf32, #tpu.memory_space<vmem>>, %arg6: memref<16x8xf32, #tpu.memory_space<vmem>>, %arg7: memref<1x8xf32, #tpu.memory_space<vmem>>, %arg8: memref<1x64x8xf32, #tpu.memory_space<vmem>>) attributes {dimension_semantics = [#tpu.dimension_semantics<parallel>], iteration_bounds = array<i64: 2>, scalar_prefetch = 0 : i64, scratch_operands = 0 : i64, tpu.core_type = #tpu.core_type<tc>, window_params = [{transform_indices = @transform_0, window_bounds = array<i64: 1, 64, 32>}, {transform_indices = @transform_1, window_bounds = array<i64: 1, 64, 8>}, {pipeline_mode = #tpu.pipeline_mode<synchronous>, transform_indices = @transform_2, window_bounds = array<i64: 64, 64>}, {pipeline_mode = #tpu.pipeline_mode<synchronous>, transform_indices = @transform_3, window_bounds = array<i64: 32, 16>}, {pipeline_mode = #tpu.pipeline_mode<synchronous>, transform_indices = @transform_4, window_bounds = array<i64: 1, 16>}, {pipeline_mode = #tpu.pipeline_mode<synchronous>, transform_indices = @transform_5, window_bounds = array<i64: 16, 8>}, {pipeline_mode = #tpu.pipeline_mode<synchronous>, transform_indices = @transform_6, window_bounds = array<i64: 1, 8>}, {transform_indices = @transform_7, window_bounds = array<i64: 1, 64, 8>}]} {
    %c0 = arith.constant 0 : index
    %c0_0 = arith.constant 0 : index
    %c0_1 = arith.constant 0 : index
    %0 = vector.load %arg1[%c0, %c0_0, %c0_1] : memref<1x64x32xf32, #tpu.memory_space<vmem>>, vector<1x64x32xf32>
    %1 = vector.shape_cast %0 : vector<1x64x32xf32> to vector<64x32xf32>
    %c0_2 = arith.constant 0 : index
    %c0_3 = arith.constant 0 : index
    %2 = vector.load %arg3[%c0_2, %c0_3] : memref<64x64xf32, #tpu.memory_space<vmem>>, vector<64x64xf32>
    %c0_4 = arith.constant 0 : index
    %c0_5 = arith.constant 0 : index
    %3 = vector.load %arg4[%c0_4, %c0_5] : memref<32x16xf32, #tpu.memory_space<vmem>>, vector<32x16xf32>
    %cst = arith.constant dense<0.000000e+00> : vector<64x16xf32>
    %4 = tpu.matmul %1, %3, %cst {dimension_numbers = #tpu.dot_dimension_numbers<[1], [0], [0], [1], [0, 0, 1, 1], [], []>} : vector<64x32xf32>, vector<32x16xf32>, vector<64x16xf32> -> vector<64x16xf32>
    %cst_6 = arith.constant dense<0.000000e+00> : vector<64x16xf32>
    %5 = tpu.matmul %2, %4, %cst_6 {dimension_numbers = #tpu.dot_dimension_numbers<[1], [0], [0], [1], [0, 0, 1, 1], [], []>} : vector<64x64xf32>, vector<64x16xf32>, vector<64x16xf32> -> vector<64x16xf32>
    %c0_7 = arith.constant 0 : index
    %c0_8 = arith.constant 0 : index
    %6 = vector.load %arg5[%c0_7, %c0_8] : memref<1x16xf32, #tpu.memory_space<vmem>>, vector<1x16xf32>
    %7 = vector.broadcast %6 : vector<1x16xf32> to vector<64x16xf32>
    %8 = arith.addf %5, %7 : vector<64x16xf32>
    %cst_9 = arith.constant 0.000000e+00 : f32
    %9 = vector.broadcast %cst_9 : f32 to vector<64x16xf32>
    %10 = arith.cmpf ogt, %8, %9 : vector<64x16xf32>
    %cst_10 = arith.constant 0.00999999977 : f32
    %11 = vector.broadcast %cst_10 : f32 to vector<64x16xf32>
    %12 = arith.mulf %11, %8 : vector<64x16xf32>
    %13 = arith.select %10, %8, %12 : vector<64x16xi1>, vector<64x16xf32>
    %c0_11 = arith.constant 0 : index
    %c0_12 = arith.constant 0 : index
    %14 = vector.load %arg3[%c0_11, %c0_12] : memref<64x64xf32, #tpu.memory_space<vmem>>, vector<64x64xf32>
    %c0_13 = arith.constant 0 : index
    %c0_14 = arith.constant 0 : index
    %15 = vector.load %arg6[%c0_13, %c0_14] : memref<16x8xf32, #tpu.memory_space<vmem>>, vector<16x8xf32>
    %cst_15 = arith.constant dense<0.000000e+00> : vector<64x8xf32>
    %16 = tpu.matmul %13, %15, %cst_15 {dimension_numbers = #tpu.dot_dimension_numbers<[1], [0], [0], [1], [0, 0, 1, 1], [], []>} : vector<64x16xf32>, vector<16x8xf32>, vector<64x8xf32> -> vector<64x8xf32>
    %cst_16 = arith.constant dense<0.000000e+00> : vector<64x8xf32>
    %17 = tpu.matmul %14, %16, %cst_16 {dimension_numbers = #tpu.dot_dimension_numbers<[1], [0], [0], [1], [0, 0, 1, 1], [], []>} : vector<64x64xf32>, vector<64x8xf32>, vector<64x8xf32> -> vector<64x8xf32>
    %c0_17 = arith.constant 0 : index
    %c0_18 = arith.constant 0 : index
    %18 = vector.load %arg7[%c0_17, %c0_18] : memref<1x8xf32, #tpu.memory_space<vmem>>, vector<1x8xf32>
    %19 = vector.broadcast %18 : vector<1x8xf32> to vector<64x8xf32>
    %20 = arith.addf %17, %19 : vector<64x8xf32>
    %c0_19 = arith.constant 0 : index
    %c0_20 = arith.constant 0 : index
    %c0_21 = arith.constant 0 : index
    %21 = vector.load %arg2[%c0_19, %c0_20, %c0_21] : memref<1x64x8xf32, #tpu.memory_space<vmem>>, vector<1x64x8xf32>
    %22 = vector.shape_cast %21 : vector<1x64x8xf32> to vector<64x8xf32>
    %cst_22 = arith.constant 0.00999999977 : f32
    %23 = vector.broadcast %cst_22 : f32 to vector<64x8xf32>
    %24 = arith.mulf %23, %22 : vector<64x8xf32>
    %cst_23 = arith.constant 9.900000e-01 : f32
    %25 = vector.broadcast %cst_23 : f32 to vector<64x8xf32>
    %26 = arith.mulf %25, %20 : vector<64x8xf32>
    %27 = arith.addf %24, %26 : vector<64x8xf32>
    %c0_24 = arith.constant 0 : index
    %c0_25 = arith.constant 0 : index
    %c0_26 = arith.constant 0 : index
    %28 = vector.load %arg8[%c0_24, %c0_25, %c0_26] : memref<1x64x8xf32, #tpu.memory_space<vmem>>, vector<1x64x8xf32>
    %29 = vector.shape_cast %28 : vector<1x64x8xf32> to vector<64x8xf32>
    %30 = vector.shape_cast %27 : vector<64x8xf32> to vector<1x64x8xf32>
    tpu.vector_store %arg8[%c0_24, %c0_25, %c0_26], %30 {strides = array<i32>} : memref<1x64x8xf32, #tpu.memory_space<vmem>>, vector<1x64x8xf32>,
    return
  }
  func.func @transform_0(%arg0: i32) -> (i32, i32, i32) {
    %c0_i32 = arith.constant 0 : i32
    %c0_i32_0 = arith.constant 0 : i32
    %c0_i32_1 = arith.constant 0 : i32
    return %arg0, %c0_i32, %c0_i32_0 : i32, i32, i32
  }
  func.func @transform_1(%arg0: i32) -> (i32, i32, i32) {
    %c0_i32 = arith.constant 0 : i32
    %c0_i32_0 = arith.constant 0 : i32
    %c0_i32_1 = arith.constant 0 : i32
    return %arg0, %c0_i32, %c0_i32_0 : i32, i32, i32
  }
  func.func @transform_2(%arg0: i32) -> (i32, i32) {
    %c0_i32 = arith.constant 0 : i32
    %c0_i32_0 = arith.constant 0 : i32
    %c0_i32_1 = arith.constant 0 : i32
    return %c0_i32, %c0_i32_0 : i32, i32
  }
  func.func @transform_3(%arg0: i32) -> (i32, i32) {
    %c0_i32 = arith.constant 0 : i32
    %c0_i32_0 = arith.constant 0 : i32
    %c0_i32_1 = arith.constant 0 : i32
    return %c0_i32, %c0_i32_0 : i32, i32
  }
  func.func @transform_4(%arg0: i32) -> (i32, i32) {
    %c0_i32 = arith.constant 0 : i32
    %c0_i32_0 = arith.constant 0 : i32
    %c0_i32_1 = arith.constant 0 : i32
    return %c0_i32, %c0_i32_0 : i32, i32
  }
  func.func @transform_5(%arg0: i32) -> (i32, i32) {
    %c0_i32 = arith.constant 0 : i32
    %c0_i32_0 = arith.constant 0 : i32
    %c0_i32_1 = arith.constant 0 : i32
    return %c0_i32, %c0_i32_0 : i32, i32
  }
  func.func @transform_6(%arg0: i32) -> (i32, i32) {
    %c0_i32 = arith.constant 0 : i32
    %c0_i32_0 = arith.constant 0 : i32
    %c0_i32_1 = arith.constant 0 : i32
    return %c0_i32, %c0_i32_0 : i32, i32
  }
  func.func @transform_7(%arg0: i32) -> (i32, i32, i32) {
    %c0_i32 = arith.constant 0 : i32
    %c0_i32_0 = arith.constant 0 : i32
    %c0_i32_1 = arith.constant 0 : i32
    return %arg0, %c0_i32, %c0_i32_0 : i32, i32, i32
  }
}

</mosaic_0001>

<llo_original>
// kernel: fmgen_forward.3
$region0: #{fmgen_forward.3}
  #allocation0 [shape = 'u32[]', space=smem, size = 0x4, offset = 0x4, fixed_abs, tag = 'smem constant byte address 0x4 - core index']
  #allocation1 [shape = 'u32[144,128]{1,0:T(1,128)}', space=vmem, size = 0x12000, scoped, tag = 'internal scratch']
  %s0 = inlined_call_operand.vmem [shape: f32[2,64,8], index: 0, kind: input, shape index: {}]
  %s1 = inlined_call_operand.vmem [shape: f32[64,64], index: 1, kind: input, shape index: {}]
  %s2 = inlined_call_operand.vmem [shape: f32[32,32], index: 2, kind: input, shape index: {}]
  %s3 = inlined_call_operand.vmem [shape: f32[32,64], index: 3, kind: input, shape index: {}]
  %s4 = inlined_call_operand.vmem [shape: f32[16,32], index: 4, kind: input, shape index: {}]
  %s5 = inlined_call_operand.vmem [shape: f32[8,16], index: 5, kind: input, shape index: {}]
  %s6 = inlined_call_operand.vmem [shape: f32[1,16], index: 6, kind: input, shape index: {}]
  %s7 = inlined_call_operand.vmem [shape: f32[16,32], index: 7, kind: input, shape index: {}]
  %s8 = inlined_call_operand.vmem [shape: f32[1,32], index: 8, kind: input, shape index: {}]
  %s9 = inlined_call_operand.hbm [shape: f32[8,16], index: 9, kind: input, shape index: {}]
  %s10 = inlined_call_operand.vmem [shape: f32[1,16], index: 10, kind: input, shape index: {}]
  %s11 = inlined_call_operand.hbm [shape: f32[16,32], index: 11, kind: input, shape index: {}]
  %s12 = inlined_call_operand.hbm [shape: f32[1,32], index: 12, kind: input, shape index: {}]
  %s13 = inlined_call_operand.vmem [shape: f32[2,1,32], index: 13, kind: output, shape index: {0}]
  %s14 = inlined_call_operand.vmem [shape: f32[2,64,32], index: 14, kind: output, shape index: {1}]
  %15 = xla_tuple %s13, %s14
  %s16 = sld [smem:[#allocation0]]
  $region105: #{fmgen_forward.3} parent=0
    _
  %s18 = ssub.s32 1, %s16
  %s19 = scalar_select 0, %s18, %s16
  $region1: #{fmgen_forward.3} parent=0
    #allocation2 [shape = 'u8[4096]{0}', space=vmem, size = 0x1000, scoped, tag = 'input window, operand 9, single buffered']
    #allocation3 [shape = 's32[2]{0}', space=sflag, size = 0x8, scoped, tag = 'scoped memory for fmgen_forward.3']
    #allocation4 [shape = 'u8[8192]{0}', space=vmem, size = 0x2000, scoped, tag = 'input window, operand 11, single buffered']
    #allocation5 [shape = 's32[1]{0}', space=sflag, size = 0x4, scoped, tag = 'scoped memory for fmgen_forward.3']
    #allocation6 [shape = 'u8[512]{0}', space=vmem, size = 0x400, scoped, tag = 'input window, operand 12, single buffered']
    %20 = vsyncpa [#allocation3], 0
    %21 = vsyncpa [#allocation5], 0
    loop: start=0, step=1, limit=4
    $region2: #{fmgen_forward.3} parent=1 // loop_pre_header
      _
    $region3: #{fmgen_forward.3} parent=1 // loop_header
      %s23 = sphi 0, %s27
      %p24 = scmp.ge.s32.totalorder %s23, 4
      %s33 = sphi 0, %s35
      %s36 = sphi 0, %s33
      %s37 = sphi 0, %s36
      %s53 = sphi 0, %s37
      %s57 = sphi 0, %s57
      %s59 = sphi 0, %s57
      %s60 = sphi 0, %s59
      %s74 = sphi 0, %s60
      %s78 = sphi 0, %s78
      %s80 = sphi 0, %s78
      %s81 = sphi 0, %s80
      %s95 = sphi 0, %s81
      %s99 = sphi 0, %s99
      %s101 = sphi 0, %s99
      %s102 = sphi 0, %s101
      %s116 = sphi 0, %s102
      %s120 = sphi 0, %s120
      %s122 = sphi 0, %s120
      %s123 = sphi 0, %s122
      %s137 = sphi 0, %s123
      %s141 = sphi 0, %s141
      %s143 = sphi 0, %s141
      %s144 = sphi 0, %s143
      %s158 = sphi 0, %s144
      %s162 = sphi 0, %s162
      %s164 = sphi 0, %s162
      %s165 = sphi 0, %s164
      %s179 = sphi 0, %s165
      %s183 = sphi 0, %s183
      %s185 = sphi 0, %s183
      %s186 = sphi 0, %s185
      %s200 = sphi 0, %s186
      %s204 = sphi 0, %s204
      %s206 = sphi 0, %s204
      %s207 = sphi 0, %s206
      %s221 = sphi 0, %s207
      %s225 = sphi 0, %s225
      %s227 = sphi 0, %s225
      %s228 = sphi 0, %s227
      %s242 = sphi 0, %s228
      %s246 = sphi 0, %s246
      %s248 = sphi 0, %s246
      %s249 = sphi 0, %s248
      %s263 = sphi 0, %s249
      %s267 = sphi 0, %s267
      %s269 = sphi 0, %s267
      %s270 = sphi 0, %s269
      %s284 = sphi 0, %s270
      %s288 = sphi 0, %s288
      %s290 = sphi 0, %s288
      %s291 = sphi 0, %s290
      %s305 = sphi 0, %s291
      %s311 = sphi 0, %s313
      %s314 = sphi 0, %s311
      %s315 = sphi 0, %s314
      %s331 = sphi 0, %s315
      %s337 = sphi 0, %s339
      %s340 = sphi 0, %s337
      %s341 = sphi 0, %s340
      %s357 = sphi 0, %s341
    $region4: #{fmgen_forward.3} parent=1 // loop_header_branch
      %26 = sbr.rel (%p24) target = $region8
    $region5: #{fmgen_forward.3} parent=1 // loop_body
      %s28 = ssub.s32 %s23, 1
      %s29 = ssub.s32 %s23, 2
      %s30 = sadd.s32 %s23, 1
      %s31 = ssub.s32 %s23, %s30
      %p32 = scmp.eq.s32.totalorder %s31, 0
      %s34 = sadd.s32 %s33, 1
      %s35 = scalar_select %p32, %s33, %s34
      %p38 = pneg %p32
      %p39 = scmp.eq.s32.totalorder %s23, 1
      %p40 = por %p38, %p39
      %p41 = scmp.ne.s32.totalorder %s33, %s36
      %p42 = scmp.eq.s32.totalorder %s23, 0
      %p43 = por %p41, %p42
      %p44 = scmp.ne.s32.totalorder %s33, %s36
      %p45 = scmp.eq.s32.totalorder %s28, 1
      %p46 = por %p44, %p45
      %p47 = scmp.ne.s32.totalorder %s36, %s37
      %p48 = scmp.eq.s32.totalorder %s28, 0
      %p49 = por %p47, %p48
      %p50 = scmp.ne.s32.totalorder %s36, %s37
      %p51 = scmp.eq.s32.totalorder %s29, 1
      %p52 = por %p50, %p51
      %p54 = scmp.ne.s32.totalorder %s37, %s53
      %p55 = scmp.eq.s32.totalorder %s29, 0
      %p56 = por %p54, %p55
      %s58 = sadd.s32 %s57, 1
      %p61 = scmp.eq.s32.totalorder %s23, 1
      %p62 = scmp.ne.s32.totalorder %s57, %s59
      %p63 = scmp.eq.s32.totalorder %s23, 0
      %p64 = por %p62, %p63
      %p65 = scmp.ne.s32.totalorder %s57, %s59
      %p66 = scmp.eq.s32.totalorder %s28, 1
      %p67 = por %p65, %p66
      %p68 = scmp.ne.s32.totalorder %s59, %s60
      %p69 = scmp.eq.s32.totalorder %s28, 0
      %p70 = por %p68, %p69
      %p71 = scmp.ne.s32.totalorder %s59, %s60
      %p72 = scmp.eq.s32.totalorder %s29, 1
      %p73 = por %p71, %p72
      %p75 = scmp.ne.s32.totalorder %s60, %s74
      %p76 = scmp.eq.s32.totalorder %s29, 0
      %p77 = por %p75, %p76
      %s79 = sadd.s32 %s78, 1
      %p82 = scmp.eq.s32.totalorder %s23, 1
      %p83 = scmp.ne.s32.totalorder %s78, %s80
      %p84 = scmp.eq.s32.totalorder %s23, 0
      %p85 = por %p83, %p84
      %p86 = scmp.ne.s32.totalorder %s78, %s80
      %p87 = scmp.eq.s32.totalorder %s28, 1
      %p88 = por %p86, %p87
      %p89 = scmp.ne.s32.totalorder %s80, %s81
      %p90 = scmp.eq.s32.totalorder %s28, 0
      %p91 = por %p89, %p90
      %p92 = scmp.ne.s32.totalorder %s80, %s81
      %p93 = scmp.eq.s32.totalorder %s29, 1
      %p94 = por %p92, %p93
      %p96 = scmp.ne.s32.totalorder %s81, %s95
      %p97 = scmp.eq.s32.totalorder %s29, 0
      %p98 = por %p96, %p97
      %s100 = sadd.s32 %s99, 1
      %p103 = scmp.eq.s32.totalorder %s23, 1
      %p104 = scmp.ne.s32.totalorder %s99, %s101
      %p105 = scmp.eq.s32.totalorder %s23, 0
      %p106 = por %p104, %p105
      %p107 = scmp.ne.s32.totalorder %s99, %s101
      %p108 = scmp.eq.s32.totalorder %s28, 1
      %p109 = por %p107, %p108
      %p110 = scmp.ne.s32.totalorder %s101, %s102
      %p111 = scmp.eq.s32.totalorder %s28, 0
      %p112 = por %p110, %p111
      %p113 = scmp.ne.s32.totalorder %s101, %s102
      %p114 = scmp.eq.s32.totalorder %s29, 1
      %p115 = por %p113, %p114
      %p117 = scmp.ne.s32.totalorder %s102, %s116
      %p118 = scmp.eq.s32.totalorder %s29, 0
      %p119 = por %p117, %p118
      %s121 = sadd.s32 %s120, 1
      %p124 = scmp.eq.s32.totalorder %s23, 1
      %p125 = scmp.ne.s32.totalorder %s120, %s122
      %p126 = scmp.eq.s32.totalorder %s23, 0
      %p127 = por %p125, %p126
      %p128 = scmp.ne.s32.totalorder %s120, %s122
      %p129 = scmp.eq.s32.totalorder %s28, 1
      %p130 = por %p128, %p129
      %p131 = scmp.ne.s32.totalorder %s122, %s123
      %p132 = scmp.eq.s32.totalorder %s28, 0
      %p133 = por %p131, %p132
      %p134 = scmp.ne.s32.totalorder %s122, %s123
      %p135 = scmp.eq.s32.totalorder %s29, 1
      %p136 = por %p134, %p135
      %p138 = scmp.ne.s32.totalorder %s123, %s137
      %p139 = scmp.eq.s32.totalorder %s29, 0
      %p140 = por %p138, %p139
      %s142 = sadd.s32 %s141, 1
      %p145 = scmp.eq.s32.totalorder %s23, 1
      %p146 = scmp.ne.s32.totalorder %s141, %s143
      %p147 = scmp.eq.s32.totalorder %s23, 0
      %p148 = por %p146, %p147
      %p149 = scmp.ne.s32.totalorder %s141, %s143
      %p150 = scmp.eq.s32.totalorder %s28, 1
      %p151 = por %p149, %p150
      %p152 = scmp.ne.s32.totalorder %s143, %s144
      %p153 = scmp.eq.s32.totalorder %s28, 0
      %p154 = por %p152, %p153
      %p155 = scmp.ne.s32.totalorder %s143, %s144
      %p156 = scmp.eq.s32.totalorder %s29, 1
      %p157 = por %p155, %p156
      %p159 = scmp.ne.s32.totalorder %s144, %s158
      %p160 = scmp.eq.s32.totalorder %s29, 0
      %p161 = por %p159, %p160
      %s163 = sadd.s32 %s162, 1
      %p166 = scmp.eq.s32.totalorder %s23, 1
      %p167 = scmp.ne.s32.totalorder %s162, %s164
      %p168 = scmp.eq.s32.totalorder %s23, 0
      %p169 = por %p167, %p168
      %p170 = scmp.ne.s32.totalorder %s162, %s164
      %p171 = scmp.eq.s32.totalorder %s28, 1
      %p172 = por %p170, %p171
      %p173 = scmp.ne.s32.totalorder %s164, %s165
      %p174 = scmp.eq.s32.totalorder %s28, 0
      %p175 = por %p173, %p174
      %p176 = scmp.ne.s32.totalorder %s164, %s165
      %p177 = scmp.eq.s32.totalorder %s29, 1
      %p178 = por %p176, %p177
      %p180 = scmp.ne.s32.totalorder %s165, %s179
      %p181 = scmp.eq.s32.totalorder %s29, 0
      %p182 = por %p180, %p181
      %s184 = sadd.s32 %s183, 1
      %p187 = scmp.eq.s32.totalorder %s23, 1
      %p188 = scmp.ne.s32.totalorder %s183, %s185
      %p189 = scmp.eq.s32.totalorder %s23, 0
      %p190 = por %p188, %p189
      %p191 = scmp.ne.s32.totalorder %s183, %s185
      %p192 = scmp.eq.s32.totalorder %s28, 1
      %p193 = por %p191, %p192
      %p194 = scmp.ne.s32.totalorder %s185, %s186
      %p195 = scmp.eq.s32.totalorder %s28, 0
      %p196 = por %p194, %p195
      %p197 = scmp.ne.s32.totalorder %s185, %s186
      %p198 = scmp.eq.s32.totalorder %s29, 1
      %p199 = por %p197, %p198
      %p201 = scmp.ne.s32.totalorder %s186, %s200
      %p202 = scmp.eq.s32.totalorder %s29, 0
      %p203 = por %p201, %p202
      %s205 = sadd.s32 %s204, 1
      %p208 = scmp.eq.s32.totalorder %s23, 1
      %p209 = scmp.ne.s32.totalorder %s204, %s206
      %p210 = scmp.eq.s32.totalorder %s23, 0
      %p211 = por %p209, %p210
      %p212 = scmp.ne.s32.totalorder %s204, %s206
      %p213 = scmp.eq.s32.totalorder %s28, 1
      %p214 = por %p212, %p213
      %p215 = scmp.ne.s32.totalorder %s206, %s207
      %p216 = scmp.eq.s32.totalorder %s28, 0
      %p217 = por %p215, %p216
      %p218 = scmp.ne.s32.totalorder %s206, %s207
      %p219 = scmp.eq.s32.totalorder %s29, 1
      %p220 = por %p218, %p219
      %p222 = scmp.ne.s32.totalorder %s207, %s221
      %p223 = scmp.eq.s32.totalorder %s29, 0
      %p224 = por %p222, %p223
      %s226 = sadd.s32 %s225, 1
      %p229 = scmp.eq.s32.totalorder %s23, 1
      %p230 = scmp.ne.s32.totalorder %s225, %s227
      %p231 = scmp.eq.s32.totalorder %s23, 0
      %p232 = por %p230, %p231
      %p233 = scmp.ne.s32.totalorder %s225, %s227
      %p234 = scmp.eq.s32.totalorder %s28, 1
      %p235 = por %p233, %p234
      %p236 = scmp.ne.s32.totalorder %s227, %s228
      %p237 = scmp.eq.s32.totalorder %s28, 0
      %p238 = por %p236, %p237
      %p239 = scmp.ne.s32.totalorder %s227, %s228
      %p240 = scmp.eq.s32.totalorder %s29, 1
      %p241 = por %p239, %p240
      %p243 = scmp.ne.s32.totalorder %s228, %s242
      %p244 = scmp.eq.s32.totalorder %s29, 0
      %p245 = por %p243, %p244
      %s247 = sadd.s32 %s246, 1
      %p250 = scmp.eq.s32.totalorder %s23, 1
      %p251 = scmp.ne.s32.totalorder %s246, %s248
      %p252 = scmp.eq.s32.totalorder %s23, 0
      %p253 = por %p251, %p252
      %p254 = scmp.ne.s32.totalorder %s246, %s248
      %p255 = scmp.eq.s32.totalorder %s28, 1
      %p256 = por %p254, %p255
      %p257 = scmp.ne.s32.totalorder %s248, %s249
      %p258 = scmp.eq.s32.totalorder %s28, 0
      %p259 = por %p257, %p258
      %p260 = scmp.ne.s32.totalorder %s248, %s249
      %p261 = scmp.eq.s32.totalorder %s29, 1
      %p262 = por %p260, %p261
      %p264 = scmp.ne.s32.totalorder %s249, %s263
      %p265 = scmp.eq.s32.totalorder %s29, 0
      %p266 = por %p264, %p265
      %s268 = sadd.s32 %s267, 1
      %p271 = scmp.eq.s32.totalorder %s23, 1
      %p272 = scmp.ne.s32.totalorder %s267, %s269
      %p273 = scmp.eq.s32.totalorder %s23, 0
      %p274 = por %p272, %p273
      %p275 = scmp.ne.s32.totalorder %s267, %s269
      %p276 = scmp.eq.s32.totalorder %s28, 1
      %p277 = por %p275, %p276
      %p278 = scmp.ne.s32.totalorder %s269, %s270
      %p279 = scmp.eq.s32.totalorder %s28, 0
      %p280 = por %p278, %p279
      %p281 = scmp.ne.s32.totalorder %s269, %s270
      %p282 = scmp.eq.s32.totalorder %s29, 1
      %p283 = por %p281, %p282
      %p285 = scmp.ne.s32.totalorder %s270, %s284
      %p286 = scmp.eq.s32.totalorder %s29, 0
      %p287 = por %p285, %p286
      %s289 = sadd.s32 %s288, 1
      %p292 = scmp.eq.s32.totalorder %s23, 1
      %p293 = scmp.ne.s32.totalorder %s288, %s290
      %p294 = scmp.eq.s32.totalorder %s23, 0
      %p295 = por %p293, %p294
      %p296 = scmp.ne.s32.totalorder %s288, %s290
      %p297 = scmp.eq.s32.totalorder %s28, 1
      %p298 = por %p296, %p297
      %p299 = scmp.ne.s32.totalorder %s290, %s291
      %p300 = scmp.eq.s32.totalorder %s28, 0
      %p301 = por %p299, %p300
      %p302 = scmp.ne.s32.totalorder %s290, %s291
      %p303 = scmp.eq.s32.totalorder %s29, 1
      %p304 = por %p302, %p303
      %p306 = scmp.ne.s32.totalorder %s291, %s305
      %p307 = scmp.eq.s32.totalorder %s29, 0
      %p308 = por %p306, %p307
      %s309 = ssub.s32 %s23, %s30
      %p310 = scmp.eq.s32.totalorder %s309, 0
      %s312 = sadd.s32 %s311, 1
      %s313 = scalar_select %p310, %s311, %s312
      %p316 = pneg %p310
      %p317 = scmp.eq.s32.totalorder %s23, 1
      %p318 = por %p316, %p317
      %p319 = scmp.ne.s32.totalorder %s311, %s314
      %p320 = scmp.eq.s32.totalorder %s23, 0
      %p321 = por %p319, %p320
      %p322 = scmp.ne.s32.totalorder %s311, %s314
      %p323 = scmp.eq.s32.totalorder %s28, 1
      %p324 = por %p322, %p323
      %p325 = scmp.ne.s32.totalorder %s314, %s315
      %p326 = scmp.eq.s32.totalorder %s28, 0
      %p327 = por %p325, %p326
      %p328 = scmp.ne.s32.totalorder %s314, %s315
      %p329 = scmp.eq.s32.totalorder %s29, 1
      %p330 = por %p328, %p329
      %p332 = scmp.ne.s32.totalorder %s315, %s331
      %p333 = scmp.eq.s32.totalorder %s29, 0
      %p334 = por %p332, %p333
      %s335 = ssub.s32 %s23, %s30
      %p336 = scmp.eq.s32.totalorder %s335, 0
      %s338 = sadd.s32 %s337, 1
      %s339 = scalar_select %p336, %s337, %s338
      %p342 = pneg %p336
      %p343 = scmp.eq.s32.totalorder %s23, 1
      %p344 = por %p342, %p343
      %p345 = scmp.ne.s32.totalorder %s337, %s340
      %p346 = scmp.eq.s32.totalorder %s23, 0
      %p347 = por %p345, %p346
      %p348 = scmp.ne.s32.totalorder %s337, %s340
      %p349 = scmp.eq.s32.totalorder %s28, 1
      %p350 = por %p348, %p349
      %p351 = scmp.ne.s32.totalorder %s340, %s341
      %p352 = scmp.eq.s32.totalorder %s28, 0
      %p353 = por %p351, %p352
      %p354 = scmp.ne.s32.totalorder %s340, %s341
      %p355 = scmp.eq.s32.totalorder %s29, 1
      %p356 = por %p354, %p355
      %p358 = scmp.ne.s32.totalorder %s341, %s357
      %p359 = scmp.eq.s32.totalorder %s29, 0
      %p360 = por %p358, %p359
      %p361 = scmp.le.s32.totalorder 1, %s23
      %p362 = scmp.lt.s32.totalorder %s23, 3
      %p363 = pnand %p361, %p362
      %p364 = pneg %p363
      // Predicated region
      $region9: #{fmgen_forward.3} parent=5 // pred_check
        _
      $region10: #{fmgen_forward.3} parent=5 // pred_check_branch
        %366 = sbr.rel (%p363) target = $region12
      $region11: #{fmgen_forward.3} parent=5 // pred_region
        %s367 = ssub.s32 %s23, 1
        // Predicated region
        $region13: #{fmgen_forward.3} parent=11 // pred_check
          %p368 = pneg %p70
        $region14: #{fmgen_forward.3} parent=11 // pred_check_branch
          %370 = sbr.rel (%p368) target = $region16
        $region15: #{fmgen_forward.3} parent=11 // pred_region
          _
        $region16: #{fmgen_forward.3} parent=11 // pred_fallthru
          _
        // Predicated region
        $region17: #{fmgen_forward.3} parent=11 // pred_check
          %p371 = pneg %p91
        $region18: #{fmgen_forward.3} parent=11 // pred_check_branch
          %373 = sbr.rel (%p371) target = $region20
        $region19: #{fmgen_forward.3} parent=11 // pred_region
          _
        $region20: #{fmgen_forward.3} parent=11 // pred_fallthru
          _
        // Predicated region
        $region21: #{fmgen_forward.3} parent=11 // pred_check
          %p374 = pneg %p112
        $region22: #{fmgen_forward.3} parent=11 // pred_check_branch
          %376 = sbr.rel (%p374) target = $region24
        $region23: #{fmgen_forward.3} parent=11 // pred_region
          _
        $region24: #{fmgen_forward.3} parent=11 // pred_fallthru
          _
        // Predicated region
        $region25: #{fmgen_forward.3} parent=11 // pred_check
          %p377 = pneg %p133
        $region26: #{fmgen_forward.3} parent=11 // pred_check_branch
          %379 = sbr.rel (%p377) target = $region28
        $region27: #{fmgen_forward.3} parent=11 // pred_region
          _
        $region28: #{fmgen_forward.3} parent=11 // pred_fallthru
          _
        // Predicated region
        $region29: #{fmgen_forward.3} parent=11 // pred_check
          %p380 = pneg %p154
        $region30: #{fmgen_forward.3} parent=11 // pred_check_branch
          %382 = sbr.rel (%p380) target = $region32
        $region31: #{fmgen_forward.3} parent=11 // pred_region
          _
        $region32: #{fmgen_forward.3} parent=11 // pred_fallthru
          _
        // Predicated region
        $region33: #{fmgen_forward.3} parent=11 // pred_check
          %p383 = pneg %p175
        $region34: #{fmgen_forward.3} parent=11 // pred_check_branch
          %385 = sbr.rel (%p383) target = $region36
        $region35: #{fmgen_forward.3} parent=11 // pred_region
          _
        $region36: #{fmgen_forward.3} parent=11 // pred_fallthru
          _
        // Predicated region
        $region37: #{fmgen_forward.3} parent=11 // pred_check
          %p386 = pneg %p196
        $region38: #{fmgen_forward.3} parent=11 // pred_check_branch
          %388 = sbr.rel (%p386) target = $region40
        $region39: #{fmgen_forward.3} parent=11 // pred_region
          _
        $region40: #{fmgen_forward.3} parent=11 // pred_fallthru
          _
        // Predicated region
        $region41: #{fmgen_forward.3} parent=11 // pred_check
          %p389 = pneg %p217
        $region42: #{fmgen_forward.3} parent=11 // pred_check_branch
          %391 = sbr.rel (%p389) target = $region44
        $region43: #{fmgen_forward.3} parent=11 // pred_region
          _
        $region44: #{fmgen_forward.3} parent=11 // pred_fallthru
          _
        // Predicated region
        $region45: #{fmgen_forward.3} parent=11 // pred_check
          %p392 = pneg %p238
        $region46: #{fmgen_forward.3} parent=11 // pred_check_branch
          %394 = sbr.rel (%p392) target = $region48
        $region47: #{fmgen_forward.3} parent=11 // pred_region
          %s396 = ssub.s32 128, 128
          %397 = vsyncadd [#allocation3], %s396
          %s399 = sshll.u32 [#allocation2], 4
          %s400 = int_to_ptr.vmem [resolvable:$true] %s399
          %402 = dma.hbm_to_vmem [thread:$0]  %s9, 128, %s400, [#allocation3]
        $region48: #{fmgen_forward.3} parent=11 // pred_fallthru
          _
        // Predicated region
        $region49: #{fmgen_forward.3} parent=11 // pred_check
          %p403 = pneg %p259
        $region50: #{fmgen_forward.3} parent=11 // pred_check_branch
          %405 = sbr.rel (%p403) target = $region52
        $region51: #{fmgen_forward.3} parent=11 // pred_region
          _
        $region52: #{fmgen_forward.3} parent=11 // pred_fallthru
          _
        // Predicated region
        $region53: #{fmgen_forward.3} parent=11 // pred_check
          %p406 = pneg %p280
        $region54: #{fmgen_forward.3} parent=11 // pred_check_branch
          %408 = sbr.rel (%p406) target = $region56
        $region55: #{fmgen_forward.3} parent=11 // pred_region
          %s410 = ssub.s32 256, 256
          %411 = vsyncadd [#allocation5], %s410
          %s412 = sshll.u32 [#allocation4], 4
          %s413 = int_to_ptr.vmem [resolvable:$true] %s412
          %418 = dma.hbm_to_vmem [thread:$0]  %s11, 256, %s413, [#allocation5], 128, 128, 8
        $region56: #{fmgen_forward.3} parent=11 // pred_fallthru
          _
        // Predicated region
        $region57: #{fmgen_forward.3} parent=11 // pred_check
          %p419 = pneg %p301
        $region58: #{fmgen_forward.3} parent=11 // pred_check_branch
          %421 = sbr.rel (%p419) target = $region60
        $region59: #{fmgen_forward.3} parent=11 // pred_region
          %s423 = ssub.s32 16, 16
          %424 = vsyncadd [#allocation5], %s423
          %s426 = sshll.u32 [#allocation6], 4
          %s427 = int_to_ptr.vmem [resolvable:$true] %s426
          %429 = dma.hbm_to_vmem [thread:$0]  %s12, 16, %s427, [#allocation5]
        $region60: #{fmgen_forward.3} parent=11 // pred_fallthru
          _
      $region12: #{fmgen_forward.3} parent=5 // pred_fallthru
        _
      %p430 = scmp.lt.s32.totalorder %s23, 2
      // Predicated region
      $region61: #{fmgen_forward.3} parent=5 // pred_check
        %p431 = pneg %p430
      $region62: #{fmgen_forward.3} parent=5 // pred_check_branch
        %433 = sbr.rel (%p431) target = $region64
      $region63: #{fmgen_forward.3} parent=5 // pred_region
        // Predicated region
        $region65: #{fmgen_forward.3} parent=63 // pred_check
          %p434 = pneg %p43
        $region66: #{fmgen_forward.3} parent=63 // pred_check_branch
          %436 = sbr.rel (%p434) target = $region68
        $region67: #{fmgen_forward.3} parent=63 // pred_region
          %p437 = scmp.lt.s32.totalorder %s23, 1
          %s438 = scalar_select %p437, %s23, 1
          %s439 = smul.addr %s438, 8
          %s440 = smul.addr %s439, 8
          %s441 = scalar_lea.vmem %s0, %s440
        $region68: #{fmgen_forward.3} parent=63 // pred_fallthru
          _
      $region64: #{fmgen_forward.3} parent=5 // pred_fallthru
        _
      %p442 = scmp.le.s32.totalorder 1, %s23
      %p443 = scmp.lt.s32.totalorder %s23, 3
      %p444 = pnand %p442, %p443
      %p445 = pneg %p444
      // Predicated region
      $region69: #{fmgen_forward.3} parent=5 // pred_check
        _
      $region70: #{fmgen_forward.3} parent=5 // pred_check_branch
        %447 = sbr.rel (%p444) target = $region72
      $region71: #{fmgen_forward.3} parent=5 // pred_region
        %s448 = ssub.s32 %s23, 1
        // Predicated region
        $region73: #{fmgen_forward.3} parent=71 // pred_check
          %p449 = pneg %p238
        $region74: #{fmgen_forward.3} parent=71 // pred_check_branch
          %451 = sbr.rel (%p449) target = $region76
        $region75: #{fmgen_forward.3} parent=71 // pred_region
          %452 = dma.done [#allocation3], 128
        $region76: #{fmgen_forward.3} parent=71 // pred_fallthru
          _
        // Predicated region
        $region77: #{fmgen_forward.3} parent=71 // pred_check
          %p453 = pneg %p280
        $region78: #{fmgen_forward.3} parent=71 // pred_check_branch
          %455 = sbr.rel (%p453) target = $region80
        $region79: #{fmgen_forward.3} parent=71 // pred_region
          %456 = dma.done [#allocation5], 256
        $region80: #{fmgen_forward.3} parent=71 // pred_fallthru
          _
        // Predicated region
        $region81: #{fmgen_forward.3} parent=71 // pred_check
          %p457 = pneg %p301
        $region82: #{fmgen_forward.3} parent=71 // pred_check_branch
          %459 = sbr.rel (%p457) target = $region84
        $region83: #{fmgen_forward.3} parent=71 // pred_region
          %460 = dma.done [#allocation5], 16
        $region84: #{fmgen_forward.3} parent=71 // pred_fallthru
          _
        %p461 = scmp.lt.s32.totalorder %s28, 1
        %s462 = scalar_select %p461, %s28, 1
        %s463 = smul.addr %s462, 8
        %s464 = smul.addr %s463, 8
        %s465 = scalar_lea.vmem %s0, %s464
        %p466 = pneg %p49
        %p467 = pneg %p46
        %p468 = pneg %p70
        %p469 = pneg %p67
        %p470 = pneg %p91
        %p471 = pneg %p88
        %p472 = pneg %p112
        %p473 = pneg %p109
        %p474 = pneg %p133
        %p475 = pneg %p130
        %p476 = pneg %p154
        %p477 = pneg %p151
        %p478 = pneg %p175
        %p479 = pneg %p172
        %p480 = pneg %p196
        %p481 = pneg %p193
        %p482 = pneg %p217
        %p483 = pneg %p214
        %p484 = pneg %p238
        %p485 = pneg %p235
        %p486 = pneg %p259
        %p487 = pneg %p256
        %p488 = pneg %p280
        %p489 = pneg %p277
        %p490 = pneg %p301
        %p491 = pneg %p298
        %p492 = pneg %p327
        %p493 = pneg %p324
        %p494 = scmp.lt.s32.totalorder %s28, 1
        %s495 = scalar_select %p494, %s28, 1
        %s496 = scalar_lea.vmem %s13, %s495
        %p497 = pneg %p353
        %p498 = pneg %p350
        %p499 = scmp.lt.s32.totalorder %s28, 1
        %s500 = scalar_select %p499, %s28, 1
        %s501 = smul.addr %s500, 8
        %s502 = smul.addr %s501, 8
        %s503 = scalar_lea.vmem %s14, %s502
        %p504 = scmp.lt.s32.totalorder %s28, 1
        %s505 = scalar_select %p504, %s28, 1
        %s506 = smul.addr %s505, 8
        %s507 = smul.addr %s506, 8
        %s508 = scalar_lea.vmem %s0, %s507
        %p509 = scmp.lt.s32.totalorder %s28, 1
        %s510 = scalar_select %p509, %s28, 1
        %s511 = scalar_lea.vmem %s13, %s510
        %p512 = scmp.lt.s32.totalorder %s28, 1
        %s513 = scalar_select %p512, %s28, 1
        %s514 = smul.addr %s513, 8
        %s515 = smul.addr %s514, 8
        %s516 = scalar_lea.vmem %s14, %s515
        %v517 = vld [vmem:[%s508] sm:$0xff]
        %v518 = vld [vmem:[%s508 + $0x8] sm:$0xff]
        %v519 = vld [vmem:[%s508 + $0x10] sm:$0xff]
        %v520 = vld [vmem:[%s508 + $0x18] sm:$0xff]
        %v521 = vld [vmem:[%s508 + $0x20] sm:$0xff]
        %v522 = vld [vmem:[%s508 + $0x28] sm:$0xff]
        %v523 = vld [vmem:[%s508 + $0x30] sm:$0xff]
        %v524 = vld [vmem:[%s508 + $0x38] sm:$0xff]
        %v525 = vld [vmem:[%s1] sm:$0xff]
        %v526 = vld [vmem:[%s1 + $0x8] sm:$0xff]
        %v527 = vld [vmem:[%s1 + $0x10] sm:$0xff]
        %v528 = vld [vmem:[%s1 + $0x18] sm:$0xff]
        %v529 = vld [vmem:[%s1 + $0x20] sm:$0xff]
        %v530 = vld [vmem:[%s1 + $0x28] sm:$0xff]
        %v531 = vld [vmem:[%s1 + $0x30] sm:$0xff]
        %v532 = vld [vmem:[%s1 + $0x38] sm:$0xff]
        %v533 = vld [vmem:[%s5] sm:$0xff]
        %vm534 = vcmask 64512
        %v536 = vsel %vm534, %v517, 0
        %v539 = vsel %vm534, %v518, 0
        %v542 = vsel %vm534, %v519, 0
        %v545 = vsel %vm534, %v520, 0
        %v548 = vsel %vm534, %v521, 0
        %v551 = vsel %vm534, %v522, 0
        %v554 = vsel %vm534, %v523, 0
        %v557 = vsel %vm534, %v524, 0
        %559 = vmatprep.subr.mxu0 0.0
        %560 = vmatpush1.msra.mxu0 0.0
        %561 = vmatprep.subr.mxu0 0.0
        %562 = vmatpush1.msra.mxu0 0.0
        %563 = vmatprep.subr.mxu0 0.0
        %564 = vmatpush1.msra.mxu0 0.0
        %565 = vmatprep.subr.mxu0 0.0
        %566 = vmatpush1.msra.mxu0 0.0
        %567 = vmatprep.subr.mxu0 0.0
        %568 = vmatpush1.msra.mxu0 0.0
        %569 = vmatprep.subr.mxu0 0.0
        %570 = vmatpush1.msra.mxu0 0.0
        %571 = vmatprep.subr.mxu0 0.0
        %572 = vmatpush1.msra.mxu0 0.0
        %573 = vmatprep.subr.mxu0 0.0
        %574 = vmatpush1.msra.mxu0 0.0
        %575 = vmatprep.subr.mxu0 0.0
        %576 = vmatpush1.msra.mxu0 0.0
        %577 = vmatprep.subr.mxu0 0.0
        %578 = vmatpush1.msra.mxu0 0.0
        %579 = vmatprep.subr.mxu0 0.0
        %580 = vmatpush1.msra.mxu0 0.0
        %581 = vmatprep.subr.mxu0 0.0
        %582 = vmatpush1.msra.mxu0 0.0
        %583 = vmatprep.subr.mxu0 0.0
        %584 = vmatpush1.msra.mxu0 0.0
        %585 = vmatprep.subr.mxu0 0.0
        %586 = vmatpush1.msra.mxu0 0.0
        %587 = vmatprep.subr.mxu0 0.0
        %588 = vmatpush1.msra.mxu0 0.0
        %589 = vmatprep.subr.mxu0 0.0
        %590 = vmatpush1.msra.mxu0 %v533
        %591 = vmatprep.subr.mxu0 0.0
        %592 = vmatpush2.msra.mxu0 0.0
        %593 = vmatprep.subr.mxu0 0.0
        %594 = vmatpush2.msra.mxu0 0.0
        %595 = vmatprep.subr.mxu0 0.0
        %596 = vmatpush2.msra.mxu0 0.0
        %597 = vmatprep.subr.mxu0 0.0
        %598 = vmatpush2.msra.mxu0 0.0
        %599 = vmatprep.subr.mxu0 0.0
        %600 = vmatpush2.msra.mxu0 0.0
        %601 = vmatprep.subr.mxu0 0.0
        %602 = vmatpush2.msra.mxu0 0.0
        %603 = vmatprep.subr.mxu0 0.0
        %604 = vmatpush2.msra.mxu0 0.0
        %605 = vmatprep.subr.mxu0 0.0
        %606 = vmatpush2.msra.mxu0 0.0
        %607 = vmatprep.subr.mxu0 0.0
        %608 = vmatpush2.msra.mxu0 0.0
        %609 = vmatprep.subr.mxu0 0.0
        %610 = vmatpush2.msra.mxu0 0.0
        %611 = vmatprep.subr.mxu0 0.0
        %612 = vmatpush2.msra.mxu0 0.0
        %613 = vmatprep.subr.mxu0 0.0
        %614 = vmatpush2.msra.mxu0 0.0
        %615 = vmatprep.subr.mxu0 0.0
        %616 = vmatpush2.msra.mxu0 0.0
        %617 = vmatprep.subr.mxu0 0.0
        %618 = vmatpush2.msra.mxu0 0.0
        %619 = vmatprep.subr.mxu0 0.0
        %620 = vmatpush2.msra.mxu0 0.0
        %621 = vmatprep.subr.mxu0 0.0
        %622 = vmatpush2.msra.mxu0 0.0
        %623 = vmatprep.mubr.f32.mxu0 0.0
        %624 = vmatmul.mubr.f32.gmra.mxu0 %v536
        %v625 = vpop.f32.mrf.mxu0
        %v626 = vadd.f32 0.0, %v625
        %v627 = vpop.f32.mrf.mxu0
        %628 = vmatprep.mubr.f32.mxu0 0.0
        %629 = vmatmul.mubr.f32.gmra.mxu0 %v539
        %v630 = vpop.f32.mrf.mxu0
        %v631 = vadd.f32 0.0, %v630
        %v632 = vpop.f32.mrf.mxu0
        %633 = vmatprep.mubr.f32.mxu0 0.0
        %634 = vmatmul.mubr.f32.gmra.mxu0 %v542
        %v635 = vpop.f32.mrf.mxu0
        %v636 = vadd.f32 0.0, %v635
        %v637 = vpop.f32.mrf.mxu0
        %638 = vmatprep.mubr.f32.mxu0 0.0
        %639 = vmatmul.mubr.f32.gmra.mxu0 %v545
        %v640 = vpop.f32.mrf.mxu0
        %v641 = vadd.f32 0.0, %v640
        %v642 = vpop.f32.mrf.mxu0
        %643 = vmatprep.mubr.f32.mxu0 0.0
        %644 = vmatmul.mubr.f32.gmra.mxu0 %v548
        %v645 = vpop.f32.mrf.mxu0
        %v646 = vadd.f32 0.0, %v645
        %v647 = vpop.f32.mrf.mxu0
        %648 = vmatprep.mubr.f32.mxu0 0.0
        %649 = vmatmul.mubr.f32.gmra.mxu0 %v551
        %v650 = vpop.f32.mrf.mxu0
        %v651 = vadd.f32 0.0, %v650
        %v652 = vpop.f32.mrf.mxu0
        %653 = vmatprep.mubr.f32.mxu0 0.0
        %654 = vmatmul.mubr.f32.gmra.mxu0 %v554
        %v655 = vpop.f32.mrf.mxu0
        %v656 = vadd.f32 0.0, %v655
        %v657 = vpop.f32.mrf.mxu0
        %658 = vmatprep.mubr.f32.mxu0 0.0
        %659 = vmatmul.mubr.f32.gmra.mxu0 %v557
        %v660 = vpop.f32.mrf.mxu0
        %v661 = vadd.f32 0.0, %v660
        %v662 = vpop.f32.mrf.mxu0
        %663 = vdwg.mxu0
        %v664 = vld [vmem:[%s6] sm:$0x1]
        %v666 = vlaneseq
        %v667 = vshrl.u32 %v666, 7
        %v668 = vsub.s32 0, %v667
        %v669 = vrot.slane %v664, %v668
        %vm671 = vcmask 523264
        %v673 = vsel %vm671, %v525, 0
        %v676 = vsel %vm671, %v526, 0
        %v679 = vsel %vm671, %v527, 0
        %v682 = vsel %vm671, %v528, 0
        %v685 = vsel %vm671, %v529, 0
        %v688 = vsel %vm671, %v530, 0
        %v691 = vsel %vm671, %v531, 0
        %v694 = vsel %vm671, %v532, 0
        %696 = vmatprep.subr.mxu0 0.0
        %697 = vmatpush1.msra.mxu0 0.0
        %698 = vmatprep.subr.mxu0 0.0
        %699 = vmatpush1.msra.mxu0 0.0
        %700 = vmatprep.subr.mxu0 0.0
        %701 = vmatpush1.msra.mxu0 0.0
        %702 = vmatprep.subr.mxu0 0.0
        %703 = vmatpush1.msra.mxu0 0.0
        %704 = vmatprep.subr.mxu0 0.0
        %705 = vmatpush1.msra.mxu0 0.0
        %706 = vmatprep.subr.mxu0 0.0
        %707 = vmatpush1.msra.mxu0 0.0
        %708 = vmatprep.subr.mxu0 0.0
        %709 = vmatpush1.msra.mxu0 0.0
        %710 = vmatprep.subr.mxu0 0.0
        %711 = vmatpush1.msra.mxu0 0.0
        %712 = vmatprep.subr.mxu0 0.0
        %713 = vmatpush1.msra.mxu0 %v661
        %714 = vmatprep.subr.mxu0 0.0
        %715 = vmatpush1.msra.mxu0 %v656
        %716 = vmatprep.subr.mxu0 0.0
        %717 = vmatpush1.msra.mxu0 %v651
        %718 = vmatprep.subr.mxu0 0.0
        %719 = vmatpush1.msra.mxu0 %v646
        %720 = vmatprep.subr.mxu0 0.0
        %721 = vmatpush1.msra.mxu0 %v641
        %722 = vmatprep.subr.mxu0 0.0
        %723 = vmatpush1.msra.mxu0 %v636
        %724 = vmatprep.subr.mxu0 0.0
        %725 = vmatpush1.msra.mxu0 %v631
        %726 = vmatprep.subr.mxu0 0.0
        %727 = vmatpush1.msra.mxu0 %v626
        %728 = vmatprep.subr.mxu0 0.0
        %729 = vmatpush2.msra.mxu0 0.0
        %730 = vmatprep.subr.mxu0 0.0
        %731 = vmatpush2.msra.mxu0 0.0
        %732 = vmatprep.subr.mxu0 0.0
        %733 = vmatpush2.msra.mxu0 0.0
        %734 = vmatprep.subr.mxu0 0.0
        %735 = vmatpush2.msra.mxu0 0.0
        %736 = vmatprep.subr.mxu0 0.0
        %737 = vmatpush2.msra.mxu0 0.0
        %738 = vmatprep.subr.mxu0 0.0
        %739 = vmatpush2.msra.mxu0 0.0
        %740 = vmatprep.subr.mxu0 0.0
        %741 = vmatpush2.msra.mxu0 0.0
        %742 = vmatprep.subr.mxu0 0.0
        %743 = vmatpush2.msra.mxu0 0.0
        %744 = vmatprep.subr.mxu0 0.0
        %745 = vmatpush2.msra.mxu0 0.0
        %746 = vmatprep.subr.mxu0 0.0
        %747 = vmatpush2.msra.mxu0 0.0
        %748 = vmatprep.subr.mxu0 0.0
        %749 = vmatpush2.msra.mxu0 0.0
        %750 = vmatprep.subr.mxu0 0.0
        %751 = vmatpush2.msra.mxu0 0.0
        %752 = vmatprep.subr.mxu0 0.0
        %753 = vmatpush2.msra.mxu0 0.0
        %754 = vmatprep.subr.mxu0 0.0
        %755 = vmatpush2.msra.mxu0 0.0
        %756 = vmatprep.subr.mxu0 0.0
        %757 = vmatpush2.msra.mxu0 0.0
        %758 = vmatprep.subr.mxu0 0.0
        %759 = vmatpush2.msra.mxu0 0.0
        %760 = vmatprep.mubr.f32.mxu0 0.0
        %761 = vmatmul.mubr.f32.gmra.mxu0 %v673
        %v762 = vpop.f32.mrf.mxu0
        %v763 = vadd.f32 %v669, %v762
        %v764 = vpop.f32.mrf.mxu0
        %765 = vmatprep.mubr.f32.mxu0 0.0
        %766 = vmatmul.mubr.f32.gmra.mxu0 %v676
        %v767 = vpop.f32.mrf.mxu0
        %v768 = vadd.f32 %v669, %v767
        %v769 = vpop.f32.mrf.mxu0
        %770 = vmatprep.mubr.f32.mxu0 0.0
        %771 = vmatmul.mubr.f32.gmra.mxu0 %v679
        %v772 = vpop.f32.mrf.mxu0
        %v773 = vadd.f32 %v669, %v772
        %v774 = vpop.f32.mrf.mxu0
        %775 = vmatprep.mubr.f32.mxu0 0.0
        %776 = vmatmul.mubr.f32.gmra.mxu0 %v682
        %v777 = vpop.f32.mrf.mxu0
        %v778 = vadd.f32 %v669, %v777
        %v779 = vpop.f32.mrf.mxu0
        %780 = vmatprep.mubr.f32.mxu0 0.0
        %781 = vmatmul.mubr.f32.gmra.mxu0 %v685
        %v782 = vpop.f32.mrf.mxu0
        %v783 = vadd.f32 %v669, %v782
        %v784 = vpop.f32.mrf.mxu0
        %785 = vmatprep.mubr.f32.mxu0 0.0
        %786 = vmatmul.mubr.f32.gmra.mxu0 %v688
        %v787 = vpop.f32.mrf.mxu0
        %v788 = vadd.f32 %v669, %v787
        %v789 = vpop.f32.mrf.mxu0
        %790 = vmatprep.mubr.f32.mxu0 0.0
        %791 = vmatmul.mubr.f32.gmra.mxu0 %v691
        %v792 = vpop.f32.mrf.mxu0
        %v793 = vadd.f32 %v669, %v792
        %v794 = vpop.f32.mrf.mxu0
        %795 = vmatprep.mubr.f32.mxu0 0.0
        %796 = vmatmul.mubr.f32.gmra.mxu0 %v694
        %v797 = vpop.f32.mrf.mxu0
        %v798 = vadd.f32 %v669, %v797
        %v799 = vpop.f32.mrf.mxu0
        %800 = vdwg.mxu0
        %vm801 = vcmp.gt.f32.partialorder %v763, 0.0
        %vm802 = vcmp.gt.f32.partialorder %v768, 0.0
        %vm803 = vcmp.gt.f32.partialorder %v773, 0.0
        %vm804 = vcmp.gt.f32.partialorder %v778, 0.0
        %vm805 = vcmp.gt.f32.partialorder %v783, 0.0
        %vm806 = vcmp.gt.f32.partialorder %v788, 0.0
        %vm807 = vcmp.gt.f32.partialorder %v793, 0.0
        %vm808 = vcmp.gt.f32.partialorder %v798, 0.0
        %v809 = vmul.f32 %v763, 0.01
        %v810 = vmul.f32 %v768, 0.01
        %v811 = vmul.f32 %v773, 0.01
        %v812 = vmul.f32 %v778, 0.01
        %v813 = vmul.f32 %v783, 0.01
        %v814 = vmul.f32 %v788, 0.01
        %v815 = vmul.f32 %v793, 0.01
        %v816 = vmul.f32 %v798, 0.01
        %v817 = vsel %vm801, %v763, %v809
        %v818 = vsel %vm802, %v768, %v810
        %v819 = vsel %vm803, %v773, %v811
        %v820 = vsel %vm804, %v778, %v812
        %v821 = vsel %vm805, %v783, %v813
        %v822 = vsel %vm806, %v788, %v814
        %v823 = vsel %vm807, %v793, %v815
        %v824 = vsel %vm808, %v798, %v816
        %v825 = vld [vmem:[%s3] sm:$0xff]
        %v826 = vld [vmem:[%s3 + $0x8] sm:$0xff]
        %v827 = vld [vmem:[%s3 + $0x10] sm:$0xff]
        %v828 = vld [vmem:[%s3 + $0x18] sm:$0xff]
        %v830 = vsel %vm671, %v825, 0
        %v833 = vsel %vm671, %v826, 0
        %v836 = vsel %vm671, %v827, 0
        %v839 = vsel %vm671, %v828, 0
        %841 = vmatprep.subr.mxu0 0.0
        %842 = vmatpush1.msra.mxu0 0.0
        %843 = vmatprep.subr.mxu0 0.0
        %844 = vmatpush1.msra.mxu0 0.0
        %845 = vmatprep.subr.mxu0 0.0
        %846 = vmatpush1.msra.mxu0 0.0
        %847 = vmatprep.subr.mxu0 0.0
        %848 = vmatpush1.msra.mxu0 0.0
        %849 = vmatprep.subr.mxu0 0.0
        %850 = vmatpush1.msra.mxu0 0.0
        %851 = vmatprep.subr.mxu0 0.0
        %852 = vmatpush1.msra.mxu0 0.0
        %853 = vmatprep.subr.mxu0 0.0
        %854 = vmatpush1.msra.mxu0 0.0
        %855 = vmatprep.subr.mxu0 0.0
        %856 = vmatpush1.msra.mxu0 0.0
        %857 = vmatprep.subr.mxu0 0.0
        %858 = vmatpush1.msra.mxu0 %v824
        %859 = vmatprep.subr.mxu0 0.0
        %860 = vmatpush1.msra.mxu0 %v823
        %861 = vmatprep.subr.mxu0 0.0
        %862 = vmatpush1.msra.mxu0 %v822
        %863 = vmatprep.subr.mxu0 0.0
        %864 = vmatpush1.msra.mxu0 %v821
        %865 = vmatprep.subr.mxu0 0.0
        %866 = vmatpush1.msra.mxu0 %v820
        %867 = vmatprep.subr.mxu0 0.0
        %868 = vmatpush1.msra.mxu0 %v819
        %869 = vmatprep.subr.mxu0 0.0
        %870 = vmatpush1.msra.mxu0 %v818
        %871 = vmatprep.subr.mxu0 0.0
        %872 = vmatpush1.msra.mxu0 %v817
        %873 = vmatprep.subr.mxu0 0.0
        %874 = vmatpush2.msra.mxu0 0.0
        %875 = vmatprep.subr.mxu0 0.0
        %876 = vmatpush2.msra.mxu0 0.0
        %877 = vmatprep.subr.mxu0 0.0
        %878 = vmatpush2.msra.mxu0 0.0
        %879 = vmatprep.subr.mxu0 0.0
        %880 = vmatpush2.msra.mxu0 0.0
        %881 = vmatprep.subr.mxu0 0.0
        %882 = vmatpush2.msra.mxu0 0.0
        %883 = vmatprep.subr.mxu0 0.0
        %884 = vmatpush2.msra.mxu0 0.0
        %885 = vmatprep.subr.mxu0 0.0
        %886 = vmatpush2.msra.mxu0 0.0
        %887 = vmatprep.subr.mxu0 0.0
        %888 = vmatpush2.msra.mxu0 0.0
        %889 = vmatprep.subr.mxu0 0.0
        %890 = vmatpush2.msra.mxu0 0.0
        %891 = vmatprep.subr.mxu0 0.0
        %892 = vmatpush2.msra.mxu0 0.0
        %893 = vmatprep.subr.mxu0 0.0
        %894 = vmatpush2.msra.mxu0 0.0
        %895 = vmatprep.subr.mxu0 0.0
        %896 = vmatpush2.msra.mxu0 0.0
        %897 = vmatprep.subr.mxu0 0.0
        %898 = vmatpush2.msra.mxu0 0.0
        %899 = vmatprep.subr.mxu0 0.0
        %900 = vmatpush2.msra.mxu0 0.0
        %901 = vmatprep.subr.mxu0 0.0
        %902 = vmatpush2.msra.mxu0 0.0
        %903 = vmatprep.subr.mxu0 0.0
        %904 = vmatpush2.msra.mxu0 0.0
        %905 = vmatprep.mubr.f32.mxu0 0.0
        %906 = vmatmul.mubr.f32.gmra.mxu0 %v830
        %v907 = vpop.f32.mrf.mxu0
        %v908 = vadd.f32 0.0, %v907
        %v909 = vpop.f32.mrf.mxu0
        %910 = vmatprep.mubr.f32.mxu0 0.0
        %911 = vmatmul.mubr.f32.gmra.mxu0 %v833
        %v912 = vpop.f32.mrf.mxu0
        %v913 = vadd.f32 0.0, %v912
        %v914 = vpop.f32.mrf.mxu0
        %915 = vmatprep.mubr.f32.mxu0 0.0
        %916 = vmatmul.mubr.f32.gmra.mxu0 %v836
        %v917 = vpop.f32.mrf.mxu0
        %v918 = vadd.f32 0.0, %v917
        %v919 = vpop.f32.mrf.mxu0
        %920 = vmatprep.mubr.f32.mxu0 0.0
        %921 = vmatmul.mubr.f32.gmra.mxu0 %v839
        %v922 = vpop.f32.mrf.mxu0
        %v923 = vadd.f32 0.0, %v922
        %v924 = vpop.f32.mrf.mxu0
        %925 = vdwg.mxu0
        %v926 = vld [vmem:[%s2] sm:$0xff]
        %v927 = vld [vmem:[%s2 + $0x8] sm:$0xff]
        %v928 = vld [vmem:[%s2 + $0x10] sm:$0xff]
        %v929 = vld [vmem:[%s2 + $0x18] sm:$0xff]
        %v930 = vld [vmem:[%s7] sm:$0xff]
        %v931 = vld [vmem:[%s7 + $0x8] sm:$0xff]
        %vm932 = vcmask 130048
        %v934 = vsel %vm932, %v908, 0
        %v937 = vsel %vm932, %v913, 0
        %v940 = vsel %vm932, %v918, 0
        %v943 = vsel %vm932, %v923, 0
        %945 = vmatprep.subr.mxu0 0.0
        %946 = vmatpush1.msra.mxu0 0.0
        %947 = vmatprep.subr.mxu0 0.0
        %948 = vmatpush1.msra.mxu0 0.0
        %949 = vmatprep.subr.mxu0 0.0
        %950 = vmatpush1.msra.mxu0 0.0
        %951 = vmatprep.subr.mxu0 0.0
        %952 = vmatpush1.msra.mxu0 0.0
        %953 = vmatprep.subr.mxu0 0.0
        %954 = vmatpush1.msra.mxu0 0.0
        %955 = vmatprep.subr.mxu0 0.0
        %956 = vmatpush1.msra.mxu0 0.0
        %957 = vmatprep.subr.mxu0 0.0
        %958 = vmatpush1.msra.mxu0 0.0
        %959 = vmatprep.subr.mxu0 0.0
        %960 = vmatpush1.msra.mxu0 0.0
        %961 = vmatprep.subr.mxu0 0.0
        %962 = vmatpush1.msra.mxu0 0.0
        %963 = vmatprep.subr.mxu0 0.0
        %964 = vmatpush1.msra.mxu0 0.0
        %965 = vmatprep.subr.mxu0 0.0
        %966 = vmatpush1.msra.mxu0 0.0
        %967 = vmatprep.subr.mxu0 0.0
        %968 = vmatpush1.msra.mxu0 0.0
        %969 = vmatprep.subr.mxu0 0.0
        %970 = vmatpush1.msra.mxu0 0.0
        %971 = vmatprep.subr.mxu0 0.0
        %972 = vmatpush1.msra.mxu0 0.0
        %973 = vmatprep.subr.mxu0 0.0
        %974 = vmatpush1.msra.mxu0 %v931
        %975 = vmatprep.subr.mxu0 0.0
        %976 = vmatpush1.msra.mxu0 %v930
        %977 = vmatprep.subr.mxu0 0.0
        %978 = vmatpush2.msra.mxu0 0.0
        %979 = vmatprep.subr.mxu0 0.0
        %980 = vmatpush2.msra.mxu0 0.0
        %981 = vmatprep.subr.mxu0 0.0
        %982 = vmatpush2.msra.mxu0 0.0
        %983 = vmatprep.subr.mxu0 0.0
        %984 = vmatpush2.msra.mxu0 0.0
        %985 = vmatprep.subr.mxu0 0.0
        %986 = vmatpush2.msra.mxu0 0.0
        %987 = vmatprep.subr.mxu0 0.0
        %988 = vmatpush2.msra.mxu0 0.0
        %989 = vmatprep.subr.mxu0 0.0
        %990 = vmatpush2.msra.mxu0 0.0
        %991 = vmatprep.subr.mxu0 0.0
        %992 = vmatpush2.msra.mxu0 0.0
        %993 = vmatprep.subr.mxu0 0.0
        %994 = vmatpush2.msra.mxu0 0.0
        %995 = vmatprep.subr.mxu0 0.0
        %996 = vmatpush2.msra.mxu0 0.0
        %997 = vmatprep.subr.mxu0 0.0
        %998 = vmatpush2.msra.mxu0 0.0
        %999 = vmatprep.subr.mxu0 0.0
        %1000 = vmatpush2.msra.mxu0 0.0
        %1001 = vmatprep.subr.mxu0 0.0
        %1002 = vmatpush2.msra.mxu0 0.0
        %1003 = vmatprep.subr.mxu0 0.0
        %1004 = vmatpush2.msra.mxu0 0.0
        %1005 = vmatprep.subr.mxu0 0.0
        %1006 = vmatpush2.msra.mxu0 0.0
        %1007 = vmatprep.subr.mxu0 0.0
        %1008 = vmatpush2.msra.mxu0 0.0
        %1009 = vmatprep.mubr.f32.mxu0 0.0
        %1010 = vmatmul.mubr.f32.gmra.mxu0 %v934
        %v1011 = vpop.f32.mrf.mxu0
        %v1012 = vadd.f32 0.0, %v1011
        %v1013 = vpop.f32.mrf.mxu0
        %1014 = vmatprep.mubr.f32.mxu0 0.0
        %1015 = vmatmul.mubr.f32.gmra.mxu0 %v937
        %v1016 = vpop.f32.mrf.mxu0
        %v1017 = vadd.f32 0.0, %v1016
        %v1018 = vpop.f32.mrf.mxu0
        %1019 = vmatprep.mubr.f32.mxu0 0.0
        %1020 = vmatmul.mubr.f32.gmra.mxu0 %v940
        %v1021 = vpop.f32.mrf.mxu0
        %v1022 = vadd.f32 0.0, %v1021
        %v1023 = vpop.f32.mrf.mxu0
        %1024 = vmatprep.mubr.f32.mxu0 0.0
        %1025 = vmatmul.mubr.f32.gmra.mxu0 %v943
        %v1026 = vpop.f32.mrf.mxu0
        %v1027 = vadd.f32 0.0, %v1026
        %v1028 = vpop.f32.mrf.mxu0
        %1029 = vdwg.mxu0
        %v1030 = vld [vmem:[%s8] sm:$0x1]
        %v1032 = vlaneseq
        %v1033 = vshrl.u32 %v1032, 7
        %v1034 = vsub.s32 0, %v1033
        %v1035 = vrot.slane %v1030, %v1034
        %vm1037 = vcmask 261120
        %v1039 = vsel %vm1037, %v926, 0
        %v1042 = vsel %vm1037, %v927, 0
        %v1045 = vsel %vm1037, %v928, 0
        %v1048 = vsel %vm1037, %v929, 0
        %1050 = vmatprep.subr.mxu0 0.0
        %1051 = vmatpush1.msra.mxu0 0.0
        %1052 = vmatprep.subr.mxu0 0.0
        %1053 = vmatpush1.msra.mxu0 0.0
        %1054 = vmatprep.subr.mxu0 0.0
        %1055 = vmatpush1.msra.mxu0 0.0
        %1056 = vmatprep.subr.mxu0 0.0
        %1057 = vmatpush1.msra.mxu0 0.0
        %1058 = vmatprep.subr.mxu0 0.0
        %1059 = vmatpush1.msra.mxu0 0.0
        %1060 = vmatprep.subr.mxu0 0.0
        %1061 = vmatpush1.msra.mxu0 0.0
        %1062 = vmatprep.subr.mxu0 0.0
        %1063 = vmatpush1.msra.mxu0 0.0
        %1064 = vmatprep.subr.mxu0 0.0
        %1065 = vmatpush1.msra.mxu0 0.0
        %1066 = vmatprep.subr.mxu0 0.0
        %1067 = vmatpush1.msra.mxu0 0.0
        %1068 = vmatprep.subr.mxu0 0.0
        %1069 = vmatpush1.msra.mxu0 0.0
        %1070 = vmatprep.subr.mxu0 0.0
        %1071 = vmatpush1.msra.mxu0 0.0
        %1072 = vmatprep.subr.mxu0 0.0
        %1073 = vmatpush1.msra.mxu0 0.0
        %1074 = vmatprep.subr.mxu0 0.0
        %1075 = vmatpush1.msra.mxu0 %v1027
        %1076 = vmatprep.subr.mxu0 0.0
        %1077 = vmatpush1.msra.mxu0 %v1022
        %1078 = vmatprep.subr.mxu0 0.0
        %1079 = vmatpush1.msra.mxu0 %v1017
        %1080 = vmatprep.subr.mxu0 0.0
        %1081 = vmatpush1.msra.mxu0 %v1012
        %1082 = vmatprep.subr.mxu0 0.0
        %1083 = vmatpush2.msra.mxu0 0.0
        %1084 = vmatprep.subr.mxu0 0.0
        %1085 = vmatpush2.msra.mxu0 0.0
        %1086 = vmatprep.subr.mxu0 0.0
        %1087 = vmatpush2.msra.mxu0 0.0
        %1088 = vmatprep.subr.mxu0 0.0
        %1089 = vmatpush2.msra.mxu0 0.0
        %1090 = vmatprep.subr.mxu0 0.0
        %1091 = vmatpush2.msra.mxu0 0.0
        %1092 = vmatprep.subr.mxu0 0.0
        %1093 = vmatpush2.msra.mxu0 0.0
        %1094 = vmatprep.subr.mxu0 0.0
        %1095 = vmatpush2.msra.mxu0 0.0
        %1096 = vmatprep.subr.mxu0 0.0
        %1097 = vmatpush2.msra.mxu0 0.0
        %1098 = vmatprep.subr.mxu0 0.0
        %1099 = vmatpush2.msra.mxu0 0.0
        %1100 = vmatprep.subr.mxu0 0.0
        %1101 = vmatpush2.msra.mxu0 0.0
        %1102 = vmatprep.subr.mxu0 0.0
        %1103 = vmatpush2.msra.mxu0 0.0
        %1104 = vmatprep.subr.mxu0 0.0
        %1105 = vmatpush2.msra.mxu0 0.0
        %1106 = vmatprep.subr.mxu0 0.0
        %1107 = vmatpush2.msra.mxu0 0.0
        %1108 = vmatprep.subr.mxu0 0.0
        %1109 = vmatpush2.msra.mxu0 0.0
        %1110 = vmatprep.subr.mxu0 0.0
        %1111 = vmatpush2.msra.mxu0 0.0
        %1112 = vmatprep.subr.mxu0 0.0
        %1113 = vmatpush2.msra.mxu0 0.0
        %1114 = vmatprep.mubr.f32.mxu0 0.0
        %1115 = vmatmul.mubr.f32.gmra.mxu0 %v1039
        %v1116 = vpop.f32.mrf.mxu0
        %v1117 = vadd.f32 %v1035, %v1116
        %v1118 = vpop.f32.mrf.mxu0
        %1119 = vmatprep.mubr.f32.mxu0 0.0
        %1120 = vmatmul.mubr.f32.gmra.mxu0 %v1042
        %v1121 = vpop.f32.mrf.mxu0
        %v1122 = vadd.f32 %v1035, %v1121
        %v1123 = vpop.f32.mrf.mxu0
        %1124 = vmatprep.mubr.f32.mxu0 0.0
        %1125 = vmatmul.mubr.f32.gmra.mxu0 %v1045
        %v1126 = vpop.f32.mrf.mxu0
        %v1127 = vadd.f32 %v1035, %v1126
        %v1128 = vpop.f32.mrf.mxu0
        %1129 = vmatprep.mubr.f32.mxu0 0.0
        %1130 = vmatmul.mubr.f32.gmra.mxu0 %v1048
        %v1131 = vpop.f32.mrf.mxu0
        %v1132 = vadd.f32 %v1035, %v1131
        %v1133 = vpop.f32.mrf.mxu0
        %1134 = vdwg.mxu0
        %vm1135 = vcmp.gt.f32.partialorder %v1117, 0.0
        %vm1136 = vcmp.gt.f32.partialorder %v1122, 0.0
        %vm1137 = vcmp.gt.f32.partialorder %v1127, 0.0
        %vm1138 = vcmp.gt.f32.partialorder %v1132, 0.0
        %v1139 = vmul.f32 %v1117, 0.01
        %v1140 = vmul.f32 %v1122, 0.01
        %v1141 = vmul.f32 %v1127, 0.01
        %v1142 = vmul.f32 %v1132, 0.01
        %v1143 = vsel %vm1135, %v1117, %v1139
        %v1144 = vsel %vm1136, %v1122, %v1140
        %v1145 = vsel %vm1137, %v1127, %v1141
        %v1146 = vsel %vm1138, %v1132, %v1142
        %v1147 = vld [vmem:[%s4] sm:$0xff]
        %v1148 = vld [vmem:[%s4 + $0x8] sm:$0xff]
        %v1150 = vsel %vm1037, %v1147, 0
        %v1153 = vsel %vm1037, %v1148, 0
        %1155 = vmatprep.subr.mxu0 0.0
        %1156 = vmatpush1.msra.mxu0 0.0
        %1157 = vmatprep.subr.mxu0 0.0
        %1158 = vmatpush1.msra.mxu0 0.0
        %1159 = vmatprep.subr.mxu0 0.0
        %1160 = vmatpush1.msra.mxu0 0.0
        %1161 = vmatprep.subr.mxu0 0.0
        %1162 = vmatpush1.msra.mxu0 0.0
        %1163 = vmatprep.subr.mxu0 0.0
        %1164 = vmatpush1.msra.mxu0 0.0
        %1165 = vmatprep.subr.mxu0 0.0
        %1166 = vmatpush1.msra.mxu0 0.0
        %1167 = vmatprep.subr.mxu0 0.0
        %1168 = vmatpush1.msra.mxu0 0.0
        %1169 = vmatprep.subr.mxu0 0.0
        %1170 = vmatpush1.msra.mxu0 0.0
        %1171 = vmatprep.subr.mxu0 0.0
        %1172 = vmatpush1.msra.mxu0 0.0
        %1173 = vmatprep.subr.mxu0 0.0
        %1174 = vmatpush1.msra.mxu0 0.0
        %1175 = vmatprep.subr.mxu0 0.0
        %1176 = vmatpush1.msra.mxu0 0.0
        %1177 = vmatprep.subr.mxu0 0.0
        %1178 = vmatpush1.msra.mxu0 0.0
        %1179 = vmatprep.subr.mxu0 0.0
        %1180 = vmatpush1.msra.mxu0 %v1146
        %1181 = vmatprep.subr.mxu0 0.0
        %1182 = vmatpush1.msra.mxu0 %v1145
        %1183 = vmatprep.subr.mxu0 0.0
        %1184 = vmatpush1.msra.mxu0 %v1144
        %1185 = vmatprep.subr.mxu0 0.0
        %1186 = vmatpush1.msra.mxu0 %v1143
        %1187 = vmatprep.subr.mxu0 0.0
        %1188 = vmatpush2.msra.mxu0 0.0
        %1189 = vmatprep.subr.mxu0 0.0
        %1190 = vmatpush2.msra.mxu0 0.0
        %1191 = vmatprep.subr.mxu0 0.0
        %1192 = vmatpush2.msra.mxu0 0.0
        %1193 = vmatprep.subr.mxu0 0.0
        %1194 = vmatpush2.msra.mxu0 0.0
        %1195 = vmatprep.subr.mxu0 0.0
        %1196 = vmatpush2.msra.mxu0 0.0
        %1197 = vmatprep.subr.mxu0 0.0
        %1198 = vmatpush2.msra.mxu0 0.0
        %1199 = vmatprep.subr.mxu0 0.0
        %1200 = vmatpush2.msra.mxu0 0.0
        %1201 = vmatprep.subr.mxu0 0.0
        %1202 = vmatpush2.msra.mxu0 0.0
        %1203 = vmatprep.subr.mxu0 0.0
        %1204 = vmatpush2.msra.mxu0 0.0
        %1205 = vmatprep.subr.mxu0 0.0
        %1206 = vmatpush2.msra.mxu0 0.0
        %1207 = vmatprep.subr.mxu0 0.0
        %1208 = vmatpush2.msra.mxu0 0.0
        %1209 = vmatprep.subr.mxu0 0.0
        %1210 = vmatpush2.msra.mxu0 0.0
        %1211 = vmatprep.subr.mxu0 0.0
        %1212 = vmatpush2.msra.mxu0 0.0
        %1213 = vmatprep.subr.mxu0 0.0
        %1214 = vmatpush2.msra.mxu0 0.0
        %1215 = vmatprep.subr.mxu0 0.0
        %1216 = vmatpush2.msra.mxu0 0.0
        %1217 = vmatprep.subr.mxu0 0.0
        %1218 = vmatpush2.msra.mxu0 0.0
        %1219 = vmatprep.mubr.f32.mxu0 0.0
        %1220 = vmatmul.mubr.f32.gmra.mxu0 %v1150
        %v1221 = vpop.f32.mrf.mxu0
        %v1222 = vadd.f32 0.0, %v1221
        %v1223 = vpop.f32.mrf.mxu0
        %1224 = vmatprep.mubr.f32.mxu0 0.0
        %1225 = vmatmul.mubr.f32.gmra.mxu0 %v1153
        %v1226 = vpop.f32.mrf.mxu0
        %v1227 = vadd.f32 0.0, %v1226
        %v1228 = vpop.f32.mrf.mxu0
        %1229 = vdwg.mxu0
        %v1230 = vsel %vm1037, %v1222, 0.0
        %v1231 = vsel %vm1037, %v1227, 0.0
        %v1232 = vadd.f32 %v1230, %v1231
        %v1233 = vrot.slane %v1232, 4
        %v1234 = vadd.f32 %v1232, %v1233
        %v1235 = vrot.slane %v1234, 2
        %v1236 = vadd.f32 %v1234, %v1235
        %v1237 = vrot.slane %v1236, 1
        %v1238 = vadd.f32 %v1236, %v1237
        %v1239 = vrcp.pop 16.0
        %v1240 = vmul.f32 %v1238, %v1239
        %vm1241 = vcmp.gt.f32.partialorder %v1240, 0.0
        %v1242 = vmul.f32 %v1240, 0.01
        %v1243 = vsel %vm1241, %v1240, %v1242
        %vm1244 = vcmask 253952
        %1245 = vst.msk [vmem:[%s511] sm:$0x1] %vm1244, %v1243
        %v1246 = vld [vmem:[%s1] sm:$0xff]
        %v1247 = vld [vmem:[%s1 + $0x8] sm:$0xff]
        %v1248 = vld [vmem:[%s1 + $0x10] sm:$0xff]
        %v1249 = vld [vmem:[%s1 + $0x18] sm:$0xff]
        %v1250 = vld [vmem:[%s1 + $0x20] sm:$0xff]
        %v1251 = vld [vmem:[%s1 + $0x28] sm:$0xff]
        %v1252 = vld [vmem:[%s1 + $0x30] sm:$0xff]
        %v1253 = vld [vmem:[%s1 + $0x38] sm:$0xff]
        %v1254 = vld [vmem:[#allocation2] sm:$0xff]
        %1255 = vmatprep.subr.mxu0 0.0
        %1256 = vmatpush1.msra.mxu0 0.0
        %1257 = vmatprep.subr.mxu0 0.0
        %1258 = vmatpush1.msra.mxu0 0.0
        %1259 = vmatprep.subr.mxu0 0.0
        %1260 = vmatpush1.msra.mxu0 0.0
        %1261 = vmatprep.subr.mxu0 0.0
        %1262 = vmatpush1.msra.mxu0 0.0
        %1263 = vmatprep.subr.mxu0 0.0
        %1264 = vmatpush1.msra.mxu0 0.0
        %1265 = vmatprep.subr.mxu0 0.0
        %1266 = vmatpush1.msra.mxu0 0.0
        %1267 = vmatprep.subr.mxu0 0.0
        %1268 = vmatpush1.msra.mxu0 0.0
        %1269 = vmatprep.subr.mxu0 0.0
        %1270 = vmatpush1.msra.mxu0 0.0
        %1271 = vmatprep.subr.mxu0 0.0
        %1272 = vmatpush1.msra.mxu0 0.0
        %1273 = vmatprep.subr.mxu0 0.0
        %1274 = vmatpush1.msra.mxu0 0.0
        %1275 = vmatprep.subr.mxu0 0.0
        %1276 = vmatpush1.msra.mxu0 0.0
        %1277 = vmatprep.subr.mxu0 0.0
        %1278 = vmatpush1.msra.mxu0 0.0
        %1279 = vmatprep.subr.mxu0 0.0
        %1280 = vmatpush1.msra.mxu0 0.0
        %1281 = vmatprep.subr.mxu0 0.0
        %1282 = vmatpush1.msra.mxu0 0.0
        %1283 = vmatprep.subr.mxu0 0.0
        %1284 = vmatpush1.msra.mxu0 0.0
        %1285 = vmatprep.subr.mxu0 0.0
        %1286 = vmatpush1.msra.mxu0 %v1254
        %1287 = vmatprep.subr.mxu0 0.0
        %1288 = vmatpush2.msra.mxu0 0.0
        %1289 = vmatprep.subr.mxu0 0.0
        %1290 = vmatpush2.msra.mxu0 0.0
        %1291 = vmatprep.subr.mxu0 0.0
        %1292 = vmatpush2.msra.mxu0 0.0
        %1293 = vmatprep.subr.mxu0 0.0
        %1294 = vmatpush2.msra.mxu0 0.0
        %1295 = vmatprep.subr.mxu0 0.0
        %1296 = vmatpush2.msra.mxu0 0.0
        %1297 = vmatprep.subr.mxu0 0.0
        %1298 = vmatpush2.msra.mxu0 0.0
        %1299 = vmatprep.subr.mxu0 0.0
        %1300 = vmatpush2.msra.mxu0 0.0
        %1301 = vmatprep.subr.mxu0 0.0
        %1302 = vmatpush2.msra.mxu0 0.0
        %1303 = vmatprep.subr.mxu0 0.0
        %1304 = vmatpush2.msra.mxu0 0.0
        %1305 = vmatprep.subr.mxu0 0.0
        %1306 = vmatpush2.msra.mxu0 0.0
        %1307 = vmatprep.subr.mxu0 0.0
        %1308 = vmatpush2.msra.mxu0 0.0
        %1309 = vmatprep.subr.mxu0 0.0
        %1310 = vmatpush2.msra.mxu0 0.0
        %1311 = vmatprep.subr.mxu0 0.0
        %1312 = vmatpush2.msra.mxu0 0.0
        %1313 = vmatprep.subr.mxu0 0.0
        %1314 = vmatpush2.msra.mxu0 0.0
        %1315 = vmatprep.subr.mxu0 0.0
        %1316 = vmatpush2.msra.mxu0 0.0
        %1317 = vmatprep.subr.mxu0 0.0
        %1318 = vmatpush2.msra.mxu0 0.0
        %1319 = vmatprep.mubr.f32.mxu0 0.0
        %1320 = vmatmul.mubr.f32.gmra.mxu0 %v536
        %v1321 = vpop.f32.mrf.mxu0
        %v1322 = vadd.f32 0.0, %v1321
        %v1323 = vpop.f32.mrf.mxu0
        %1324 = vmatprep.mubr.f32.mxu0 0.0
        %1325 = vmatmul.mubr.f32.gmra.mxu0 %v539
        %v1326 = vpop.f32.mrf.mxu0
        %v1327 = vadd.f32 0.0, %v1326
        %v1328 = vpop.f32.mrf.mxu0
        %1329 = vmatprep.mubr.f32.mxu0 0.0
        %1330 = vmatmul.mubr.f32.gmra.mxu0 %v542
        %v1331 = vpop.f32.mrf.mxu0
        %v1332 = vadd.f32 0.0, %v1331
        %v1333 = vpop.f32.mrf.mxu0
        %1334 = vmatprep.mubr.f32.mxu0 0.0
        %1335 = vmatmul.mubr.f32.gmra.mxu0 %v545
        %v1336 = vpop.f32.mrf.mxu0
        %v1337 = vadd.f32 0.0, %v1336
        %v1338 = vpop.f32.mrf.mxu0
        %1339 = vmatprep.mubr.f32.mxu0 0.0
        %1340 = vmatmul.mubr.f32.gmra.mxu0 %v548
        %v1341 = vpop.f32.mrf.mxu0
        %v1342 = vadd.f32 0.0, %v1341
        %v1343 = vpop.f32.mrf.mxu0
        %1344 = vmatprep.mubr.f32.mxu0 0.0
        %1345 = vmatmul.mubr.f32.gmra.mxu0 %v551
        %v1346 = vpop.f32.mrf.mxu0
        %v1347 = vadd.f32 0.0, %v1346
        %v1348 = vpop.f32.mrf.mxu0
        %1349 = vmatprep.mubr.f32.mxu0 0.0
        %1350 = vmatmul.mubr.f32.gmra.mxu0 %v554
        %v1351 = vpop.f32.mrf.mxu0
        %v1352 = vadd.f32 0.0, %v1351
        %v1353 = vpop.f32.mrf.mxu0
        %1354 = vmatprep.mubr.f32.mxu0 0.0
        %1355 = vmatmul.mubr.f32.gmra.mxu0 %v557
        %v1356 = vpop.f32.mrf.mxu0
        %v1357 = vadd.f32 0.0, %v1356
        %v1358 = vpop.f32.mrf.mxu0
        %1359 = vdwg.mxu0
        %v1360 = vld [vmem:[%s10] sm:$0x1]
        %v1362 = vlaneseq
        %v1363 = vshrl.u32 %v1362, 7
        %v1364 = vsub.s32 0, %v1363
        %v1365 = vrot.slane %v1360, %v1364
        %v1368 = vsel %vm671, %v1246, 0
        %v1371 = vsel %vm671, %v1247, 0
        %v1374 = vsel %vm671, %v1248, 0
        %v1377 = vsel %vm671, %v1249, 0
        %v1380 = vsel %vm671, %v1250, 0
        %v1383 = vsel %vm671, %v1251, 0
        %v1386 = vsel %vm671, %v1252, 0
        %v1389 = vsel %vm671, %v1253, 0
        %1391 = vmatprep.subr.mxu0 0.0
        %1392 = vmatpush1.msra.mxu0 0.0
        %1393 = vmatprep.subr.mxu0 0.0
        %1394 = vmatpush1.msra.mxu0 0.0
        %1395 = vmatprep.subr.mxu0 0.0
        %1396 = vmatpush1.msra.mxu0 0.0
        %1397 = vmatprep.subr.mxu0 0.0
        %1398 = vmatpush1.msra.mxu0 0.0
        %1399 = vmatprep.subr.mxu0 0.0
        %1400 = vmatpush1.msra.mxu0 0.0
        %1401 = vmatprep.subr.mxu0 0.0
        %1402 = vmatpush1.msra.mxu0 0.0
        %1403 = vmatprep.subr.mxu0 0.0
        %1404 = vmatpush1.msra.mxu0 0.0
        %1405 = vmatprep.subr.mxu0 0.0
        %1406 = vmatpush1.msra.mxu0 0.0
        %1407 = vmatprep.subr.mxu0 0.0
        %1408 = vmatpush1.msra.mxu0 %v1357
        %1409 = vmatprep.subr.mxu0 0.0
        %1410 = vmatpush1.msra.mxu0 %v1352
        %1411 = vmatprep.subr.mxu0 0.0
        %1412 = vmatpush1.msra.mxu0 %v1347
        %1413 = vmatprep.subr.mxu0 0.0
        %1414 = vmatpush1.msra.mxu0 %v1342
        %1415 = vmatprep.subr.mxu0 0.0
        %1416 = vmatpush1.msra.mxu0 %v1337
        %1417 = vmatprep.subr.mxu0 0.0
        %1418 = vmatpush1.msra.mxu0 %v1332
        %1419 = vmatprep.subr.mxu0 0.0
        %1420 = vmatpush1.msra.mxu0 %v1327
        %1421 = vmatprep.subr.mxu0 0.0
        %1422 = vmatpush1.msra.mxu0 %v1322
        %1423 = vmatprep.subr.mxu0 0.0
        %1424 = vmatpush2.msra.mxu0 0.0
        %1425 = vmatprep.subr.mxu0 0.0
        %1426 = vmatpush2.msra.mxu0 0.0
        %1427 = vmatprep.subr.mxu0 0.0
        %1428 = vmatpush2.msra.mxu0 0.0
        %1429 = vmatprep.subr.mxu0 0.0
        %1430 = vmatpush2.msra.mxu0 0.0
        %1431 = vmatprep.subr.mxu0 0.0
        %1432 = vmatpush2.msra.mxu0 0.0
        %1433 = vmatprep.subr.mxu0 0.0
        %1434 = vmatpush2.msra.mxu0 0.0
        %1435 = vmatprep.subr.mxu0 0.0
        %1436 = vmatpush2.msra.mxu0 0.0
        %1437 = vmatprep.subr.mxu0 0.0
        %1438 = vmatpush2.msra.mxu0 0.0
        %1439 = vmatprep.subr.mxu0 0.0
        %1440 = vmatpush2.msra.mxu0 0.0
        %1441 = vmatprep.subr.mxu0 0.0
        %1442 = vmatpush2.msra.mxu0 0.0
        %1443 = vmatprep.subr.mxu0 0.0
        %1444 = vmatpush2.msra.mxu0 0.0
        %1445 = vmatprep.subr.mxu0 0.0
        %1446 = vmatpush2.msra.mxu0 0.0
        %1447 = vmatprep.subr.mxu0 0.0
        %1448 = vmatpush2.msra.mxu0 0.0
        %1449 = vmatprep.subr.mxu0 0.0
        %1450 = vmatpush2.msra.mxu0 0.0
        %1451 = vmatprep.subr.mxu0 0.0
        %1452 = vmatpush2.msra.mxu0 0.0
        %1453 = vmatprep.subr.mxu0 0.0
        %1454 = vmatpush2.msra.mxu0 0.0
        %1455 = vmatprep.mubr.f32.mxu0 0.0
        %1456 = vmatmul.mubr.f32.gmra.mxu0 %v1368
        %v1457 = vpop.f32.mrf.mxu0
        %v1458 = vadd.f32 %v1365, %v1457
        %v1459 = vpop.f32.mrf.mxu0
        %1460 = vmatprep.mubr.f32.mxu0 0.0
        %1461 = vmatmul.mubr.f32.gmra.mxu0 %v1371
        %v1462 = vpop.f32.mrf.mxu0
        %v1463 = vadd.f32 %v1365, %v1462
        %v1464 = vpop.f32.mrf.mxu0
        %1465 = vmatprep.mubr.f32.mxu0 0.0
        %1466 = vmatmul.mubr.f32.gmra.mxu0 %v1374
        %v1467 = vpop.f32.mrf.mxu0
        %v1468 = vadd.f32 %v1365, %v1467
        %v1469 = vpop.f32.mrf.mxu0
        %1470 = vmatprep.mubr.f32.mxu0 0.0
        %1471 = vmatmul.mubr.f32.gmra.mxu0 %v1377
        %v1472 = vpop.f32.mrf.mxu0
        %v1473 = vadd.f32 %v1365, %v1472
        %v1474 = vpop.f32.mrf.mxu0
        %1475 = vmatprep.mubr.f32.mxu0 0.0
        %1476 = vmatmul.mubr.f32.gmra.mxu0 %v1380
        %v1477 = vpop.f32.mrf.mxu0
        %v1478 = vadd.f32 %v1365, %v1477
        %v1479 = vpop.f32.mrf.mxu0
        %1480 = vmatprep.mubr.f32.mxu0 0.0
        %1481 = vmatmul.mubr.f32.gmra.mxu0 %v1383
        %v1482 = vpop.f32.mrf.mxu0
        %v1483 = vadd.f32 %v1365, %v1482
        %v1484 = vpop.f32.mrf.mxu0
        %1485 = vmatprep.mubr.f32.mxu0 0.0
        %1486 = vmatmul.mubr.f32.gmra.mxu0 %v1386
        %v1487 = vpop.f32.mrf.mxu0
        %v1488 = vadd.f32 %v1365, %v1487
        %v1489 = vpop.f32.mrf.mxu0
        %1490 = vmatprep.mubr.f32.mxu0 0.0
        %1491 = vmatmul.mubr.f32.gmra.mxu0 %v1389
        %v1492 = vpop.f32.mrf.mxu0
        %v1493 = vadd.f32 %v1365, %v1492
        %v1494 = vpop.f32.mrf.mxu0
        %1495 = vdwg.mxu0
        %vm1496 = vcmp.gt.f32.partialorder %v1458, 0.0
        %vm1497 = vcmp.gt.f32.partialorder %v1463, 0.0
        %vm1498 = vcmp.gt.f32.partialorder %v1468, 0.0
        %vm1499 = vcmp.gt.f32.partialorder %v1473, 0.0
        %vm1500 = vcmp.gt.f32.partialorder %v1478, 0.0
        %vm1501 = vcmp.gt.f32.partialorder %v1483, 0.0
        %vm1502 = vcmp.gt.f32.partialorder %v1488, 0.0
        %vm1503 = vcmp.gt.f32.partialorder %v1493, 0.0
        %v1504 = vmul.f32 %v1458, 0.01
        %v1505 = vmul.f32 %v1463, 0.01
        %v1506 = vmul.f32 %v1468, 0.01
        %v1507 = vmul.f32 %v1473, 0.01
        %v1508 = vmul.f32 %v1478, 0.01
        %v1509 = vmul.f32 %v1483, 0.01
        %v1510 = vmul.f32 %v1488, 0.01
        %v1511 = vmul.f32 %v1493, 0.01
        %v1512 = vsel %vm1496, %v1458, %v1504
        %v1513 = vsel %vm1497, %v1463, %v1505
        %v1514 = vsel %vm1498, %v1468, %v1506
        %v1515 = vsel %vm1499, %v1473, %v1507
        %v1516 = vsel %vm1500, %v1478, %v1508
        %v1517 = vsel %vm1501, %v1483, %v1509
        %v1518 = vsel %vm1502, %v1488, %v1510
        %v1519 = vsel %vm1503, %v1493, %v1511
        %v1520 = vld [vmem:[#allocation4] sm:$0xff]
        %v1521 = vld [vmem:[#allocation4 + $0x8] sm:$0xff]
        %v1523 = vsel %vm932, %v1512, 0
        %v1526 = vsel %vm932, %v1513, 0
        %v1529 = vsel %vm932, %v1514, 0
        %v1532 = vsel %vm932, %v1515, 0
        %v1535 = vsel %vm932, %v1516, 0
        %v1538 = vsel %vm932, %v1517, 0
        %v1541 = vsel %vm932, %v1518, 0
        %v1544 = vsel %vm932, %v1519, 0
        %1546 = vmatprep.subr.mxu0 0.0
        %1547 = vmatpush1.msra.mxu0 0.0
        %1548 = vmatprep.subr.mxu0 0.0
        %1549 = vmatpush1.msra.mxu0 0.0
        %1550 = vmatprep.subr.mxu0 0.0
        %1551 = vmatpush1.msra.mxu0 0.0
        %1552 = vmatprep.subr.mxu0 0.0
        %1553 = vmatpush1.msra.mxu0 0.0
        %1554 = vmatprep.subr.mxu0 0.0
        %1555 = vmatpush1.msra.mxu0 0.0
        %1556 = vmatprep.subr.mxu0 0.0
        %1557 = vmatpush1.msra.mxu0 0.0
        %1558 = vmatprep.subr.mxu0 0.0
        %1559 = vmatpush1.msra.mxu0 0.0
        %1560 = vmatprep.subr.mxu0 0.0
        %1561 = vmatpush1.msra.mxu0 0.0
        %1562 = vmatprep.subr.mxu0 0.0
        %1563 = vmatpush1.msra.mxu0 0.0
        %1564 = vmatprep.subr.mxu0 0.0
        %1565 = vmatpush1.msra.mxu0 0.0
        %1566 = vmatprep.subr.mxu0 0.0
        %1567 = vmatpush1.msra.mxu0 0.0
        %1568 = vmatprep.subr.mxu0 0.0
        %1569 = vmatpush1.msra.mxu0 0.0
        %1570 = vmatprep.subr.mxu0 0.0
        %1571 = vmatpush1.msra.mxu0 0.0
        %1572 = vmatprep.subr.mxu0 0.0
        %1573 = vmatpush1.msra.mxu0 0.0
        %1574 = vmatprep.subr.mxu0 0.0
        %1575 = vmatpush1.msra.mxu0 %v1521
        %1576 = vmatprep.subr.mxu0 0.0
        %1577 = vmatpush1.msra.mxu0 %v1520
        %1578 = vmatprep.subr.mxu0 0.0
        %1579 = vmatpush2.msra.mxu0 0.0
        %1580 = vmatprep.subr.mxu0 0.0
        %1581 = vmatpush2.msra.mxu0 0.0
        %1582 = vmatprep.subr.mxu0 0.0
        %1583 = vmatpush2.msra.mxu0 0.0
        %1584 = vmatprep.subr.mxu0 0.0
        %1585 = vmatpush2.msra.mxu0 0.0
        %1586 = vmatprep.subr.mxu0 0.0
        %1587 = vmatpush2.msra.mxu0 0.0
        %1588 = vmatprep.subr.mxu0 0.0
        %1589 = vmatpush2.msra.mxu0 0.0
        %1590 = vmatprep.subr.mxu0 0.0
        %1591 = vmatpush2.msra.mxu0 0.0
        %1592 = vmatprep.subr.mxu0 0.0
        %1593 = vmatpush2.msra.mxu0 0.0
        %1594 = vmatprep.subr.mxu0 0.0
        %1595 = vmatpush2.msra.mxu0 0.0
        %1596 = vmatprep.subr.mxu0 0.0
        %1597 = vmatpush2.msra.mxu0 0.0
        %1598 = vmatprep.subr.mxu0 0.0
        %1599 = vmatpush2.msra.mxu0 0.0
        %1600 = vmatprep.subr.mxu0 0.0
        %1601 = vmatpush2.msra.mxu0 0.0
        %1602 = vmatprep.subr.mxu0 0.0
        %1603 = vmatpush2.msra.mxu0 0.0
        %1604 = vmatprep.subr.mxu0 0.0
        %1605 = vmatpush2.msra.mxu0 0.0
        %1606 = vmatprep.subr.mxu0 0.0
        %1607 = vmatpush2.msra.mxu0 0.0
        %1608 = vmatprep.subr.mxu0 0.0
        %1609 = vmatpush2.msra.mxu0 0.0
        %1610 = vmatprep.mubr.f32.mxu0 0.0
        %1611 = vmatmul.mubr.f32.gmra.mxu0 %v1523
        %v1612 = vpop.f32.mrf.mxu0
        %v1613 = vadd.f32 0.0, %v1612
        %v1614 = vpop.f32.mrf.mxu0
        %1615 = vmatprep.mubr.f32.mxu0 0.0
        %1616 = vmatmul.mubr.f32.gmra.mxu0 %v1526
        %v1617 = vpop.f32.mrf.mxu0
        %v1618 = vadd.f32 0.0, %v1617
        %v1619 = vpop.f32.mrf.mxu0
        %1620 = vmatprep.mubr.f32.mxu0 0.0
        %1621 = vmatmul.mubr.f32.gmra.mxu0 %v1529
        %v1622 = vpop.f32.mrf.mxu0
        %v1623 = vadd.f32 0.0, %v1622
        %v1624 = vpop.f32.mrf.mxu0
        %1625 = vmatprep.mubr.f32.mxu0 0.0
        %1626 = vmatmul.mubr.f32.gmra.mxu0 %v1532
        %v1627 = vpop.f32.mrf.mxu0
        %v1628 = vadd.f32 0.0, %v1627
        %v1629 = vpop.f32.mrf.mxu0
        %1630 = vmatprep.mubr.f32.mxu0 0.0
        %1631 = vmatmul.mubr.f32.gmra.mxu0 %v1535
        %v1632 = vpop.f32.mrf.mxu0
        %v1633 = vadd.f32 0.0, %v1632
        %v1634 = vpop.f32.mrf.mxu0
        %1635 = vmatprep.mubr.f32.mxu0 0.0
        %1636 = vmatmul.mubr.f32.gmra.mxu0 %v1538
        %v1637 = vpop.f32.mrf.mxu0
        %v1638 = vadd.f32 0.0, %v1637
        %v1639 = vpop.f32.mrf.mxu0
        %1640 = vmatprep.mubr.f32.mxu0 0.0
        %1641 = vmatmul.mubr.f32.gmra.mxu0 %v1541
        %v1642 = vpop.f32.mrf.mxu0
        %v1643 = vadd.f32 0.0, %v1642
        %v1644 = vpop.f32.mrf.mxu0
        %1645 = vmatprep.mubr.f32.mxu0 0.0
        %1646 = vmatmul.mubr.f32.gmra.mxu0 %v1544
        %v1647 = vpop.f32.mrf.mxu0
        %v1648 = vadd.f32 0.0, %v1647
        %v1649 = vpop.f32.mrf.mxu0
        %1650 = vdwg.mxu0
        %v1651 = vld [vmem:[#allocation6] sm:$0x1]
        %v1653 = vlaneseq
        %v1654 = vshrl.u32 %v1653, 7
        %v1655 = vsub.s32 0, %v1654
        %v1656 = vrot.slane %v1651, %v1655
        %1658 = vmatprep.subr.mxu0 0.0
        %1659 = vmatpush1.msra.mxu0 0.0
        %1660 = vmatprep.subr.mxu0 0.0
        %1661 = vmatpush1.msra.mxu0 0.0
        %1662 = vmatprep.subr.mxu0 0.0
        %1663 = vmatpush1.msra.mxu0 0.0
        %1664 = vmatprep.subr.mxu0 0.0
        %1665 = vmatpush1.msra.mxu0 0.0
        %1666 = vmatprep.subr.mxu0 0.0
        %1667 = vmatpush1.msra.mxu0 0.0
        %1668 = vmatprep.subr.mxu0 0.0
        %1669 = vmatpush1.msra.mxu0 0.0
        %1670 = vmatprep.subr.mxu0 0.0
        %1671 = vmatpush1.msra.mxu0 0.0
        %1672 = vmatprep.subr.mxu0 0.0
        %1673 = vmatpush1.msra.mxu0 0.0
        %1674 = vmatprep.subr.mxu0 0.0
        %1675 = vmatpush1.msra.mxu0 %v1648
        %1676 = vmatprep.subr.mxu0 0.0
        %1677 = vmatpush1.msra.mxu0 %v1643
        %1678 = vmatprep.subr.mxu0 0.0
        %1679 = vmatpush1.msra.mxu0 %v1638
        %1680 = vmatprep.subr.mxu0 0.0
        %1681 = vmatpush1.msra.mxu0 %v1633
        %1682 = vmatprep.subr.mxu0 0.0
        %1683 = vmatpush1.msra.mxu0 %v1628
        %1684 = vmatprep.subr.mxu0 0.0
        %1685 = vmatpush1.msra.mxu0 %v1623
        %1686 = vmatprep.subr.mxu0 0.0
        %1687 = vmatpush1.msra.mxu0 %v1618
        %1688 = vmatprep.subr.mxu0 0.0
        %1689 = vmatpush1.msra.mxu0 %v1613
        %1690 = vmatprep.subr.mxu0 0.0
        %1691 = vmatpush2.msra.mxu0 0.0
        %1692 = vmatprep.subr.mxu0 0.0
        %1693 = vmatpush2.msra.mxu0 0.0
        %1694 = vmatprep.subr.mxu0 0.0
        %1695 = vmatpush2.msra.mxu0 0.0
        %1696 = vmatprep.subr.mxu0 0.0
        %1697 = vmatpush2.msra.mxu0 0.0
        %1698 = vmatprep.subr.mxu0 0.0
        %1699 = vmatpush2.msra.mxu0 0.0
        %1700 = vmatprep.subr.mxu0 0.0
        %1701 = vmatpush2.msra.mxu0 0.0
        %1702 = vmatprep.subr.mxu0 0.0
        %1703 = vmatpush2.msra.mxu0 0.0
        %1704 = vmatprep.subr.mxu0 0.0
        %1705 = vmatpush2.msra.mxu0 0.0
        %1706 = vmatprep.subr.mxu0 0.0
        %1707 = vmatpush2.msra.mxu0 0.0
        %1708 = vmatprep.subr.mxu0 0.0
        %1709 = vmatpush2.msra.mxu0 0.0
        %1710 = vmatprep.subr.mxu0 0.0
        %1711 = vmatpush2.msra.mxu0 0.0
        %1712 = vmatprep.subr.mxu0 0.0
        %1713 = vmatpush2.msra.mxu0 0.0
        %1714 = vmatprep.subr.mxu0 0.0
        %1715 = vmatpush2.msra.mxu0 0.0
        %1716 = vmatprep.subr.mxu0 0.0
        %1717 = vmatpush2.msra.mxu0 0.0
        %1718 = vmatprep.subr.mxu0 0.0
        %1719 = vmatpush2.msra.mxu0 0.0
        %1720 = vmatprep.subr.mxu0 0.0
        %1721 = vmatpush2.msra.mxu0 0.0
        %1722 = vmatprep.mubr.f32.mxu0 0.0
        %1723 = vmatmul.mubr.f32.gmra.mxu0 %v1368
        %v1724 = vpop.f32.mrf.mxu0
        %v1725 = vadd.f32 %v1656, %v1724
        %v1726 = vpop.f32.mrf.mxu0
        %1727 = vmatprep.mubr.f32.mxu0 0.0
        %1728 = vmatmul.mubr.f32.gmra.mxu0 %v1371
        %v1729 = vpop.f32.mrf.mxu0
        %v1730 = vadd.f32 %v1656, %v1729
        %v1731 = vpop.f32.mrf.mxu0
        %1732 = vmatprep.mubr.f32.mxu0 0.0
        %1733 = vmatmul.mubr.f32.gmra.mxu0 %v1374
        %v1734 = vpop.f32.mrf.mxu0
        %v1735 = vadd.f32 %v1656, %v1734
        %v1736 = vpop.f32.mrf.mxu0
        %1737 = vmatprep.mubr.f32.mxu0 0.0
        %1738 = vmatmul.mubr.f32.gmra.mxu0 %v1377
        %v1739 = vpop.f32.mrf.mxu0
        %v1740 = vadd.f32 %v1656, %v1739
        %v1741 = vpop.f32.mrf.mxu0
        %1742 = vmatprep.mubr.f32.mxu0 0.0
        %1743 = vmatmul.mubr.f32.gmra.mxu0 %v1380
        %v1744 = vpop.f32.mrf.mxu0
        %v1745 = vadd.f32 %v1656, %v1744
        %v1746 = vpop.f32.mrf.mxu0
        %1747 = vmatprep.mubr.f32.mxu0 0.0
        %1748 = vmatmul.mubr.f32.gmra.mxu0 %v1383
        %v1749 = vpop.f32.mrf.mxu0
        %v1750 = vadd.f32 %v1656, %v1749
        %v1751 = vpop.f32.mrf.mxu0
        %1752 = vmatprep.mubr.f32.mxu0 0.0
        %1753 = vmatmul.mubr.f32.gmra.mxu0 %v1386
        %v1754 = vpop.f32.mrf.mxu0
        %v1755 = vadd.f32 %v1656, %v1754
        %v1756 = vpop.f32.mrf.mxu0
        %1757 = vmatprep.mubr.f32.mxu0 0.0
        %1758 = vmatmul.mubr.f32.gmra.mxu0 %v1389
        %v1759 = vpop.f32.mrf.mxu0
        %v1760 = vadd.f32 %v1656, %v1759
        %v1761 = vpop.f32.mrf.mxu0
        %1762 = vdwg.mxu0
        %vm1763 = vcmp.gt.f32.partialorder %v1725, 0.0
        %vm1764 = vcmp.gt.f32.partialorder %v1730, 0.0
        %vm1765 = vcmp.gt.f32.partialorder %v1735, 0.0
        %vm1766 = vcmp.gt.f32.partialorder %v1740, 0.0
        %vm1767 = vcmp.gt.f32.partialorder %v1745, 0.0
        %vm1768 = vcmp.gt.f32.partialorder %v1750, 0.0
        %vm1769 = vcmp.gt.f32.partialorder %v1755, 0.0
        %vm1770 = vcmp.gt.f32.partialorder %v1760, 0.0
        %v1771 = vmul.f32 %v1725, 0.01
        %v1772 = vmul.f32 %v1730, 0.01
        %v1773 = vmul.f32 %v1735, 0.01
        %v1774 = vmul.f32 %v1740, 0.01
        %v1775 = vmul.f32 %v1745, 0.01
        %v1776 = vmul.f32 %v1750, 0.01
        %v1777 = vmul.f32 %v1755, 0.01
        %v1778 = vmul.f32 %v1760, 0.01
        %v1779 = vsel %vm1763, %v1725, %v1771
        %v1780 = vsel %vm1764, %v1730, %v1772
        %v1781 = vsel %vm1765, %v1735, %v1773
        %v1782 = vsel %vm1766, %v1740, %v1774
        %v1783 = vsel %vm1767, %v1745, %v1775
        %v1784 = vsel %vm1768, %v1750, %v1776
        %v1785 = vsel %vm1769, %v1755, %v1777
        %v1786 = vsel %vm1770, %v1760, %v1778
        %1787 = vst.msk [vmem:[%s516] sm:$0xff] %vm1037, %v1779
        %1788 = vst.msk [vmem:[%s516 + $0x8] sm:$0xff] %vm1037, %v1780
        %1789 = vst.msk [vmem:[%s516 + $0x10] sm:$0xff] %vm1037, %v1781
        %1790 = vst.msk [vmem:[%s516 + $0x18] sm:$0xff] %vm1037, %v1782
        %1791 = vst.msk [vmem:[%s516 + $0x20] sm:$0xff] %vm1037, %v1783
        %1792 = vst.msk [vmem:[%s516 + $0x28] sm:$0xff] %vm1037, %v1784
        %1793 = vst.msk [vmem:[%s516 + $0x30] sm:$0xff] %vm1037, %v1785
        %1794 = vst.msk [vmem:[%s516 + $0x38] sm:$0xff] %vm1037, %v1786
        %p1795 = scmp.lt.s32.totalorder %s28, 1
        %s1796 = scalar_select %p1795, %s28, 1
        %s1797 = scalar_lea.vmem %s13, %s1796
        %p1798 = scmp.lt.s32.totalorder %s28, 1
        %s1799 = scalar_select %p1798, %s28, 1
        %s1800 = smul.addr %s1799, 8
        %s1801 = smul.addr %s1800, 8
        %s1802 = scalar_lea.vmem %s14, %s1801
        // Predicated region
        $region85: #{fmgen_forward.3} parent=71 // pred_check
          %p1803 = pneg %p324
        $region86: #{fmgen_forward.3} parent=71 // pred_check_branch
          %1805 = sbr.rel (%p1803) target = $region88
        $region87: #{fmgen_forward.3} parent=71 // pred_region
          _
        $region88: #{fmgen_forward.3} parent=71 // pred_fallthru
          _
        // Predicated region
        $region89: #{fmgen_forward.3} parent=71 // pred_check
          %p1806 = pneg %p350
        $region90: #{fmgen_forward.3} parent=71 // pred_check_branch
          %1808 = sbr.rel (%p1806) target = $region92
        $region91: #{fmgen_forward.3} parent=71 // pred_region
          _
        $region92: #{fmgen_forward.3} parent=71 // pred_fallthru
          _
      $region72: #{fmgen_forward.3} parent=5 // pred_fallthru
        _
      %p1809 = scmp.le.s32.totalorder 2, %s23
      // Predicated region
      $region93: #{fmgen_forward.3} parent=5 // pred_check
        %p1810 = pneg %p1809
      $region94: #{fmgen_forward.3} parent=5 // pred_check_branch
        %1812 = sbr.rel (%p1810) target = $region96
      $region95: #{fmgen_forward.3} parent=5 // pred_region
        %s1813 = ssub.s32 %s23, 2
        // Predicated region
        $region97: #{fmgen_forward.3} parent=95 // pred_check
          %p1814 = pneg %p330
        $region98: #{fmgen_forward.3} parent=95 // pred_check_branch
          %1816 = sbr.rel (%p1814) target = $region100
        $region99: #{fmgen_forward.3} parent=95 // pred_region
          %p1817 = scmp.lt.s32.totalorder %s29, 1
          %s1818 = scalar_select %p1817, %s29, 1
          %s1819 = scalar_lea.vmem %s13, %s1818
        $region100: #{fmgen_forward.3} parent=95 // pred_fallthru
          _
        // Predicated region
        $region101: #{fmgen_forward.3} parent=95 // pred_check
          %p1820 = pneg %p356
        $region102: #{fmgen_forward.3} parent=95 // pred_check_branch
          %1822 = sbr.rel (%p1820) target = $region104
        $region103: #{fmgen_forward.3} parent=95 // pred_region
          %p1823 = scmp.lt.s32.totalorder %s29, 1
          %s1824 = scalar_select %p1823, %s29, 1
          %s1825 = smul.addr %s1824, 8
          %s1826 = smul.addr %s1825, 8
          %s1827 = scalar_lea.vmem %s14, %s1826
        $region104: #{fmgen_forward.3} parent=95 // pred_fallthru
          _
      $region96: #{fmgen_forward.3} parent=5 // pred_fallthru
        _
    $region6: #{fmgen_forward.3} parent=1 // loop_footer
      %s27 = sadd.s32 1, %s23
    $region7: #{fmgen_forward.3} parent=1 // loop_footer_branch
      %22 = sbr.rel target = $region3
    $region8: #{fmgen_forward.3} parent=1 // loop_exit
      _
    %1828 = vsyncpa [#allocation3], 1
    %s1829 = scalar_lea.sflag [#allocation3], 1
    %1830 = vsyncpa %s1829, 1
    %1831 = vsyncpa [#allocation5], 1

// kernel: fmgen_forward.5
$region0: #{fmgen_forward.5}
  #allocation0 [shape = 'u32[]', space=smem, size = 0x4, offset = 0x4, fixed_abs, tag = 'smem constant byte address 0x4 - core index']
  #allocation1 [shape = 'u32[144,128]{1,0:T(1,128)}', space=vmem, size = 0x12000, scoped, tag = 'internal scratch']
  %s0 = inlined_call_operand.vmem [shape: f32[2,64,32], index: 0, kind: input, shape index: {}]
  %s1 = inlined_call_operand.vmem [shape: f32[2,64,8], index: 1, kind: input, shape index: {}]
  %s2 = inlined_call_operand.vmem [shape: f32[64,64], index: 2, kind: input, shape index: {}]
  %s3 = inlined_call_operand.vmem [shape: f32[32,16], index: 3, kind: input, shape index: {}]
  %s4 = inlined_call_operand.vmem [shape: f32[1,16], index: 4, kind: input, shape index: {}]
  %s5 = inlined_call_operand.vmem [shape: f32[16,8], index: 5, kind: input, shape index: {}]
  %s6 = inlined_call_operand.vmem [shape: f32[1,8], index: 6, kind: input, shape index: {}]
  %s7 = inlined_call_operand.vmem [shape: f32[2,64,8], index: 7, kind: output, shape index: {}]
  %s8 = sld [smem:[#allocation0]]
  $region61: #{fmgen_forward.5} parent=0
    _
  %s10 = ssub.s32 1, %s8
  %s11 = scalar_select 0, %s10, %s8
  loop: start=0, step=1, limit=4
  $region2: #{fmgen_forward.5} parent=0 // loop_pre_header
    _
  $region3: #{fmgen_forward.5} parent=0 // loop_header
    %s13 = sphi 0, %s17
    %p14 = scmp.ge.s32.totalorder %s13, 4
    %s23 = sphi 0, %s25
    %s26 = sphi 0, %s23
    %s27 = sphi 0, %s26
    %s43 = sphi 0, %s27
    %s49 = sphi 0, %s51
    %s52 = sphi 0, %s49
    %s53 = sphi 0, %s52
    %s69 = sphi 0, %s53
    %s73 = sphi 0, %s73
    %s75 = sphi 0, %s73
    %s76 = sphi 0, %s75
    %s90 = sphi 0, %s76
    %s94 = sphi 0, %s94
    %s96 = sphi 0, %s94
    %s97 = sphi 0, %s96
    %s111 = sphi 0, %s97
    %s115 = sphi 0, %s115
    %s117 = sphi 0, %s115
    %s118 = sphi 0, %s117
    %s132 = sphi 0, %s118
    %s136 = sphi 0, %s136
    %s138 = sphi 0, %s136
    %s139 = sphi 0, %s138
    %s153 = sphi 0, %s139
    %s157 = sphi 0, %s157
    %s159 = sphi 0, %s157
    %s160 = sphi 0, %s159
    %s174 = sphi 0, %s160
    %s180 = sphi 0, %s182
    %s183 = sphi 0, %s180
    %s184 = sphi 0, %s183
    %s200 = sphi 0, %s184
  $region4: #{fmgen_forward.5} parent=0 // loop_header_branch
    %16 = sbr.rel (%p14) target = $region8
  $region5: #{fmgen_forward.5} parent=0 // loop_body
    %s18 = ssub.s32 %s13, 1
    %s19 = ssub.s32 %s13, 2
    %s20 = sadd.s32 %s13, 1
    %s21 = ssub.s32 %s13, %s20
    %p22 = scmp.eq.s32.totalorder %s21, 0
    %s24 = sadd.s32 %s23, 1
    %s25 = scalar_select %p22, %s23, %s24
    %p28 = pneg %p22
    %p29 = scmp.eq.s32.totalorder %s13, 1
    %p30 = por %p28, %p29
    %p31 = scmp.ne.s32.totalorder %s23, %s26
    %p32 = scmp.eq.s32.totalorder %s13, 0
    %p33 = por %p31, %p32
    %p34 = scmp.ne.s32.totalorder %s23, %s26
    %p35 = scmp.eq.s32.totalorder %s18, 1
    %p36 = por %p34, %p35
    %p37 = scmp.ne.s32.totalorder %s26, %s27
    %p38 = scmp.eq.s32.totalorder %s18, 0
    %p39 = por %p37, %p38
    %p40 = scmp.ne.s32.totalorder %s26, %s27
    %p41 = scmp.eq.s32.totalorder %s19, 1
    %p42 = por %p40, %p41
    %p44 = scmp.ne.s32.totalorder %s27, %s43
    %p45 = scmp.eq.s32.totalorder %s19, 0
    %p46 = por %p44, %p45
    %s47 = ssub.s32 %s13, %s20
    %p48 = scmp.eq.s32.totalorder %s47, 0
    %s50 = sadd.s32 %s49, 1
    %s51 = scalar_select %p48, %s49, %s50
    %p54 = pneg %p48
    %p55 = scmp.eq.s32.totalorder %s13, 1
    %p56 = por %p54, %p55
    %p57 = scmp.ne.s32.totalorder %s49, %s52
    %p58 = scmp.eq.s32.totalorder %s13, 0
    %p59 = por %p57, %p58
    %p60 = scmp.ne.s32.totalorder %s49, %s52
    %p61 = scmp.eq.s32.totalorder %s18, 1
    %p62 = por %p60, %p61
    %p63 = scmp.ne.s32.totalorder %s52, %s53
    %p64 = scmp.eq.s32.totalorder %s18, 0
    %p65 = por %p63, %p64
    %p66 = scmp.ne.s32.totalorder %s52, %s53
    %p67 = scmp.eq.s32.totalorder %s19, 1
    %p68 = por %p66, %p67
    %p70 = scmp.ne.s32.totalorder %s53, %s69
    %p71 = scmp.eq.s32.totalorder %s19, 0
    %p72 = por %p70, %p71
    %s74 = sadd.s32 %s73, 1
    %p77 = scmp.eq.s32.totalorder %s13, 1
    %p78 = scmp.ne.s32.totalorder %s73, %s75
    %p79 = scmp.eq.s32.totalorder %s13, 0
    %p80 = por %p78, %p79
    %p81 = scmp.ne.s32.totalorder %s73, %s75
    %p82 = scmp.eq.s32.totalorder %s18, 1
    %p83 = por %p81, %p82
    %p84 = scmp.ne.s32.totalorder %s75, %s76
    %p85 = scmp.eq.s32.totalorder %s18, 0
    %p86 = por %p84, %p85
    %p87 = scmp.ne.s32.totalorder %s75, %s76
    %p88 = scmp.eq.s32.totalorder %s19, 1
    %p89 = por %p87, %p88
    %p91 = scmp.ne.s32.totalorder %s76, %s90
    %p92 = scmp.eq.s32.totalorder %s19, 0
    %p93 = por %p91, %p92
    %s95 = sadd.s32 %s94, 1
    %p98 = scmp.eq.s32.totalorder %s13, 1
    %p99 = scmp.ne.s32.totalorder %s94, %s96
    %p100 = scmp.eq.s32.totalorder %s13, 0
    %p101 = por %p99, %p100
    %p102 = scmp.ne.s32.totalorder %s94, %s96
    %p103 = scmp.eq.s32.totalorder %s18, 1
    %p104 = por %p102, %p103
    %p105 = scmp.ne.s32.totalorder %s96, %s97
    %p106 = scmp.eq.s32.totalorder %s18, 0
    %p107 = por %p105, %p106
    %p108 = scmp.ne.s32.totalorder %s96, %s97
    %p109 = scmp.eq.s32.totalorder %s19, 1
    %p110 = por %p108, %p109
    %p112 = scmp.ne.s32.totalorder %s97, %s111
    %p113 = scmp.eq.s32.totalorder %s19, 0
    %p114 = por %p112, %p113
    %s116 = sadd.s32 %s115, 1
    %p119 = scmp.eq.s32.totalorder %s13, 1
    %p120 = scmp.ne.s32.totalorder %s115, %s117
    %p121 = scmp.eq.s32.totalorder %s13, 0
    %p122 = por %p120, %p121
    %p123 = scmp.ne.s32.totalorder %s115, %s117
    %p124 = scmp.eq.s32.totalorder %s18, 1
    %p125 = por %p123, %p124
    %p126 = scmp.ne.s32.totalorder %s117, %s118
    %p127 = scmp.eq.s32.totalorder %s18, 0
    %p128 = por %p126, %p127
    %p129 = scmp.ne.s32.totalorder %s117, %s118
    %p130 = scmp.eq.s32.totalorder %s19, 1
    %p131 = por %p129, %p130
    %p133 = scmp.ne.s32.totalorder %s118, %s132
    %p134 = scmp.eq.s32.totalorder %s19, 0
    %p135 = por %p133, %p134
    %s137 = sadd.s32 %s136, 1
    %p140 = scmp.eq.s32.totalorder %s13, 1
    %p141 = scmp.ne.s32.totalorder %s136, %s138
    %p142 = scmp.eq.s32.totalorder %s13, 0
    %p143 = por %p141, %p142
    %p144 = scmp.ne.s32.totalorder %s136, %s138
    %p145 = scmp.eq.s32.totalorder %s18, 1
    %p146 = por %p144, %p145
    %p147 = scmp.ne.s32.totalorder %s138, %s139
    %p148 = scmp.eq.s32.totalorder %s18, 0
    %p149 = por %p147, %p148
    %p150 = scmp.ne.s32.totalorder %s138, %s139
    %p151 = scmp.eq.s32.totalorder %s19, 1
    %p152 = por %p150, %p151
    %p154 = scmp.ne.s32.totalorder %s139, %s153
    %p155 = scmp.eq.s32.totalorder %s19, 0
    %p156 = por %p154, %p155
    %s158 = sadd.s32 %s157, 1
    %p161 = scmp.eq.s32.totalorder %s13, 1
    %p162 = scmp.ne.s32.totalorder %s157, %s159
    %p163 = scmp.eq.s32.totalorder %s13, 0
    %p164 = por %p162, %p163
    %p165 = scmp.ne.s32.totalorder %s157, %s159
    %p166 = scmp.eq.s32.totalorder %s18, 1
    %p167 = por %p165, %p166
    %p168 = scmp.ne.s32.totalorder %s159, %s160
    %p169 = scmp.eq.s32.totalorder %s18, 0
    %p170 = por %p168, %p169
    %p171 = scmp.ne.s32.totalorder %s159, %s160
    %p172 = scmp.eq.s32.totalorder %s19, 1
    %p173 = por %p171, %p172
    %p175 = scmp.ne.s32.totalorder %s160, %s174
    %p176 = scmp.eq.s32.totalorder %s19, 0
    %p177 = por %p175, %p176
    %s178 = ssub.s32 %s13, %s20
    %p179 = scmp.eq.s32.totalorder %s178, 0
    %s181 = sadd.s32 %s180, 1
    %s182 = scalar_select %p179, %s180, %s181
    %p185 = pneg %p179
    %p186 = scmp.eq.s32.totalorder %s13, 1
    %p187 = por %p185, %p186
    %p188 = scmp.ne.s32.totalorder %s180, %s183
    %p189 = scmp.eq.s32.totalorder %s13, 0
    %p190 = por %p188, %p189
    %p191 = scmp.ne.s32.totalorder %s180, %s183
    %p192 = scmp.eq.s32.totalorder %s18, 1
    %p193 = por %p191, %p192
    %p194 = scmp.ne.s32.totalorder %s183, %s184
    %p195 = scmp.eq.s32.totalorder %s18, 0
    %p196 = por %p194, %p195
    %p197 = scmp.ne.s32.totalorder %s183, %s184
    %p198 = scmp.eq.s32.totalorder %s19, 1
    %p199 = por %p197, %p198
    %p201 = scmp.ne.s32.totalorder %s184, %s200
    %p202 = scmp.eq.s32.totalorder %s19, 0
    %p203 = por %p201, %p202
    %p204 = scmp.le.s32.totalorder 1, %s13
    %p205 = scmp.lt.s32.totalorder %s13, 3
    %p206 = pnand %p204, %p205
    %p207 = pneg %p206
    // Predicated region
    $region9: #{fmgen_forward.5} parent=5 // pred_check
      _
    $region10: #{fmgen_forward.5} parent=5 // pred_check_branch
      %209 = sbr.rel (%p206) target = $region12
    $region11: #{fmgen_forward.5} parent=5 // pred_region
      %s210 = ssub.s32 %s13, 1
      // Predicated region
      $region13: #{fmgen_forward.5} parent=11 // pred_check
        %p211 = pneg %p86
      $region14: #{fmgen_forward.5} parent=11 // pred_check_branch
        %213 = sbr.rel (%p211) target = $region16
      $region15: #{fmgen_forward.5} parent=11 // pred_region
        _
      $region16: #{fmgen_forward.5} parent=11 // pred_fallthru
        _
      // Predicated region
      $region17: #{fmgen_forward.5} parent=11 // pred_check
        %p214 = pneg %p107
      $region18: #{fmgen_forward.5} parent=11 // pred_check_branch
        %216 = sbr.rel (%p214) target = $region20
      $region19: #{fmgen_forward.5} parent=11 // pred_region
        _
      $region20: #{fmgen_forward.5} parent=11 // pred_fallthru
        _
      // Predicated region
      $region21: #{fmgen_forward.5} parent=11 // pred_check
        %p217 = pneg %p128
      $region22: #{fmgen_forward.5} parent=11 // pred_check_branch
        %219 = sbr.rel (%p217) target = $region24
      $region23: #{fmgen_forward.5} parent=11 // pred_region
        _
      $region24: #{fmgen_forward.5} parent=11 // pred_fallthru
        _
      // Predicated region
      $region25: #{fmgen_forward.5} parent=11 // pred_check
        %p220 = pneg %p149
      $region26: #{fmgen_forward.5} parent=11 // pred_check_branch
        %222 = sbr.rel (%p220) target = $region28
      $region27: #{fmgen_forward.5} parent=11 // pred_region
        _
      $region28: #{fmgen_forward.5} parent=11 // pred_fallthru
        _
      // Predicated region
      $region29: #{fmgen_forward.5} parent=11 // pred_check
        %p223 = pneg %p170
      $region30: #{fmgen_forward.5} parent=11 // pred_check_branch
        %225 = sbr.rel (%p223) target = $region32
      $region31: #{fmgen_forward.5} parent=11 // pred_region
        _
      $region32: #{fmgen_forward.5} parent=11 // pred_fallthru
        _
    $region12: #{fmgen_forward.5} parent=5 // pred_fallthru
      _
    %p226 = scmp.lt.s32.totalorder %s13, 2
    // Predicated region
    $region33: #{fmgen_forward.5} parent=5 // pred_check
      %p227 = pneg %p226
    $region34: #{fmgen_forward.5} parent=5 // pred_check_branch
      %229 = sbr.rel (%p227) target = $region36
    $region35: #{fmgen_forward.5} parent=5 // pred_region
      // Predicated region
      $region37: #{fmgen_forward.5} parent=35 // pred_check
        %p230 = pneg %p33
      $region38: #{fmgen_forward.5} parent=35 // pred_check_branch
        %232 = sbr.rel (%p230) target = $region40
      $region39: #{fmgen_forward.5} parent=35 // pred_region
        %p233 = scmp.lt.s32.totalorder %s13, 1
        %s234 = scalar_select %p233, %s13, 1
        %s235 = smul.addr %s234, 8
        %s236 = smul.addr %s235, 8
        %s237 = scalar_lea.vmem %s0, %s236
      $region40: #{fmgen_forward.5} parent=35 // pred_fallthru
        _
      // Predicated region
      $region41: #{fmgen_forward.5} parent=35 // pred_check
        %p238 = pneg %p59
      $region42: #{fmgen_forward.5} parent=35 // pred_check_branch
        %240 = sbr.rel (%p238) target = $region44
      $region43: #{fmgen_forward.5} parent=35 // pred_region
        %p241 = scmp.lt.s32.totalorder %s13, 1
        %s242 = scalar_select %p241, %s13, 1
        %s243 = smul.addr %s242, 8
        %s244 = smul.addr %s243, 8
        %s245 = scalar_lea.vmem %s1, %s244
      $region44: #{fmgen_forward.5} parent=35 // pred_fallthru
        _
    $region36: #{fmgen_forward.5} parent=5 // pred_fallthru
      _
    %p246 = scmp.le.s32.totalorder 1, %s13
    %p247 = scmp.lt.s32.totalorder %s13, 3
    %p248 = pnand %p246, %p247
    %p249 = pneg %p248
    // Predicated region
    $region45: #{fmgen_forward.5} parent=5 // pred_check
      _
    $region46: #{fmgen_forward.5} parent=5 // pred_check_branch
      %251 = sbr.rel (%p248) target = $region48
    $region47: #{fmgen_forward.5} parent=5 // pred_region
      %s252 = ssub.s32 %s13, 1
      %p253 = scmp.lt.s32.totalorder %s18, 1
      %s254 = scalar_select %p253, %s18, 1
      %s255 = smul.addr %s254, 8
      %s256 = smul.addr %s255, 8
      %s257 = scalar_lea.vmem %s0, %s256
      %p258 = pneg %p39
      %p259 = pneg %p36
      %p260 = scmp.lt.s32.totalorder %s18, 1
      %s261 = scalar_select %p260, %s18, 1
      %s262 = smul.addr %s261, 8
      %s263 = smul.addr %s262, 8
      %s264 = scalar_lea.vmem %s1, %s263
      %p265 = pneg %p65
      %p266 = pneg %p62
      %p267 = pneg %p86
      %p268 = pneg %p83
      %p269 = pneg %p107
      %p270 = pneg %p104
      %p271 = pneg %p128
      %p272 = pneg %p125
      %p273 = pneg %p149
      %p274 = pneg %p146
      %p275 = pneg %p170
      %p276 = pneg %p167
      %p277 = pneg %p196
      %p278 = pneg %p193
      %p279 = scmp.lt.s32.totalorder %s18, 1
      %s280 = scalar_select %p279, %s18, 1
      %s281 = smul.addr %s280, 8
      %s282 = smul.addr %s281, 8
      %s283 = scalar_lea.vmem %s7, %s282
      %p284 = scmp.lt.s32.totalorder %s18, 1
      %s285 = scalar_select %p284, %s18, 1
      %s286 = smul.addr %s285, 8
      %s287 = smul.addr %s286, 8
      %s288 = scalar_lea.vmem %s0, %s287
      %p289 = scmp.lt.s32.totalorder %s18, 1
      %s290 = scalar_select %p289, %s18, 1
      %s291 = smul.addr %s290, 8
      %s292 = smul.addr %s291, 8
      %s293 = scalar_lea.vmem %s1, %s292
      %p294 = scmp.lt.s32.totalorder %s18, 1
      %s295 = scalar_select %p294, %s18, 1
      %s296 = smul.addr %s295, 8
      %s297 = smul.addr %s296, 8
      %s298 = scalar_lea.vmem %s7, %s297
      %v299 = vld [vmem:[%s288] sm:$0xff]
      %v300 = vld [vmem:[%s288 + $0x8] sm:$0xff]
      %v301 = vld [vmem:[%s288 + $0x10] sm:$0xff]
      %v302 = vld [vmem:[%s288 + $0x18] sm:$0xff]
      %v303 = vld [vmem:[%s288 + $0x20] sm:$0xff]
      %v304 = vld [vmem:[%s288 + $0x28] sm:$0xff]
      %v305 = vld [vmem:[%s288 + $0x30] sm:$0xff]
      %v306 = vld [vmem:[%s288 + $0x38] sm:$0xff]
      %v307 = vld [vmem:[%s2] sm:$0xff]
      %v308 = vld [vmem:[%s2 + $0x8] sm:$0xff]
      %v309 = vld [vmem:[%s2 + $0x10] sm:$0xff]
      %v310 = vld [vmem:[%s2 + $0x18] sm:$0xff]
      %v311 = vld [vmem:[%s2 + $0x20] sm:$0xff]
      %v312 = vld [vmem:[%s2 + $0x28] sm:$0xff]
      %v313 = vld [vmem:[%s2 + $0x30] sm:$0xff]
      %v314 = vld [vmem:[%s2 + $0x38] sm:$0xff]
      %v315 = vld [vmem:[%s3] sm:$0xff]
      %v316 = vld [vmem:[%s3 + $0x8] sm:$0xff]
      %v317 = vld [vmem:[%s3 + $0x10] sm:$0xff]
      %v318 = vld [vmem:[%s3 + $0x18] sm:$0xff]
      %vm319 = vcmask 261120
      %v321 = vsel %vm319, %v299, 0
      %v324 = vsel %vm319, %v300, 0
      %v327 = vsel %vm319, %v301, 0
      %v330 = vsel %vm319, %v302, 0
      %v333 = vsel %vm319, %v303, 0
      %v336 = vsel %vm319, %v304, 0
      %v339 = vsel %vm319, %v305, 0
      %v342 = vsel %vm319, %v306, 0
      %344 = vmatprep.subr.mxu0 0.0
      %345 = vmatpush1.msra.mxu0 0.0
      %346 = vmatprep.subr.mxu0 0.0
      %347 = vmatpush1.msra.mxu0 0.0
      %348 = vmatprep.subr.mxu0 0.0
      %349 = vmatpush1.msra.mxu0 0.0
      %350 = vmatprep.subr.mxu0 0.0
      %351 = vmatpush1.msra.mxu0 0.0
      %352 = vmatprep.subr.mxu0 0.0
      %353 = vmatpush1.msra.mxu0 0.0
      %354 = vmatprep.subr.mxu0 0.0
      %355 = vmatpush1.msra.mxu0 0.0
      %356 = vmatprep.subr.mxu0 0.0
      %357 = vmatpush1.msra.mxu0 0.0
      %358 = vmatprep.subr.mxu0 0.0
      %359 = vmatpush1.msra.mxu0 0.0
      %360 = vmatprep.subr.mxu0 0.0
      %361 = vmatpush1.msra.mxu0 0.0
      %362 = vmatprep.subr.mxu0 0.0
      %363 = vmatpush1.msra.mxu0 0.0
      %364 = vmatprep.subr.mxu0 0.0
      %365 = vmatpush1.msra.mxu0 0.0
      %366 = vmatprep.subr.mxu0 0.0
      %367 = vmatpush1.msra.mxu0 0.0
      %368 = vmatprep.subr.mxu0 0.0
      %369 = vmatpush1.msra.mxu0 %v318
      %370 = vmatprep.subr.mxu0 0.0
      %371 = vmatpush1.msra.mxu0 %v317
      %372 = vmatprep.subr.mxu0 0.0
      %373 = vmatpush1.msra.mxu0 %v316
      %374 = vmatprep.subr.mxu0 0.0
      %375 = vmatpush1.msra.mxu0 %v315
      %376 = vmatprep.subr.mxu0 0.0
      %377 = vmatpush2.msra.mxu0 0.0
      %378 = vmatprep.subr.mxu0 0.0
      %379 = vmatpush2.msra.mxu0 0.0
      %380 = vmatprep.subr.mxu0 0.0
      %381 = vmatpush2.msra.mxu0 0.0
      %382 = vmatprep.subr.mxu0 0.0
      %383 = vmatpush2.msra.mxu0 0.0
      %384 = vmatprep.subr.mxu0 0.0
      %385 = vmatpush2.msra.mxu0 0.0
      %386 = vmatprep.subr.mxu0 0.0
      %387 = vmatpush2.msra.mxu0 0.0
      %388 = vmatprep.subr.mxu0 0.0
      %389 = vmatpush2.msra.mxu0 0.0
      %390 = vmatprep.subr.mxu0 0.0
      %391 = vmatpush2.msra.mxu0 0.0
      %392 = vmatprep.subr.mxu0 0.0
      %393 = vmatpush2.msra.mxu0 0.0
      %394 = vmatprep.subr.mxu0 0.0
      %395 = vmatpush2.msra.mxu0 0.0
      %396 = vmatprep.subr.mxu0 0.0
      %397 = vmatpush2.msra.mxu0 0.0
      %398 = vmatprep.subr.mxu0 0.0
      %399 = vmatpush2.msra.mxu0 0.0
      %400 = vmatprep.subr.mxu0 0.0
      %401 = vmatpush2.msra.mxu0 0.0
      %402 = vmatprep.subr.mxu0 0.0
      %403 = vmatpush2.msra.mxu0 0.0
      %404 = vmatprep.subr.mxu0 0.0
      %405 = vmatpush2.msra.mxu0 0.0
      %406 = vmatprep.subr.mxu0 0.0
      %407 = vmatpush2.msra.mxu0 0.0
      %408 = vmatprep.mubr.f32.mxu0 0.0
      %409 = vmatmul.mubr.f32.gmra.mxu0 %v321
      %v410 = vpop.f32.mrf.mxu0
      %v411 = vadd.f32 0.0, %v410
      %v412 = vpop.f32.mrf.mxu0
      %413 = vmatprep.mubr.f32.mxu0 0.0
      %414 = vmatmul.mubr.f32.gmra.mxu0 %v324
      %v415 = vpop.f32.mrf.mxu0
      %v416 = vadd.f32 0.0, %v415
      %v417 = vpop.f32.mrf.mxu0
      %418 = vmatprep.mubr.f32.mxu0 0.0
      %419 = vmatmul.mubr.f32.gmra.mxu0 %v327
      %v420 = vpop.f32.mrf.mxu0
      %v421 = vadd.f32 0.0, %v420
      %v422 = vpop.f32.mrf.mxu0
      %423 = vmatprep.mubr.f32.mxu0 0.0
      %424 = vmatmul.mubr.f32.gmra.mxu0 %v330
      %v425 = vpop.f32.mrf.mxu0
      %v426 = vadd.f32 0.0, %v425
      %v427 = vpop.f32.mrf.mxu0
      %428 = vmatprep.mubr.f32.mxu0 0.0
      %429 = vmatmul.mubr.f32.gmra.mxu0 %v333
      %v430 = vpop.f32.mrf.mxu0
      %v431 = vadd.f32 0.0, %v430
      %v432 = vpop.f32.mrf.mxu0
      %433 = vmatprep.mubr.f32.mxu0 0.0
      %434 = vmatmul.mubr.f32.gmra.mxu0 %v336
      %v435 = vpop.f32.mrf.mxu0
      %v436 = vadd.f32 0.0, %v435
      %v437 = vpop.f32.mrf.mxu0
      %438 = vmatprep.mubr.f32.mxu0 0.0
      %439 = vmatmul.mubr.f32.gmra.mxu0 %v339
      %v440 = vpop.f32.mrf.mxu0
      %v441 = vadd.f32 0.0, %v440
      %v442 = vpop.f32.mrf.mxu0
      %443 = vmatprep.mubr.f32.mxu0 0.0
      %444 = vmatmul.mubr.f32.gmra.mxu0 %v342
      %v445 = vpop.f32.mrf.mxu0
      %v446 = vadd.f32 0.0, %v445
      %v447 = vpop.f32.mrf.mxu0
      %448 = vdwg.mxu0
      %v449 = vld [vmem:[%s4] sm:$0x1]
      %v451 = vlaneseq
      %v452 = vshrl.u32 %v451, 7
      %v453 = vsub.s32 0, %v452
      %v454 = vrot.slane %v449, %v453
      %vm456 = vcmask 523264
      %v458 = vsel %vm456, %v307, 0
      %v461 = vsel %vm456, %v308, 0
      %v464 = vsel %vm456, %v309, 0
      %v467 = vsel %vm456, %v310, 0
      %v470 = vsel %vm456, %v311, 0
      %v473 = vsel %vm456, %v312, 0
      %v476 = vsel %vm456, %v313, 0
      %v479 = vsel %vm456, %v314, 0
      %481 = vmatprep.subr.mxu0 0.0
      %482 = vmatpush1.msra.mxu0 0.0
      %483 = vmatprep.subr.mxu0 0.0
      %484 = vmatpush1.msra.mxu0 0.0
      %485 = vmatprep.subr.mxu0 0.0
      %486 = vmatpush1.msra.mxu0 0.0
      %487 = vmatprep.subr.mxu0 0.0
      %488 = vmatpush1.msra.mxu0 0.0
      %489 = vmatprep.subr.mxu0 0.0
      %490 = vmatpush1.msra.mxu0 0.0
      %491 = vmatprep.subr.mxu0 0.0
      %492 = vmatpush1.msra.mxu0 0.0
      %493 = vmatprep.subr.mxu0 0.0
      %494 = vmatpush1.msra.mxu0 0.0
      %495 = vmatprep.subr.mxu0 0.0
      %496 = vmatpush1.msra.mxu0 0.0
      %497 = vmatprep.subr.mxu0 0.0
      %498 = vmatpush1.msra.mxu0 %v446
      %499 = vmatprep.subr.mxu0 0.0
      %500 = vmatpush1.msra.mxu0 %v441
      %501 = vmatprep.subr.mxu0 0.0
      %502 = vmatpush1.msra.mxu0 %v436
      %503 = vmatprep.subr.mxu0 0.0
      %504 = vmatpush1.msra.mxu0 %v431
      %505 = vmatprep.subr.mxu0 0.0
      %506 = vmatpush1.msra.mxu0 %v426
      %507 = vmatprep.subr.mxu0 0.0
      %508 = vmatpush1.msra.mxu0 %v421
      %509 = vmatprep.subr.mxu0 0.0
      %510 = vmatpush1.msra.mxu0 %v416
      %511 = vmatprep.subr.mxu0 0.0
      %512 = vmatpush1.msra.mxu0 %v411
      %513 = vmatprep.subr.mxu0 0.0
      %514 = vmatpush2.msra.mxu0 0.0
      %515 = vmatprep.subr.mxu0 0.0
      %516 = vmatpush2.msra.mxu0 0.0
      %517 = vmatprep.subr.mxu0 0.0
      %518 = vmatpush2.msra.mxu0 0.0
      %519 = vmatprep.subr.mxu0 0.0
      %520 = vmatpush2.msra.mxu0 0.0
      %521 = vmatprep.subr.mxu0 0.0
      %522 = vmatpush2.msra.mxu0 0.0
      %523 = vmatprep.subr.mxu0 0.0
      %524 = vmatpush2.msra.mxu0 0.0
      %525 = vmatprep.subr.mxu0 0.0
      %526 = vmatpush2.msra.mxu0 0.0
      %527 = vmatprep.subr.mxu0 0.0
      %528 = vmatpush2.msra.mxu0 0.0
      %529 = vmatprep.subr.mxu0 0.0
      %530 = vmatpush2.msra.mxu0 0.0
      %531 = vmatprep.subr.mxu0 0.0
      %532 = vmatpush2.msra.mxu0 0.0
      %533 = vmatprep.subr.mxu0 0.0
      %534 = vmatpush2.msra.mxu0 0.0
      %535 = vmatprep.subr.mxu0 0.0
      %536 = vmatpush2.msra.mxu0 0.0
      %537 = vmatprep.subr.mxu0 0.0
      %538 = vmatpush2.msra.mxu0 0.0
      %539 = vmatprep.subr.mxu0 0.0
      %540 = vmatpush2.msra.mxu0 0.0
      %541 = vmatprep.subr.mxu0 0.0
      %542 = vmatpush2.msra.mxu0 0.0
      %543 = vmatprep.subr.mxu0 0.0
      %544 = vmatpush2.msra.mxu0 0.0
      %545 = vmatprep.mubr.f32.mxu0 0.0
      %546 = vmatmul.mubr.f32.gmra.mxu0 %v458
      %v547 = vpop.f32.mrf.mxu0
      %v548 = vadd.f32 %v454, %v547
      %v549 = vpop.f32.mrf.mxu0
      %550 = vmatprep.mubr.f32.mxu0 0.0
      %551 = vmatmul.mubr.f32.gmra.mxu0 %v461
      %v552 = vpop.f32.mrf.mxu0
      %v553 = vadd.f32 %v454, %v552
      %v554 = vpop.f32.mrf.mxu0
      %555 = vmatprep.mubr.f32.mxu0 0.0
      %556 = vmatmul.mubr.f32.gmra.mxu0 %v464
      %v557 = vpop.f32.mrf.mxu0
      %v558 = vadd.f32 %v454, %v557
      %v559 = vpop.f32.mrf.mxu0
      %560 = vmatprep.mubr.f32.mxu0 0.0
      %561 = vmatmul.mubr.f32.gmra.mxu0 %v467
      %v562 = vpop.f32.mrf.mxu0
      %v563 = vadd.f32 %v454, %v562
      %v564 = vpop.f32.mrf.mxu0
      %565 = vmatprep.mubr.f32.mxu0 0.0
      %566 = vmatmul.mubr.f32.gmra.mxu0 %v470
      %v567 = vpop.f32.mrf.mxu0
      %v568 = vadd.f32 %v454, %v567
      %v569 = vpop.f32.mrf.mxu0
      %570 = vmatprep.mubr.f32.mxu0 0.0
      %571 = vmatmul.mubr.f32.gmra.mxu0 %v473
      %v572 = vpop.f32.mrf.mxu0
      %v573 = vadd.f32 %v454, %v572
      %v574 = vpop.f32.mrf.mxu0
      %575 = vmatprep.mubr.f32.mxu0 0.0
      %576 = vmatmul.mubr.f32.gmra.mxu0 %v476
      %v577 = vpop.f32.mrf.mxu0
      %v578 = vadd.f32 %v454, %v577
      %v579 = vpop.f32.mrf.mxu0
      %580 = vmatprep.mubr.f32.mxu0 0.0
      %581 = vmatmul.mubr.f32.gmra.mxu0 %v479
      %v582 = vpop.f32.mrf.mxu0
      %v583 = vadd.f32 %v454, %v582
      %v584 = vpop.f32.mrf.mxu0
      %585 = vdwg.mxu0
      %vm586 = vcmp.gt.f32.partialorder %v548, 0.0
      %vm587 = vcmp.gt.f32.partialorder %v553, 0.0
      %vm588 = vcmp.gt.f32.partialorder %v558, 0.0
      %vm589 = vcmp.gt.f32.partialorder %v563, 0.0
      %vm590 = vcmp.gt.f32.partialorder %v568, 0.0
      %vm591 = vcmp.gt.f32.partialorder %v573, 0.0
      %vm592 = vcmp.gt.f32.partialorder %v578, 0.0
      %vm593 = vcmp.gt.f32.partialorder %v583, 0.0
      %v594 = vmul.f32 %v548, 0.01
      %v595 = vmul.f32 %v553, 0.01
      %v596 = vmul.f32 %v558, 0.01
      %v597 = vmul.f32 %v563, 0.01
      %v598 = vmul.f32 %v568, 0.01
      %v599 = vmul.f32 %v573, 0.01
      %v600 = vmul.f32 %v578, 0.01
      %v601 = vmul.f32 %v583, 0.01
      %v602 = vsel %vm586, %v548, %v594
      %v603 = vsel %vm587, %v553, %v595
      %v604 = vsel %vm588, %v558, %v596
      %v605 = vsel %vm589, %v563, %v597
      %v606 = vsel %vm590, %v568, %v598
      %v607 = vsel %vm591, %v573, %v599
      %v608 = vsel %vm592, %v578, %v600
      %v609 = vsel %vm593, %v583, %v601
      %v610 = vld [vmem:[%s5] sm:$0xff]
      %v611 = vld [vmem:[%s5 + $0x8] sm:$0xff]
      %vm612 = vcmask 130048
      %v614 = vsel %vm612, %v602, 0
      %v617 = vsel %vm612, %v603, 0
      %v620 = vsel %vm612, %v604, 0
      %v623 = vsel %vm612, %v605, 0
      %v626 = vsel %vm612, %v606, 0
      %v629 = vsel %vm612, %v607, 0
      %v632 = vsel %vm612, %v608, 0
      %v635 = vsel %vm612, %v609, 0
      %637 = vmatprep.subr.mxu0 0.0
      %638 = vmatpush1.msra.mxu0 0.0
      %639 = vmatprep.subr.mxu0 0.0
      %640 = vmatpush1.msra.mxu0 0.0
      %641 = vmatprep.subr.mxu0 0.0
      %642 = vmatpush1.msra.mxu0 0.0
      %643 = vmatprep.subr.mxu0 0.0
      %644 = vmatpush1.msra.mxu0 0.0
      %645 = vmatprep.subr.mxu0 0.0
      %646 = vmatpush1.msra.mxu0 0.0
      %647 = vmatprep.subr.mxu0 0.0
      %648 = vmatpush1.msra.mxu0 0.0
      %649 = vmatprep.subr.mxu0 0.0
      %650 = vmatpush1.msra.mxu0 0.0
      %651 = vmatprep.subr.mxu0 0.0
      %652 = vmatpush1.msra.mxu0 0.0
      %653 = vmatprep.subr.mxu0 0.0
      %654 = vmatpush1.msra.mxu0 0.0
      %655 = vmatprep.subr.mxu0 0.0
      %656 = vmatpush1.msra.mxu0 0.0
      %657 = vmatprep.subr.mxu0 0.0
      %658 = vmatpush1.msra.mxu0 0.0
      %659 = vmatprep.subr.mxu0 0.0
      %660 = vmatpush1.msra.mxu0 0.0
      %661 = vmatprep.subr.mxu0 0.0
      %662 = vmatpush1.msra.mxu0 0.0
      %663 = vmatprep.subr.mxu0 0.0
      %664 = vmatpush1.msra.mxu0 0.0
      %665 = vmatprep.subr.mxu0 0.0
      %666 = vmatpush1.msra.mxu0 %v611
      %667 = vmatprep.subr.mxu0 0.0
      %668 = vmatpush1.msra.mxu0 %v610
      %669 = vmatprep.subr.mxu0 0.0
      %670 = vmatpush2.msra.mxu0 0.0
      %671 = vmatprep.subr.mxu0 0.0
      %672 = vmatpush2.msra.mxu0 0.0
      %673 = vmatprep.subr.mxu0 0.0
      %674 = vmatpush2.msra.mxu0 0.0
      %675 = vmatprep.subr.mxu0 0.0
      %676 = vmatpush2.msra.mxu0 0.0
      %677 = vmatprep.subr.mxu0 0.0
      %678 = vmatpush2.msra.mxu0 0.0
      %679 = vmatprep.subr.mxu0 0.0
      %680 = vmatpush2.msra.mxu0 0.0
      %681 = vmatprep.subr.mxu0 0.0
      %682 = vmatpush2.msra.mxu0 0.0
      %683 = vmatprep.subr.mxu0 0.0
      %684 = vmatpush2.msra.mxu0 0.0
      %685 = vmatprep.subr.mxu0 0.0
      %686 = vmatpush2.msra.mxu0 0.0
      %687 = vmatprep.subr.mxu0 0.0
      %688 = vmatpush2.msra.mxu0 0.0
      %689 = vmatprep.subr.mxu0 0.0
      %690 = vmatpush2.msra.mxu0 0.0
      %691 = vmatprep.subr.mxu0 0.0
      %692 = vmatpush2.msra.mxu0 0.0
      %693 = vmatprep.subr.mxu0 0.0
      %694 = vmatpush2.msra.mxu0 0.0
      %695 = vmatprep.subr.mxu0 0.0
      %696 = vmatpush2.msra.mxu0 0.0
      %697 = vmatprep.subr.mxu0 0.0
      %698 = vmatpush2.msra.mxu0 0.0
      %699 = vmatprep.subr.mxu0 0.0
      %700 = vmatpush2.msra.mxu0 0.0
      %701 = vmatprep.mubr.f32.mxu0 0.0
      %702 = vmatmul.mubr.f32.gmra.mxu0 %v614
      %v703 = vpop.f32.mrf.mxu0
      %v704 = vadd.f32 0.0, %v703
      %v705 = vpop.f32.mrf.mxu0
      %706 = vmatprep.mubr.f32.mxu0 0.0
      %707 = vmatmul.mubr.f32.gmra.mxu0 %v617
      %v708 = vpop.f32.mrf.mxu0
      %v709 = vadd.f32 0.0, %v708
      %v710 = vpop.f32.mrf.mxu0
      %711 = vmatprep.mubr.f32.mxu0 0.0
      %712 = vmatmul.mubr.f32.gmra.mxu0 %v620
      %v713 = vpop.f32.mrf.mxu0
      %v714 = vadd.f32 0.0, %v713
      %v715 = vpop.f32.mrf.mxu0
      %716 = vmatprep.mubr.f32.mxu0 0.0
      %717 = vmatmul.mubr.f32.gmra.mxu0 %v623
      %v718 = vpop.f32.mrf.mxu0
      %v719 = vadd.f32 0.0, %v718
      %v720 = vpop.f32.mrf.mxu0
      %721 = vmatprep.mubr.f32.mxu0 0.0
      %722 = vmatmul.mubr.f32.gmra.mxu0 %v626
      %v723 = vpop.f32.mrf.mxu0
      %v724 = vadd.f32 0.0, %v723
      %v725 = vpop.f32.mrf.mxu0
      %726 = vmatprep.mubr.f32.mxu0 0.0
      %727 = vmatmul.mubr.f32.gmra.mxu0 %v629
      %v728 = vpop.f32.mrf.mxu0
      %v729 = vadd.f32 0.0, %v728
      %v730 = vpop.f32.mrf.mxu0
      %731 = vmatprep.mubr.f32.mxu0 0.0
      %732 = vmatmul.mubr.f32.gmra.mxu0 %v632
      %v733 = vpop.f32.mrf.mxu0
      %v734 = vadd.f32 0.0, %v733
      %v735 = vpop.f32.mrf.mxu0
      %736 = vmatprep.mubr.f32.mxu0 0.0
      %737 = vmatmul.mubr.f32.gmra.mxu0 %v635
      %v738 = vpop.f32.mrf.mxu0
      %v739 = vadd.f32 0.0, %v738
      %v740 = vpop.f32.mrf.mxu0
      %741 = vdwg.mxu0
      %v742 = vld [vmem:[%s6] sm:$0x1]
      %v744 = vlaneseq
      %v745 = vshrl.u32 %v744, 7
      %v746 = vsub.s32 0, %v745
      %v747 = vrot.slane %v742, %v746
      %749 = vmatprep.subr.mxu0 0.0
      %750 = vmatpush1.msra.mxu0 0.0
      %751 = vmatprep.subr.mxu0 0.0
      %752 = vmatpush1.msra.mxu0 0.0
      %753 = vmatprep.subr.mxu0 0.0
      %754 = vmatpush1.msra.mxu0 0.0
      %755 = vmatprep.subr.mxu0 0.0
      %756 = vmatpush1.msra.mxu0 0.0
      %757 = vmatprep.subr.mxu0 0.0
      %758 = vmatpush1.msra.mxu0 0.0
      %759 = vmatprep.subr.mxu0 0.0
      %760 = vmatpush1.msra.mxu0 0.0
      %761 = vmatprep.subr.mxu0 0.0
      %762 = vmatpush1.msra.mxu0 0.0
      %763 = vmatprep.subr.mxu0 0.0
      %764 = vmatpush1.msra.mxu0 0.0
      %765 = vmatprep.subr.mxu0 0.0
      %766 = vmatpush1.msra.mxu0 %v739
      %767 = vmatprep.subr.mxu0 0.0
      %768 = vmatpush1.msra.mxu0 %v734
      %769 = vmatprep.subr.mxu0 0.0
      %770 = vmatpush1.msra.mxu0 %v729
      %771 = vmatprep.subr.mxu0 0.0
      %772 = vmatpush1.msra.mxu0 %v724
      %773 = vmatprep.subr.mxu0 0.0
      %774 = vmatpush1.msra.mxu0 %v719
      %775 = vmatprep.subr.mxu0 0.0
      %776 = vmatpush1.msra.mxu0 %v714
      %777 = vmatprep.subr.mxu0 0.0
      %778 = vmatpush1.msra.mxu0 %v709
      %779 = vmatprep.subr.mxu0 0.0
      %780 = vmatpush1.msra.mxu0 %v704
      %781 = vmatprep.subr.mxu0 0.0
      %782 = vmatpush2.msra.mxu0 0.0
      %783 = vmatprep.subr.mxu0 0.0
      %784 = vmatpush2.msra.mxu0 0.0
      %785 = vmatprep.subr.mxu0 0.0
      %786 = vmatpush2.msra.mxu0 0.0
      %787 = vmatprep.subr.mxu0 0.0
      %788 = vmatpush2.msra.mxu0 0.0
      %789 = vmatprep.subr.mxu0 0.0
      %790 = vmatpush2.msra.mxu0 0.0
      %791 = vmatprep.subr.mxu0 0.0
      %792 = vmatpush2.msra.mxu0 0.0
      %793 = vmatprep.subr.mxu0 0.0
      %794 = vmatpush2.msra.mxu0 0.0
      %795 = vmatprep.subr.mxu0 0.0
      %796 = vmatpush2.msra.mxu0 0.0
      %797 = vmatprep.subr.mxu0 0.0
      %798 = vmatpush2.msra.mxu0 0.0
      %799 = vmatprep.subr.mxu0 0.0
      %800 = vmatpush2.msra.mxu0 0.0
      %801 = vmatprep.subr.mxu0 0.0
      %802 = vmatpush2.msra.mxu0 0.0
      %803 = vmatprep.subr.mxu0 0.0
      %804 = vmatpush2.msra.mxu0 0.0
      %805 = vmatprep.subr.mxu0 0.0
      %806 = vmatpush2.msra.mxu0 0.0
      %807 = vmatprep.subr.mxu0 0.0
      %808 = vmatpush2.msra.mxu0 0.0
      %809 = vmatprep.subr.mxu0 0.0
      %810 = vmatpush2.msra.mxu0 0.0
      %811 = vmatprep.subr.mxu0 0.0
      %812 = vmatpush2.msra.mxu0 0.0
      %813 = vmatprep.mubr.f32.mxu0 0.0
      %814 = vmatmul.mubr.f32.gmra.mxu0 %v458
      %v815 = vpop.f32.mrf.mxu0
      %v816 = vadd.f32 %v747, %v815
      %v817 = vpop.f32.mrf.mxu0
      %818 = vmatprep.mubr.f32.mxu0 0.0
      %819 = vmatmul.mubr.f32.gmra.mxu0 %v461
      %v820 = vpop.f32.mrf.mxu0
      %v821 = vadd.f32 %v747, %v820
      %v822 = vpop.f32.mrf.mxu0
      %823 = vmatprep.mubr.f32.mxu0 0.0
      %824 = vmatmul.mubr.f32.gmra.mxu0 %v464
      %v825 = vpop.f32.mrf.mxu0
      %v826 = vadd.f32 %v747, %v825
      %v827 = vpop.f32.mrf.mxu0
      %828 = vmatprep.mubr.f32.mxu0 0.0
      %829 = vmatmul.mubr.f32.gmra.mxu0 %v467
      %v830 = vpop.f32.mrf.mxu0
      %v831 = vadd.f32 %v747, %v830
      %v832 = vpop.f32.mrf.mxu0
      %833 = vmatprep.mubr.f32.mxu0 0.0
      %834 = vmatmul.mubr.f32.gmra.mxu0 %v470
      %v835 = vpop.f32.mrf.mxu0
      %v836 = vadd.f32 %v747, %v835
      %v837 = vpop.f32.mrf.mxu0
      %838 = vmatprep.mubr.f32.mxu0 0.0
      %839 = vmatmul.mubr.f32.gmra.mxu0 %v473
      %v840 = vpop.f32.mrf.mxu0
      %v841 = vadd.f32 %v747, %v840
      %v842 = vpop.f32.mrf.mxu0
      %843 = vmatprep.mubr.f32.mxu0 0.0
      %844 = vmatmul.mubr.f32.gmra.mxu0 %v476
      %v845 = vpop.f32.mrf.mxu0
      %v846 = vadd.f32 %v747, %v845
      %v847 = vpop.f32.mrf.mxu0
      %848 = vmatprep.mubr.f32.mxu0 0.0
      %849 = vmatmul.mubr.f32.gmra.mxu0 %v479
      %v850 = vpop.f32.mrf.mxu0
      %v851 = vadd.f32 %v747, %v850
      %v852 = vpop.f32.mrf.mxu0
      %853 = vdwg.mxu0
      %v854 = vld [vmem:[%s293] sm:$0xff]
      %v855 = vld [vmem:[%s293 + $0x8] sm:$0xff]
      %v856 = vld [vmem:[%s293 + $0x10] sm:$0xff]
      %v857 = vld [vmem:[%s293 + $0x18] sm:$0xff]
      %v858 = vld [vmem:[%s293 + $0x20] sm:$0xff]
      %v859 = vld [vmem:[%s293 + $0x28] sm:$0xff]
      %v860 = vld [vmem:[%s293 + $0x30] sm:$0xff]
      %v861 = vld [vmem:[%s293 + $0x38] sm:$0xff]
      %v862 = vmul.f32 %v854, 0.01
      %v863 = vmul.f32 %v855, 0.01
      %v864 = vmul.f32 %v856, 0.01
      %v865 = vmul.f32 %v857, 0.01
      %v866 = vmul.f32 %v858, 0.01
      %v867 = vmul.f32 %v859, 0.01
      %v868 = vmul.f32 %v860, 0.01
      %v869 = vmul.f32 %v861, 0.01
      %v870 = vmul.f32 %v816, 0.99
      %v871 = vmul.f32 %v821, 0.99
      %v872 = vmul.f32 %v826, 0.99
      %v873 = vmul.f32 %v831, 0.99
      %v874 = vmul.f32 %v836, 0.99
      %v875 = vmul.f32 %v841, 0.99
      %v876 = vmul.f32 %v846, 0.99
      %v877 = vmul.f32 %v851, 0.99
      %v878 = vadd.f32 %v862, %v870
      %v879 = vadd.f32 %v863, %v871
      %v880 = vadd.f32 %v864, %v872
      %v881 = vadd.f32 %v865, %v873
      %v882 = vadd.f32 %v866, %v874
      %v883 = vadd.f32 %v867, %v875
      %v884 = vadd.f32 %v868, %v876
      %v885 = vadd.f32 %v869, %v877
      %vm886 = vcmask 64512
      %887 = vst.msk [vmem:[%s298] sm:$0xff] %vm886, %v878
      %888 = vst.msk [vmem:[%s298 + $0x8] sm:$0xff] %vm886, %v879
      %889 = vst.msk [vmem:[%s298 + $0x10] sm:$0xff] %vm886, %v880
      %890 = vst.msk [vmem:[%s298 + $0x18] sm:$0xff] %vm886, %v881
      %891 = vst.msk [vmem:[%s298 + $0x20] sm:$0xff] %vm886, %v882
      %892 = vst.msk [vmem:[%s298 + $0x28] sm:$0xff] %vm886, %v883
      %893 = vst.msk [vmem:[%s298 + $0x30] sm:$0xff] %vm886, %v884
      %894 = vst.msk [vmem:[%s298 + $0x38] sm:$0xff] %vm886, %v885
      %p895 = scmp.lt.s32.totalorder %s18, 1
      %s896 = scalar_select %p895, %s18, 1
      %s897 = smul.addr %s896, 8
      %s898 = smul.addr %s897, 8
      %s899 = scalar_lea.vmem %s7, %s898
      // Predicated region
      $region49: #{fmgen_forward.5} parent=47 // pred_check
        %p900 = pneg %p193
      $region50: #{fmgen_forward.5} parent=47 // pred_check_branch
        %902 = sbr.rel (%p900) target = $region52
      $region51: #{fmgen_forward.5} parent=47 // pred_region
        _
      $region52: #{fmgen_forward.5} parent=47 // pred_fallthru
        _
    $region48: #{fmgen_forward.5} parent=5 // pred_fallthru
      _
    %p903 = scmp.le.s32.totalorder 2, %s13
    // Predicated region
    $region53: #{fmgen_forward.5} parent=5 // pred_check
      %p904 = pneg %p903
    $region54: #{fmgen_forward.5} parent=5 // pred_check_branch
      %906 = sbr.rel (%p904) target = $region56
    $region55: #{fmgen_forward.5} parent=5 // pred_region
      %s907 = ssub.s32 %s13, 2
      // Predicated region
      $region57: #{fmgen_forward.5} parent=55 // pred_check
        %p908 = pneg %p199
      $region58: #{fmgen_forward.5} parent=55 // pred_check_branch
        %910 = sbr.rel (%p908) target = $region60
      $region59: #{fmgen_forward.5} parent=55 // pred_region
        %p911 = scmp.lt.s32.totalorder %s19, 1
        %s912 = scalar_select %p911, %s19, 1
        %s913 = smul.addr %s912, 8
        %s914 = smul.addr %s913, 8
        %s915 = scalar_lea.vmem %s7, %s914
      $region60: #{fmgen_forward.5} parent=55 // pred_fallthru
        _
    $region56: #{fmgen_forward.5} parent=5 // pred_fallthru
      _
  $region6: #{fmgen_forward.5} parent=0 // loop_footer
    %s17 = sadd.s32 1, %s13
  $region7: #{fmgen_forward.5} parent=0 // loop_footer_branch
    %12 = sbr.rel target = $region3
  $region8: #{fmgen_forward.5} parent=0 // loop_exit
    _

// kernel: fmgen_forward.4
$region0: #{fmgen_forward.4}
  #allocation0 [shape = 'u32[]', space=smem, size = 0x4, offset = 0x4, fixed_abs, tag = 'smem constant byte address 0x4 - core index']
  #allocation1 [shape = 'u32[144,128]{1,0:T(1,128)}', space=vmem, size = 0x12000, scoped, tag = 'internal scratch']
  %s0 = inlined_call_operand.vmem [shape: f32[2,1,32], index: 0, kind: input, shape index: {}]
  %s1 = inlined_call_operand.vmem [shape: f32[2,1,2048], index: 1, kind: input, shape index: {}]
  %s2 = inlined_call_operand.vmem [shape: f32[64,64], index: 2, kind: input, shape index: {}]
  %s3 = inlined_call_operand.vmem [shape: f32[32,32], index: 3, kind: input, shape index: {}]
  %s4 = inlined_call_operand.vmem [shape: f32[64,32], index: 4, kind: input, shape index: {}]
  %s5 = inlined_call_operand.vmem [shape: f32[32,1], index: 5, kind: input, shape index: {}]
  %s6 = inlined_call_operand.vmem [shape: f32[32,16], index: 6, kind: input, shape index: {}]
  %s7 = inlined_call_operand.vmem [shape: f32[1,16], index: 7, kind: input, shape index: {}]
  %s8 = inlined_call_operand.vmem [shape: f32[16,8], index: 8, kind: input, shape index: {}]
  %s9 = inlined_call_operand.vmem [shape: f32[1,8], index: 9, kind: input, shape index: {}]
  %s10 = inlined_call_operand.vmem [shape: f32[16,32], index: 10, kind: input, shape index: {}]
  %s11 = inlined_call_operand.vmem [shape: f32[16,16], index: 11, kind: input, shape index: {}]
  %s12 = inlined_call_operand.vmem [shape: f32[1,32], index: 12, kind: input, shape index: {}]
  %s13 = inlined_call_operand.vmem [shape: f32[1,16], index: 13, kind: input, shape index: {}]
  %s14 = inlined_call_operand.vmem [shape: f32[16,2048], index: 14, kind: input, shape index: {}]
  %s15 = inlined_call_operand.vmem [shape: f32[1,2048], index: 15, kind: input, shape index: {}]
  %s16 = inlined_call_operand.vmem [shape: f32[32,16], index: 16, kind: input, shape index: {}]
  %s17 = inlined_call_operand.vmem [shape: f32[16,16], index: 17, kind: input, shape index: {}]
  %s18 = inlined_call_operand.vmem [shape: f32[1,16], index: 18, kind: input, shape index: {}]
  %s19 = inlined_call_operand.vmem [shape: f32[2048,16], index: 19, kind: input, shape index: {}]
  %s20 = inlined_call_operand.vmem [shape: f32[1,16], index: 20, kind: input, shape index: {}]
  %s21 = inlined_call_operand.hbm [shape: f32[2,1,16], index: 21, kind: output, shape index: {0}]
  %s22 = inlined_call_operand.vmem [shape: f32[2,64,8], index: 22, kind: output, shape index: {1}]
  %s23 = inlined_call_operand.vmem [shape: f32[2,1,2048], index: 23, kind: output, shape index: {2}]
  %24 = xla_tuple %s21, %s22, %s23
  %s25 = sld [smem:[#allocation0]]
  $region133: #{fmgen_forward.4} parent=0
    _
  %s27 = ssub.s32 1, %s25
  %s28 = scalar_select 0, %s27, %s25
  $region1: #{fmgen_forward.4} parent=0
    #allocation2 [shape = 'u8[1024]{0}', space=vmem, size = 0x400, scoped, tag = 'output window, operand 0']
    #allocation3 [shape = 's32[2]{0}', space=sflag, size = 0x8, scoped, tag = 'scoped memory for fmgen_forward.4']
    %29 = vsyncpa [#allocation3], 0
    %s30 = scalar_lea.sflag [#allocation3], 1
    %31 = vsyncpa %s30, 0
    loop: start=0, step=1, limit=4
    $region2: #{fmgen_forward.4} parent=1 // loop_pre_header
      _
    $region3: #{fmgen_forward.4} parent=1 // loop_header
      %s33 = sphi 0, %s37
      %p34 = scmp.ge.s32.totalorder %s33, 4
      %s43 = sphi 0, %s45
      %s46 = sphi 0, %s43
      %s47 = sphi 0, %s46
      %s63 = sphi 0, %s47
      %s69 = sphi 0, %s71
      %s72 = sphi 0, %s69
      %s73 = sphi 0, %s72
      %s89 = sphi 0, %s73
      %s93 = sphi 0, %s93
      %s95 = sphi 0, %s93
      %s96 = sphi 0, %s95
      %s110 = sphi 0, %s96
      %s114 = sphi 0, %s114
      %s116 = sphi 0, %s114
      %s117 = sphi 0, %s116
      %s131 = sphi 0, %s117
      %s135 = sphi 0, %s135
      %s137 = sphi 0, %s135
      %s138 = sphi 0, %s137
      %s152 = sphi 0, %s138
      %s156 = sphi 0, %s156
      %s158 = sphi 0, %s156
      %s159 = sphi 0, %s158
      %s173 = sphi 0, %s159
      %s177 = sphi 0, %s177
      %s179 = sphi 0, %s177
      %s180 = sphi 0, %s179
      %s194 = sphi 0, %s180
      %s198 = sphi 0, %s198
      %s200 = sphi 0, %s198
      %s201 = sphi 0, %s200
      %s215 = sphi 0, %s201
      %s219 = sphi 0, %s219
      %s221 = sphi 0, %s219
      %s222 = sphi 0, %s221
      %s236 = sphi 0, %s222
      %s240 = sphi 0, %s240
      %s242 = sphi 0, %s240
      %s243 = sphi 0, %s242
      %s257 = sphi 0, %s243
      %s261 = sphi 0, %s261
      %s263 = sphi 0, %s261
      %s264 = sphi 0, %s263
      %s278 = sphi 0, %s264
      %s282 = sphi 0, %s282
      %s284 = sphi 0, %s282
      %s285 = sphi 0, %s284
      %s299 = sphi 0, %s285
      %s303 = sphi 0, %s303
      %s305 = sphi 0, %s303
      %s306 = sphi 0, %s305
      %s320 = sphi 0, %s306
      %s324 = sphi 0, %s324
      %s326 = sphi 0, %s324
      %s327 = sphi 0, %s326
      %s341 = sphi 0, %s327
      %s345 = sphi 0, %s345
      %s347 = sphi 0, %s345
      %s348 = sphi 0, %s347
      %s362 = sphi 0, %s348
      %s366 = sphi 0, %s366
      %s368 = sphi 0, %s366
      %s369 = sphi 0, %s368
      %s383 = sphi 0, %s369
      %s387 = sphi 0, %s387
      %s389 = sphi 0, %s387
      %s390 = sphi 0, %s389
      %s404 = sphi 0, %s390
      %s408 = sphi 0, %s408
      %s410 = sphi 0, %s408
      %s411 = sphi 0, %s410
      %s425 = sphi 0, %s411
      %s429 = sphi 0, %s429
      %s431 = sphi 0, %s429
      %s432 = sphi 0, %s431
      %s446 = sphi 0, %s432
      %s450 = sphi 0, %s450
      %s452 = sphi 0, %s450
      %s453 = sphi 0, %s452
      %s467 = sphi 0, %s453
      %s471 = sphi 0, %s471
      %s473 = sphi 0, %s471
      %s474 = sphi 0, %s473
      %s488 = sphi 0, %s474
      %s494 = sphi 0, %s496
      %s497 = sphi 0, %s494
      %s498 = sphi 0, %s497
      %s514 = sphi 0, %s498
      %s520 = sphi 0, %s522
      %s523 = sphi 0, %s520
      %s524 = sphi 0, %s523
      %s540 = sphi 0, %s524
      %s546 = sphi 0, %s548
      %s549 = sphi 0, %s546
      %s550 = sphi 0, %s549
      %s566 = sphi 0, %s550
    $region4: #{fmgen_forward.4} parent=1 // loop_header_branch
      %36 = sbr.rel (%p34) target = $region8
    $region5: #{fmgen_forward.4} parent=1 // loop_body
      %s38 = ssub.s32 %s33, 1
      %s39 = ssub.s32 %s33, 2
      %s40 = sadd.s32 %s33, 1
      %s41 = ssub.s32 %s33, %s40
      %p42 = scmp.eq.s32.totalorder %s41, 0
      %s44 = sadd.s32 %s43, 1
      %s45 = scalar_select %p42, %s43, %s44
      %p48 = pneg %p42
      %p49 = scmp.eq.s32.totalorder %s33, 1
      %p50 = por %p48, %p49
      %p51 = scmp.ne.s32.totalorder %s43, %s46
      %p52 = scmp.eq.s32.totalorder %s33, 0
      %p53 = por %p51, %p52
      %p54 = scmp.ne.s32.totalorder %s43, %s46
      %p55 = scmp.eq.s32.totalorder %s38, 1
      %p56 = por %p54, %p55
      %p57 = scmp.ne.s32.totalorder %s46, %s47
      %p58 = scmp.eq.s32.totalorder %s38, 0
      %p59 = por %p57, %p58
      %p60 = scmp.ne.s32.totalorder %s46, %s47
      %p61 = scmp.eq.s32.totalorder %s39, 1
      %p62 = por %p60, %p61
      %p64 = scmp.ne.s32.totalorder %s47, %s63
      %p65 = scmp.eq.s32.totalorder %s39, 0
      %p66 = por %p64, %p65
      %s67 = ssub.s32 %s33, %s40
      %p68 = scmp.eq.s32.totalorder %s67, 0
      %s70 = sadd.s32 %s69, 1
      %s71 = scalar_select %p68, %s69, %s70
      %p74 = pneg %p68
      %p75 = scmp.eq.s32.totalorder %s33, 1
      %p76 = por %p74, %p75
      %p77 = scmp.ne.s32.totalorder %s69, %s72
      %p78 = scmp.eq.s32.totalorder %s33, 0
      %p79 = por %p77, %p78
      %p80 = scmp.ne.s32.totalorder %s69, %s72
      %p81 = scmp.eq.s32.totalorder %s38, 1
      %p82 = por %p80, %p81
      %p83 = scmp.ne.s32.totalorder %s72, %s73
      %p84 = scmp.eq.s32.totalorder %s38, 0
      %p85 = por %p83, %p84
      %p86 = scmp.ne.s32.totalorder %s72, %s73
      %p87 = scmp.eq.s32.totalorder %s39, 1
      %p88 = por %p86, %p87
      %p90 = scmp.ne.s32.totalorder %s73, %s89
      %p91 = scmp.eq.s32.totalorder %s39, 0
      %p92 = por %p90, %p91
      %s94 = sadd.s32 %s93, 1
      %p97 = scmp.eq.s32.totalorder %s33, 1
      %p98 = scmp.ne.s32.totalorder %s93, %s95
      %p99 = scmp.eq.s32.totalorder %s33, 0
      %p100 = por %p98, %p99
      %p101 = scmp.ne.s32.totalorder %s93, %s95
      %p102 = scmp.eq.s32.totalorder %s38, 1
      %p103 = por %p101, %p102
      %p104 = scmp.ne.s32.totalorder %s95, %s96
      %p105 = scmp.eq.s32.totalorder %s38, 0
      %p106 = por %p104, %p105
      %p107 = scmp.ne.s32.totalorder %s95, %s96
      %p108 = scmp.eq.s32.totalorder %s39, 1
      %p109 = por %p107, %p108
      %p111 = scmp.ne.s32.totalorder %s96, %s110
      %p112 = scmp.eq.s32.totalorder %s39, 0
      %p113 = por %p111, %p112
      %s115 = sadd.s32 %s114, 1
      %p118 = scmp.eq.s32.totalorder %s33, 1
      %p119 = scmp.ne.s32.totalorder %s114, %s116
      %p120 = scmp.eq.s32.totalorder %s33, 0
      %p121 = por %p119, %p120
      %p122 = scmp.ne.s32.totalorder %s114, %s116
      %p123 = scmp.eq.s32.totalorder %s38, 1
      %p124 = por %p122, %p123
      %p125 = scmp.ne.s32.totalorder %s116, %s117
      %p126 = scmp.eq.s32.totalorder %s38, 0
      %p127 = por %p125, %p126
      %p128 = scmp.ne.s32.totalorder %s116, %s117
      %p129 = scmp.eq.s32.totalorder %s39, 1
      %p130 = por %p128, %p129
      %p132 = scmp.ne.s32.totalorder %s117, %s131
      %p133 = scmp.eq.s32.totalorder %s39, 0
      %p134 = por %p132, %p133
      %s136 = sadd.s32 %s135, 1
      %p139 = scmp.eq.s32.totalorder %s33, 1
      %p140 = scmp.ne.s32.totalorder %s135, %s137
      %p141 = scmp.eq.s32.totalorder %s33, 0
      %p142 = por %p140, %p141
      %p143 = scmp.ne.s32.totalorder %s135, %s137
      %p144 = scmp.eq.s32.totalorder %s38, 1
      %p145 = por %p143, %p144
      %p146 = scmp.ne.s32.totalorder %s137, %s138
      %p147 = scmp.eq.s32.totalorder %s38, 0
      %p148 = por %p146, %p147
      %p149 = scmp.ne.s32.totalorder %s137, %s138
      %p150 = scmp.eq.s32.totalorder %s39, 1
      %p151 = por %p149, %p150
      %p153 = scmp.ne.s32.totalorder %s138, %s152
      %p154 = scmp.eq.s32.totalorder %s39, 0
      %p155 = por %p153, %p154
      %s157 = sadd.s32 %s156, 1
      %p160 = scmp.eq.s32.totalorder %s33, 1
      %p161 = scmp.ne.s32.totalorder %s156, %s158
      %p162 = scmp.eq.s32.totalorder %s33, 0
      %p163 = por %p161, %p162
      %p164 = scmp.ne.s32.totalorder %s156, %s158
      %p165 = scmp.eq.s32.totalorder %s38, 1
      %p166 = por %p164, %p165
      %p167 = scmp.ne.s32.totalorder %s158, %s159
      %p168 = scmp.eq.s32.totalorder %s38, 0
      %p169 = por %p167, %p168
      %p170 = scmp.ne.s32.totalorder %s158, %s159
      %p171 = scmp.eq.s32.totalorder %s39, 1
      %p172 = por %p170, %p171
      %p174 = scmp.ne.s32.totalorder %s159, %s173
      %p175 = scmp.eq.s32.totalorder %s39, 0
      %p176 = por %p174, %p175
      %s178 = sadd.s32 %s177, 1
      %p181 = scmp.eq.s32.totalorder %s33, 1
      %p182 = scmp.ne.s32.totalorder %s177, %s179
      %p183 = scmp.eq.s32.totalorder %s33, 0
      %p184 = por %p182, %p183
      %p185 = scmp.ne.s32.totalorder %s177, %s179
      %p186 = scmp.eq.s32.totalorder %s38, 1
      %p187 = por %p185, %p186
      %p188 = scmp.ne.s32.totalorder %s179, %s180
      %p189 = scmp.eq.s32.totalorder %s38, 0
      %p190 = por %p188, %p189
      %p191 = scmp.ne.s32.totalorder %s179, %s180
      %p192 = scmp.eq.s32.totalorder %s39, 1
      %p193 = por %p191, %p192
      %p195 = scmp.ne.s32.totalorder %s180, %s194
      %p196 = scmp.eq.s32.totalorder %s39, 0
      %p197 = por %p195, %p196
      %s199 = sadd.s32 %s198, 1
      %p202 = scmp.eq.s32.totalorder %s33, 1
      %p203 = scmp.ne.s32.totalorder %s198, %s200
      %p204 = scmp.eq.s32.totalorder %s33, 0
      %p205 = por %p203, %p204
      %p206 = scmp.ne.s32.totalorder %s198, %s200
      %p207 = scmp.eq.s32.totalorder %s38, 1
      %p208 = por %p206, %p207
      %p209 = scmp.ne.s32.totalorder %s200, %s201
      %p210 = scmp.eq.s32.totalorder %s38, 0
      %p211 = por %p209, %p210
      %p212 = scmp.ne.s32.totalorder %s200, %s201
      %p213 = scmp.eq.s32.totalorder %s39, 1
      %p214 = por %p212, %p213
      %p216 = scmp.ne.s32.totalorder %s201, %s215
      %p217 = scmp.eq.s32.totalorder %s39, 0
      %p218 = por %p216, %p217
      %s220 = sadd.s32 %s219, 1
      %p223 = scmp.eq.s32.totalorder %s33, 1
      %p224 = scmp.ne.s32.totalorder %s219, %s221
      %p225 = scmp.eq.s32.totalorder %s33, 0
      %p226 = por %p224, %p225
      %p227 = scmp.ne.s32.totalorder %s219, %s221
      %p228 = scmp.eq.s32.totalorder %s38, 1
      %p229 = por %p227, %p228
      %p230 = scmp.ne.s32.totalorder %s221, %s222
      %p231 = scmp.eq.s32.totalorder %s38, 0
      %p232 = por %p230, %p231
      %p233 = scmp.ne.s32.totalorder %s221, %s222
      %p234 = scmp.eq.s32.totalorder %s39, 1
      %p235 = por %p233, %p234
      %p237 = scmp.ne.s32.totalorder %s222, %s236
      %p238 = scmp.eq.s32.totalorder %s39, 0
      %p239 = por %p237, %p238
      %s241 = sadd.s32 %s240, 1
      %p244 = scmp.eq.s32.totalorder %s33, 1
      %p245 = scmp.ne.s32.totalorder %s240, %s242
      %p246 = scmp.eq.s32.totalorder %s33, 0
      %p247 = por %p245, %p246
      %p248 = scmp.ne.s32.totalorder %s240, %s242
      %p249 = scmp.eq.s32.totalorder %s38, 1
      %p250 = por %p248, %p249
      %p251 = scmp.ne.s32.totalorder %s242, %s243
      %p252 = scmp.eq.s32.totalorder %s38, 0
      %p253 = por %p251, %p252
      %p254 = scmp.ne.s32.totalorder %s242, %s243
      %p255 = scmp.eq.s32.totalorder %s39, 1
      %p256 = por %p254, %p255
      %p258 = scmp.ne.s32.totalorder %s243, %s257
      %p259 = scmp.eq.s32.totalorder %s39, 0
      %p260 = por %p258, %p259
      %s262 = sadd.s32 %s261, 1
      %p265 = scmp.eq.s32.totalorder %s33, 1
      %p266 = scmp.ne.s32.totalorder %s261, %s263
      %p267 = scmp.eq.s32.totalorder %s33, 0
      %p268 = por %p266, %p267
      %p269 = scmp.ne.s32.totalorder %s261, %s263
      %p270 = scmp.eq.s32.totalorder %s38, 1
      %p271 = por %p269, %p270
      %p272 = scmp.ne.s32.totalorder %s263, %s264
      %p273 = scmp.eq.s32.totalorder %s38, 0
      %p274 = por %p272, %p273
      %p275 = scmp.ne.s32.totalorder %s263, %s264
      %p276 = scmp.eq.s32.totalorder %s39, 1
      %p277 = por %p275, %p276
      %p279 = scmp.ne.s32.totalorder %s264, %s278
      %p280 = scmp.eq.s32.totalorder %s39, 0
      %p281 = por %p279, %p280
      %s283 = sadd.s32 %s282, 1
      %p286 = scmp.eq.s32.totalorder %s33, 1
      %p287 = scmp.ne.s32.totalorder %s282, %s284
      %p288 = scmp.eq.s32.totalorder %s33, 0
      %p289 = por %p287, %p288
      %p290 = scmp.ne.s32.totalorder %s282, %s284
      %p291 = scmp.eq.s32.totalorder %s38, 1
      %p292 = por %p290, %p291
      %p293 = scmp.ne.s32.totalorder %s284, %s285
      %p294 = scmp.eq.s32.totalorder %s38, 0
      %p295 = por %p293, %p294
      %p296 = scmp.ne.s32.totalorder %s284, %s285
      %p297 = scmp.eq.s32.totalorder %s39, 1
      %p298 = por %p296, %p297
      %p300 = scmp.ne.s32.totalorder %s285, %s299
      %p301 = scmp.eq.s32.totalorder %s39, 0
      %p302 = por %p300, %p301
      %s304 = sadd.s32 %s303, 1
      %p307 = scmp.eq.s32.totalorder %s33, 1
      %p308 = scmp.ne.s32.totalorder %s303, %s305
      %p309 = scmp.eq.s32.totalorder %s33, 0
      %p310 = por %p308, %p309
      %p311 = scmp.ne.s32.totalorder %s303, %s305
      %p312 = scmp.eq.s32.totalorder %s38, 1
      %p313 = por %p311, %p312
      %p314 = scmp.ne.s32.totalorder %s305, %s306
      %p315 = scmp.eq.s32.totalorder %s38, 0
      %p316 = por %p314, %p315
      %p317 = scmp.ne.s32.totalorder %s305, %s306
      %p318 = scmp.eq.s32.totalorder %s39, 1
      %p319 = por %p317, %p318
      %p321 = scmp.ne.s32.totalorder %s306, %s320
      %p322 = scmp.eq.s32.totalorder %s39, 0
      %p323 = por %p321, %p322
      %s325 = sadd.s32 %s324, 1
      %p328 = scmp.eq.s32.totalorder %s33, 1
      %p329 = scmp.ne.s32.totalorder %s324, %s326
      %p330 = scmp.eq.s32.totalorder %s33, 0
      %p331 = por %p329, %p330
      %p332 = scmp.ne.s32.totalorder %s324, %s326
      %p333 = scmp.eq.s32.totalorder %s38, 1
      %p334 = por %p332, %p333
      %p335 = scmp.ne.s32.totalorder %s326, %s327
      %p336 = scmp.eq.s32.totalorder %s38, 0
      %p337 = por %p335, %p336
      %p338 = scmp.ne.s32.totalorder %s326, %s327
      %p339 = scmp.eq.s32.totalorder %s39, 1
      %p340 = por %p338, %p339
      %p342 = scmp.ne.s32.totalorder %s327, %s341
      %p343 = scmp.eq.s32.totalorder %s39, 0
      %p344 = por %p342, %p343
      %s346 = sadd.s32 %s345, 1
      %p349 = scmp.eq.s32.totalorder %s33, 1
      %p350 = scmp.ne.s32.totalorder %s345, %s347
      %p351 = scmp.eq.s32.totalorder %s33, 0
      %p352 = por %p350, %p351
      %p353 = scmp.ne.s32.totalorder %s345, %s347
      %p354 = scmp.eq.s32.totalorder %s38, 1
      %p355 = por %p353, %p354
      %p356 = scmp.ne.s32.totalorder %s347, %s348
      %p357 = scmp.eq.s32.totalorder %s38, 0
      %p358 = por %p356, %p357
      %p359 = scmp.ne.s32.totalorder %s347, %s348
      %p360 = scmp.eq.s32.totalorder %s39, 1
      %p361 = por %p359, %p360
      %p363 = scmp.ne.s32.totalorder %s348, %s362
      %p364 = scmp.eq.s32.totalorder %s39, 0
      %p365 = por %p363, %p364
      %s367 = sadd.s32 %s366, 1
      %p370 = scmp.eq.s32.totalorder %s33, 1
      %p371 = scmp.ne.s32.totalorder %s366, %s368
      %p372 = scmp.eq.s32.totalorder %s33, 0
      %p373 = por %p371, %p372
      %p374 = scmp.ne.s32.totalorder %s366, %s368
      %p375 = scmp.eq.s32.totalorder %s38, 1
      %p376 = por %p374, %p375
      %p377 = scmp.ne.s32.totalorder %s368, %s369
      %p378 = scmp.eq.s32.totalorder %s38, 0
      %p379 = por %p377, %p378
      %p380 = scmp.ne.s32.totalorder %s368, %s369
      %p381 = scmp.eq.s32.totalorder %s39, 1
      %p382 = por %p380, %p381
      %p384 = scmp.ne.s32.totalorder %s369, %s383
      %p385 = scmp.eq.s32.totalorder %s39, 0
      %p386 = por %p384, %p385
      %s388 = sadd.s32 %s387, 1
      %p391 = scmp.eq.s32.totalorder %s33, 1
      %p392 = scmp.ne.s32.totalorder %s387, %s389
      %p393 = scmp.eq.s32.totalorder %s33, 0
      %p394 = por %p392, %p393
      %p395 = scmp.ne.s32.totalorder %s387, %s389
      %p396 = scmp.eq.s32.totalorder %s38, 1
      %p397 = por %p395, %p396
      %p398 = scmp.ne.s32.totalorder %s389, %s390
      %p399 = scmp.eq.s32.totalorder %s38, 0
      %p400 = por %p398, %p399
      %p401 = scmp.ne.s32.totalorder %s389, %s390
      %p402 = scmp.eq.s32.totalorder %s39, 1
      %p403 = por %p401, %p402
      %p405 = scmp.ne.s32.totalorder %s390, %s404
      %p406 = scmp.eq.s32.totalorder %s39, 0
      %p407 = por %p405, %p406
      %s409 = sadd.s32 %s408, 1
      %p412 = scmp.eq.s32.totalorder %s33, 1
      %p413 = scmp.ne.s32.totalorder %s408, %s410
      %p414 = scmp.eq.s32.totalorder %s33, 0
      %p415 = por %p413, %p414
      %p416 = scmp.ne.s32.totalorder %s408, %s410
      %p417 = scmp.eq.s32.totalorder %s38, 1
      %p418 = por %p416, %p417
      %p419 = scmp.ne.s32.totalorder %s410, %s411
      %p420 = scmp.eq.s32.totalorder %s38, 0
      %p421 = por %p419, %p420
      %p422 = scmp.ne.s32.totalorder %s410, %s411
      %p423 = scmp.eq.s32.totalorder %s39, 1
      %p424 = por %p422, %p423
      %p426 = scmp.ne.s32.totalorder %s411, %s425
      %p427 = scmp.eq.s32.totalorder %s39, 0
      %p428 = por %p426, %p427
      %s430 = sadd.s32 %s429, 1
      %p433 = scmp.eq.s32.totalorder %s33, 1
      %p434 = scmp.ne.s32.totalorder %s429, %s431
      %p435 = scmp.eq.s32.totalorder %s33, 0
      %p436 = por %p434, %p435
      %p437 = scmp.ne.s32.totalorder %s429, %s431
      %p438 = scmp.eq.s32.totalorder %s38, 1
      %p439 = por %p437, %p438
      %p440 = scmp.ne.s32.totalorder %s431, %s432
      %p441 = scmp.eq.s32.totalorder %s38, 0
      %p442 = por %p440, %p441
      %p443 = scmp.ne.s32.totalorder %s431, %s432
      %p444 = scmp.eq.s32.totalorder %s39, 1
      %p445 = por %p443, %p444
      %p447 = scmp.ne.s32.totalorder %s432, %s446
      %p448 = scmp.eq.s32.totalorder %s39, 0
      %p449 = por %p447, %p448
      %s451 = sadd.s32 %s450, 1
      %p454 = scmp.eq.s32.totalorder %s33, 1
      %p455 = scmp.ne.s32.totalorder %s450, %s452
      %p456 = scmp.eq.s32.totalorder %s33, 0
      %p457 = por %p455, %p456
      %p458 = scmp.ne.s32.totalorder %s450, %s452
      %p459 = scmp.eq.s32.totalorder %s38, 1
      %p460 = por %p458, %p459
      %p461 = scmp.ne.s32.totalorder %s452, %s453
      %p462 = scmp.eq.s32.totalorder %s38, 0
      %p463 = por %p461, %p462
      %p464 = scmp.ne.s32.totalorder %s452, %s453
      %p465 = scmp.eq.s32.totalorder %s39, 1
      %p466 = por %p464, %p465
      %p468 = scmp.ne.s32.totalorder %s453, %s467
      %p469 = scmp.eq.s32.totalorder %s39, 0
      %p470 = por %p468, %p469
      %s472 = sadd.s32 %s471, 1
      %p475 = scmp.eq.s32.totalorder %s33, 1
      %p476 = scmp.ne.s32.totalorder %s471, %s473
      %p477 = scmp.eq.s32.totalorder %s33, 0
      %p478 = por %p476, %p477
      %p479 = scmp.ne.s32.totalorder %s471, %s473
      %p480 = scmp.eq.s32.totalorder %s38, 1
      %p481 = por %p479, %p480
      %p482 = scmp.ne.s32.totalorder %s473, %s474
      %p483 = scmp.eq.s32.totalorder %s38, 0
      %p484 = por %p482, %p483
      %p485 = scmp.ne.s32.totalorder %s473, %s474
      %p486 = scmp.eq.s32.totalorder %s39, 1
      %p487 = por %p485, %p486
      %p489 = scmp.ne.s32.totalorder %s474, %s488
      %p490 = scmp.eq.s32.totalorder %s39, 0
      %p491 = por %p489, %p490
      %s492 = ssub.s32 %s33, %s40
      %p493 = scmp.eq.s32.totalorder %s492, 0
      %s495 = sadd.s32 %s494, 1
      %s496 = scalar_select %p493, %s494, %s495
      %p499 = pneg %p493
      %p500 = scmp.eq.s32.totalorder %s33, 1
      %p501 = por %p499, %p500
      %p502 = scmp.ne.s32.totalorder %s494, %s497
      %p503 = scmp.eq.s32.totalorder %s33, 0
      %p504 = por %p502, %p503
      %p505 = scmp.ne.s32.totalorder %s494, %s497
      %p506 = scmp.eq.s32.totalorder %s38, 1
      %p507 = por %p505, %p506
      %p508 = scmp.ne.s32.totalorder %s497, %s498
      %p509 = scmp.eq.s32.totalorder %s38, 0
      %p510 = por %p508, %p509
      %p511 = scmp.ne.s32.totalorder %s497, %s498
      %p512 = scmp.eq.s32.totalorder %s39, 1
      %p513 = por %p511, %p512
      %p515 = scmp.ne.s32.totalorder %s498, %s514
      %p516 = scmp.eq.s32.totalorder %s39, 0
      %p517 = por %p515, %p516
      %s518 = ssub.s32 %s33, %s40
      %p519 = scmp.eq.s32.totalorder %s518, 0
      %s521 = sadd.s32 %s520, 1
      %s522 = scalar_select %p519, %s520, %s521
      %p525 = pneg %p519
      %p526 = scmp.eq.s32.totalorder %s33, 1
      %p527 = por %p525, %p526
      %p528 = scmp.ne.s32.totalorder %s520, %s523
      %p529 = scmp.eq.s32.totalorder %s33, 0
      %p530 = por %p528, %p529
      %p531 = scmp.ne.s32.totalorder %s520, %s523
      %p532 = scmp.eq.s32.totalorder %s38, 1
      %p533 = por %p531, %p532
      %p534 = scmp.ne.s32.totalorder %s523, %s524
      %p535 = scmp.eq.s32.totalorder %s38, 0
      %p536 = por %p534, %p535
      %p537 = scmp.ne.s32.totalorder %s523, %s524
      %p538 = scmp.eq.s32.totalorder %s39, 1
      %p539 = por %p537, %p538
      %p541 = scmp.ne.s32.totalorder %s524, %s540
      %p542 = scmp.eq.s32.totalorder %s39, 0
      %p543 = por %p541, %p542
      %s544 = ssub.s32 %s33, %s40
      %p545 = scmp.eq.s32.totalorder %s544, 0
      %s547 = sadd.s32 %s546, 1
      %s548 = scalar_select %p545, %s546, %s547
      %p551 = pneg %p545
      %p552 = scmp.eq.s32.totalorder %s33, 1
      %p553 = por %p551, %p552
      %p554 = scmp.ne.s32.totalorder %s546, %s549
      %p555 = scmp.eq.s32.totalorder %s33, 0
      %p556 = por %p554, %p555
      %p557 = scmp.ne.s32.totalorder %s546, %s549
      %p558 = scmp.eq.s32.totalorder %s38, 1
      %p559 = por %p557, %p558
      %p560 = scmp.ne.s32.totalorder %s549, %s550
      %p561 = scmp.eq.s32.totalorder %s38, 0
      %p562 = por %p560, %p561
      %p563 = scmp.ne.s32.totalorder %s549, %s550
      %p564 = scmp.eq.s32.totalorder %s39, 1
      %p565 = por %p563, %p564
      %p567 = scmp.ne.s32.totalorder %s550, %s566
      %p568 = scmp.eq.s32.totalorder %s39, 0
      %p569 = por %p567, %p568
      %p570 = scmp.le.s32.totalorder 1, %s33
      %p571 = scmp.lt.s32.totalorder %s33, 3
      %p572 = pnand %p570, %p571
      %p573 = pneg %p572
      // Predicated region
      $region9: #{fmgen_forward.4} parent=5 // pred_check
        _
      $region10: #{fmgen_forward.4} parent=5 // pred_check_branch
        %575 = sbr.rel (%p572) target = $region12
      $region11: #{fmgen_forward.4} parent=5 // pred_region
        %s576 = ssub.s32 %s33, 1
        // Predicated region
        $region13: #{fmgen_forward.4} parent=11 // pred_check
          %p577 = pneg %p106
        $region14: #{fmgen_forward.4} parent=11 // pred_check_branch
          %579 = sbr.rel (%p577) target = $region16
        $region15: #{fmgen_forward.4} parent=11 // pred_region
          _
        $region16: #{fmgen_forward.4} parent=11 // pred_fallthru
          _
        // Predicated region
        $region17: #{fmgen_forward.4} parent=11 // pred_check
          %p580 = pneg %p127
        $region18: #{fmgen_forward.4} parent=11 // pred_check_branch
          %582 = sbr.rel (%p580) target = $region20
        $region19: #{fmgen_forward.4} parent=11 // pred_region
          _
        $region20: #{fmgen_forward.4} parent=11 // pred_fallthru
          _
        // Predicated region
        $region21: #{fmgen_forward.4} parent=11 // pred_check
          %p583 = pneg %p148
        $region22: #{fmgen_forward.4} parent=11 // pred_check_branch
          %585 = sbr.rel (%p583) target = $region24
        $region23: #{fmgen_forward.4} parent=11 // pred_region
          _
        $region24: #{fmgen_forward.4} parent=11 // pred_fallthru
          _
        // Predicated region
        $region25: #{fmgen_forward.4} parent=11 // pred_check
          %p586 = pneg %p169
        $region26: #{fmgen_forward.4} parent=11 // pred_check_branch
          %588 = sbr.rel (%p586) target = $region28
        $region27: #{fmgen_forward.4} parent=11 // pred_region
          _
        $region28: #{fmgen_forward.4} parent=11 // pred_fallthru
          _
        // Predicated region
        $region29: #{fmgen_forward.4} parent=11 // pred_check
          %p589 = pneg %p190
        $region30: #{fmgen_forward.4} parent=11 // pred_check_branch
          %591 = sbr.rel (%p589) target = $region32
        $region31: #{fmgen_forward.4} parent=11 // pred_region
          _
        $region32: #{fmgen_forward.4} parent=11 // pred_fallthru
          _
        // Predicated region
        $region33: #{fmgen_forward.4} parent=11 // pred_check
          %p592 = pneg %p211
        $region34: #{fmgen_forward.4} parent=11 // pred_check_branch
          %594 = sbr.rel (%p592) target = $region36
        $region35: #{fmgen_forward.4} parent=11 // pred_region
          _
        $region36: #{fmgen_forward.4} parent=11 // pred_fallthru
          _
        // Predicated region
        $region37: #{fmgen_forward.4} parent=11 // pred_check
          %p595 = pneg %p232
        $region38: #{fmgen_forward.4} parent=11 // pred_check_branch
          %597 = sbr.rel (%p595) target = $region40
        $region39: #{fmgen_forward.4} parent=11 // pred_region
          _
        $region40: #{fmgen_forward.4} parent=11 // pred_fallthru
          _
        // Predicated region
        $region41: #{fmgen_forward.4} parent=11 // pred_check
          %p598 = pneg %p253
        $region42: #{fmgen_forward.4} parent=11 // pred_check_branch
          %600 = sbr.rel (%p598) target = $region44
        $region43: #{fmgen_forward.4} parent=11 // pred_region
          _
        $region44: #{fmgen_forward.4} parent=11 // pred_fallthru
          _
        // Predicated region
        $region45: #{fmgen_forward.4} parent=11 // pred_check
          %p601 = pneg %p274
        $region46: #{fmgen_forward.4} parent=11 // pred_check_branch
          %603 = sbr.rel (%p601) target = $region48
        $region47: #{fmgen_forward.4} parent=11 // pred_region
          _
        $region48: #{fmgen_forward.4} parent=11 // pred_fallthru
          _
        // Predicated region
        $region49: #{fmgen_forward.4} parent=11 // pred_check
          %p604 = pneg %p295
        $region50: #{fmgen_forward.4} parent=11 // pred_check_branch
          %606 = sbr.rel (%p604) target = $region52
        $region51: #{fmgen_forward.4} parent=11 // pred_region
          _
        $region52: #{fmgen_forward.4} parent=11 // pred_fallthru
          _
        // Predicated region
        $region53: #{fmgen_forward.4} parent=11 // pred_check
          %p607 = pneg %p316
        $region54: #{fmgen_forward.4} parent=11 // pred_check_branch
          %609 = sbr.rel (%p607) target = $region56
        $region55: #{fmgen_forward.4} parent=11 // pred_region
          _
        $region56: #{fmgen_forward.4} parent=11 // pred_fallthru
          _
        // Predicated region
        $region57: #{fmgen_forward.4} parent=11 // pred_check
          %p610 = pneg %p337
        $region58: #{fmgen_forward.4} parent=11 // pred_check_branch
          %612 = sbr.rel (%p610) target = $region60
        $region59: #{fmgen_forward.4} parent=11 // pred_region
          _
        $region60: #{fmgen_forward.4} parent=11 // pred_fallthru
          _
        // Predicated region
        $region61: #{fmgen_forward.4} parent=11 // pred_check
          %p613 = pneg %p358
        $region62: #{fmgen_forward.4} parent=11 // pred_check_branch
          %615 = sbr.rel (%p613) target = $region64
        $region63: #{fmgen_forward.4} parent=11 // pred_region
          _
        $region64: #{fmgen_forward.4} parent=11 // pred_fallthru
          _
        // Predicated region
        $region65: #{fmgen_forward.4} parent=11 // pred_check
          %p616 = pneg %p379
        $region66: #{fmgen_forward.4} parent=11 // pred_check_branch
          %618 = sbr.rel (%p616) target = $region68
        $region67: #{fmgen_forward.4} parent=11 // pred_region
          _
        $region68: #{fmgen_forward.4} parent=11 // pred_fallthru
          _
        // Predicated region
        $region69: #{fmgen_forward.4} parent=11 // pred_check
          %p619 = pneg %p400
        $region70: #{fmgen_forward.4} parent=11 // pred_check_branch
          %621 = sbr.rel (%p619) target = $region72
        $region71: #{fmgen_forward.4} parent=11 // pred_region
          _
        $region72: #{fmgen_forward.4} parent=11 // pred_fallthru
          _
        // Predicated region
        $region73: #{fmgen_forward.4} parent=11 // pred_check
          %p622 = pneg %p421
        $region74: #{fmgen_forward.4} parent=11 // pred_check_branch
          %624 = sbr.rel (%p622) target = $region76
        $region75: #{fmgen_forward.4} parent=11 // pred_region
          _
        $region76: #{fmgen_forward.4} parent=11 // pred_fallthru
          _
        // Predicated region
        $region77: #{fmgen_forward.4} parent=11 // pred_check
          %p625 = pneg %p442
        $region78: #{fmgen_forward.4} parent=11 // pred_check_branch
          %627 = sbr.rel (%p625) target = $region80
        $region79: #{fmgen_forward.4} parent=11 // pred_region
          _
        $region80: #{fmgen_forward.4} parent=11 // pred_fallthru
          _
        // Predicated region
        $region81: #{fmgen_forward.4} parent=11 // pred_check
          %p628 = pneg %p463
        $region82: #{fmgen_forward.4} parent=11 // pred_check_branch
          %630 = sbr.rel (%p628) target = $region84
        $region83: #{fmgen_forward.4} parent=11 // pred_region
          _
        $region84: #{fmgen_forward.4} parent=11 // pred_fallthru
          _
        // Predicated region
        $region85: #{fmgen_forward.4} parent=11 // pred_check
          %p631 = pneg %p484
        $region86: #{fmgen_forward.4} parent=11 // pred_check_branch
          %633 = sbr.rel (%p631) target = $region88
        $region87: #{fmgen_forward.4} parent=11 // pred_region
          _
        $region88: #{fmgen_forward.4} parent=11 // pred_fallthru
          _
      $region12: #{fmgen_forward.4} parent=5 // pred_fallthru
        _
      %p634 = scmp.lt.s32.totalorder %s33, 2
      // Predicated region
      $region89: #{fmgen_forward.4} parent=5 // pred_check
        %p635 = pneg %p634
      $region90: #{fmgen_forward.4} parent=5 // pred_check_branch
        %637 = sbr.rel (%p635) target = $region92
      $region91: #{fmgen_forward.4} parent=5 // pred_region
        // Predicated region
        $region93: #{fmgen_forward.4} parent=91 // pred_check
          %p638 = pneg %p53
        $region94: #{fmgen_forward.4} parent=91 // pred_check_branch
          %640 = sbr.rel (%p638) target = $region96
        $region95: #{fmgen_forward.4} parent=91 // pred_region
          %p641 = scmp.lt.s32.totalorder %s33, 1
          %s642 = scalar_select %p641, %s33, 1
          %s643 = scalar_lea.vmem %s0, %s642
        $region96: #{fmgen_forward.4} parent=91 // pred_fallthru
          _
        // Predicated region
        $region97: #{fmgen_forward.4} parent=91 // pred_check
          %p644 = pneg %p79
        $region98: #{fmgen_forward.4} parent=91 // pred_check_branch
          %646 = sbr.rel (%p644) target = $region100
        $region99: #{fmgen_forward.4} parent=91 // pred_region
          %p647 = scmp.lt.s32.totalorder %s33, 1
          %s648 = scalar_select %p647, %s33, 1
          %s649 = smul.addr %s648, 16
          %s650 = scalar_lea.vmem %s1, %s649
        $region100: #{fmgen_forward.4} parent=91 // pred_fallthru
          _
      $region92: #{fmgen_forward.4} parent=5 // pred_fallthru
        _
      %p651 = scmp.le.s32.totalorder 1, %s33
      %p652 = scmp.lt.s32.totalorder %s33, 3
      %p653 = pnand %p651, %p652
      %p654 = pneg %p653
      // Predicated region
      $region101: #{fmgen_forward.4} parent=5 // pred_check
        _
      $region102: #{fmgen_forward.4} parent=5 // pred_check_branch
        %656 = sbr.rel (%p653) target = $region104
      $region103: #{fmgen_forward.4} parent=5 // pred_region
        %s657 = ssub.s32 %s33, 1
        %p658 = scmp.lt.s32.totalorder %s38, 1
        %s659 = scalar_select %p658, %s38, 1
        %s660 = scalar_lea.vmem %s0, %s659
        %p661 = pneg %p59
        %p662 = pneg %p56
        %p663 = scmp.lt.s32.totalorder %s38, 1
        %s664 = scalar_select %p663, %s38, 1
        %s665 = smul.addr %s664, 16
        %s666 = scalar_lea.vmem %s1, %s665
        %p667 = pneg %p85
        %p668 = pneg %p82
        %p669 = pneg %p106
        %p670 = pneg %p103
        %p671 = pneg %p127
        %p672 = pneg %p124
        %p673 = pneg %p148
        %p674 = pneg %p145
        %p675 = pneg %p169
        %p676 = pneg %p166
        %p677 = pneg %p190
        %p678 = pneg %p187
        %p679 = pneg %p211
        %p680 = pneg %p208
        %p681 = pneg %p232
        %p682 = pneg %p229
        %p683 = pneg %p253
        %p684 = pneg %p250
        %p685 = pneg %p274
        %p686 = pneg %p271
        %p687 = pneg %p295
        %p688 = pneg %p292
        %p689 = pneg %p316
        %p690 = pneg %p313
        %p691 = pneg %p337
        %p692 = pneg %p334
        %p693 = pneg %p358
        %p694 = pneg %p355
        %p695 = pneg %p379
        %p696 = pneg %p376
        %p697 = pneg %p400
        %p698 = pneg %p397
        %p699 = pneg %p421
        %p700 = pneg %p418
        %p701 = pneg %p442
        %p702 = pneg %p439
        %p703 = pneg %p463
        %p704 = pneg %p460
        %p705 = pneg %p484
        %p706 = pneg %p481
        %p707 = pneg %p510
        %p708 = pneg %p507
        %s709 = sand.u32 %s497, 1
        %s710 = scalar_lea.sflag [#allocation3], %s709
        %s711 = sand.u32 %s497, 1
        %s712 = scalar_lea.vmem [#allocation2], %s711
        %p713 = pneg %p536
        %p714 = pneg %p533
        %p715 = scmp.lt.s32.totalorder %s38, 1
        %s716 = scalar_select %p715, %s38, 1
        %s717 = smul.addr %s716, 8
        %s718 = smul.addr %s717, 8
        %s719 = scalar_lea.vmem %s22, %s718
        %p720 = pneg %p562
        %p721 = pneg %p559
        %p722 = scmp.lt.s32.totalorder %s38, 1
        %s723 = scalar_select %p722, %s38, 1
        %s724 = smul.addr %s723, 16
        %s725 = scalar_lea.vmem %s23, %s724
        %p726 = scmp.lt.s32.totalorder %s38, 1
        %s727 = scalar_select %p726, %s38, 1
        %s728 = scalar_lea.vmem %s0, %s727
        %p729 = scmp.lt.s32.totalorder %s38, 1
        %s730 = scalar_select %p729, %s38, 1
        %s731 = smul.addr %s730, 16
        %s732 = scalar_lea.vmem %s1, %s731
        %p733 = scmp.lt.s32.totalorder %s38, 1
        %s734 = scalar_select %p733, %s38, 1
        %s735 = smul.addr %s734, 8
        %s736 = smul.addr %s735, 8
        %s737 = scalar_lea.vmem %s22, %s736
        %p738 = scmp.lt.s32.totalorder %s38, 1
        %s739 = scalar_select %p738, %s38, 1
        %s740 = smul.addr %s739, 16
        %s741 = scalar_lea.vmem %s23, %s740
        %v742 = vld [vmem:[%s732] sm:$0xff]
        %v743 = vld [vmem:[%s732 + $0x8] sm:$0xff]
        %v744 = vld [vmem:[%s19] sm:$0xff]
        %v745 = vld [vmem:[%s19 + $0x8] sm:$0xff]
        %v746 = vld [vmem:[%s19 + $0x10] sm:$0xff]
        %v747 = vld [vmem:[%s19 + $0x18] sm:$0xff]
        %v748 = vld [vmem:[%s19 + $0x20] sm:$0xff]
        %v749 = vld [vmem:[%s19 + $0x28] sm:$0xff]
        %v750 = vld [vmem:[%s19 + $0x30] sm:$0xff]
        %v751 = vld [vmem:[%s19 + $0x38] sm:$0xff]
        %v752 = vld [vmem:[%s19 + $0x40] sm:$0xff]
        %v753 = vld [vmem:[%s19 + $0x48] sm:$0xff]
        %v754 = vld [vmem:[%s19 + $0x50] sm:$0xff]
        %v755 = vld [vmem:[%s19 + $0x58] sm:$0xff]
        %v756 = vld [vmem:[%s19 + $0x60] sm:$0xff]
        %v757 = vld [vmem:[%s19 + $0x68] sm:$0xff]
        %v758 = vld [vmem:[%s19 + $0x70] sm:$0xff]
        %v759 = vld [vmem:[%s19 + $0x78] sm:$0xff]
        %v760 = vld [vmem:[%s19 + $0x80] sm:$0xff]
        %v761 = vld [vmem:[%s19 + $0x88] sm:$0xff]
        %v762 = vld [vmem:[%s19 + $0x90] sm:$0xff]
        %v763 = vld [vmem:[%s19 + $0x98] sm:$0xff]
        %v764 = vld [vmem:[%s19 + $0xa0] sm:$0xff]
        %v765 = vld [vmem:[%s19 + $0xa8] sm:$0xff]
        %v766 = vld [vmem:[%s19 + $0xb0] sm:$0xff]
        %v767 = vld [vmem:[%s19 + $0xb8] sm:$0xff]
        %v768 = vld [vmem:[%s19 + $0xc0] sm:$0xff]
        %v769 = vld [vmem:[%s19 + $0xc8] sm:$0xff]
        %v770 = vld [vmem:[%s19 + $0xd0] sm:$0xff]
        %v771 = vld [vmem:[%s19 + $0xd8] sm:$0xff]
        %v772 = vld [vmem:[%s19 + $0xe0] sm:$0xff]
        %v773 = vld [vmem:[%s19 + $0xe8] sm:$0xff]
        %v774 = vld [vmem:[%s19 + $0xf0] sm:$0xff]
        %v775 = vld [vmem:[%s19 + $0xf8] sm:$0xff]
        %v776 = vld [vmem:[%s19 + $0x100] sm:$0xff]
        %v777 = vld [vmem:[%s19 + $0x108] sm:$0xff]
        %v778 = vld [vmem:[%s19 + $0x110] sm:$0xff]
        %v779 = vld [vmem:[%s19 + $0x118] sm:$0xff]
        %v780 = vld [vmem:[%s19 + $0x120] sm:$0xff]
        %v781 = vld [vmem:[%s19 + $0x128] sm:$0xff]
        %v782 = vld [vmem:[%s19 + $0x130] sm:$0xff]
        %v783 = vld [vmem:[%s19 + $0x138] sm:$0xff]
        %v784 = vld [vmem:[%s19 + $0x140] sm:$0xff]
        %v785 = vld [vmem:[%s19 + $0x148] sm:$0xff]
        %v786 = vld [vmem:[%s19 + $0x150] sm:$0xff]
        %v787 = vld [vmem:[%s19 + $0x158] sm:$0xff]
        %v788 = vld [vmem:[%s19 + $0x160] sm:$0xff]
        %v789 = vld [vmem:[%s19 + $0x168] sm:$0xff]
        %v790 = vld [vmem:[%s19 + $0x170] sm:$0xff]
        %v791 = vld [vmem:[%s19 + $0x178] sm:$0xff]
        %v792 = vld [vmem:[%s19 + $0x180] sm:$0xff]
        %v793 = vld [vmem:[%s19 + $0x188] sm:$0xff]
        %v794 = vld [vmem:[%s19 + $0x190] sm:$0xff]
        %v795 = vld [vmem:[%s19 + $0x198] sm:$0xff]
        %v796 = vld [vmem:[%s19 + $0x1a0] sm:$0xff]
        %v797 = vld [vmem:[%s19 + $0x1a8] sm:$0xff]
        %v798 = vld [vmem:[%s19 + $0x1b0] sm:$0xff]
        %v799 = vld [vmem:[%s19 + $0x1b8] sm:$0xff]
        %v800 = vld [vmem:[%s19 + $0x1c0] sm:$0xff]
        %v801 = vld [vmem:[%s19 + $0x1c8] sm:$0xff]
        %v802 = vld [vmem:[%s19 + $0x1d0] sm:$0xff]
        %v803 = vld [vmem:[%s19 + $0x1d8] sm:$0xff]
        %v804 = vld [vmem:[%s19 + $0x1e0] sm:$0xff]
        %v805 = vld [vmem:[%s19 + $0x1e8] sm:$0xff]
        %v806 = vld [vmem:[%s19 + $0x1f0] sm:$0xff]
        %v807 = vld [vmem:[%s19 + $0x1f8] sm:$0xff]
        %v808 = vld [vmem:[%s19 + $0x200] sm:$0xff]
        %v809 = vld [vmem:[%s19 + $0x208] sm:$0xff]
        %v810 = vld [vmem:[%s19 + $0x210] sm:$0xff]
        %v811 = vld [vmem:[%s19 + $0x218] sm:$0xff]
        %v812 = vld [vmem:[%s19 + $0x220] sm:$0xff]
        %v813 = vld [vmem:[%s19 + $0x228] sm:$0xff]
        %v814 = vld [vmem:[%s19 + $0x230] sm:$0xff]
        %v815 = vld [vmem:[%s19 + $0x238] sm:$0xff]
        %v816 = vld [vmem:[%s19 + $0x240] sm:$0xff]
        %v817 = vld [vmem:[%s19 + $0x248] sm:$0xff]
        %v818 = vld [vmem:[%s19 + $0x250] sm:$0xff]
        %v819 = vld [vmem:[%s19 + $0x258] sm:$0xff]
        %v820 = vld [vmem:[%s19 + $0x260] sm:$0xff]
        %v821 = vld [vmem:[%s19 + $0x268] sm:$0xff]
        %v822 = vld [vmem:[%s19 + $0x270] sm:$0xff]
        %v823 = vld [vmem:[%s19 + $0x278] sm:$0xff]
        %v824 = vld [vmem:[%s19 + $0x280] sm:$0xff]
        %v825 = vld [vmem:[%s19 + $0x288] sm:$0xff]
        %v826 = vld [vmem:[%s19 + $0x290] sm:$0xff]
        %v827 = vld [vmem:[%s19 + $0x298] sm:$0xff]
        %v828 = vld [vmem:[%s19 + $0x2a0] sm:$0xff]
        %v829 = vld [vmem:[%s19 + $0x2a8] sm:$0xff]
        %v830 = vld [vmem:[%s19 + $0x2b0] sm:$0xff]
        %v831 = vld [vmem:[%s19 + $0x2b8] sm:$0xff]
        %v832 = vld [vmem:[%s19 + $0x2c0] sm:$0xff]
        %v833 = vld [vmem:[%s19 + $0x2c8] sm:$0xff]
        %v834 = vld [vmem:[%s19 + $0x2d0] sm:$0xff]
        %v835 = vld [vmem:[%s19 + $0x2d8] sm:$0xff]
        %v836 = vld [vmem:[%s19 + $0x2e0] sm:$0xff]
        %v837 = vld [vmem:[%s19 + $0x2e8] sm:$0xff]
        %v838 = vld [vmem:[%s19 + $0x2f0] sm:$0xff]
        %v839 = vld [vmem:[%s19 + $0x2f8] sm:$0xff]
        %v840 = vld [vmem:[%s19 + $0x300] sm:$0xff]
        %v841 = vld [vmem:[%s19 + $0x308] sm:$0xff]
        %v842 = vld [vmem:[%s19 + $0x310] sm:$0xff]
        %v843 = vld [vmem:[%s19 + $0x318] sm:$0xff]
        %v844 = vld [vmem:[%s19 + $0x320] sm:$0xff]
        %v845 = vld [vmem:[%s19 + $0x328] sm:$0xff]
        %v846 = vld [vmem:[%s19 + $0x330] sm:$0xff]
        %v847 = vld [vmem:[%s19 + $0x338] sm:$0xff]
        %v848 = vld [vmem:[%s19 + $0x340] sm:$0xff]
        %v849 = vld [vmem:[%s19 + $0x348] sm:$0xff]
        %v850 = vld [vmem:[%s19 + $0x350] sm:$0xff]
        %v851 = vld [vmem:[%s19 + $0x358] sm:$0xff]
        %v852 = vld [vmem:[%s19 + $0x360] sm:$0xff]
        %v853 = vld [vmem:[%s19 + $0x368] sm:$0xff]
        %v854 = vld [vmem:[%s19 + $0x370] sm:$0xff]
        %v855 = vld [vmem:[%s19 + $0x378] sm:$0xff]
        %v856 = vld [vmem:[%s19 + $0x380] sm:$0xff]
        %v857 = vld [vmem:[%s19 + $0x388] sm:$0xff]
        %v858 = vld [vmem:[%s19 + $0x390] sm:$0xff]
        %v859 = vld [vmem:[%s19 + $0x398] sm:$0xff]
        %v860 = vld [vmem:[%s19 + $0x3a0] sm:$0xff]
        %v861 = vld [vmem:[%s19 + $0x3a8] sm:$0xff]
        %v862 = vld [vmem:[%s19 + $0x3b0] sm:$0xff]
        %v863 = vld [vmem:[%s19 + $0x3b8] sm:$0xff]
        %v864 = vld [vmem:[%s19 + $0x3c0] sm:$0xff]
        %v865 = vld [vmem:[%s19 + $0x3c8] sm:$0xff]
        %v866 = vld [vmem:[%s19 + $0x3d0] sm:$0xff]
        %v867 = vld [vmem:[%s19 + $0x3d8] sm:$0xff]
        %v868 = vld [vmem:[%s19 + $0x3e0] sm:$0xff]
        %v869 = vld [vmem:[%s19 + $0x3e8] sm:$0xff]
        %v870 = vld [vmem:[%s19 + $0x3f0] sm:$0xff]
        %v871 = vld [vmem:[%s19 + $0x3f8] sm:$0xff]
        %v872 = vld [vmem:[%s19 + $0x400] sm:$0xff]
        %v873 = vld [vmem:[%s19 + $0x408] sm:$0xff]
        %v874 = vld [vmem:[%s19 + $0x410] sm:$0xff]
        %v875 = vld [vmem:[%s19 + $0x418] sm:$0xff]
        %v876 = vld [vmem:[%s19 + $0x420] sm:$0xff]
        %v877 = vld [vmem:[%s19 + $0x428] sm:$0xff]
        %v878 = vld [vmem:[%s19 + $0x430] sm:$0xff]
        %v879 = vld [vmem:[%s19 + $0x438] sm:$0xff]
        %v880 = vld [vmem:[%s19 + $0x440] sm:$0xff]
        %v881 = vld [vmem:[%s19 + $0x448] sm:$0xff]
        %v882 = vld [vmem:[%s19 + $0x450] sm:$0xff]
        %v883 = vld [vmem:[%s19 + $0x458] sm:$0xff]
        %v884 = vld [vmem:[%s19 + $0x460] sm:$0xff]
        %v885 = vld [vmem:[%s19 + $0x468] sm:$0xff]
        %v886 = vld [vmem:[%s19 + $0x470] sm:$0xff]
        %v887 = vld [vmem:[%s19 + $0x478] sm:$0xff]
        %v888 = vld [vmem:[%s19 + $0x480] sm:$0xff]
        %v889 = vld [vmem:[%s19 + $0x488] sm:$0xff]
        %v890 = vld [vmem:[%s19 + $0x490] sm:$0xff]
        %v891 = vld [vmem:[%s19 + $0x498] sm:$0xff]
        %v892 = vld [vmem:[%s19 + $0x4a0] sm:$0xff]
        %v893 = vld [vmem:[%s19 + $0x4a8] sm:$0xff]
        %v894 = vld [vmem:[%s19 + $0x4b0] sm:$0xff]
        %v895 = vld [vmem:[%s19 + $0x4b8] sm:$0xff]
        %v896 = vld [vmem:[%s19 + $0x4c0] sm:$0xff]
        %v897 = vld [vmem:[%s19 + $0x4c8] sm:$0xff]
        %v898 = vld [vmem:[%s19 + $0x4d0] sm:$0xff]
        %v899 = vld [vmem:[%s19 + $0x4d8] sm:$0xff]
        %v900 = vld [vmem:[%s19 + $0x4e0] sm:$0xff]
        %v901 = vld [vmem:[%s19 + $0x4e8] sm:$0xff]
        %v902 = vld [vmem:[%s19 + $0x4f0] sm:$0xff]
        %v903 = vld [vmem:[%s19 + $0x4f8] sm:$0xff]
        %v904 = vld [vmem:[%s19 + $0x500] sm:$0xff]
        %v905 = vld [vmem:[%s19 + $0x508] sm:$0xff]
        %v906 = vld [vmem:[%s19 + $0x510] sm:$0xff]
        %v907 = vld [vmem:[%s19 + $0x518] sm:$0xff]
        %v908 = vld [vmem:[%s19 + $0x520] sm:$0xff]
        %v909 = vld [vmem:[%s19 + $0x528] sm:$0xff]
        %v910 = vld [vmem:[%s19 + $0x530] sm:$0xff]
        %v911 = vld [vmem:[%s19 + $0x538] sm:$0xff]
        %v912 = vld [vmem:[%s19 + $0x540] sm:$0xff]
        %v913 = vld [vmem:[%s19 + $0x548] sm:$0xff]
        %v914 = vld [vmem:[%s19 + $0x550] sm:$0xff]
        %v915 = vld [vmem:[%s19 + $0x558] sm:$0xff]
        %v916 = vld [vmem:[%s19 + $0x560] sm:$0xff]
        %v917 = vld [vmem:[%s19 + $0x568] sm:$0xff]
        %v918 = vld [vmem:[%s19 + $0x570] sm:$0xff]
        %v919 = vld [vmem:[%s19 + $0x578] sm:$0xff]
        %v920 = vld [vmem:[%s19 + $0x580] sm:$0xff]
        %v921 = vld [vmem:[%s19 + $0x588] sm:$0xff]
        %v922 = vld [vmem:[%s19 + $0x590] sm:$0xff]
        %v923 = vld [vmem:[%s19 + $0x598] sm:$0xff]
        %v924 = vld [vmem:[%s19 + $0x5a0] sm:$0xff]
        %v925 = vld [vmem:[%s19 + $0x5a8] sm:$0xff]
        %v926 = vld [vmem:[%s19 + $0x5b0] sm:$0xff]
        %v927 = vld [vmem:[%s19 + $0x5b8] sm:$0xff]
        %v928 = vld [vmem:[%s19 + $0x5c0] sm:$0xff]
        %v929 = vld [vmem:[%s19 + $0x5c8] sm:$0xff]
        %v930 = vld [vmem:[%s19 + $0x5d0] sm:$0xff]
        %v931 = vld [vmem:[%s19 + $0x5d8] sm:$0xff]
        %v932 = vld [vmem:[%s19 + $0x5e0] sm:$0xff]
        %v933 = vld [vmem:[%s19 + $0x5e8] sm:$0xff]
        %v934 = vld [vmem:[%s19 + $0x5f0] sm:$0xff]
        %v935 = vld [vmem:[%s19 + $0x5f8] sm:$0xff]
        %v936 = vld [vmem:[%s19 + $0x600] sm:$0xff]
        %v937 = vld [vmem:[%s19 + $0x608] sm:$0xff]
        %v938 = vld [vmem:[%s19 + $0x610] sm:$0xff]
        %v939 = vld [vmem:[%s19 + $0x618] sm:$0xff]
        %v940 = vld [vmem:[%s19 + $0x620] sm:$0xff]
        %v941 = vld [vmem:[%s19 + $0x628] sm:$0xff]
        %v942 = vld [vmem:[%s19 + $0x630] sm:$0xff]
        %v943 = vld [vmem:[%s19 + $0x638] sm:$0xff]
        %v944 = vld [vmem:[%s19 + $0x640] sm:$0xff]
        %v945 = vld [vmem:[%s19 + $0x648] sm:$0xff]
        %v946 = vld [vmem:[%s19 + $0x650] sm:$0xff]
        %v947 = vld [vmem:[%s19 + $0x658] sm:$0xff]
        %v948 = vld [vmem:[%s19 + $0x660] sm:$0xff]
        %v949 = vld [vmem:[%s19 + $0x668] sm:$0xff]
        %v950 = vld [vmem:[%s19 + $0x670] sm:$0xff]
        %v951 = vld [vmem:[%s19 + $0x678] sm:$0xff]
        %v952 = vld [vmem:[%s19 + $0x680] sm:$0xff]
        %v953 = vld [vmem:[%s19 + $0x688] sm:$0xff]
        %v954 = vld [vmem:[%s19 + $0x690] sm:$0xff]
        %v955 = vld [vmem:[%s19 + $0x698] sm:$0xff]
        %v956 = vld [vmem:[%s19 + $0x6a0] sm:$0xff]
        %v957 = vld [vmem:[%s19 + $0x6a8] sm:$0xff]
        %v958 = vld [vmem:[%s19 + $0x6b0] sm:$0xff]
        %v959 = vld [vmem:[%s19 + $0x6b8] sm:$0xff]
        %v960 = vld [vmem:[%s19 + $0x6c0] sm:$0xff]
        %v961 = vld [vmem:[%s19 + $0x6c8] sm:$0xff]
        %v962 = vld [vmem:[%s19 + $0x6d0] sm:$0xff]
        %v963 = vld [vmem:[%s19 + $0x6d8] sm:$0xff]
        %v964 = vld [vmem:[%s19 + $0x6e0] sm:$0xff]
        %v965 = vld [vmem:[%s19 + $0x6e8] sm:$0xff]
        %v966 = vld [vmem:[%s19 + $0x6f0] sm:$0xff]
        %v967 = vld [vmem:[%s19 + $0x6f8] sm:$0xff]
        %v968 = vld [vmem:[%s19 + $0x700] sm:$0xff]
        %v969 = vld [vmem:[%s19 + $0x708] sm:$0xff]
        %v970 = vld [vmem:[%s19 + $0x710] sm:$0xff]
        %v971 = vld [vmem:[%s19 + $0x718] sm:$0xff]
        %v972 = vld [vmem:[%s19 + $0x720] sm:$0xff]
        %v973 = vld [vmem:[%s19 + $0x728] sm:$0xff]
        %v974 = vld [vmem:[%s19 + $0x730] sm:$0xff]
        %v975 = vld [vmem:[%s19 + $0x738] sm:$0xff]
        %v976 = vld [vmem:[%s19 + $0x740] sm:$0xff]
        %v977 = vld [vmem:[%s19 + $0x748] sm:$0xff]
        %v978 = vld [vmem:[%s19 + $0x750] sm:$0xff]
        %v979 = vld [vmem:[%s19 + $0x758] sm:$0xff]
        %v980 = vld [vmem:[%s19 + $0x760] sm:$0xff]
        %v981 = vld [vmem:[%s19 + $0x768] sm:$0xff]
        %v982 = vld [vmem:[%s19 + $0x770] sm:$0xff]
        %v983 = vld [vmem:[%s19 + $0x778] sm:$0xff]
        %v984 = vld [vmem:[%s19 + $0x780] sm:$0xff]
        %v985 = vld [vmem:[%s19 + $0x788] sm:$0xff]
        %v986 = vld [vmem:[%s19 + $0x790] sm:$0xff]
        %v987 = vld [vmem:[%s19 + $0x798] sm:$0xff]
        %v988 = vld [vmem:[%s19 + $0x7a0] sm:$0xff]
        %v989 = vld [vmem:[%s19 + $0x7a8] sm:$0xff]
        %v990 = vld [vmem:[%s19 + $0x7b0] sm:$0xff]
        %v991 = vld [vmem:[%s19 + $0x7b8] sm:$0xff]
        %v992 = vld [vmem:[%s19 + $0x7c0] sm:$0xff]
        %v993 = vld [vmem:[%s19 + $0x7c8] sm:$0xff]
        %v994 = vld [vmem:[%s19 + $0x7d0] sm:$0xff]
        %v995 = vld [vmem:[%s19 + $0x7d8] sm:$0xff]
        %v996 = vld [vmem:[%s19 + $0x7e0] sm:$0xff]
        %v997 = vld [vmem:[%s19 + $0x7e8] sm:$0xff]
        %v998 = vld [vmem:[%s19 + $0x7f0] sm:$0xff]
        %v999 = vld [vmem:[%s19 + $0x7f8] sm:$0xff]
        %v1000 = vld [vmem:[%s20] sm:$0x1]
        %v1003 = vlaneseq
        %v1004 = vshrl.u32 %v1003, 7
        %v1005 = vsub.s32 0, %v1004
        %v1006 = vrot.slane %v742, %v1005
        %v1007 = vlaneseq
        %v1008 = vshrl.u32 %v1007, 7
        %v1009 = vsub.s32 1, %v1008
        %v1010 = vrot.slane %v742, %v1009
        %v1011 = vlaneseq
        %v1012 = vshrl.u32 %v1011, 7
        %v1013 = vsub.s32 2, %v1012
        %v1014 = vrot.slane %v742, %v1013
        %v1015 = vlaneseq
        %v1016 = vshrl.u32 %v1015, 7
        %v1017 = vsub.s32 3, %v1016
        %v1018 = vrot.slane %v742, %v1017
        %v1019 = vlaneseq
        %v1020 = vshrl.u32 %v1019, 7
        %v1021 = vsub.s32 4, %v1020
        %v1022 = vrot.slane %v742, %v1021
        %v1023 = vlaneseq
        %v1024 = vshrl.u32 %v1023, 7
        %v1025 = vsub.s32 5, %v1024
        %v1026 = vrot.slane %v742, %v1025
        %v1027 = vlaneseq
        %v1028 = vshrl.u32 %v1027, 7
        %v1029 = vsub.s32 6, %v1028
        %v1030 = vrot.slane %v742, %v1029
        %v1031 = vlaneseq
        %v1032 = vshrl.u32 %v1031, 7
        %v1033 = vsub.s32 7, %v1032
        %v1034 = vrot.slane %v742, %v1033
        %v1035 = vlaneseq
        %v1036 = vshrl.u32 %v1035, 7
        %v1037 = vsub.s32 0, %v1036
        %v1038 = vrot.slane %v743, %v1037
        %v1039 = vlaneseq
        %v1040 = vshrl.u32 %v1039, 7
        %v1041 = vsub.s32 1, %v1040
        %v1042 = vrot.slane %v743, %v1041
        %v1043 = vlaneseq
        %v1044 = vshrl.u32 %v1043, 7
        %v1045 = vsub.s32 2, %v1044
        %v1046 = vrot.slane %v743, %v1045
        %v1047 = vlaneseq
        %v1048 = vshrl.u32 %v1047, 7
        %v1049 = vsub.s32 3, %v1048
        %v1050 = vrot.slane %v743, %v1049
        %v1051 = vlaneseq
        %v1052 = vshrl.u32 %v1051, 7
        %v1053 = vsub.s32 4, %v1052
        %v1054 = vrot.slane %v743, %v1053
        %v1055 = vlaneseq
        %v1056 = vshrl.u32 %v1055, 7
        %v1057 = vsub.s32 5, %v1056
        %v1058 = vrot.slane %v743, %v1057
        %v1059 = vlaneseq
        %v1060 = vshrl.u32 %v1059, 7
        %v1061 = vsub.s32 6, %v1060
        %v1062 = vrot.slane %v743, %v1061
        %v1063 = vlaneseq
        %v1064 = vshrl.u32 %v1063, 7
        %v1065 = vsub.s32 7, %v1064
        %v1066 = vrot.slane %v743, %v1065
        %1083 = vmatprep.subr.mxu0 0.0
        %1084 = vmatpush1.msra.mxu0 %v759
        %1085 = vmatprep.subr.mxu0 0.0
        %1086 = vmatpush1.msra.mxu0 %v758
        %1087 = vmatprep.subr.mxu0 0.0
        %1088 = vmatpush1.msra.mxu0 %v757
        %1089 = vmatprep.subr.mxu0 0.0
        %1090 = vmatpush1.msra.mxu0 %v756
        %1091 = vmatprep.subr.mxu0 0.0
        %1092 = vmatpush1.msra.mxu0 %v755
        %1093 = vmatprep.subr.mxu0 0.0
        %1094 = vmatpush1.msra.mxu0 %v754
        %1095 = vmatprep.subr.mxu0 0.0
        %1096 = vmatpush1.msra.mxu0 %v753
        %1097 = vmatprep.subr.mxu0 0.0
        %1098 = vmatpush1.msra.mxu0 %v752
        %1099 = vmatprep.subr.mxu0 0.0
        %1100 = vmatpush1.msra.mxu0 %v751
        %1101 = vmatprep.subr.mxu0 0.0
        %1102 = vmatpush1.msra.mxu0 %v750
        %1103 = vmatprep.subr.mxu0 0.0
        %1104 = vmatpush1.msra.mxu0 %v749
        %1105 = vmatprep.subr.mxu0 0.0
        %1106 = vmatpush1.msra.mxu0 %v748
        %1107 = vmatprep.subr.mxu0 0.0
        %1108 = vmatpush1.msra.mxu0 %v747
        %1109 = vmatprep.subr.mxu0 0.0
        %1110 = vmatpush1.msra.mxu0 %v746
        %1111 = vmatprep.subr.mxu0 0.0
        %1112 = vmatpush1.msra.mxu0 %v745
        %1113 = vmatprep.subr.mxu0 0.0
        %1114 = vmatpush1.msra.mxu0 %v744
        %1115 = vmatprep.subr.mxu0 0.0
        %1116 = vmatpush2.msra.mxu0 %v775
        %1117 = vmatprep.subr.mxu0 0.0
        %1118 = vmatpush2.msra.mxu0 %v774
        %1119 = vmatprep.subr.mxu0 0.0
        %1120 = vmatpush2.msra.mxu0 %v773
        %1121 = vmatprep.subr.mxu0 0.0
        %1122 = vmatpush2.msra.mxu0 %v772
        %1123 = vmatprep.subr.mxu0 0.0
        %1124 = vmatpush2.msra.mxu0 %v771
        %1125 = vmatprep.subr.mxu0 0.0
        %1126 = vmatpush2.msra.mxu0 %v770
        %1127 = vmatprep.subr.mxu0 0.0
        %1128 = vmatpush2.msra.mxu0 %v769
        %1129 = vmatprep.subr.mxu0 0.0
        %1130 = vmatpush2.msra.mxu0 %v768
        %1131 = vmatprep.subr.mxu0 0.0
        %1132 = vmatpush2.msra.mxu0 %v767
        %1133 = vmatprep.subr.mxu0 0.0
        %1134 = vmatpush2.msra.mxu0 %v766
        %1135 = vmatprep.subr.mxu0 0.0
        %1136 = vmatpush2.msra.mxu0 %v765
        %1137 = vmatprep.subr.mxu0 0.0
        %1138 = vmatpush2.msra.mxu0 %v764
        %1139 = vmatprep.subr.mxu0 0.0
        %1140 = vmatpush2.msra.mxu0 %v763
        %1141 = vmatprep.subr.mxu0 0.0
        %1142 = vmatpush2.msra.mxu0 %v762
        %1143 = vmatprep.subr.mxu0 0.0
        %1144 = vmatpush2.msra.mxu0 %v761
        %1145 = vmatprep.subr.mxu0 0.0
        %1146 = vmatpush2.msra.mxu0 %v760
        %1147 = vmatprep.mubr.f32.mxu0 %v1010
        %1148 = vmatmul.mubr.f32.gmra.mxu0 %v1006
        %v1149 = vpop.f32.mrf.mxu0
        %v1150 = vadd.f32 %v1000, %v1149
        %v1151 = vpop.f32.mrf.mxu0
        %1152 = vdwg.mxu0
        %1153 = vmatprep.subr.mxu0 0.0
        %1154 = vmatpush1.msra.mxu0 %v791
        %1155 = vmatprep.subr.mxu0 0.0
        %1156 = vmatpush1.msra.mxu0 %v790
        %1157 = vmatprep.subr.mxu0 0.0
        %1158 = vmatpush1.msra.mxu0 %v789
        %1159 = vmatprep.subr.mxu0 0.0
        %1160 = vmatpush1.msra.mxu0 %v788
        %1161 = vmatprep.subr.mxu0 0.0
        %1162 = vmatpush1.msra.mxu0 %v787
        %1163 = vmatprep.subr.mxu0 0.0
        %1164 = vmatpush1.msra.mxu0 %v786
        %1165 = vmatprep.subr.mxu0 0.0
        %1166 = vmatpush1.msra.mxu0 %v785
        %1167 = vmatprep.subr.mxu0 0.0
        %1168 = vmatpush1.msra.mxu0 %v784
        %1169 = vmatprep.subr.mxu0 0.0
        %1170 = vmatpush1.msra.mxu0 %v783
        %1171 = vmatprep.subr.mxu0 0.0
        %1172 = vmatpush1.msra.mxu0 %v782
        %1173 = vmatprep.subr.mxu0 0.0
        %1174 = vmatpush1.msra.mxu0 %v781
        %1175 = vmatprep.subr.mxu0 0.0
        %1176 = vmatpush1.msra.mxu0 %v780
        %1177 = vmatprep.subr.mxu0 0.0
        %1178 = vmatpush1.msra.mxu0 %v779
        %1179 = vmatprep.subr.mxu0 0.0
        %1180 = vmatpush1.msra.mxu0 %v778
        %1181 = vmatprep.subr.mxu0 0.0
        %1182 = vmatpush1.msra.mxu0 %v777
        %1183 = vmatprep.subr.mxu0 0.0
        %1184 = vmatpush1.msra.mxu0 %v776
        %1185 = vmatprep.subr.mxu0 0.0
        %1186 = vmatpush2.msra.mxu0 %v807
        %1187 = vmatprep.subr.mxu0 0.0
        %1188 = vmatpush2.msra.mxu0 %v806
        %1189 = vmatprep.subr.mxu0 0.0
        %1190 = vmatpush2.msra.mxu0 %v805
        %1191 = vmatprep.subr.mxu0 0.0
        %1192 = vmatpush2.msra.mxu0 %v804
        %1193 = vmatprep.subr.mxu0 0.0
        %1194 = vmatpush2.msra.mxu0 %v803
        %1195 = vmatprep.subr.mxu0 0.0
        %1196 = vmatpush2.msra.mxu0 %v802
        %1197 = vmatprep.subr.mxu0 0.0
        %1198 = vmatpush2.msra.mxu0 %v801
        %1199 = vmatprep.subr.mxu0 0.0
        %1200 = vmatpush2.msra.mxu0 %v800
        %1201 = vmatprep.subr.mxu0 0.0
        %1202 = vmatpush2.msra.mxu0 %v799
        %1203 = vmatprep.subr.mxu0 0.0
        %1204 = vmatpush2.msra.mxu0 %v798
        %1205 = vmatprep.subr.mxu0 0.0
        %1206 = vmatpush2.msra.mxu0 %v797
        %1207 = vmatprep.subr.mxu0 0.0
        %1208 = vmatpush2.msra.mxu0 %v796
        %1209 = vmatprep.subr.mxu0 0.0
        %1210 = vmatpush2.msra.mxu0 %v795
        %1211 = vmatprep.subr.mxu0 0.0
        %1212 = vmatpush2.msra.mxu0 %v794
        %1213 = vmatprep.subr.mxu0 0.0
        %1214 = vmatpush2.msra.mxu0 %v793
        %1215 = vmatprep.subr.mxu0 0.0
        %1216 = vmatpush2.msra.mxu0 %v792
        %1217 = vmatprep.mubr.f32.mxu0 %v1018
        %1218 = vmatmul.mubr.f32.gmra.mxu0 %v1014
        %v1219 = vpop.f32.mrf.mxu0
        %v1220 = vadd.f32 %v1150, %v1219
        %v1221 = vpop.f32.mrf.mxu0
        %1222 = vdwg.mxu0
        %1223 = vmatprep.subr.mxu0 0.0
        %1224 = vmatpush1.msra.mxu0 %v823
        %1225 = vmatprep.subr.mxu0 0.0
        %1226 = vmatpush1.msra.mxu0 %v822
        %1227 = vmatprep.subr.mxu0 0.0
        %1228 = vmatpush1.msra.mxu0 %v821
        %1229 = vmatprep.subr.mxu0 0.0
        %1230 = vmatpush1.msra.mxu0 %v820
        %1231 = vmatprep.subr.mxu0 0.0
        %1232 = vmatpush1.msra.mxu0 %v819
        %1233 = vmatprep.subr.mxu0 0.0
        %1234 = vmatpush1.msra.mxu0 %v818
        %1235 = vmatprep.subr.mxu0 0.0
        %1236 = vmatpush1.msra.mxu0 %v817
        %1237 = vmatprep.subr.mxu0 0.0
        %1238 = vmatpush1.msra.mxu0 %v816
        %1239 = vmatprep.subr.mxu0 0.0
        %1240 = vmatpush1.msra.mxu0 %v815
        %1241 = vmatprep.subr.mxu0 0.0
        %1242 = vmatpush1.msra.mxu0 %v814
        %1243 = vmatprep.subr.mxu0 0.0
        %1244 = vmatpush1.msra.mxu0 %v813
        %1245 = vmatprep.subr.mxu0 0.0
        %1246 = vmatpush1.msra.mxu0 %v812
        %1247 = vmatprep.subr.mxu0 0.0
        %1248 = vmatpush1.msra.mxu0 %v811
        %1249 = vmatprep.subr.mxu0 0.0
        %1250 = vmatpush1.msra.mxu0 %v810
        %1251 = vmatprep.subr.mxu0 0.0
        %1252 = vmatpush1.msra.mxu0 %v809
        %1253 = vmatprep.subr.mxu0 0.0
        %1254 = vmatpush1.msra.mxu0 %v808
        %1255 = vmatprep.subr.mxu0 0.0
        %1256 = vmatpush2.msra.mxu0 %v839
        %1257 = vmatprep.subr.mxu0 0.0
        %1258 = vmatpush2.msra.mxu0 %v838
        %1259 = vmatprep.subr.mxu0 0.0
        %1260 = vmatpush2.msra.mxu0 %v837
        %1261 = vmatprep.subr.mxu0 0.0
        %1262 = vmatpush2.msra.mxu0 %v836
        %1263 = vmatprep.subr.mxu0 0.0
        %1264 = vmatpush2.msra.mxu0 %v835
        %1265 = vmatprep.subr.mxu0 0.0
        %1266 = vmatpush2.msra.mxu0 %v834
        %1267 = vmatprep.subr.mxu0 0.0
        %1268 = vmatpush2.msra.mxu0 %v833
        %1269 = vmatprep.subr.mxu0 0.0
        %1270 = vmatpush2.msra.mxu0 %v832
        %1271 = vmatprep.subr.mxu0 0.0
        %1272 = vmatpush2.msra.mxu0 %v831
        %1273 = vmatprep.subr.mxu0 0.0
        %1274 = vmatpush2.msra.mxu0 %v830
        %1275 = vmatprep.subr.mxu0 0.0
        %1276 = vmatpush2.msra.mxu0 %v829
        %1277 = vmatprep.subr.mxu0 0.0
        %1278 = vmatpush2.msra.mxu0 %v828
        %1279 = vmatprep.subr.mxu0 0.0
        %1280 = vmatpush2.msra.mxu0 %v827
        %1281 = vmatprep.subr.mxu0 0.0
        %1282 = vmatpush2.msra.mxu0 %v826
        %1283 = vmatprep.subr.mxu0 0.0
        %1284 = vmatpush2.msra.mxu0 %v825
        %1285 = vmatprep.subr.mxu0 0.0
        %1286 = vmatpush2.msra.mxu0 %v824
        %1287 = vmatprep.mubr.f32.mxu0 %v1026
        %1288 = vmatmul.mubr.f32.gmra.mxu0 %v1022
        %v1289 = vpop.f32.mrf.mxu0
        %v1290 = vadd.f32 %v1220, %v1289
        %v1291 = vpop.f32.mrf.mxu0
        %1292 = vdwg.mxu0
        %1293 = vmatprep.subr.mxu0 0.0
        %1294 = vmatpush1.msra.mxu0 %v855
        %1295 = vmatprep.subr.mxu0 0.0
        %1296 = vmatpush1.msra.mxu0 %v854
        %1297 = vmatprep.subr.mxu0 0.0
        %1298 = vmatpush1.msra.mxu0 %v853
        %1299 = vmatprep.subr.mxu0 0.0
        %1300 = vmatpush1.msra.mxu0 %v852
        %1301 = vmatprep.subr.mxu0 0.0
        %1302 = vmatpush1.msra.mxu0 %v851
        %1303 = vmatprep.subr.mxu0 0.0
        %1304 = vmatpush1.msra.mxu0 %v850
        %1305 = vmatprep.subr.mxu0 0.0
        %1306 = vmatpush1.msra.mxu0 %v849
        %1307 = vmatprep.subr.mxu0 0.0
        %1308 = vmatpush1.msra.mxu0 %v848
        %1309 = vmatprep.subr.mxu0 0.0
        %1310 = vmatpush1.msra.mxu0 %v847
        %1311 = vmatprep.subr.mxu0 0.0
        %1312 = vmatpush1.msra.mxu0 %v846
        %1313 = vmatprep.subr.mxu0 0.0
        %1314 = vmatpush1.msra.mxu0 %v845
        %1315 = vmatprep.subr.mxu0 0.0
        %1316 = vmatpush1.msra.mxu0 %v844
        %1317 = vmatprep.subr.mxu0 0.0
        %1318 = vmatpush1.msra.mxu0 %v843
        %1319 = vmatprep.subr.mxu0 0.0
        %1320 = vmatpush1.msra.mxu0 %v842
        %1321 = vmatprep.subr.mxu0 0.0
        %1322 = vmatpush1.msra.mxu0 %v841
        %1323 = vmatprep.subr.mxu0 0.0
        %1324 = vmatpush1.msra.mxu0 %v840
        %1325 = vmatprep.subr.mxu0 0.0
        %1326 = vmatpush2.msra.mxu0 %v871
        %1327 = vmatprep.subr.mxu0 0.0
        %1328 = vmatpush2.msra.mxu0 %v870
        %1329 = vmatprep.subr.mxu0 0.0
        %1330 = vmatpush2.msra.mxu0 %v869
        %1331 = vmatprep.subr.mxu0 0.0
        %1332 = vmatpush2.msra.mxu0 %v868
        %1333 = vmatprep.subr.mxu0 0.0
        %1334 = vmatpush2.msra.mxu0 %v867
        %1335 = vmatprep.subr.mxu0 0.0
        %1336 = vmatpush2.msra.mxu0 %v866
        %1337 = vmatprep.subr.mxu0 0.0
        %1338 = vmatpush2.msra.mxu0 %v865
        %1339 = vmatprep.subr.mxu0 0.0
        %1340 = vmatpush2.msra.mxu0 %v864
        %1341 = vmatprep.subr.mxu0 0.0
        %1342 = vmatpush2.msra.mxu0 %v863
        %1343 = vmatprep.subr.mxu0 0.0
        %1344 = vmatpush2.msra.mxu0 %v862
        %1345 = vmatprep.subr.mxu0 0.0
        %1346 = vmatpush2.msra.mxu0 %v861
        %1347 = vmatprep.subr.mxu0 0.0
        %1348 = vmatpush2.msra.mxu0 %v860
        %1349 = vmatprep.subr.mxu0 0.0
        %1350 = vmatpush2.msra.mxu0 %v859
        %1351 = vmatprep.subr.mxu0 0.0
        %1352 = vmatpush2.msra.mxu0 %v858
        %1353 = vmatprep.subr.mxu0 0.0
        %1354 = vmatpush2.msra.mxu0 %v857
        %1355 = vmatprep.subr.mxu0 0.0
        %1356 = vmatpush2.msra.mxu0 %v856
        %1357 = vmatprep.mubr.f32.mxu0 %v1034
        %1358 = vmatmul.mubr.f32.gmra.mxu0 %v1030
        %v1359 = vpop.f32.mrf.mxu0
        %v1360 = vadd.f32 %v1290, %v1359
        %v1361 = vpop.f32.mrf.mxu0
        %1362 = vdwg.mxu0
        %1363 = vmatprep.subr.mxu0 0.0
        %1364 = vmatpush1.msra.mxu0 %v887
        %1365 = vmatprep.subr.mxu0 0.0
        %1366 = vmatpush1.msra.mxu0 %v886
        %1367 = vmatprep.subr.mxu0 0.0
        %1368 = vmatpush1.msra.mxu0 %v885
        %1369 = vmatprep.subr.mxu0 0.0
        %1370 = vmatpush1.msra.mxu0 %v884
        %1371 = vmatprep.subr.mxu0 0.0
        %1372 = vmatpush1.msra.mxu0 %v883
        %1373 = vmatprep.subr.mxu0 0.0
        %1374 = vmatpush1.msra.mxu0 %v882
        %1375 = vmatprep.subr.mxu0 0.0
        %1376 = vmatpush1.msra.mxu0 %v881
        %1377 = vmatprep.subr.mxu0 0.0
        %1378 = vmatpush1.msra.mxu0 %v880
        %1379 = vmatprep.subr.mxu0 0.0
        %1380 = vmatpush1.msra.mxu0 %v879
        %1381 = vmatprep.subr.mxu0 0.0
        %1382 = vmatpush1.msra.mxu0 %v878
        %1383 = vmatprep.subr.mxu0 0.0
        %1384 = vmatpush1.msra.mxu0 %v877
        %1385 = vmatprep.subr.mxu0 0.0
        %1386 = vmatpush1.msra.mxu0 %v876
        %1387 = vmatprep.subr.mxu0 0.0
        %1388 = vmatpush1.msra.mxu0 %v875
        %1389 = vmatprep.subr.mxu0 0.0
        %1390 = vmatpush1.msra.mxu0 %v874
        %1391 = vmatprep.subr.mxu0 0.0
        %1392 = vmatpush1.msra.mxu0 %v873
        %1393 = vmatprep.subr.mxu0 0.0
        %1394 = vmatpush1.msra.mxu0 %v872
        %1395 = vmatprep.subr.mxu0 0.0
        %1396 = vmatpush2.msra.mxu0 %v903
        %1397 = vmatprep.subr.mxu0 0.0
        %1398 = vmatpush2.msra.mxu0 %v902
        %1399 = vmatprep.subr.mxu0 0.0
        %1400 = vmatpush2.msra.mxu0 %v901
        %1401 = vmatprep.subr.mxu0 0.0
        %1402 = vmatpush2.msra.mxu0 %v900
        %1403 = vmatprep.subr.mxu0 0.0
        %1404 = vmatpush2.msra.mxu0 %v899
        %1405 = vmatprep.subr.mxu0 0.0
        %1406 = vmatpush2.msra.mxu0 %v898
        %1407 = vmatprep.subr.mxu0 0.0
        %1408 = vmatpush2.msra.mxu0 %v897
        %1409 = vmatprep.subr.mxu0 0.0
        %1410 = vmatpush2.msra.mxu0 %v896
        %1411 = vmatprep.subr.mxu0 0.0
        %1412 = vmatpush2.msra.mxu0 %v895
        %1413 = vmatprep.subr.mxu0 0.0
        %1414 = vmatpush2.msra.mxu0 %v894
        %1415 = vmatprep.subr.mxu0 0.0
        %1416 = vmatpush2.msra.mxu0 %v893
        %1417 = vmatprep.subr.mxu0 0.0
        %1418 = vmatpush2.msra.mxu0 %v892
        %1419 = vmatprep.subr.mxu0 0.0
        %1420 = vmatpush2.msra.mxu0 %v891
        %1421 = vmatprep.subr.mxu0 0.0
        %1422 = vmatpush2.msra.mxu0 %v890
        %1423 = vmatprep.subr.mxu0 0.0
        %1424 = vmatpush2.msra.mxu0 %v889
        %1425 = vmatprep.subr.mxu0 0.0
        %1426 = vmatpush2.msra.mxu0 %v888
        %1427 = vmatprep.mubr.f32.mxu0 %v1042
        %1428 = vmatmul.mubr.f32.gmra.mxu0 %v1038
        %v1429 = vpop.f32.mrf.mxu0
        %v1430 = vadd.f32 %v1360, %v1429
        %v1431 = vpop.f32.mrf.mxu0
        %1432 = vdwg.mxu0
        %1433 = vmatprep.subr.mxu0 0.0
        %1434 = vmatpush1.msra.mxu0 %v919
        %1435 = vmatprep.subr.mxu0 0.0
        %1436 = vmatpush1.msra.mxu0 %v918
        %1437 = vmatprep.subr.mxu0 0.0
        %1438 = vmatpush1.msra.mxu0 %v917
        %1439 = vmatprep.subr.mxu0 0.0
        %1440 = vmatpush1.msra.mxu0 %v916
        %1441 = vmatprep.subr.mxu0 0.0
        %1442 = vmatpush1.msra.mxu0 %v915
        %1443 = vmatprep.subr.mxu0 0.0
        %1444 = vmatpush1.msra.mxu0 %v914
        %1445 = vmatprep.subr.mxu0 0.0
        %1446 = vmatpush1.msra.mxu0 %v913
        %1447 = vmatprep.subr.mxu0 0.0
        %1448 = vmatpush1.msra.mxu0 %v912
        %1449 = vmatprep.subr.mxu0 0.0
        %1450 = vmatpush1.msra.mxu0 %v911
        %1451 = vmatprep.subr.mxu0 0.0
        %1452 = vmatpush1.msra.mxu0 %v910
        %1453 = vmatprep.subr.mxu0 0.0
        %1454 = vmatpush1.msra.mxu0 %v909
        %1455 = vmatprep.subr.mxu0 0.0
        %1456 = vmatpush1.msra.mxu0 %v908
        %1457 = vmatprep.subr.mxu0 0.0
        %1458 = vmatpush1.msra.mxu0 %v907
        %1459 = vmatprep.subr.mxu0 0.0
        %1460 = vmatpush1.msra.mxu0 %v906
        %1461 = vmatprep.subr.mxu0 0.0
        %1462 = vmatpush1.msra.mxu0 %v905
        %1463 = vmatprep.subr.mxu0 0.0
        %1464 = vmatpush1.msra.mxu0 %v904
        %1465 = vmatprep.subr.mxu0 0.0
        %1466 = vmatpush2.msra.mxu0 %v935
        %1467 = vmatprep.subr.mxu0 0.0
        %1468 = vmatpush2.msra.mxu0 %v934
        %1469 = vmatprep.subr.mxu0 0.0
        %1470 = vmatpush2.msra.mxu0 %v933
        %1471 = vmatprep.subr.mxu0 0.0
        %1472 = vmatpush2.msra.mxu0 %v932
        %1473 = vmatprep.subr.mxu0 0.0
        %1474 = vmatpush2.msra.mxu0 %v931
        %1475 = vmatprep.subr.mxu0 0.0
        %1476 = vmatpush2.msra.mxu0 %v930
        %1477 = vmatprep.subr.mxu0 0.0
        %1478 = vmatpush2.msra.mxu0 %v929
        %1479 = vmatprep.subr.mxu0 0.0
        %1480 = vmatpush2.msra.mxu0 %v928
        %1481 = vmatprep.subr.mxu0 0.0
        %1482 = vmatpush2.msra.mxu0 %v927
        %1483 = vmatprep.subr.mxu0 0.0
        %1484 = vmatpush2.msra.mxu0 %v926
        %1485 = vmatprep.subr.mxu0 0.0
        %1486 = vmatpush2.msra.mxu0 %v925
        %1487 = vmatprep.subr.mxu0 0.0
        %1488 = vmatpush2.msra.mxu0 %v924
        %1489 = vmatprep.subr.mxu0 0.0
        %1490 = vmatpush2.msra.mxu0 %v923
        %1491 = vmatprep.subr.mxu0 0.0
        %1492 = vmatpush2.msra.mxu0 %v922
        %1493 = vmatprep.subr.mxu0 0.0
        %1494 = vmatpush2.msra.mxu0 %v921
        %1495 = vmatprep.subr.mxu0 0.0
        %1496 = vmatpush2.msra.mxu0 %v920
        %1497 = vmatprep.mubr.f32.mxu0 %v1050
        %1498 = vmatmul.mubr.f32.gmra.mxu0 %v1046
        %v1499 = vpop.f32.mrf.mxu0
        %v1500 = vadd.f32 %v1430, %v1499
        %v1501 = vpop.f32.mrf.mxu0
        %1502 = vdwg.mxu0
        %1503 = vmatprep.subr.mxu0 0.0
        %1504 = vmatpush1.msra.mxu0 %v951
        %1505 = vmatprep.subr.mxu0 0.0
        %1506 = vmatpush1.msra.mxu0 %v950
        %1507 = vmatprep.subr.mxu0 0.0
        %1508 = vmatpush1.msra.mxu0 %v949
        %1509 = vmatprep.subr.mxu0 0.0
        %1510 = vmatpush1.msra.mxu0 %v948
        %1511 = vmatprep.subr.mxu0 0.0
        %1512 = vmatpush1.msra.mxu0 %v947
        %1513 = vmatprep.subr.mxu0 0.0
        %1514 = vmatpush1.msra.mxu0 %v946
        %1515 = vmatprep.subr.mxu0 0.0
        %1516 = vmatpush1.msra.mxu0 %v945
        %1517 = vmatprep.subr.mxu0 0.0
        %1518 = vmatpush1.msra.mxu0 %v944
        %1519 = vmatprep.subr.mxu0 0.0
        %1520 = vmatpush1.msra.mxu0 %v943
        %1521 = vmatprep.subr.mxu0 0.0
        %1522 = vmatpush1.msra.mxu0 %v942
        %1523 = vmatprep.subr.mxu0 0.0
        %1524 = vmatpush1.msra.mxu0 %v941
        %1525 = vmatprep.subr.mxu0 0.0
        %1526 = vmatpush1.msra.mxu0 %v940
        %1527 = vmatprep.subr.mxu0 0.0
        %1528 = vmatpush1.msra.mxu0 %v939
        %1529 = vmatprep.subr.mxu0 0.0
        %1530 = vmatpush1.msra.mxu0 %v938
        %1531 = vmatprep.subr.mxu0 0.0
        %1532 = vmatpush1.msra.mxu0 %v937
        %1533 = vmatprep.subr.mxu0 0.0
        %1534 = vmatpush1.msra.mxu0 %v936
        %1535 = vmatprep.subr.mxu0 0.0
        %1536 = vmatpush2.msra.mxu0 %v967
        %1537 = vmatprep.subr.mxu0 0.0
        %1538 = vmatpush2.msra.mxu0 %v966
        %1539 = vmatprep.subr.mxu0 0.0
        %1540 = vmatpush2.msra.mxu0 %v965
        %1541 = vmatprep.subr.mxu0 0.0
        %1542 = vmatpush2.msra.mxu0 %v964
        %1543 = vmatprep.subr.mxu0 0.0
        %1544 = vmatpush2.msra.mxu0 %v963
        %1545 = vmatprep.subr.mxu0 0.0
        %1546 = vmatpush2.msra.mxu0 %v962
        %1547 = vmatprep.subr.mxu0 0.0
        %1548 = vmatpush2.msra.mxu0 %v961
        %1549 = vmatprep.subr.mxu0 0.0
        %1550 = vmatpush2.msra.mxu0 %v960
        %1551 = vmatprep.subr.mxu0 0.0
        %1552 = vmatpush2.msra.mxu0 %v959
        %1553 = vmatprep.subr.mxu0 0.0
        %1554 = vmatpush2.msra.mxu0 %v958
        %1555 = vmatprep.subr.mxu0 0.0
        %1556 = vmatpush2.msra.mxu0 %v957
        %1557 = vmatprep.subr.mxu0 0.0
        %1558 = vmatpush2.msra.mxu0 %v956
        %1559 = vmatprep.subr.mxu0 0.0
        %1560 = vmatpush2.msra.mxu0 %v955
        %1561 = vmatprep.subr.mxu0 0.0
        %1562 = vmatpush2.msra.mxu0 %v954
        %1563 = vmatprep.subr.mxu0 0.0
        %1564 = vmatpush2.msra.mxu0 %v953
        %1565 = vmatprep.subr.mxu0 0.0
        %1566 = vmatpush2.msra.mxu0 %v952
        %1567 = vmatprep.mubr.f32.mxu0 %v1058
        %1568 = vmatmul.mubr.f32.gmra.mxu0 %v1054
        %v1569 = vpop.f32.mrf.mxu0
        %v1570 = vadd.f32 %v1500, %v1569
        %v1571 = vpop.f32.mrf.mxu0
        %1572 = vdwg.mxu0
        %1573 = vmatprep.subr.mxu0 0.0
        %1574 = vmatpush1.msra.mxu0 %v983
        %1575 = vmatprep.subr.mxu0 0.0
        %1576 = vmatpush1.msra.mxu0 %v982
        %1577 = vmatprep.subr.mxu0 0.0
        %1578 = vmatpush1.msra.mxu0 %v981
        %1579 = vmatprep.subr.mxu0 0.0
        %1580 = vmatpush1.msra.mxu0 %v980
        %1581 = vmatprep.subr.mxu0 0.0
        %1582 = vmatpush1.msra.mxu0 %v979
        %1583 = vmatprep.subr.mxu0 0.0
        %1584 = vmatpush1.msra.mxu0 %v978
        %1585 = vmatprep.subr.mxu0 0.0
        %1586 = vmatpush1.msra.mxu0 %v977
        %1587 = vmatprep.subr.mxu0 0.0
        %1588 = vmatpush1.msra.mxu0 %v976
        %1589 = vmatprep.subr.mxu0 0.0
        %1590 = vmatpush1.msra.mxu0 %v975
        %1591 = vmatprep.subr.mxu0 0.0
        %1592 = vmatpush1.msra.mxu0 %v974
        %1593 = vmatprep.subr.mxu0 0.0
        %1594 = vmatpush1.msra.mxu0 %v973
        %1595 = vmatprep.subr.mxu0 0.0
        %1596 = vmatpush1.msra.mxu0 %v972
        %1597 = vmatprep.subr.mxu0 0.0
        %1598 = vmatpush1.msra.mxu0 %v971
        %1599 = vmatprep.subr.mxu0 0.0
        %1600 = vmatpush1.msra.mxu0 %v970
        %1601 = vmatprep.subr.mxu0 0.0
        %1602 = vmatpush1.msra.mxu0 %v969
        %1603 = vmatprep.subr.mxu0 0.0
        %1604 = vmatpush1.msra.mxu0 %v968
        %1605 = vmatprep.subr.mxu0 0.0
        %1606 = vmatpush2.msra.mxu0 %v999
        %1607 = vmatprep.subr.mxu0 0.0
        %1608 = vmatpush2.msra.mxu0 %v998
        %1609 = vmatprep.subr.mxu0 0.0
        %1610 = vmatpush2.msra.mxu0 %v997
        %1611 = vmatprep.subr.mxu0 0.0
        %1612 = vmatpush2.msra.mxu0 %v996
        %1613 = vmatprep.subr.mxu0 0.0
        %1614 = vmatpush2.msra.mxu0 %v995
        %1615 = vmatprep.subr.mxu0 0.0
        %1616 = vmatpush2.msra.mxu0 %v994
        %1617 = vmatprep.subr.mxu0 0.0
        %1618 = vmatpush2.msra.mxu0 %v993
        %1619 = vmatprep.subr.mxu0 0.0
        %1620 = vmatpush2.msra.mxu0 %v992
        %1621 = vmatprep.subr.mxu0 0.0
        %1622 = vmatpush2.msra.mxu0 %v991
        %1623 = vmatprep.subr.mxu0 0.0
        %1624 = vmatpush2.msra.mxu0 %v990
        %1625 = vmatprep.subr.mxu0 0.0
        %1626 = vmatpush2.msra.mxu0 %v989
        %1627 = vmatprep.subr.mxu0 0.0
        %1628 = vmatpush2.msra.mxu0 %v988
        %1629 = vmatprep.subr.mxu0 0.0
        %1630 = vmatpush2.msra.mxu0 %v987
        %1631 = vmatprep.subr.mxu0 0.0
        %1632 = vmatpush2.msra.mxu0 %v986
        %1633 = vmatprep.subr.mxu0 0.0
        %1634 = vmatpush2.msra.mxu0 %v985
        %1635 = vmatprep.subr.mxu0 0.0
        %1636 = vmatpush2.msra.mxu0 %v984
        %1637 = vmatprep.mubr.f32.mxu0 %v1066
        %1638 = vmatmul.mubr.f32.gmra.mxu0 %v1062
        %v1639 = vpop.f32.mrf.mxu0
        %v1640 = vadd.f32 %v1570, %v1639
        %v1641 = vpop.f32.mrf.mxu0
        %1642 = vdwg.mxu0
        %vm1643 = vcmp.gt.f32.partialorder %v1640, 0.0
        %v1644 = vmul.f32 %v1640, 0.01
        %v1645 = vsel %vm1643, %v1640, %v1644
        %v1646 = vld [vmem:[%s728] sm:$0x1]
        %v1647 = vld [vmem:[%s16] sm:$0xff]
        %v1648 = vld [vmem:[%s16 + $0x8] sm:$0xff]
        %v1649 = vld [vmem:[%s16 + $0x10] sm:$0xff]
        %v1650 = vld [vmem:[%s16 + $0x18] sm:$0xff]
        %v1651 = vld [vmem:[%s17] sm:$0xff]
        %v1652 = vld [vmem:[%s17 + $0x8] sm:$0xff]
        %vm1653 = vcmask 130048
        %v1655 = vsel %vm1653, %v1645, 0
        %1657 = vmatprep.subr.mxu0 0.0
        %1658 = vmatpush1.msra.mxu0 0.0
        %1659 = vmatprep.subr.mxu0 0.0
        %1660 = vmatpush1.msra.mxu0 0.0
        %1661 = vmatprep.subr.mxu0 0.0
        %1662 = vmatpush1.msra.mxu0 0.0
        %1663 = vmatprep.subr.mxu0 0.0
        %1664 = vmatpush1.msra.mxu0 0.0
        %1665 = vmatprep.subr.mxu0 0.0
        %1666 = vmatpush1.msra.mxu0 0.0
        %1667 = vmatprep.subr.mxu0 0.0
        %1668 = vmatpush1.msra.mxu0 0.0
        %1669 = vmatprep.subr.mxu0 0.0
        %1670 = vmatpush1.msra.mxu0 0.0
        %1671 = vmatprep.subr.mxu0 0.0
        %1672 = vmatpush1.msra.mxu0 0.0
        %1673 = vmatprep.subr.mxu0 0.0
        %1674 = vmatpush1.msra.mxu0 0.0
        %1675 = vmatprep.subr.mxu0 0.0
        %1676 = vmatpush1.msra.mxu0 0.0
        %1677 = vmatprep.subr.mxu0 0.0
        %1678 = vmatpush1.msra.mxu0 0.0
        %1679 = vmatprep.subr.mxu0 0.0
        %1680 = vmatpush1.msra.mxu0 0.0
        %1681 = vmatprep.subr.mxu0 0.0
        %1682 = vmatpush1.msra.mxu0 0.0
        %1683 = vmatprep.subr.mxu0 0.0
        %1684 = vmatpush1.msra.mxu0 0.0
        %1685 = vmatprep.subr.mxu0 0.0
        %1686 = vmatpush1.msra.mxu0 %v1652
        %1687 = vmatprep.subr.mxu0 0.0
        %1688 = vmatpush1.msra.mxu0 %v1651
        %1689 = vmatprep.subr.mxu0 0.0
        %1690 = vmatpush2.msra.mxu0 0.0
        %1691 = vmatprep.subr.mxu0 0.0
        %1692 = vmatpush2.msra.mxu0 0.0
        %1693 = vmatprep.subr.mxu0 0.0
        %1694 = vmatpush2.msra.mxu0 0.0
        %1695 = vmatprep.subr.mxu0 0.0
        %1696 = vmatpush2.msra.mxu0 0.0
        %1697 = vmatprep.subr.mxu0 0.0
        %1698 = vmatpush2.msra.mxu0 0.0
        %1699 = vmatprep.subr.mxu0 0.0
        %1700 = vmatpush2.msra.mxu0 0.0
        %1701 = vmatprep.subr.mxu0 0.0
        %1702 = vmatpush2.msra.mxu0 0.0
        %1703 = vmatprep.subr.mxu0 0.0
        %1704 = vmatpush2.msra.mxu0 0.0
        %1705 = vmatprep.subr.mxu0 0.0
        %1706 = vmatpush2.msra.mxu0 0.0
        %1707 = vmatprep.subr.mxu0 0.0
        %1708 = vmatpush2.msra.mxu0 0.0
        %1709 = vmatprep.subr.mxu0 0.0
        %1710 = vmatpush2.msra.mxu0 0.0
        %1711 = vmatprep.subr.mxu0 0.0
        %1712 = vmatpush2.msra.mxu0 0.0
        %1713 = vmatprep.subr.mxu0 0.0
        %1714 = vmatpush2.msra.mxu0 0.0
        %1715 = vmatprep.subr.mxu0 0.0
        %1716 = vmatpush2.msra.mxu0 0.0
        %1717 = vmatprep.subr.mxu0 0.0
        %1718 = vmatpush2.msra.mxu0 0.0
        %1719 = vmatprep.subr.mxu0 0.0
        %1720 = vmatpush2.msra.mxu0 0.0
        %1721 = vmatprep.mubr.f32.mxu0 0.0
        %1722 = vmatmul.mubr.f32.gmra.mxu0 %v1655
        %v1723 = vpop.f32.mrf.mxu0
        %v1724 = vadd.f32 0.0, %v1723
        %v1725 = vpop.f32.mrf.mxu0
        %1726 = vdwg.mxu0
        %vm1727 = vcmask 261120
        %v1729 = vsel %vm1727, %v1646, 0
        %1731 = vmatprep.subr.mxu0 0.0
        %1732 = vmatpush1.msra.mxu0 0.0
        %1733 = vmatprep.subr.mxu0 0.0
        %1734 = vmatpush1.msra.mxu0 0.0
        %1735 = vmatprep.subr.mxu0 0.0
        %1736 = vmatpush1.msra.mxu0 0.0
        %1737 = vmatprep.subr.mxu0 0.0
        %1738 = vmatpush1.msra.mxu0 0.0
        %1739 = vmatprep.subr.mxu0 0.0
        %1740 = vmatpush1.msra.mxu0 0.0
        %1741 = vmatprep.subr.mxu0 0.0
        %1742 = vmatpush1.msra.mxu0 0.0
        %1743 = vmatprep.subr.mxu0 0.0
        %1744 = vmatpush1.msra.mxu0 0.0
        %1745 = vmatprep.subr.mxu0 0.0
        %1746 = vmatpush1.msra.mxu0 0.0
        %1747 = vmatprep.subr.mxu0 0.0
        %1748 = vmatpush1.msra.mxu0 0.0
        %1749 = vmatprep.subr.mxu0 0.0
        %1750 = vmatpush1.msra.mxu0 0.0
        %1751 = vmatprep.subr.mxu0 0.0
        %1752 = vmatpush1.msra.mxu0 0.0
        %1753 = vmatprep.subr.mxu0 0.0
        %1754 = vmatpush1.msra.mxu0 0.0
        %1755 = vmatprep.subr.mxu0 0.0
        %1756 = vmatpush1.msra.mxu0 %v1650
        %1757 = vmatprep.subr.mxu0 0.0
        %1758 = vmatpush1.msra.mxu0 %v1649
        %1759 = vmatprep.subr.mxu0 0.0
        %1760 = vmatpush1.msra.mxu0 %v1648
        %1761 = vmatprep.subr.mxu0 0.0
        %1762 = vmatpush1.msra.mxu0 %v1647
        %1763 = vmatprep.subr.mxu0 0.0
        %1764 = vmatpush2.msra.mxu0 0.0
        %1765 = vmatprep.subr.mxu0 0.0
        %1766 = vmatpush2.msra.mxu0 0.0
        %1767 = vmatprep.subr.mxu0 0.0
        %1768 = vmatpush2.msra.mxu0 0.0
        %1769 = vmatprep.subr.mxu0 0.0
        %1770 = vmatpush2.msra.mxu0 0.0
        %1771 = vmatprep.subr.mxu0 0.0
        %1772 = vmatpush2.msra.mxu0 0.0
        %1773 = vmatprep.subr.mxu0 0.0
        %1774 = vmatpush2.msra.mxu0 0.0
        %1775 = vmatprep.subr.mxu0 0.0
        %1776 = vmatpush2.msra.mxu0 0.0
        %1777 = vmatprep.subr.mxu0 0.0
        %1778 = vmatpush2.msra.mxu0 0.0
        %1779 = vmatprep.subr.mxu0 0.0
        %1780 = vmatpush2.msra.mxu0 0.0
        %1781 = vmatprep.subr.mxu0 0.0
        %1782 = vmatpush2.msra.mxu0 0.0
        %1783 = vmatprep.subr.mxu0 0.0
        %1784 = vmatpush2.msra.mxu0 0.0
        %1785 = vmatprep.subr.mxu0 0.0
        %1786 = vmatpush2.msra.mxu0 0.0
        %1787 = vmatprep.subr.mxu0 0.0
        %1788 = vmatpush2.msra.mxu0 0.0
        %1789 = vmatprep.subr.mxu0 0.0
        %1790 = vmatpush2.msra.mxu0 0.0
        %1791 = vmatprep.subr.mxu0 0.0
        %1792 = vmatpush2.msra.mxu0 0.0
        %1793 = vmatprep.subr.mxu0 0.0
        %1794 = vmatpush2.msra.mxu0 0.0
        %1795 = vmatprep.mubr.f32.mxu0 0.0
        %1796 = vmatmul.mubr.f32.gmra.mxu0 %v1729
        %v1797 = vpop.f32.mrf.mxu0
        %v1798 = vadd.f32 %v1724, %v1797
        %v1799 = vpop.f32.mrf.mxu0
        %1800 = vdwg.mxu0
        %v1801 = vld [vmem:[%s18] sm:$0x1]
        %v1802 = vadd.f32 %v1798, %v1801
        %vm1803 = vcmask 122880
        %1804 = vst.msk [vmem:[%s712] sm:$0x1] %vm1803, %v1802
        %v1805 = vld [vmem:[%s10] sm:$0xff]
        %v1806 = vld [vmem:[%s10 + $0x8] sm:$0xff]
        %v1807 = vld [vmem:[%s12] sm:$0x1]
        %v1809 = vsel %vm1653, %v1802, 0
        %1811 = vmatprep.subr.mxu0 0.0
        %1812 = vmatpush1.msra.mxu0 0.0
        %1813 = vmatprep.subr.mxu0 0.0
        %1814 = vmatpush1.msra.mxu0 0.0
        %1815 = vmatprep.subr.mxu0 0.0
        %1816 = vmatpush1.msra.mxu0 0.0
        %1817 = vmatprep.subr.mxu0 0.0
        %1818 = vmatpush1.msra.mxu0 0.0
        %1819 = vmatprep.subr.mxu0 0.0
        %1820 = vmatpush1.msra.mxu0 0.0
        %1821 = vmatprep.subr.mxu0 0.0
        %1822 = vmatpush1.msra.mxu0 0.0
        %1823 = vmatprep.subr.mxu0 0.0
        %1824 = vmatpush1.msra.mxu0 0.0
        %1825 = vmatprep.subr.mxu0 0.0
        %1826 = vmatpush1.msra.mxu0 0.0
        %1827 = vmatprep.subr.mxu0 0.0
        %1828 = vmatpush1.msra.mxu0 0.0
        %1829 = vmatprep.subr.mxu0 0.0
        %1830 = vmatpush1.msra.mxu0 0.0
        %1831 = vmatprep.subr.mxu0 0.0
        %1832 = vmatpush1.msra.mxu0 0.0
        %1833 = vmatprep.subr.mxu0 0.0
        %1834 = vmatpush1.msra.mxu0 0.0
        %1835 = vmatprep.subr.mxu0 0.0
        %1836 = vmatpush1.msra.mxu0 0.0
        %1837 = vmatprep.subr.mxu0 0.0
        %1838 = vmatpush1.msra.mxu0 0.0
        %1839 = vmatprep.subr.mxu0 0.0
        %1840 = vmatpush1.msra.mxu0 %v1806
        %1841 = vmatprep.subr.mxu0 0.0
        %1842 = vmatpush1.msra.mxu0 %v1805
        %1843 = vmatprep.subr.mxu0 0.0
        %1844 = vmatpush2.msra.mxu0 0.0
        %1845 = vmatprep.subr.mxu0 0.0
        %1846 = vmatpush2.msra.mxu0 0.0
        %1847 = vmatprep.subr.mxu0 0.0
        %1848 = vmatpush2.msra.mxu0 0.0
        %1849 = vmatprep.subr.mxu0 0.0
        %1850 = vmatpush2.msra.mxu0 0.0
        %1851 = vmatprep.subr.mxu0 0.0
        %1852 = vmatpush2.msra.mxu0 0.0
        %1853 = vmatprep.subr.mxu0 0.0
        %1854 = vmatpush2.msra.mxu0 0.0
        %1855 = vmatprep.subr.mxu0 0.0
        %1856 = vmatpush2.msra.mxu0 0.0
        %1857 = vmatprep.subr.mxu0 0.0
        %1858 = vmatpush2.msra.mxu0 0.0
        %1859 = vmatprep.subr.mxu0 0.0
        %1860 = vmatpush2.msra.mxu0 0.0
        %1861 = vmatprep.subr.mxu0 0.0
        %1862 = vmatpush2.msra.mxu0 0.0
        %1863 = vmatprep.subr.mxu0 0.0
        %1864 = vmatpush2.msra.mxu0 0.0
        %1865 = vmatprep.subr.mxu0 0.0
        %1866 = vmatpush2.msra.mxu0 0.0
        %1867 = vmatprep.subr.mxu0 0.0
        %1868 = vmatpush2.msra.mxu0 0.0
        %1869 = vmatprep.subr.mxu0 0.0
        %1870 = vmatpush2.msra.mxu0 0.0
        %1871 = vmatprep.subr.mxu0 0.0
        %1872 = vmatpush2.msra.mxu0 0.0
        %1873 = vmatprep.subr.mxu0 0.0
        %1874 = vmatpush2.msra.mxu0 0.0
        %1875 = vmatprep.mubr.f32.mxu0 0.0
        %1876 = vmatmul.mubr.f32.gmra.mxu0 %v1809
        %v1877 = vpop.f32.mrf.mxu0
        %v1878 = vadd.f32 %v1807, %v1877
        %v1879 = vpop.f32.mrf.mxu0
        %1880 = vdwg.mxu0
        %v1881 = vld [vmem:[%s11] sm:$0xff]
        %v1882 = vld [vmem:[%s11 + $0x8] sm:$0xff]
        %v1883 = vld [vmem:[%s13] sm:$0x1]
        %1884 = vmatprep.subr.mxu0 0.0
        %1885 = vmatpush1.msra.mxu0 0.0
        %1886 = vmatprep.subr.mxu0 0.0
        %1887 = vmatpush1.msra.mxu0 0.0
        %1888 = vmatprep.subr.mxu0 0.0
        %1889 = vmatpush1.msra.mxu0 0.0
        %1890 = vmatprep.subr.mxu0 0.0
        %1891 = vmatpush1.msra.mxu0 0.0
        %1892 = vmatprep.subr.mxu0 0.0
        %1893 = vmatpush1.msra.mxu0 0.0
        %1894 = vmatprep.subr.mxu0 0.0
        %1895 = vmatpush1.msra.mxu0 0.0
        %1896 = vmatprep.subr.mxu0 0.0
        %1897 = vmatpush1.msra.mxu0 0.0
        %1898 = vmatprep.subr.mxu0 0.0
        %1899 = vmatpush1.msra.mxu0 0.0
        %1900 = vmatprep.subr.mxu0 0.0
        %1901 = vmatpush1.msra.mxu0 0.0
        %1902 = vmatprep.subr.mxu0 0.0
        %1903 = vmatpush1.msra.mxu0 0.0
        %1904 = vmatprep.subr.mxu0 0.0
        %1905 = vmatpush1.msra.mxu0 0.0
        %1906 = vmatprep.subr.mxu0 0.0
        %1907 = vmatpush1.msra.mxu0 0.0
        %1908 = vmatprep.subr.mxu0 0.0
        %1909 = vmatpush1.msra.mxu0 0.0
        %1910 = vmatprep.subr.mxu0 0.0
        %1911 = vmatpush1.msra.mxu0 0.0
        %1912 = vmatprep.subr.mxu0 0.0
        %1913 = vmatpush1.msra.mxu0 %v1882
        %1914 = vmatprep.subr.mxu0 0.0
        %1915 = vmatpush1.msra.mxu0 %v1881
        %1916 = vmatprep.subr.mxu0 0.0
        %1917 = vmatpush2.msra.mxu0 0.0
        %1918 = vmatprep.subr.mxu0 0.0
        %1919 = vmatpush2.msra.mxu0 0.0
        %1920 = vmatprep.subr.mxu0 0.0
        %1921 = vmatpush2.msra.mxu0 0.0
        %1922 = vmatprep.subr.mxu0 0.0
        %1923 = vmatpush2.msra.mxu0 0.0
        %1924 = vmatprep.subr.mxu0 0.0
        %1925 = vmatpush2.msra.mxu0 0.0
        %1926 = vmatprep.subr.mxu0 0.0
        %1927 = vmatpush2.msra.mxu0 0.0
        %1928 = vmatprep.subr.mxu0 0.0
        %1929 = vmatpush2.msra.mxu0 0.0
        %1930 = vmatprep.subr.mxu0 0.0
        %1931 = vmatpush2.msra.mxu0 0.0
        %1932 = vmatprep.subr.mxu0 0.0
        %1933 = vmatpush2.msra.mxu0 0.0
        %1934 = vmatprep.subr.mxu0 0.0
        %1935 = vmatpush2.msra.mxu0 0.0
        %1936 = vmatprep.subr.mxu0 0.0
        %1937 = vmatpush2.msra.mxu0 0.0
        %1938 = vmatprep.subr.mxu0 0.0
        %1939 = vmatpush2.msra.mxu0 0.0
        %1940 = vmatprep.subr.mxu0 0.0
        %1941 = vmatpush2.msra.mxu0 0.0
        %1942 = vmatprep.subr.mxu0 0.0
        %1943 = vmatpush2.msra.mxu0 0.0
        %1944 = vmatprep.subr.mxu0 0.0
        %1945 = vmatpush2.msra.mxu0 0.0
        %1946 = vmatprep.subr.mxu0 0.0
        %1947 = vmatpush2.msra.mxu0 0.0
        %1948 = vmatprep.mubr.f32.mxu0 0.0
        %1949 = vmatmul.mubr.f32.gmra.mxu0 %v1809
        %v1950 = vpop.f32.mrf.mxu0
        %v1951 = vadd.f32 %v1883, %v1950
        %v1952 = vpop.f32.mrf.mxu0
        %1953 = vdwg.mxu0
        %v1954 = vld [vmem:[%s5] sm:$0xff]
        %v1955 = vld [vmem:[%s5 + $0x8] sm:$0xff]
        %v1956 = vld [vmem:[%s5 + $0x10] sm:$0xff]
        %v1957 = vld [vmem:[%s5 + $0x18] sm:$0xff]
        %1959 = vset.pattern.permute.xlu0 0
        %1960 = vperm.xlu0 %1959, %v1954
        %v1961 = vpop.permute.xlu0 %1960
        %1964 = vset.pattern.permute.xlu0 0
        %1965 = vperm.xlu0 %1964, %v1955
        %v1966 = vpop.permute.xlu0 %1965
        %1969 = vset.pattern.permute.xlu0 0
        %1970 = vperm.xlu0 %1969, %v1956
        %v1971 = vpop.permute.xlu0 %1970
        %1974 = vset.pattern.permute.xlu0 0
        %1975 = vperm.xlu0 %1974, %v1957
        %v1976 = vpop.permute.xlu0 %1975
        %v1978 = vlaneseq
        %v1979 = vshrl.u32 %v1978, 7
        %v1980 = vsub.s32 0, %v1979
        %v1981 = vrot.slane %v1878, %v1980
        %v1982 = vmul.f32 %v1961, %v1981
        %v1983 = vmul.f32 %v1966, %v1981
        %v1984 = vmul.f32 %v1971, %v1981
        %v1985 = vmul.f32 %v1976, %v1981
        %v1986 = vld [vmem:[%s3] sm:$0xff]
        %v1987 = vld [vmem:[%s3 + $0x8] sm:$0xff]
        %v1988 = vld [vmem:[%s3 + $0x10] sm:$0xff]
        %v1989 = vld [vmem:[%s3 + $0x18] sm:$0xff]
        %v1990 = vld [vmem:[%s6] sm:$0xff]
        %v1991 = vld [vmem:[%s6 + $0x8] sm:$0xff]
        %v1992 = vld [vmem:[%s6 + $0x10] sm:$0xff]
        %v1993 = vld [vmem:[%s6 + $0x18] sm:$0xff]
        %v1995 = vsel %vm1727, %v1982, 0
        %v1998 = vsel %vm1727, %v1983, 0
        %v2001 = vsel %vm1727, %v1984, 0
        %v2004 = vsel %vm1727, %v1985, 0
        %2006 = vmatprep.subr.mxu0 0.0
        %2007 = vmatpush1.msra.mxu0 0.0
        %2008 = vmatprep.subr.mxu0 0.0
        %2009 = vmatpush1.msra.mxu0 0.0
        %2010 = vmatprep.subr.mxu0 0.0
        %2011 = vmatpush1.msra.mxu0 0.0
        %2012 = vmatprep.subr.mxu0 0.0
        %2013 = vmatpush1.msra.mxu0 0.0
        %2014 = vmatprep.subr.mxu0 0.0
        %2015 = vmatpush1.msra.mxu0 0.0
        %2016 = vmatprep.subr.mxu0 0.0
        %2017 = vmatpush1.msra.mxu0 0.0
        %2018 = vmatprep.subr.mxu0 0.0
        %2019 = vmatpush1.msra.mxu0 0.0
        %2020 = vmatprep.subr.mxu0 0.0
        %2021 = vmatpush1.msra.mxu0 0.0
        %2022 = vmatprep.subr.mxu0 0.0
        %2023 = vmatpush1.msra.mxu0 0.0
        %2024 = vmatprep.subr.mxu0 0.0
        %2025 = vmatpush1.msra.mxu0 0.0
        %2026 = vmatprep.subr.mxu0 0.0
        %2027 = vmatpush1.msra.mxu0 0.0
        %2028 = vmatprep.subr.mxu0 0.0
        %2029 = vmatpush1.msra.mxu0 0.0
        %2030 = vmatprep.subr.mxu0 0.0
        %2031 = vmatpush1.msra.mxu0 %v1993
        %2032 = vmatprep.subr.mxu0 0.0
        %2033 = vmatpush1.msra.mxu0 %v1992
        %2034 = vmatprep.subr.mxu0 0.0
        %2035 = vmatpush1.msra.mxu0 %v1991
        %2036 = vmatprep.subr.mxu0 0.0
        %2037 = vmatpush1.msra.mxu0 %v1990
        %2038 = vmatprep.subr.mxu0 0.0
        %2039 = vmatpush2.msra.mxu0 0.0
        %2040 = vmatprep.subr.mxu0 0.0
        %2041 = vmatpush2.msra.mxu0 0.0
        %2042 = vmatprep.subr.mxu0 0.0
        %2043 = vmatpush2.msra.mxu0 0.0
        %2044 = vmatprep.subr.mxu0 0.0
        %2045 = vmatpush2.msra.mxu0 0.0
        %2046 = vmatprep.subr.mxu0 0.0
        %2047 = vmatpush2.msra.mxu0 0.0
        %2048 = vmatprep.subr.mxu0 0.0
        %2049 = vmatpush2.msra.mxu0 0.0
        %2050 = vmatprep.subr.mxu0 0.0
        %2051 = vmatpush2.msra.mxu0 0.0
        %2052 = vmatprep.subr.mxu0 0.0
        %2053 = vmatpush2.msra.mxu0 0.0
        %2054 = vmatprep.subr.mxu0 0.0
        %2055 = vmatpush2.msra.mxu0 0.0
        %2056 = vmatprep.subr.mxu0 0.0
        %2057 = vmatpush2.msra.mxu0 0.0
        %2058 = vmatprep.subr.mxu0 0.0
        %2059 = vmatpush2.msra.mxu0 0.0
        %2060 = vmatprep.subr.mxu0 0.0
        %2061 = vmatpush2.msra.mxu0 0.0
        %2062 = vmatprep.subr.mxu0 0.0
        %2063 = vmatpush2.msra.mxu0 0.0
        %2064 = vmatprep.subr.mxu0 0.0
        %2065 = vmatpush2.msra.mxu0 0.0
        %2066 = vmatprep.subr.mxu0 0.0
        %2067 = vmatpush2.msra.mxu0 0.0
        %2068 = vmatprep.subr.mxu0 0.0
        %2069 = vmatpush2.msra.mxu0 0.0
        %2070 = vmatprep.mubr.f32.mxu0 0.0
        %2071 = vmatmul.mubr.f32.gmra.mxu0 %v1995
        %v2072 = vpop.f32.mrf.mxu0
        %v2073 = vadd.f32 0.0, %v2072
        %v2074 = vpop.f32.mrf.mxu0
        %2075 = vmatprep.mubr.f32.mxu0 0.0
        %2076 = vmatmul.mubr.f32.gmra.mxu0 %v1998
        %v2077 = vpop.f32.mrf.mxu0
        %v2078 = vadd.f32 0.0, %v2077
        %v2079 = vpop.f32.mrf.mxu0
        %2080 = vmatprep.mubr.f32.mxu0 0.0
        %2081 = vmatmul.mubr.f32.gmra.mxu0 %v2001
        %v2082 = vpop.f32.mrf.mxu0
        %v2083 = vadd.f32 0.0, %v2082
        %v2084 = vpop.f32.mrf.mxu0
        %2085 = vmatprep.mubr.f32.mxu0 0.0
        %2086 = vmatmul.mubr.f32.gmra.mxu0 %v2004
        %v2087 = vpop.f32.mrf.mxu0
        %v2088 = vadd.f32 0.0, %v2087
        %v2089 = vpop.f32.mrf.mxu0
        %2090 = vdwg.mxu0
        %v2091 = vld [vmem:[%s7] sm:$0x1]
        %v2093 = vlaneseq
        %v2094 = vshrl.u32 %v2093, 7
        %v2095 = vsub.s32 0, %v2094
        %v2096 = vrot.slane %v2091, %v2095
        %v2099 = vsel %vm1727, %v1986, 0
        %v2102 = vsel %vm1727, %v1987, 0
        %v2105 = vsel %vm1727, %v1988, 0
        %v2108 = vsel %vm1727, %v1989, 0
        %2110 = vmatprep.subr.mxu0 0.0
        %2111 = vmatpush1.msra.mxu0 0.0
        %2112 = vmatprep.subr.mxu0 0.0
        %2113 = vmatpush1.msra.mxu0 0.0
        %2114 = vmatprep.subr.mxu0 0.0
        %2115 = vmatpush1.msra.mxu0 0.0
        %2116 = vmatprep.subr.mxu0 0.0
        %2117 = vmatpush1.msra.mxu0 0.0
        %2118 = vmatprep.subr.mxu0 0.0
        %2119 = vmatpush1.msra.mxu0 0.0
        %2120 = vmatprep.subr.mxu0 0.0
        %2121 = vmatpush1.msra.mxu0 0.0
        %2122 = vmatprep.subr.mxu0 0.0
        %2123 = vmatpush1.msra.mxu0 0.0
        %2124 = vmatprep.subr.mxu0 0.0
        %2125 = vmatpush1.msra.mxu0 0.0
        %2126 = vmatprep.subr.mxu0 0.0
        %2127 = vmatpush1.msra.mxu0 0.0
        %2128 = vmatprep.subr.mxu0 0.0
        %2129 = vmatpush1.msra.mxu0 0.0
        %2130 = vmatprep.subr.mxu0 0.0
        %2131 = vmatpush1.msra.mxu0 0.0
        %2132 = vmatprep.subr.mxu0 0.0
        %2133 = vmatpush1.msra.mxu0 0.0
        %2134 = vmatprep.subr.mxu0 0.0
        %2135 = vmatpush1.msra.mxu0 %v2088
        %2136 = vmatprep.subr.mxu0 0.0
        %2137 = vmatpush1.msra.mxu0 %v2083
        %2138 = vmatprep.subr.mxu0 0.0
        %2139 = vmatpush1.msra.mxu0 %v2078
        %2140 = vmatprep.subr.mxu0 0.0
        %2141 = vmatpush1.msra.mxu0 %v2073
        %2142 = vmatprep.subr.mxu0 0.0
        %2143 = vmatpush2.msra.mxu0 0.0
        %2144 = vmatprep.subr.mxu0 0.0
        %2145 = vmatpush2.msra.mxu0 0.0
        %2146 = vmatprep.subr.mxu0 0.0
        %2147 = vmatpush2.msra.mxu0 0.0
        %2148 = vmatprep.subr.mxu0 0.0
        %2149 = vmatpush2.msra.mxu0 0.0
        %2150 = vmatprep.subr.mxu0 0.0
        %2151 = vmatpush2.msra.mxu0 0.0
        %2152 = vmatprep.subr.mxu0 0.0
        %2153 = vmatpush2.msra.mxu0 0.0
        %2154 = vmatprep.subr.mxu0 0.0
        %2155 = vmatpush2.msra.mxu0 0.0
        %2156 = vmatprep.subr.mxu0 0.0
        %2157 = vmatpush2.msra.mxu0 0.0
        %2158 = vmatprep.subr.mxu0 0.0
        %2159 = vmatpush2.msra.mxu0 0.0
        %2160 = vmatprep.subr.mxu0 0.0
        %2161 = vmatpush2.msra.mxu0 0.0
        %2162 = vmatprep.subr.mxu0 0.0
        %2163 = vmatpush2.msra.mxu0 0.0
        %2164 = vmatprep.subr.mxu0 0.0
        %2165 = vmatpush2.msra.mxu0 0.0
        %2166 = vmatprep.subr.mxu0 0.0
        %2167 = vmatpush2.msra.mxu0 0.0
        %2168 = vmatprep.subr.mxu0 0.0
        %2169 = vmatpush2.msra.mxu0 0.0
        %2170 = vmatprep.subr.mxu0 0.0
        %2171 = vmatpush2.msra.mxu0 0.0
        %2172 = vmatprep.subr.mxu0 0.0
        %2173 = vmatpush2.msra.mxu0 0.0
        %2174 = vmatprep.mubr.f32.mxu0 0.0
        %2175 = vmatmul.mubr.f32.gmra.mxu0 %v2099
        %v2176 = vpop.f32.mrf.mxu0
        %v2177 = vadd.f32 %v2096, %v2176
        %v2178 = vpop.f32.mrf.mxu0
        %2179 = vmatprep.mubr.f32.mxu0 0.0
        %2180 = vmatmul.mubr.f32.gmra.mxu0 %v2102
        %v2181 = vpop.f32.mrf.mxu0
        %v2182 = vadd.f32 %v2096, %v2181
        %v2183 = vpop.f32.mrf.mxu0
        %2184 = vmatprep.mubr.f32.mxu0 0.0
        %2185 = vmatmul.mubr.f32.gmra.mxu0 %v2105
        %v2186 = vpop.f32.mrf.mxu0
        %v2187 = vadd.f32 %v2096, %v2186
        %v2188 = vpop.f32.mrf.mxu0
        %2189 = vmatprep.mubr.f32.mxu0 0.0
        %2190 = vmatmul.mubr.f32.gmra.mxu0 %v2108
        %v2191 = vpop.f32.mrf.mxu0
        %v2192 = vadd.f32 %v2096, %v2191
        %v2193 = vpop.f32.mrf.mxu0
        %2194 = vdwg.mxu0
        %vm2195 = vcmp.gt.f32.partialorder %v2177, 0.0
        %vm2196 = vcmp.gt.f32.partialorder %v2182, 0.0
        %vm2197 = vcmp.gt.f32.partialorder %v2187, 0.0
        %vm2198 = vcmp.gt.f32.partialorder %v2192, 0.0
        %v2199 = vmul.f32 %v2177, 0.01
        %v2200 = vmul.f32 %v2182, 0.01
        %v2201 = vmul.f32 %v2187, 0.01
        %v2202 = vmul.f32 %v2192, 0.01
        %v2203 = vsel %vm2195, %v2177, %v2199
        %v2204 = vsel %vm2196, %v2182, %v2200
        %v2205 = vsel %vm2197, %v2187, %v2201
        %v2206 = vsel %vm2198, %v2192, %v2202
        %v2207 = vld [vmem:[%s4] sm:$0xff]
        %v2208 = vld [vmem:[%s4 + $0x8] sm:$0xff]
        %v2209 = vld [vmem:[%s4 + $0x10] sm:$0xff]
        %v2210 = vld [vmem:[%s4 + $0x18] sm:$0xff]
        %v2211 = vld [vmem:[%s4 + $0x20] sm:$0xff]
        %v2212 = vld [vmem:[%s4 + $0x28] sm:$0xff]
        %v2213 = vld [vmem:[%s4 + $0x30] sm:$0xff]
        %v2214 = vld [vmem:[%s4 + $0x38] sm:$0xff]
        %v2216 = vsel %vm1727, %v2207, 0
        %v2219 = vsel %vm1727, %v2208, 0
        %v2222 = vsel %vm1727, %v2209, 0
        %v2225 = vsel %vm1727, %v2210, 0
        %v2228 = vsel %vm1727, %v2211, 0
        %v2231 = vsel %vm1727, %v2212, 0
        %v2234 = vsel %vm1727, %v2213, 0
        %v2237 = vsel %vm1727, %v2214, 0
        %2239 = vmatprep.subr.mxu0 0.0
        %2240 = vmatpush1.msra.mxu0 0.0
        %2241 = vmatprep.subr.mxu0 0.0
        %2242 = vmatpush1.msra.mxu0 0.0
        %2243 = vmatprep.subr.mxu0 0.0
        %2244 = vmatpush1.msra.mxu0 0.0
        %2245 = vmatprep.subr.mxu0 0.0
        %2246 = vmatpush1.msra.mxu0 0.0
        %2247 = vmatprep.subr.mxu0 0.0
        %2248 = vmatpush1.msra.mxu0 0.0
        %2249 = vmatprep.subr.mxu0 0.0
        %2250 = vmatpush1.msra.mxu0 0.0
        %2251 = vmatprep.subr.mxu0 0.0
        %2252 = vmatpush1.msra.mxu0 0.0
        %2253 = vmatprep.subr.mxu0 0.0
        %2254 = vmatpush1.msra.mxu0 0.0
        %2255 = vmatprep.subr.mxu0 0.0
        %2256 = vmatpush1.msra.mxu0 0.0
        %2257 = vmatprep.subr.mxu0 0.0
        %2258 = vmatpush1.msra.mxu0 0.0
        %2259 = vmatprep.subr.mxu0 0.0
        %2260 = vmatpush1.msra.mxu0 0.0
        %2261 = vmatprep.subr.mxu0 0.0
        %2262 = vmatpush1.msra.mxu0 0.0
        %2263 = vmatprep.subr.mxu0 0.0
        %2264 = vmatpush1.msra.mxu0 %v2206
        %2265 = vmatprep.subr.mxu0 0.0
        %2266 = vmatpush1.msra.mxu0 %v2205
        %2267 = vmatprep.subr.mxu0 0.0
        %2268 = vmatpush1.msra.mxu0 %v2204
        %2269 = vmatprep.subr.mxu0 0.0
        %2270 = vmatpush1.msra.mxu0 %v2203
        %2271 = vmatprep.subr.mxu0 0.0
        %2272 = vmatpush2.msra.mxu0 0.0
        %2273 = vmatprep.subr.mxu0 0.0
        %2274 = vmatpush2.msra.mxu0 0.0
        %2275 = vmatprep.subr.mxu0 0.0
        %2276 = vmatpush2.msra.mxu0 0.0
        %2277 = vmatprep.subr.mxu0 0.0
        %2278 = vmatpush2.msra.mxu0 0.0
        %2279 = vmatprep.subr.mxu0 0.0
        %2280 = vmatpush2.msra.mxu0 0.0
        %2281 = vmatprep.subr.mxu0 0.0
        %2282 = vmatpush2.msra.mxu0 0.0
        %2283 = vmatprep.subr.mxu0 0.0
        %2284 = vmatpush2.msra.mxu0 0.0
        %2285 = vmatprep.subr.mxu0 0.0
        %2286 = vmatpush2.msra.mxu0 0.0
        %2287 = vmatprep.subr.mxu0 0.0
        %2288 = vmatpush2.msra.mxu0 0.0
        %2289 = vmatprep.subr.mxu0 0.0
        %2290 = vmatpush2.msra.mxu0 0.0
        %2291 = vmatprep.subr.mxu0 0.0
        %2292 = vmatpush2.msra.mxu0 0.0
        %2293 = vmatprep.subr.mxu0 0.0
        %2294 = vmatpush2.msra.mxu0 0.0
        %2295 = vmatprep.subr.mxu0 0.0
        %2296 = vmatpush2.msra.mxu0 0.0
        %2297 = vmatprep.subr.mxu0 0.0
        %2298 = vmatpush2.msra.mxu0 0.0
        %2299 = vmatprep.subr.mxu0 0.0
        %2300 = vmatpush2.msra.mxu0 0.0
        %2301 = vmatprep.subr.mxu0 0.0
        %2302 = vmatpush2.msra.mxu0 0.0
        %2303 = vmatprep.mubr.f32.mxu0 0.0
        %2304 = vmatmul.mubr.f32.gmra.mxu0 %v2216
        %v2305 = vpop.f32.mrf.mxu0
        %v2306 = vadd.f32 0.0, %v2305
        %v2307 = vpop.f32.mrf.mxu0
        %2308 = vmatprep.mubr.f32.mxu0 0.0
        %2309 = vmatmul.mubr.f32.gmra.mxu0 %v2219
        %v2310 = vpop.f32.mrf.mxu0
        %v2311 = vadd.f32 0.0, %v2310
        %v2312 = vpop.f32.mrf.mxu0
        %2313 = vmatprep.mubr.f32.mxu0 0.0
        %2314 = vmatmul.mubr.f32.gmra.mxu0 %v2222
        %v2315 = vpop.f32.mrf.mxu0
        %v2316 = vadd.f32 0.0, %v2315
        %v2317 = vpop.f32.mrf.mxu0
        %2318 = vmatprep.mubr.f32.mxu0 0.0
        %2319 = vmatmul.mubr.f32.gmra.mxu0 %v2225
        %v2320 = vpop.f32.mrf.mxu0
        %v2321 = vadd.f32 0.0, %v2320
        %v2322 = vpop.f32.mrf.mxu0
        %2323 = vmatprep.mubr.f32.mxu0 0.0
        %2324 = vmatmul.mubr.f32.gmra.mxu0 %v2228
        %v2325 = vpop.f32.mrf.mxu0
        %v2326 = vadd.f32 0.0, %v2325
        %v2327 = vpop.f32.mrf.mxu0
        %2328 = vmatprep.mubr.f32.mxu0 0.0
        %2329 = vmatmul.mubr.f32.gmra.mxu0 %v2231
        %v2330 = vpop.f32.mrf.mxu0
        %v2331 = vadd.f32 0.0, %v2330
        %v2332 = vpop.f32.mrf.mxu0
        %2333 = vmatprep.mubr.f32.mxu0 0.0
        %2334 = vmatmul.mubr.f32.gmra.mxu0 %v2234
        %v2335 = vpop.f32.mrf.mxu0
        %v2336 = vadd.f32 0.0, %v2335
        %v2337 = vpop.f32.mrf.mxu0
        %2338 = vmatprep.mubr.f32.mxu0 0.0
        %2339 = vmatmul.mubr.f32.gmra.mxu0 %v2237
        %v2340 = vpop.f32.mrf.mxu0
        %v2341 = vadd.f32 0.0, %v2340
        %v2342 = vpop.f32.mrf.mxu0
        %2343 = vdwg.mxu0
        %v2344 = vld [vmem:[%s2] sm:$0xff]
        %v2345 = vld [vmem:[%s2 + $0x8] sm:$0xff]
        %v2346 = vld [vmem:[%s2 + $0x10] sm:$0xff]
        %v2347 = vld [vmem:[%s2 + $0x18] sm:$0xff]
        %v2348 = vld [vmem:[%s2 + $0x20] sm:$0xff]
        %v2349 = vld [vmem:[%s2 + $0x28] sm:$0xff]
        %v2350 = vld [vmem:[%s2 + $0x30] sm:$0xff]
        %v2351 = vld [vmem:[%s2 + $0x38] sm:$0xff]
        %v2352 = vld [vmem:[%s8] sm:$0xff]
        %v2353 = vld [vmem:[%s8 + $0x8] sm:$0xff]
        %v2355 = vsel %vm1653, %v2306, 0
        %v2358 = vsel %vm1653, %v2311, 0
        %v2361 = vsel %vm1653, %v2316, 0
        %v2364 = vsel %vm1653, %v2321, 0
        %v2367 = vsel %vm1653, %v2326, 0
        %v2370 = vsel %vm1653, %v2331, 0
        %v2373 = vsel %vm1653, %v2336, 0
        %v2376 = vsel %vm1653, %v2341, 0
        %2378 = vmatprep.subr.mxu0 0.0
        %2379 = vmatpush1.msra.mxu0 0.0
        %2380 = vmatprep.subr.mxu0 0.0
        %2381 = vmatpush1.msra.mxu0 0.0
        %2382 = vmatprep.subr.mxu0 0.0
        %2383 = vmatpush1.msra.mxu0 0.0
        %2384 = vmatprep.subr.mxu0 0.0
        %2385 = vmatpush1.msra.mxu0 0.0
        %2386 = vmatprep.subr.mxu0 0.0
        %2387 = vmatpush1.msra.mxu0 0.0
        %2388 = vmatprep.subr.mxu0 0.0
        %2389 = vmatpush1.msra.mxu0 0.0
        %2390 = vmatprep.subr.mxu0 0.0
        %2391 = vmatpush1.msra.mxu0 0.0
        %2392 = vmatprep.subr.mxu0 0.0
        %2393 = vmatpush1.msra.mxu0 0.0
        %2394 = vmatprep.subr.mxu0 0.0
        %2395 = vmatpush1.msra.mxu0 0.0
        %2396 = vmatprep.subr.mxu0 0.0
        %2397 = vmatpush1.msra.mxu0 0.0
        %2398 = vmatprep.subr.mxu0 0.0
        %2399 = vmatpush1.msra.mxu0 0.0
        %2400 = vmatprep.subr.mxu0 0.0
        %2401 = vmatpush1.msra.mxu0 0.0
        %2402 = vmatprep.subr.mxu0 0.0
        %2403 = vmatpush1.msra.mxu0 0.0
        %2404 = vmatprep.subr.mxu0 0.0
        %2405 = vmatpush1.msra.mxu0 0.0
        %2406 = vmatprep.subr.mxu0 0.0
        %2407 = vmatpush1.msra.mxu0 %v2353
        %2408 = vmatprep.subr.mxu0 0.0
        %2409 = vmatpush1.msra.mxu0 %v2352
        %2410 = vmatprep.subr.mxu0 0.0
        %2411 = vmatpush2.msra.mxu0 0.0
        %2412 = vmatprep.subr.mxu0 0.0
        %2413 = vmatpush2.msra.mxu0 0.0
        %2414 = vmatprep.subr.mxu0 0.0
        %2415 = vmatpush2.msra.mxu0 0.0
        %2416 = vmatprep.subr.mxu0 0.0
        %2417 = vmatpush2.msra.mxu0 0.0
        %2418 = vmatprep.subr.mxu0 0.0
        %2419 = vmatpush2.msra.mxu0 0.0
        %2420 = vmatprep.subr.mxu0 0.0
        %2421 = vmatpush2.msra.mxu0 0.0
        %2422 = vmatprep.subr.mxu0 0.0
        %2423 = vmatpush2.msra.mxu0 0.0
        %2424 = vmatprep.subr.mxu0 0.0
        %2425 = vmatpush2.msra.mxu0 0.0
        %2426 = vmatprep.subr.mxu0 0.0
        %2427 = vmatpush2.msra.mxu0 0.0
        %2428 = vmatprep.subr.mxu0 0.0
        %2429 = vmatpush2.msra.mxu0 0.0
        %2430 = vmatprep.subr.mxu0 0.0
        %2431 = vmatpush2.msra.mxu0 0.0
        %2432 = vmatprep.subr.mxu0 0.0
        %2433 = vmatpush2.msra.mxu0 0.0
        %2434 = vmatprep.subr.mxu0 0.0
        %2435 = vmatpush2.msra.mxu0 0.0
        %2436 = vmatprep.subr.mxu0 0.0
        %2437 = vmatpush2.msra.mxu0 0.0
        %2438 = vmatprep.subr.mxu0 0.0
        %2439 = vmatpush2.msra.mxu0 0.0
        %2440 = vmatprep.subr.mxu0 0.0
        %2441 = vmatpush2.msra.mxu0 0.0
        %2442 = vmatprep.mubr.f32.mxu0 0.0
        %2443 = vmatmul.mubr.f32.gmra.mxu0 %v2355
        %v2444 = vpop.f32.mrf.mxu0
        %v2445 = vadd.f32 0.0, %v2444
        %v2446 = vpop.f32.mrf.mxu0
        %2447 = vmatprep.mubr.f32.mxu0 0.0
        %2448 = vmatmul.mubr.f32.gmra.mxu0 %v2358
        %v2449 = vpop.f32.mrf.mxu0
        %v2450 = vadd.f32 0.0, %v2449
        %v2451 = vpop.f32.mrf.mxu0
        %2452 = vmatprep.mubr.f32.mxu0 0.0
        %2453 = vmatmul.mubr.f32.gmra.mxu0 %v2361
        %v2454 = vpop.f32.mrf.mxu0
        %v2455 = vadd.f32 0.0, %v2454
        %v2456 = vpop.f32.mrf.mxu0
        %2457 = vmatprep.mubr.f32.mxu0 0.0
        %2458 = vmatmul.mubr.f32.gmra.mxu0 %v2364
        %v2459 = vpop.f32.mrf.mxu0
        %v2460 = vadd.f32 0.0, %v2459
        %v2461 = vpop.f32.mrf.mxu0
        %2462 = vmatprep.mubr.f32.mxu0 0.0
        %2463 = vmatmul.mubr.f32.gmra.mxu0 %v2367
        %v2464 = vpop.f32.mrf.mxu0
        %v2465 = vadd.f32 0.0, %v2464
        %v2466 = vpop.f32.mrf.mxu0
        %2467 = vmatprep.mubr.f32.mxu0 0.0
        %2468 = vmatmul.mubr.f32.gmra.mxu0 %v2370
        %v2469 = vpop.f32.mrf.mxu0
        %v2470 = vadd.f32 0.0, %v2469
        %v2471 = vpop.f32.mrf.mxu0
        %2472 = vmatprep.mubr.f32.mxu0 0.0
        %2473 = vmatmul.mubr.f32.gmra.mxu0 %v2373
        %v2474 = vpop.f32.mrf.mxu0
        %v2475 = vadd.f32 0.0, %v2474
        %v2476 = vpop.f32.mrf.mxu0
        %2477 = vmatprep.mubr.f32.mxu0 0.0
        %2478 = vmatmul.mubr.f32.gmra.mxu0 %v2376
        %v2479 = vpop.f32.mrf.mxu0
        %v2480 = vadd.f32 0.0, %v2479
        %v2481 = vpop.f32.mrf.mxu0
        %2482 = vdwg.mxu0
        %v2483 = vld [vmem:[%s9] sm:$0x1]
        %v2485 = vlaneseq
        %v2486 = vshrl.u32 %v2485, 7
        %v2487 = vsub.s32 0, %v2486
        %v2488 = vrot.slane %v2483, %v2487
        %vm2490 = vcmask 523264
        %v2492 = vsel %vm2490, %v2344, 0
        %v2495 = vsel %vm2490, %v2345, 0
        %v2498 = vsel %vm2490, %v2346, 0
        %v2501 = vsel %vm2490, %v2347, 0
        %v2504 = vsel %vm2490, %v2348, 0
        %v2507 = vsel %vm2490, %v2349, 0
        %v2510 = vsel %vm2490, %v2350, 0
        %v2513 = vsel %vm2490, %v2351, 0
        %2515 = vmatprep.subr.mxu0 0.0
        %2516 = vmatpush1.msra.mxu0 0.0
        %2517 = vmatprep.subr.mxu0 0.0
        %2518 = vmatpush1.msra.mxu0 0.0
        %2519 = vmatprep.subr.mxu0 0.0
        %2520 = vmatpush1.msra.mxu0 0.0
        %2521 = vmatprep.subr.mxu0 0.0
        %2522 = vmatpush1.msra.mxu0 0.0
        %2523 = vmatprep.subr.mxu0 0.0
        %2524 = vmatpush1.msra.mxu0 0.0
        %2525 = vmatprep.subr.mxu0 0.0
        %2526 = vmatpush1.msra.mxu0 0.0
        %2527 = vmatprep.subr.mxu0 0.0
        %2528 = vmatpush1.msra.mxu0 0.0
        %2529 = vmatprep.subr.mxu0 0.0
        %2530 = vmatpush1.msra.mxu0 0.0
        %2531 = vmatprep.subr.mxu0 0.0
        %2532 = vmatpush1.msra.mxu0 %v2480
        %2533 = vmatprep.subr.mxu0 0.0
        %2534 = vmatpush1.msra.mxu0 %v2475
        %2535 = vmatprep.subr.mxu0 0.0
        %2536 = vmatpush1.msra.mxu0 %v2470
        %2537 = vmatprep.subr.mxu0 0.0
        %2538 = vmatpush1.msra.mxu0 %v2465
        %2539 = vmatprep.subr.mxu0 0.0
        %2540 = vmatpush1.msra.mxu0 %v2460
        %2541 = vmatprep.subr.mxu0 0.0
        %2542 = vmatpush1.msra.mxu0 %v2455
        %2543 = vmatprep.subr.mxu0 0.0
        %2544 = vmatpush1.msra.mxu0 %v2450
        %2545 = vmatprep.subr.mxu0 0.0
        %2546 = vmatpush1.msra.mxu0 %v2445
        %2547 = vmatprep.subr.mxu0 0.0
        %2548 = vmatpush2.msra.mxu0 0.0
        %2549 = vmatprep.subr.mxu0 0.0
        %2550 = vmatpush2.msra.mxu0 0.0
        %2551 = vmatprep.subr.mxu0 0.0
        %2552 = vmatpush2.msra.mxu0 0.0
        %2553 = vmatprep.subr.mxu0 0.0
        %2554 = vmatpush2.msra.mxu0 0.0
        %2555 = vmatprep.subr.mxu0 0.0
        %2556 = vmatpush2.msra.mxu0 0.0
        %2557 = vmatprep.subr.mxu0 0.0
        %2558 = vmatpush2.msra.mxu0 0.0
        %2559 = vmatprep.subr.mxu0 0.0
        %2560 = vmatpush2.msra.mxu0 0.0
        %2561 = vmatprep.subr.mxu0 0.0
        %2562 = vmatpush2.msra.mxu0 0.0
        %2563 = vmatprep.subr.mxu0 0.0
        %2564 = vmatpush2.msra.mxu0 0.0
        %2565 = vmatprep.subr.mxu0 0.0
        %2566 = vmatpush2.msra.mxu0 0.0
        %2567 = vmatprep.subr.mxu0 0.0
        %2568 = vmatpush2.msra.mxu0 0.0
        %2569 = vmatprep.subr.mxu0 0.0
        %2570 = vmatpush2.msra.mxu0 0.0
        %2571 = vmatprep.subr.mxu0 0.0
        %2572 = vmatpush2.msra.mxu0 0.0
        %2573 = vmatprep.subr.mxu0 0.0
        %2574 = vmatpush2.msra.mxu0 0.0
        %2575 = vmatprep.subr.mxu0 0.0
        %2576 = vmatpush2.msra.mxu0 0.0
        %2577 = vmatprep.subr.mxu0 0.0
        %2578 = vmatpush2.msra.mxu0 0.0
        %2579 = vmatprep.mubr.f32.mxu0 0.0
        %2580 = vmatmul.mubr.f32.gmra.mxu0 %v2492
        %v2581 = vpop.f32.mrf.mxu0
        %v2582 = vadd.f32 %v2488, %v2581
        %v2583 = vpop.f32.mrf.mxu0
        %2584 = vmatprep.mubr.f32.mxu0 0.0
        %2585 = vmatmul.mubr.f32.gmra.mxu0 %v2495
        %v2586 = vpop.f32.mrf.mxu0
        %v2587 = vadd.f32 %v2488, %v2586
        %v2588 = vpop.f32.mrf.mxu0
        %2589 = vmatprep.mubr.f32.mxu0 0.0
        %2590 = vmatmul.mubr.f32.gmra.mxu0 %v2498
        %v2591 = vpop.f32.mrf.mxu0
        %v2592 = vadd.f32 %v2488, %v2591
        %v2593 = vpop.f32.mrf.mxu0
        %2594 = vmatprep.mubr.f32.mxu0 0.0
        %2595 = vmatmul.mubr.f32.gmra.mxu0 %v2501
        %v2596 = vpop.f32.mrf.mxu0
        %v2597 = vadd.f32 %v2488, %v2596
        %v2598 = vpop.f32.mrf.mxu0
        %2599 = vmatprep.mubr.f32.mxu0 0.0
        %2600 = vmatmul.mubr.f32.gmra.mxu0 %v2504
        %v2601 = vpop.f32.mrf.mxu0
        %v2602 = vadd.f32 %v2488, %v2601
        %v2603 = vpop.f32.mrf.mxu0
        %2604 = vmatprep.mubr.f32.mxu0 0.0
        %2605 = vmatmul.mubr.f32.gmra.mxu0 %v2507
        %v2606 = vpop.f32.mrf.mxu0
        %v2607 = vadd.f32 %v2488, %v2606
        %v2608 = vpop.f32.mrf.mxu0
        %2609 = vmatprep.mubr.f32.mxu0 0.0
        %2610 = vmatmul.mubr.f32.gmra.mxu0 %v2510
        %v2611 = vpop.f32.mrf.mxu0
        %v2612 = vadd.f32 %v2488, %v2611
        %v2613 = vpop.f32.mrf.mxu0
        %2614 = vmatprep.mubr.f32.mxu0 0.0
        %2615 = vmatmul.mubr.f32.gmra.mxu0 %v2513
        %v2616 = vpop.f32.mrf.mxu0
        %v2617 = vadd.f32 %v2488, %v2616
        %v2618 = vpop.f32.mrf.mxu0
        %2619 = vdwg.mxu0
        %vm2620 = vcmask 64512
        %2621 = vst.msk [vmem:[%s737] sm:$0xff] %vm2620, %v2582
        %2622 = vst.msk [vmem:[%s737 + $0x8] sm:$0xff] %vm2620, %v2587
        %2623 = vst.msk [vmem:[%s737 + $0x10] sm:$0xff] %vm2620, %v2592
        %2624 = vst.msk [vmem:[%s737 + $0x18] sm:$0xff] %vm2620, %v2597
        %2625 = vst.msk [vmem:[%s737 + $0x20] sm:$0xff] %vm2620, %v2602
        %2626 = vst.msk [vmem:[%s737 + $0x28] sm:$0xff] %vm2620, %v2607
        %2627 = vst.msk [vmem:[%s737 + $0x30] sm:$0xff] %vm2620, %v2612
        %2628 = vst.msk [vmem:[%s737 + $0x38] sm:$0xff] %vm2620, %v2617
        %v2629 = vld [vmem:[%s14] sm:$0xff]
        %v2630 = vld [vmem:[%s14 + $0x8] sm:$0xff]
        %v2631 = vld [vmem:[%s14 + $0x10] sm:$0xff]
        %v2632 = vld [vmem:[%s14 + $0x18] sm:$0xff]
        %v2633 = vld [vmem:[%s14 + $0x20] sm:$0xff]
        %v2634 = vld [vmem:[%s14 + $0x28] sm:$0xff]
        %v2635 = vld [vmem:[%s14 + $0x30] sm:$0xff]
        %v2636 = vld [vmem:[%s14 + $0x38] sm:$0xff]
        %v2637 = vld [vmem:[%s14 + $0x40] sm:$0xff]
        %v2638 = vld [vmem:[%s14 + $0x48] sm:$0xff]
        %v2639 = vld [vmem:[%s14 + $0x50] sm:$0xff]
        %v2640 = vld [vmem:[%s14 + $0x58] sm:$0xff]
        %v2641 = vld [vmem:[%s14 + $0x60] sm:$0xff]
        %v2642 = vld [vmem:[%s14 + $0x68] sm:$0xff]
        %v2643 = vld [vmem:[%s14 + $0x70] sm:$0xff]
        %v2644 = vld [vmem:[%s14 + $0x78] sm:$0xff]
        %v2645 = vld [vmem:[%s14 + $0x80] sm:$0xff]
        %v2646 = vld [vmem:[%s14 + $0x88] sm:$0xff]
        %v2647 = vld [vmem:[%s14 + $0x90] sm:$0xff]
        %v2648 = vld [vmem:[%s14 + $0x98] sm:$0xff]
        %v2649 = vld [vmem:[%s14 + $0xa0] sm:$0xff]
        %v2650 = vld [vmem:[%s14 + $0xa8] sm:$0xff]
        %v2651 = vld [vmem:[%s14 + $0xb0] sm:$0xff]
        %v2652 = vld [vmem:[%s14 + $0xb8] sm:$0xff]
        %v2653 = vld [vmem:[%s14 + $0xc0] sm:$0xff]
        %v2654 = vld [vmem:[%s14 + $0xc8] sm:$0xff]
        %v2655 = vld [vmem:[%s14 + $0xd0] sm:$0xff]
        %v2656 = vld [vmem:[%s14 + $0xd8] sm:$0xff]
        %v2657 = vld [vmem:[%s14 + $0xe0] sm:$0xff]
        %v2658 = vld [vmem:[%s14 + $0xe8] sm:$0xff]
        %v2659 = vld [vmem:[%s14 + $0xf0] sm:$0xff]
        %v2660 = vld [vmem:[%s14 + $0xf8] sm:$0xff]
        %v2661 = vld [vmem:[%s15] sm:$0xff]
        %v2662 = vld [vmem:[%s15 + $0x8] sm:$0xff]
        %v2665 = vlaneseq
        %v2666 = vshrl.u32 %v2665, 7
        %v2667 = vsub.s32 0, %v2666
        %v2668 = vrot.slane %v2661, %v2667
        %v2669 = vlaneseq
        %v2670 = vshrl.u32 %v2669, 7
        %v2671 = vsub.s32 1, %v2670
        %v2672 = vrot.slane %v2661, %v2671
        %v2673 = vlaneseq
        %v2674 = vshrl.u32 %v2673, 7
        %v2675 = vsub.s32 2, %v2674
        %v2676 = vrot.slane %v2661, %v2675
        %v2677 = vlaneseq
        %v2678 = vshrl.u32 %v2677, 7
        %v2679 = vsub.s32 3, %v2678
        %v2680 = vrot.slane %v2661, %v2679
        %v2681 = vlaneseq
        %v2682 = vshrl.u32 %v2681, 7
        %v2683 = vsub.s32 4, %v2682
        %v2684 = vrot.slane %v2661, %v2683
        %v2685 = vlaneseq
        %v2686 = vshrl.u32 %v2685, 7
        %v2687 = vsub.s32 5, %v2686
        %v2688 = vrot.slane %v2661, %v2687
        %v2689 = vlaneseq
        %v2690 = vshrl.u32 %v2689, 7
        %v2691 = vsub.s32 6, %v2690
        %v2692 = vrot.slane %v2661, %v2691
        %v2693 = vlaneseq
        %v2694 = vshrl.u32 %v2693, 7
        %v2695 = vsub.s32 7, %v2694
        %v2696 = vrot.slane %v2661, %v2695
        %v2697 = vlaneseq
        %v2698 = vshrl.u32 %v2697, 7
        %v2699 = vsub.s32 0, %v2698
        %v2700 = vrot.slane %v2662, %v2699
        %v2701 = vlaneseq
        %v2702 = vshrl.u32 %v2701, 7
        %v2703 = vsub.s32 1, %v2702
        %v2704 = vrot.slane %v2662, %v2703
        %v2705 = vlaneseq
        %v2706 = vshrl.u32 %v2705, 7
        %v2707 = vsub.s32 2, %v2706
        %v2708 = vrot.slane %v2662, %v2707
        %v2709 = vlaneseq
        %v2710 = vshrl.u32 %v2709, 7
        %v2711 = vsub.s32 3, %v2710
        %v2712 = vrot.slane %v2662, %v2711
        %v2713 = vlaneseq
        %v2714 = vshrl.u32 %v2713, 7
        %v2715 = vsub.s32 4, %v2714
        %v2716 = vrot.slane %v2662, %v2715
        %v2717 = vlaneseq
        %v2718 = vshrl.u32 %v2717, 7
        %v2719 = vsub.s32 5, %v2718
        %v2720 = vrot.slane %v2662, %v2719
        %v2721 = vlaneseq
        %v2722 = vshrl.u32 %v2721, 7
        %v2723 = vsub.s32 6, %v2722
        %v2724 = vrot.slane %v2662, %v2723
        %v2725 = vlaneseq
        %v2726 = vshrl.u32 %v2725, 7
        %v2727 = vsub.s32 7, %v2726
        %v2728 = vrot.slane %v2662, %v2727
        %v2746 = vsel %vm1653, %v1951, 0
        %2748 = vmatprep.subr.mxu0 0.0
        %2749 = vmatpush1.msra.mxu0 0.0
        %2750 = vmatprep.subr.mxu0 0.0
        %2751 = vmatpush1.msra.mxu0 0.0
        %2752 = vmatprep.subr.mxu0 0.0
        %2753 = vmatpush1.msra.mxu0 0.0
        %2754 = vmatprep.subr.mxu0 0.0
        %2755 = vmatpush1.msra.mxu0 0.0
        %2756 = vmatprep.subr.mxu0 0.0
        %2757 = vmatpush1.msra.mxu0 0.0
        %2758 = vmatprep.subr.mxu0 0.0
        %2759 = vmatpush1.msra.mxu0 0.0
        %2760 = vmatprep.subr.mxu0 0.0
        %2761 = vmatpush1.msra.mxu0 0.0
        %2762 = vmatprep.subr.mxu0 0.0
        %2763 = vmatpush1.msra.mxu0 0.0
        %2764 = vmatprep.subr.mxu0 0.0
        %2765 = vmatpush1.msra.mxu0 0.0
        %2766 = vmatprep.subr.mxu0 0.0
        %2767 = vmatpush1.msra.mxu0 0.0
        %2768 = vmatprep.subr.mxu0 0.0
        %2769 = vmatpush1.msra.mxu0 0.0
        %2770 = vmatprep.subr.mxu0 0.0
        %2771 = vmatpush1.msra.mxu0 0.0
        %2772 = vmatprep.subr.mxu0 0.0
        %2773 = vmatpush1.msra.mxu0 0.0
        %2774 = vmatprep.subr.mxu0 0.0
        %2775 = vmatpush1.msra.mxu0 0.0
        %2776 = vmatprep.subr.mxu0 %v2646
        %2777 = vmatpush1.msra.mxu0 %v2645
        %2778 = vmatprep.subr.mxu0 %v2630
        %2779 = vmatpush1.msra.mxu0 %v2629
        %2780 = vmatprep.subr.mxu0 0.0
        %2781 = vmatpush2.msra.mxu0 0.0
        %2782 = vmatprep.subr.mxu0 0.0
        %2783 = vmatpush2.msra.mxu0 0.0
        %2784 = vmatprep.subr.mxu0 0.0
        %2785 = vmatpush2.msra.mxu0 0.0
        %2786 = vmatprep.subr.mxu0 0.0
        %2787 = vmatpush2.msra.mxu0 0.0
        %2788 = vmatprep.subr.mxu0 0.0
        %2789 = vmatpush2.msra.mxu0 0.0
        %2790 = vmatprep.subr.mxu0 0.0
        %2791 = vmatpush2.msra.mxu0 0.0
        %2792 = vmatprep.subr.mxu0 0.0
        %2793 = vmatpush2.msra.mxu0 0.0
        %2794 = vmatprep.subr.mxu0 0.0
        %2795 = vmatpush2.msra.mxu0 0.0
        %2796 = vmatprep.subr.mxu0 0.0
        %2797 = vmatpush2.msra.mxu0 0.0
        %2798 = vmatprep.subr.mxu0 0.0
        %2799 = vmatpush2.msra.mxu0 0.0
        %2800 = vmatprep.subr.mxu0 0.0
        %2801 = vmatpush2.msra.mxu0 0.0
        %2802 = vmatprep.subr.mxu0 0.0
        %2803 = vmatpush2.msra.mxu0 0.0
        %2804 = vmatprep.subr.mxu0 0.0
        %2805 = vmatpush2.msra.mxu0 0.0
        %2806 = vmatprep.subr.mxu0 0.0
        %2807 = vmatpush2.msra.mxu0 0.0
        %2808 = vmatprep.subr.mxu0 0.0
        %2809 = vmatpush2.msra.mxu0 0.0
        %2810 = vmatprep.subr.mxu0 0.0
        %2811 = vmatpush2.msra.mxu0 0.0
        %2812 = vmatprep.mubr.f32.mxu0 0.0
        %2813 = vmatmul.mubr.f32.gmra.mxu0 %v2746
        %v2814 = vpop.f32.mrf.mxu0
        %v2815 = vadd.f32 %v2668, %v2814
        %v2816 = vpop.f32.mrf.mxu0
        %v2817 = vadd.f32 %v2672, %v2816
        %2818 = vdwg.mxu0
        %2819 = vmatprep.subr.mxu0 0.0
        %2820 = vmatpush1.msra.mxu0 0.0
        %2821 = vmatprep.subr.mxu0 0.0
        %2822 = vmatpush1.msra.mxu0 0.0
        %2823 = vmatprep.subr.mxu0 0.0
        %2824 = vmatpush1.msra.mxu0 0.0
        %2825 = vmatprep.subr.mxu0 0.0
        %2826 = vmatpush1.msra.mxu0 0.0
        %2827 = vmatprep.subr.mxu0 0.0
        %2828 = vmatpush1.msra.mxu0 0.0
        %2829 = vmatprep.subr.mxu0 0.0
        %2830 = vmatpush1.msra.mxu0 0.0
        %2831 = vmatprep.subr.mxu0 0.0
        %2832 = vmatpush1.msra.mxu0 0.0
        %2833 = vmatprep.subr.mxu0 0.0
        %2834 = vmatpush1.msra.mxu0 0.0
        %2835 = vmatprep.subr.mxu0 0.0
        %2836 = vmatpush1.msra.mxu0 0.0
        %2837 = vmatprep.subr.mxu0 0.0
        %2838 = vmatpush1.msra.mxu0 0.0
        %2839 = vmatprep.subr.mxu0 0.0
        %2840 = vmatpush1.msra.mxu0 0.0
        %2841 = vmatprep.subr.mxu0 0.0
        %2842 = vmatpush1.msra.mxu0 0.0
        %2843 = vmatprep.subr.mxu0 0.0
        %2844 = vmatpush1.msra.mxu0 0.0
        %2845 = vmatprep.subr.mxu0 0.0
        %2846 = vmatpush1.msra.mxu0 0.0
        %2847 = vmatprep.subr.mxu0 %v2648
        %2848 = vmatpush1.msra.mxu0 %v2647
        %2849 = vmatprep.subr.mxu0 %v2632
        %2850 = vmatpush1.msra.mxu0 %v2631
        %2851 = vmatprep.subr.mxu0 0.0
        %2852 = vmatpush2.msra.mxu0 0.0
        %2853 = vmatprep.subr.mxu0 0.0
        %2854 = vmatpush2.msra.mxu0 0.0
        %2855 = vmatprep.subr.mxu0 0.0
        %2856 = vmatpush2.msra.mxu0 0.0
        %2857 = vmatprep.subr.mxu0 0.0
        %2858 = vmatpush2.msra.mxu0 0.0
        %2859 = vmatprep.subr.mxu0 0.0
        %2860 = vmatpush2.msra.mxu0 0.0
        %2861 = vmatprep.subr.mxu0 0.0
        %2862 = vmatpush2.msra.mxu0 0.0
        %2863 = vmatprep.subr.mxu0 0.0
        %2864 = vmatpush2.msra.mxu0 0.0
        %2865 = vmatprep.subr.mxu0 0.0
        %2866 = vmatpush2.msra.mxu0 0.0
        %2867 = vmatprep.subr.mxu0 0.0
        %2868 = vmatpush2.msra.mxu0 0.0
        %2869 = vmatprep.subr.mxu0 0.0
        %2870 = vmatpush2.msra.mxu0 0.0
        %2871 = vmatprep.subr.mxu0 0.0
        %2872 = vmatpush2.msra.mxu0 0.0
        %2873 = vmatprep.subr.mxu0 0.0
        %2874 = vmatpush2.msra.mxu0 0.0
        %2875 = vmatprep.subr.mxu0 0.0
        %2876 = vmatpush2.msra.mxu0 0.0
        %2877 = vmatprep.subr.mxu0 0.0
        %2878 = vmatpush2.msra.mxu0 0.0
        %2879 = vmatprep.subr.mxu0 0.0
        %2880 = vmatpush2.msra.mxu0 0.0
        %2881 = vmatprep.subr.mxu0 0.0
        %2882 = vmatpush2.msra.mxu0 0.0
        %2883 = vmatprep.mubr.f32.mxu0 0.0
        %2884 = vmatmul.mubr.f32.gmra.mxu0 %v2746
        %v2885 = vpop.f32.mrf.mxu0
        %v2886 = vadd.f32 %v2676, %v2885
        %v2887 = vpop.f32.mrf.mxu0
        %v2888 = vadd.f32 %v2680, %v2887
        %2889 = vdwg.mxu0
        %2890 = vmatprep.subr.mxu0 0.0
        %2891 = vmatpush1.msra.mxu0 0.0
        %2892 = vmatprep.subr.mxu0 0.0
        %2893 = vmatpush1.msra.mxu0 0.0
        %2894 = vmatprep.subr.mxu0 0.0
        %2895 = vmatpush1.msra.mxu0 0.0
        %2896 = vmatprep.subr.mxu0 0.0
        %2897 = vmatpush1.msra.mxu0 0.0
        %2898 = vmatprep.subr.mxu0 0.0
        %2899 = vmatpush1.msra.mxu0 0.0
        %2900 = vmatprep.subr.mxu0 0.0
        %2901 = vmatpush1.msra.mxu0 0.0
        %2902 = vmatprep.subr.mxu0 0.0
        %2903 = vmatpush1.msra.mxu0 0.0
        %2904 = vmatprep.subr.mxu0 0.0
        %2905 = vmatpush1.msra.mxu0 0.0
        %2906 = vmatprep.subr.mxu0 0.0
        %2907 = vmatpush1.msra.mxu0 0.0
        %2908 = vmatprep.subr.mxu0 0.0
        %2909 = vmatpush1.msra.mxu0 0.0
        %2910 = vmatprep.subr.mxu0 0.0
        %2911 = vmatpush1.msra.mxu0 0.0
        %2912 = vmatprep.subr.mxu0 0.0
        %2913 = vmatpush1.msra.mxu0 0.0
        %2914 = vmatprep.subr.mxu0 0.0
        %2915 = vmatpush1.msra.mxu0 0.0
        %2916 = vmatprep.subr.mxu0 0.0
        %2917 = vmatpush1.msra.mxu0 0.0
        %2918 = vmatprep.subr.mxu0 %v2650
        %2919 = vmatpush1.msra.mxu0 %v2649
        %2920 = vmatprep.subr.mxu0 %v2634
        %2921 = vmatpush1.msra.mxu0 %v2633
        %2922 = vmatprep.subr.mxu0 0.0
        %2923 = vmatpush2.msra.mxu0 0.0
        %2924 = vmatprep.subr.mxu0 0.0
        %2925 = vmatpush2.msra.mxu0 0.0
        %2926 = vmatprep.subr.mxu0 0.0
        %2927 = vmatpush2.msra.mxu0 0.0
        %2928 = vmatprep.subr.mxu0 0.0
        %2929 = vmatpush2.msra.mxu0 0.0
        %2930 = vmatprep.subr.mxu0 0.0
        %2931 = vmatpush2.msra.mxu0 0.0
        %2932 = vmatprep.subr.mxu0 0.0
        %2933 = vmatpush2.msra.mxu0 0.0
        %2934 = vmatprep.subr.mxu0 0.0
        %2935 = vmatpush2.msra.mxu0 0.0
        %2936 = vmatprep.subr.mxu0 0.0
        %2937 = vmatpush2.msra.mxu0 0.0
        %2938 = vmatprep.subr.mxu0 0.0
        %2939 = vmatpush2.msra.mxu0 0.0
        %2940 = vmatprep.subr.mxu0 0.0
        %2941 = vmatpush2.msra.mxu0 0.0
        %2942 = vmatprep.subr.mxu0 0.0
        %2943 = vmatpush2.msra.mxu0 0.0
        %2944 = vmatprep.subr.mxu0 0.0
        %2945 = vmatpush2.msra.mxu0 0.0
        %2946 = vmatprep.subr.mxu0 0.0
        %2947 = vmatpush2.msra.mxu0 0.0
        %2948 = vmatprep.subr.mxu0 0.0
        %2949 = vmatpush2.msra.mxu0 0.0
        %2950 = vmatprep.subr.mxu0 0.0
        %2951 = vmatpush2.msra.mxu0 0.0
        %2952 = vmatprep.subr.mxu0 0.0
        %2953 = vmatpush2.msra.mxu0 0.0
        %2954 = vmatprep.mubr.f32.mxu0 0.0
        %2955 = vmatmul.mubr.f32.gmra.mxu0 %v2746
        %v2956 = vpop.f32.mrf.mxu0
        %v2957 = vadd.f32 %v2684, %v2956
        %v2958 = vpop.f32.mrf.mxu0
        %v2959 = vadd.f32 %v2688, %v2958
        %2960 = vdwg.mxu0
        %2961 = vmatprep.subr.mxu0 0.0
        %2962 = vmatpush1.msra.mxu0 0.0
        %2963 = vmatprep.subr.mxu0 0.0
        %2964 = vmatpush1.msra.mxu0 0.0
        %2965 = vmatprep.subr.mxu0 0.0
        %2966 = vmatpush1.msra.mxu0 0.0
        %2967 = vmatprep.subr.mxu0 0.0
        %2968 = vmatpush1.msra.mxu0 0.0
        %2969 = vmatprep.subr.mxu0 0.0
        %2970 = vmatpush1.msra.mxu0 0.0
        %2971 = vmatprep.subr.mxu0 0.0
        %2972 = vmatpush1.msra.mxu0 0.0
        %2973 = vmatprep.subr.mxu0 0.0
        %2974 = vmatpush1.msra.mxu0 0.0
        %2975 = vmatprep.subr.mxu0 0.0
        %2976 = vmatpush1.msra.mxu0 0.0
        %2977 = vmatprep.subr.mxu0 0.0
        %2978 = vmatpush1.msra.mxu0 0.0
        %2979 = vmatprep.subr.mxu0 0.0
        %2980 = vmatpush1.msra.mxu0 0.0
        %2981 = vmatprep.subr.mxu0 0.0
        %2982 = vmatpush1.msra.mxu0 0.0
        %2983 = vmatprep.subr.mxu0 0.0
        %2984 = vmatpush1.msra.mxu0 0.0
        %2985 = vmatprep.subr.mxu0 0.0
        %2986 = vmatpush1.msra.mxu0 0.0
        %2987 = vmatprep.subr.mxu0 0.0
        %2988 = vmatpush1.msra.mxu0 0.0
        %2989 = vmatprep.subr.mxu0 %v2652
        %2990 = vmatpush1.msra.mxu0 %v2651
        %2991 = vmatprep.subr.mxu0 %v2636
        %2992 = vmatpush1.msra.mxu0 %v2635
        %2993 = vmatprep.subr.mxu0 0.0
        %2994 = vmatpush2.msra.mxu0 0.0
        %2995 = vmatprep.subr.mxu0 0.0
        %2996 = vmatpush2.msra.mxu0 0.0
        %2997 = vmatprep.subr.mxu0 0.0
        %2998 = vmatpush2.msra.mxu0 0.0
        %2999 = vmatprep.subr.mxu0 0.0
        %3000 = vmatpush2.msra.mxu0 0.0
        %3001 = vmatprep.subr.mxu0 0.0
        %3002 = vmatpush2.msra.mxu0 0.0
        %3003 = vmatprep.subr.mxu0 0.0
        %3004 = vmatpush2.msra.mxu0 0.0
        %3005 = vmatprep.subr.mxu0 0.0
        %3006 = vmatpush2.msra.mxu0 0.0
        %3007 = vmatprep.subr.mxu0 0.0
        %3008 = vmatpush2.msra.mxu0 0.0
        %3009 = vmatprep.subr.mxu0 0.0
        %3010 = vmatpush2.msra.mxu0 0.0
        %3011 = vmatprep.subr.mxu0 0.0
        %3012 = vmatpush2.msra.mxu0 0.0
        %3013 = vmatprep.subr.mxu0 0.0
        %3014 = vmatpush2.msra.mxu0 0.0
        %3015 = vmatprep.subr.mxu0 0.0
        %3016 = vmatpush2.msra.mxu0 0.0
        %3017 = vmatprep.subr.mxu0 0.0
        %3018 = vmatpush2.msra.mxu0 0.0
        %3019 = vmatprep.subr.mxu0 0.0
        %3020 = vmatpush2.msra.mxu0 0.0
        %3021 = vmatprep.subr.mxu0 0.0
        %3022 = vmatpush2.msra.mxu0 0.0
        %3023 = vmatprep.subr.mxu0 0.0
        %3024 = vmatpush2.msra.mxu0 0.0
        %3025 = vmatprep.mubr.f32.mxu0 0.0
        %3026 = vmatmul.mubr.f32.gmra.mxu0 %v2746
        %v3027 = vpop.f32.mrf.mxu0
        %v3028 = vadd.f32 %v2692, %v3027
        %v3029 = vpop.f32.mrf.mxu0
        %v3030 = vadd.f32 %v2696, %v3029
        %3031 = vdwg.mxu0
        %3032 = vmatprep.subr.mxu0 0.0
        %3033 = vmatpush1.msra.mxu0 0.0
        %3034 = vmatprep.subr.mxu0 0.0
        %3035 = vmatpush1.msra.mxu0 0.0
        %3036 = vmatprep.subr.mxu0 0.0
        %3037 = vmatpush1.msra.mxu0 0.0
        %3038 = vmatprep.subr.mxu0 0.0
        %3039 = vmatpush1.msra.mxu0 0.0
        %3040 = vmatprep.subr.mxu0 0.0
        %3041 = vmatpush1.msra.mxu0 0.0
        %3042 = vmatprep.subr.mxu0 0.0
        %3043 = vmatpush1.msra.mxu0 0.0
        %3044 = vmatprep.subr.mxu0 0.0
        %3045 = vmatpush1.msra.mxu0 0.0
        %3046 = vmatprep.subr.mxu0 0.0
        %3047 = vmatpush1.msra.mxu0 0.0
        %3048 = vmatprep.subr.mxu0 0.0
        %3049 = vmatpush1.msra.mxu0 0.0
        %3050 = vmatprep.subr.mxu0 0.0
        %3051 = vmatpush1.msra.mxu0 0.0
        %3052 = vmatprep.subr.mxu0 0.0
        %3053 = vmatpush1.msra.mxu0 0.0
        %3054 = vmatprep.subr.mxu0 0.0
        %3055 = vmatpush1.msra.mxu0 0.0
        %3056 = vmatprep.subr.mxu0 0.0
        %3057 = vmatpush1.msra.mxu0 0.0
        %3058 = vmatprep.subr.mxu0 0.0
        %3059 = vmatpush1.msra.mxu0 0.0
        %3060 = vmatprep.subr.mxu0 %v2654
        %3061 = vmatpush1.msra.mxu0 %v2653
        %3062 = vmatprep.subr.mxu0 %v2638
        %3063 = vmatpush1.msra.mxu0 %v2637
        %3064 = vmatprep.subr.mxu0 0.0
        %3065 = vmatpush2.msra.mxu0 0.0
        %3066 = vmatprep.subr.mxu0 0.0
        %3067 = vmatpush2.msra.mxu0 0.0
        %3068 = vmatprep.subr.mxu0 0.0
        %3069 = vmatpush2.msra.mxu0 0.0
        %3070 = vmatprep.subr.mxu0 0.0
        %3071 = vmatpush2.msra.mxu0 0.0
        %3072 = vmatprep.subr.mxu0 0.0
        %3073 = vmatpush2.msra.mxu0 0.0
        %3074 = vmatprep.subr.mxu0 0.0
        %3075 = vmatpush2.msra.mxu0 0.0
        %3076 = vmatprep.subr.mxu0 0.0
        %3077 = vmatpush2.msra.mxu0 0.0
        %3078 = vmatprep.subr.mxu0 0.0
        %3079 = vmatpush2.msra.mxu0 0.0
        %3080 = vmatprep.subr.mxu0 0.0
        %3081 = vmatpush2.msra.mxu0 0.0
        %3082 = vmatprep.subr.mxu0 0.0
        %3083 = vmatpush2.msra.mxu0 0.0
        %3084 = vmatprep.subr.mxu0 0.0
        %3085 = vmatpush2.msra.mxu0 0.0
        %3086 = vmatprep.subr.mxu0 0.0
        %3087 = vmatpush2.msra.mxu0 0.0
        %3088 = vmatprep.subr.mxu0 0.0
        %3089 = vmatpush2.msra.mxu0 0.0
        %3090 = vmatprep.subr.mxu0 0.0
        %3091 = vmatpush2.msra.mxu0 0.0
        %3092 = vmatprep.subr.mxu0 0.0
        %3093 = vmatpush2.msra.mxu0 0.0
        %3094 = vmatprep.subr.mxu0 0.0
        %3095 = vmatpush2.msra.mxu0 0.0
        %3096 = vmatprep.mubr.f32.mxu0 0.0
        %3097 = vmatmul.mubr.f32.gmra.mxu0 %v2746
        %v3098 = vpop.f32.mrf.mxu0
        %v3099 = vadd.f32 %v2700, %v3098
        %v3100 = vpop.f32.mrf.mxu0
        %v3101 = vadd.f32 %v2704, %v3100
        %3102 = vdwg.mxu0
        %3103 = vmatprep.subr.mxu0 0.0
        %3104 = vmatpush1.msra.mxu0 0.0
        %3105 = vmatprep.subr.mxu0 0.0
        %3106 = vmatpush1.msra.mxu0 0.0
        %3107 = vmatprep.subr.mxu0 0.0
        %3108 = vmatpush1.msra.mxu0 0.0
        %3109 = vmatprep.subr.mxu0 0.0
        %3110 = vmatpush1.msra.mxu0 0.0
        %3111 = vmatprep.subr.mxu0 0.0
        %3112 = vmatpush1.msra.mxu0 0.0
        %3113 = vmatprep.subr.mxu0 0.0
        %3114 = vmatpush1.msra.mxu0 0.0
        %3115 = vmatprep.subr.mxu0 0.0
        %3116 = vmatpush1.msra.mxu0 0.0
        %3117 = vmatprep.subr.mxu0 0.0
        %3118 = vmatpush1.msra.mxu0 0.0
        %3119 = vmatprep.subr.mxu0 0.0
        %3120 = vmatpush1.msra.mxu0 0.0
        %3121 = vmatprep.subr.mxu0 0.0
        %3122 = vmatpush1.msra.mxu0 0.0
        %3123 = vmatprep.subr.mxu0 0.0
        %3124 = vmatpush1.msra.mxu0 0.0
        %3125 = vmatprep.subr.mxu0 0.0
        %3126 = vmatpush1.msra.mxu0 0.0
        %3127 = vmatprep.subr.mxu0 0.0
        %3128 = vmatpush1.msra.mxu0 0.0
        %3129 = vmatprep.subr.mxu0 0.0
        %3130 = vmatpush1.msra.mxu0 0.0
        %3131 = vmatprep.subr.mxu0 %v2656
        %3132 = vmatpush1.msra.mxu0 %v2655
        %3133 = vmatprep.subr.mxu0 %v2640
        %3134 = vmatpush1.msra.mxu0 %v2639
        %3135 = vmatprep.subr.mxu0 0.0
        %3136 = vmatpush2.msra.mxu0 0.0
        %3137 = vmatprep.subr.mxu0 0.0
        %3138 = vmatpush2.msra.mxu0 0.0
        %3139 = vmatprep.subr.mxu0 0.0
        %3140 = vmatpush2.msra.mxu0 0.0
        %3141 = vmatprep.subr.mxu0 0.0
        %3142 = vmatpush2.msra.mxu0 0.0
        %3143 = vmatprep.subr.mxu0 0.0
        %3144 = vmatpush2.msra.mxu0 0.0
        %3145 = vmatprep.subr.mxu0 0.0
        %3146 = vmatpush2.msra.mxu0 0.0
        %3147 = vmatprep.subr.mxu0 0.0
        %3148 = vmatpush2.msra.mxu0 0.0
        %3149 = vmatprep.subr.mxu0 0.0
        %3150 = vmatpush2.msra.mxu0 0.0
        %3151 = vmatprep.subr.mxu0 0.0
        %3152 = vmatpush2.msra.mxu0 0.0
        %3153 = vmatprep.subr.mxu0 0.0
        %3154 = vmatpush2.msra.mxu0 0.0
        %3155 = vmatprep.subr.mxu0 0.0
        %3156 = vmatpush2.msra.mxu0 0.0
        %3157 = vmatprep.subr.mxu0 0.0
        %3158 = vmatpush2.msra.mxu0 0.0
        %3159 = vmatprep.subr.mxu0 0.0
        %3160 = vmatpush2.msra.mxu0 0.0
        %3161 = vmatprep.subr.mxu0 0.0
        %3162 = vmatpush2.msra.mxu0 0.0
        %3163 = vmatprep.subr.mxu0 0.0
        %3164 = vmatpush2.msra.mxu0 0.0
        %3165 = vmatprep.subr.mxu0 0.0
        %3166 = vmatpush2.msra.mxu0 0.0
        %3167 = vmatprep.mubr.f32.mxu0 0.0
        %3168 = vmatmul.mubr.f32.gmra.mxu0 %v2746
        %v3169 = vpop.f32.mrf.mxu0
        %v3170 = vadd.f32 %v2708, %v3169
        %v3171 = vpop.f32.mrf.mxu0
        %v3172 = vadd.f32 %v2712, %v3171
        %3173 = vdwg.mxu0
        %3174 = vmatprep.subr.mxu0 0.0
        %3175 = vmatpush1.msra.mxu0 0.0
        %3176 = vmatprep.subr.mxu0 0.0
        %3177 = vmatpush1.msra.mxu0 0.0
        %3178 = vmatprep.subr.mxu0 0.0
        %3179 = vmatpush1.msra.mxu0 0.0
        %3180 = vmatprep.subr.mxu0 0.0
        %3181 = vmatpush1.msra.mxu0 0.0
        %3182 = vmatprep.subr.mxu0 0.0
        %3183 = vmatpush1.msra.mxu0 0.0
        %3184 = vmatprep.subr.mxu0 0.0
        %3185 = vmatpush1.msra.mxu0 0.0
        %3186 = vmatprep.subr.mxu0 0.0
        %3187 = vmatpush1.msra.mxu0 0.0
        %3188 = vmatprep.subr.mxu0 0.0
        %3189 = vmatpush1.msra.mxu0 0.0
        %3190 = vmatprep.subr.mxu0 0.0
        %3191 = vmatpush1.msra.mxu0 0.0
        %3192 = vmatprep.subr.mxu0 0.0
        %3193 = vmatpush1.msra.mxu0 0.0
        %3194 = vmatprep.subr.mxu0 0.0
        %3195 = vmatpush1.msra.mxu0 0.0
        %3196 = vmatprep.subr.mxu0 0.0
        %3197 = vmatpush1.msra.mxu0 0.0
        %3198 = vmatprep.subr.mxu0 0.0
        %3199 = vmatpush1.msra.mxu0 0.0
        %3200 = vmatprep.subr.mxu0 0.0
        %3201 = vmatpush1.msra.mxu0 0.0
        %3202 = vmatprep.subr.mxu0 %v2658
        %3203 = vmatpush1.msra.mxu0 %v2657
        %3204 = vmatprep.subr.mxu0 %v2642
        %3205 = vmatpush1.msra.mxu0 %v2641
        %3206 = vmatprep.subr.mxu0 0.0
        %3207 = vmatpush2.msra.mxu0 0.0
        %3208 = vmatprep.subr.mxu0 0.0
        %3209 = vmatpush2.msra.mxu0 0.0
        %3210 = vmatprep.subr.mxu0 0.0
        %3211 = vmatpush2.msra.mxu0 0.0
        %3212 = vmatprep.subr.mxu0 0.0
        %3213 = vmatpush2.msra.mxu0 0.0
        %3214 = vmatprep.subr.mxu0 0.0
        %3215 = vmatpush2.msra.mxu0 0.0
        %3216 = vmatprep.subr.mxu0 0.0
        %3217 = vmatpush2.msra.mxu0 0.0
        %3218 = vmatprep.subr.mxu0 0.0
        %3219 = vmatpush2.msra.mxu0 0.0
        %3220 = vmatprep.subr.mxu0 0.0
        %3221 = vmatpush2.msra.mxu0 0.0
        %3222 = vmatprep.subr.mxu0 0.0
        %3223 = vmatpush2.msra.mxu0 0.0
        %3224 = vmatprep.subr.mxu0 0.0
        %3225 = vmatpush2.msra.mxu0 0.0
        %3226 = vmatprep.subr.mxu0 0.0
        %3227 = vmatpush2.msra.mxu0 0.0
        %3228 = vmatprep.subr.mxu0 0.0
        %3229 = vmatpush2.msra.mxu0 0.0
        %3230 = vmatprep.subr.mxu0 0.0
        %3231 = vmatpush2.msra.mxu0 0.0
        %3232 = vmatprep.subr.mxu0 0.0
        %3233 = vmatpush2.msra.mxu0 0.0
        %3234 = vmatprep.subr.mxu0 0.0
        %3235 = vmatpush2.msra.mxu0 0.0
        %3236 = vmatprep.subr.mxu0 0.0
        %3237 = vmatpush2.msra.mxu0 0.0
        %3238 = vmatprep.mubr.f32.mxu0 0.0
        %3239 = vmatmul.mubr.f32.gmra.mxu0 %v2746
        %v3240 = vpop.f32.mrf.mxu0
        %v3241 = vadd.f32 %v2716, %v3240
        %v3242 = vpop.f32.mrf.mxu0
        %v3243 = vadd.f32 %v2720, %v3242
        %3244 = vdwg.mxu0
        %3245 = vmatprep.subr.mxu0 0.0
        %3246 = vmatpush1.msra.mxu0 0.0
        %3247 = vmatprep.subr.mxu0 0.0
        %3248 = vmatpush1.msra.mxu0 0.0
        %3249 = vmatprep.subr.mxu0 0.0
        %3250 = vmatpush1.msra.mxu0 0.0
        %3251 = vmatprep.subr.mxu0 0.0
        %3252 = vmatpush1.msra.mxu0 0.0
        %3253 = vmatprep.subr.mxu0 0.0
        %3254 = vmatpush1.msra.mxu0 0.0
        %3255 = vmatprep.subr.mxu0 0.0
        %3256 = vmatpush1.msra.mxu0 0.0
        %3257 = vmatprep.subr.mxu0 0.0
        %3258 = vmatpush1.msra.mxu0 0.0
        %3259 = vmatprep.subr.mxu0 0.0
        %3260 = vmatpush1.msra.mxu0 0.0
        %3261 = vmatprep.subr.mxu0 0.0
        %3262 = vmatpush1.msra.mxu0 0.0
        %3263 = vmatprep.subr.mxu0 0.0
        %3264 = vmatpush1.msra.mxu0 0.0
        %3265 = vmatprep.subr.mxu0 0.0
        %3266 = vmatpush1.msra.mxu0 0.0
        %3267 = vmatprep.subr.mxu0 0.0
        %3268 = vmatpush1.msra.mxu0 0.0
        %3269 = vmatprep.subr.mxu0 0.0
        %3270 = vmatpush1.msra.mxu0 0.0
        %3271 = vmatprep.subr.mxu0 0.0
        %3272 = vmatpush1.msra.mxu0 0.0
        %3273 = vmatprep.subr.mxu0 %v2660
        %3274 = vmatpush1.msra.mxu0 %v2659
        %3275 = vmatprep.subr.mxu0 %v2644
        %3276 = vmatpush1.msra.mxu0 %v2643
        %3277 = vmatprep.subr.mxu0 0.0
        %3278 = vmatpush2.msra.mxu0 0.0
        %3279 = vmatprep.subr.mxu0 0.0
        %3280 = vmatpush2.msra.mxu0 0.0
        %3281 = vmatprep.subr.mxu0 0.0
        %3282 = vmatpush2.msra.mxu0 0.0
        %3283 = vmatprep.subr.mxu0 0.0
        %3284 = vmatpush2.msra.mxu0 0.0
        %3285 = vmatprep.subr.mxu0 0.0
        %3286 = vmatpush2.msra.mxu0 0.0
        %3287 = vmatprep.subr.mxu0 0.0
        %3288 = vmatpush2.msra.mxu0 0.0
        %3289 = vmatprep.subr.mxu0 0.0
        %3290 = vmatpush2.msra.mxu0 0.0
        %3291 = vmatprep.subr.mxu0 0.0
        %3292 = vmatpush2.msra.mxu0 0.0
        %3293 = vmatprep.subr.mxu0 0.0
        %3294 = vmatpush2.msra.mxu0 0.0
        %3295 = vmatprep.subr.mxu0 0.0
        %3296 = vmatpush2.msra.mxu0 0.0
        %3297 = vmatprep.subr.mxu0 0.0
        %3298 = vmatpush2.msra.mxu0 0.0
        %3299 = vmatprep.subr.mxu0 0.0
        %3300 = vmatpush2.msra.mxu0 0.0
        %3301 = vmatprep.subr.mxu0 0.0
        %3302 = vmatpush2.msra.mxu0 0.0
        %3303 = vmatprep.subr.mxu0 0.0
        %3304 = vmatpush2.msra.mxu0 0.0
        %3305 = vmatprep.subr.mxu0 0.0
        %3306 = vmatpush2.msra.mxu0 0.0
        %3307 = vmatprep.subr.mxu0 0.0
        %3308 = vmatpush2.msra.mxu0 0.0
        %3309 = vmatprep.mubr.f32.mxu0 0.0
        %3310 = vmatmul.mubr.f32.gmra.mxu0 %v2746
        %v3311 = vpop.f32.mrf.mxu0
        %v3312 = vadd.f32 %v2724, %v3311
        %v3313 = vpop.f32.mrf.mxu0
        %v3314 = vadd.f32 %v2728, %v3313
        %3315 = vdwg.mxu0
        %v3332 = vcombine.low %v2815, %v2817
        %v3333 = vcombine.low %v2886, %v2888
        %v3334 = vcombine.low %v2957, %v2959
        %v3335 = vcombine.low %v3028, %v3030
        %v3337 = vunpack.c.l.s4 1966171168
        %v3338 = vunpack.c.0.s8 %v3337
        %v3339 = vlaneseq
        %v3340 = vshrl.u32 %v3339, 7
        %v3341 = vsub.s32 %v3338, %v3340
        %v3342 = vrot.slane %v3332, %v3341
        %v3344 = vunpack.c.l.s4 1966171168
        %v3345 = vunpack.c.0.s8 %v3344
        %v3346 = vlaneseq
        %v3347 = vshrl.u32 %v3346, 7
        %v3348 = vsub.s32 %v3345, %v3347
        %v3349 = vrot.slane %v3333, %v3348
        %v3351 = vunpack.c.l.s4 1966171168
        %v3352 = vunpack.c.0.s8 %v3351
        %v3353 = vlaneseq
        %v3354 = vshrl.u32 %v3353, 7
        %v3355 = vsub.s32 %v3352, %v3354
        %v3356 = vrot.slane %v3334, %v3355
        %v3358 = vunpack.c.l.s4 1966171168
        %v3359 = vunpack.c.0.s8 %v3358
        %v3360 = vlaneseq
        %v3361 = vshrl.u32 %v3360, 7
        %v3362 = vsub.s32 %v3359, %v3361
        %v3363 = vrot.slane %v3335, %v3362
        %v3364 = vcombine.low %v3342, %v3349
        %v3365 = vcombine.low %v3356, %v3363
        %v3367 = vunpack.c.l.s4 1966171168
        %v3368 = vunpack.c.0.s8 %v3367
        %v3369 = vlaneseq
        %v3370 = vshrl.u32 %v3369, 7
        %v3371 = vsub.s32 %v3368, %v3370
        %v3372 = vrot.slane %v3364, %v3371
        %v3374 = vunpack.c.l.s4 1966171168
        %v3375 = vunpack.c.0.s8 %v3374
        %v3376 = vlaneseq
        %v3377 = vshrl.u32 %v3376, 7
        %v3378 = vsub.s32 %v3375, %v3377
        %v3379 = vrot.slane %v3365, %v3378
        %v3380 = vcombine.low %v3372, %v3379
        %v3381 = vcombine.low %v3099, %v3101
        %v3382 = vcombine.low %v3170, %v3172
        %v3383 = vcombine.low %v3241, %v3243
        %v3384 = vcombine.low %v3312, %v3314
        %v3386 = vunpack.c.l.s4 1966171168
        %v3387 = vunpack.c.0.s8 %v3386
        %v3388 = vlaneseq
        %v3389 = vshrl.u32 %v3388, 7
        %v3390 = vsub.s32 %v3387, %v3389
        %v3391 = vrot.slane %v3381, %v3390
        %v3393 = vunpack.c.l.s4 1966171168
        %v3394 = vunpack.c.0.s8 %v3393
        %v3395 = vlaneseq
        %v3396 = vshrl.u32 %v3395, 7
        %v3397 = vsub.s32 %v3394, %v3396
        %v3398 = vrot.slane %v3382, %v3397
        %v3400 = vunpack.c.l.s4 1966171168
        %v3401 = vunpack.c.0.s8 %v3400
        %v3402 = vlaneseq
        %v3403 = vshrl.u32 %v3402, 7
        %v3404 = vsub.s32 %v3401, %v3403
        %v3405 = vrot.slane %v3383, %v3404
        %v3407 = vunpack.c.l.s4 1966171168
        %v3408 = vunpack.c.0.s8 %v3407
        %v3409 = vlaneseq
        %v3410 = vshrl.u32 %v3409, 7
        %v3411 = vsub.s32 %v3408, %v3410
        %v3412 = vrot.slane %v3384, %v3411
        %v3413 = vcombine.low %v3391, %v3398
        %v3414 = vcombine.low %v3405, %v3412
        %v3416 = vunpack.c.l.s4 1966171168
        %v3417 = vunpack.c.0.s8 %v3416
        %v3418 = vlaneseq
        %v3419 = vshrl.u32 %v3418, 7
        %v3420 = vsub.s32 %v3417, %v3419
        %v3421 = vrot.slane %v3413, %v3420
        %v3423 = vunpack.c.l.s4 1966171168
        %v3424 = vunpack.c.0.s8 %v3423
        %v3425 = vlaneseq
        %v3426 = vshrl.u32 %v3425, 7
        %v3427 = vsub.s32 %v3424, %v3426
        %v3428 = vrot.slane %v3414, %v3427
        %v3429 = vcombine.low %v3421, %v3428
        %3432 = vst [vmem:[%s741] sm:$0xff] %v3380
        %3433 = vst [vmem:[%s741 + $0x8] sm:$0xff] %v3429
        %s3434 = sand.u32 %s497, 1
        %s3435 = scalar_lea.sflag [#allocation3], %s3434
        %s3436 = sand.u32 %s497, 1
        %s3437 = scalar_lea.vmem [#allocation2], %s3436
        %p3438 = scmp.lt.s32.totalorder %s38, 1
        %s3439 = scalar_select %p3438, %s38, 1
        %s3440 = smul.addr %s3439, 8
        %s3441 = smul.addr %s3440, 8
        %s3442 = scalar_lea.vmem %s22, %s3441
        %p3443 = scmp.lt.s32.totalorder %s38, 1
        %s3444 = scalar_select %p3443, %s38, 1
        %s3445 = smul.addr %s3444, 16
        %s3446 = scalar_lea.vmem %s23, %s3445
        // Predicated region
        $region105: #{fmgen_forward.4} parent=103 // pred_check
          %p3447 = pneg %p507
        $region106: #{fmgen_forward.4} parent=103 // pred_check_branch
          %3449 = sbr.rel (%p3447) target = $region108
        $region107: #{fmgen_forward.4} parent=103 // pred_region
          %s3451 = ssub.s32 16, 16
          %3452 = vsyncadd %s3435, %s3451
          %s3453 = smul.addr %s38, 16
          %s3454 = scalar_lea.hbm %s21, %s3453
          %s3456 = sshll.u32 %s3437, 4
          %s3457 = int_to_ptr.vmem [resolvable:$true] %s3456
          %3459 = dma.vmem_to_hbm [thread:$0]  %s3457, 16, %s3454, %s3435
        $region108: #{fmgen_forward.4} parent=103 // pred_fallthru
          _
        // Predicated region
        $region109: #{fmgen_forward.4} parent=103 // pred_check
          %p3460 = pneg %p533
        $region110: #{fmgen_forward.4} parent=103 // pred_check_branch
          %3462 = sbr.rel (%p3460) target = $region112
        $region111: #{fmgen_forward.4} parent=103 // pred_region
          _
        $region112: #{fmgen_forward.4} parent=103 // pred_fallthru
          _
        // Predicated region
        $region113: #{fmgen_forward.4} parent=103 // pred_check
          %p3463 = pneg %p559
        $region114: #{fmgen_forward.4} parent=103 // pred_check_branch
          %3465 = sbr.rel (%p3463) target = $region116
        $region115: #{fmgen_forward.4} parent=103 // pred_region
          _
        $region116: #{fmgen_forward.4} parent=103 // pred_fallthru
          _
      $region104: #{fmgen_forward.4} parent=5 // pred_fallthru
        _
      %p3466 = scmp.le.s32.totalorder 2, %s33
      // Predicated region
      $region117: #{fmgen_forward.4} parent=5 // pred_check
        %p3467 = pneg %p3466
      $region118: #{fmgen_forward.4} parent=5 // pred_check_branch
        %3469 = sbr.rel (%p3467) target = $region120
      $region119: #{fmgen_forward.4} parent=5 // pred_region
        %s3470 = ssub.s32 %s33, 2
        // Predicated region
        $region121: #{fmgen_forward.4} parent=119 // pred_check
          %p3471 = pneg %p513
        $region122: #{fmgen_forward.4} parent=119 // pred_check_branch
          %3473 = sbr.rel (%p3471) target = $region124
        $region123: #{fmgen_forward.4} parent=119 // pred_region
          %s3474 = sand.u32 %s498, 1
          %s3475 = scalar_lea.sflag [#allocation3], %s3474
          %s3476 = sand.u32 %s498, 1
          %s3477 = scalar_lea.vmem [#allocation2], %s3476
          %3478 = dma.done %s3475, 16
        $region124: #{fmgen_forward.4} parent=119 // pred_fallthru
          _
        // Predicated region
        $region125: #{fmgen_forward.4} parent=119 // pred_check
          %p3479 = pneg %p539
        $region126: #{fmgen_forward.4} parent=119 // pred_check_branch
          %3481 = sbr.rel (%p3479) target = $region128
        $region127: #{fmgen_forward.4} parent=119 // pred_region
          %p3482 = scmp.lt.s32.totalorder %s39, 1
          %s3483 = scalar_select %p3482, %s39, 1
          %s3484 = smul.addr %s3483, 8
          %s3485 = smul.addr %s3484, 8
          %s3486 = scalar_lea.vmem %s22, %s3485
        $region128: #{fmgen_forward.4} parent=119 // pred_fallthru
          _
        // Predicated region
        $region129: #{fmgen_forward.4} parent=119 // pred_check
          %p3487 = pneg %p565
        $region130: #{fmgen_forward.4} parent=119 // pred_check_branch
          %3489 = sbr.rel (%p3487) target = $region132
        $region131: #{fmgen_forward.4} parent=119 // pred_region
          %p3490 = scmp.lt.s32.totalorder %s39, 1
          %s3491 = scalar_select %p3490, %s39, 1
          %s3492 = smul.addr %s3491, 16
          %s3493 = scalar_lea.vmem %s23, %s3492
        $region132: #{fmgen_forward.4} parent=119 // pred_fallthru
          _
      $region120: #{fmgen_forward.4} parent=5 // pred_fallthru
        _
    $region6: #{fmgen_forward.4} parent=1 // loop_footer
      %s37 = sadd.s32 1, %s33
    $region7: #{fmgen_forward.4} parent=1 // loop_footer_branch
      %32 = sbr.rel target = $region3
    $region8: #{fmgen_forward.4} parent=1 // loop_exit
      _
    %3494 = vsyncpa [#allocation3], 1
    %s3495 = scalar_lea.sflag [#allocation3], 1
    %3496 = vsyncpa %s3495, 1

</llo_original>
